<compile_context>
chip_gen: v7x
topology: tpu7x:2x2x1
jax: 0.10.0
libtpu: 0.0.40
codegen_flags: <defaults>
</compile_context>

<pallas_src>
import jax
import jax.numpy as jnp
from jax.experimental import pallas as pl
from jax.experimental.pallas import tpu as pltpu

_LANES = 128
_TB = 32 * _LANES          # 4096 batch elements per grid step (lane-major)


def biasmf_kernel(u_idx_ref, i_idx_ref,     # (1, TB) int32 batch indices
                  u_tab_ref, i_tab_ref,     # (2*k_pad, U_pad/I_pad) bf16 [hi; lo] tables
                  out_ref):                 # (1, TB) f32 ratings
    tb = out_ref.shape[-1]
    u_ids = u_idx_ref[...]                  # (1, TB)
    i_ids = i_idx_ref[...]
    u_tab = u_tab_ref[...]                  # (2*k_pad, U_pad)  rows 0..k_pad-1 = hi, rest = lo
    i_tab = i_tab_ref[...]                  # (2*k_pad, I_pad)
    k_pad = u_tab.shape[0] // 2
    u_pad = u_tab.shape[1]
    i_pad = i_tab.shape[1]

    # Fused one-hot selectors for the whole 4096-element batch tile.
    # (bool -> f32 -> bf16: bf16 one-hot is exact and halves MXU operand traffic.)
    u_iota = jax.lax.broadcasted_iota(jnp.int32, (u_pad, tb), 0)
    i_iota = jax.lax.broadcasted_iota(jnp.int32, (i_pad, tb), 0)
    u_oh = (u_iota == u_ids).astype(jnp.float32).astype(jnp.bfloat16)   # (U_pad, TB)
    i_oh = (i_iota == i_ids).astype(jnp.float32).astype(jnp.bfloat16)   # (I_pad, TB)

    # One MXU matmul per table gathers the hi and lo halves simultaneously
    # (f32 accumulation; exactly one nonzero per one-hot column).
    u_g = jnp.dot(u_tab, u_oh, preferred_element_type=jnp.float32)      # (2*k_pad, TB)
    i_g = jnp.dot(i_tab, i_oh, preferred_element_type=jnp.float32)
    u_rows = u_g[:k_pad, :] + u_g[k_pad:, :]     # (k_pad, TB)  ~exact f32 gathered rows
    i_rows = i_g[:k_pad, :] + i_g[k_pad:, :]

    # Dot product over the augmented feature axis (includes u_bias, i_bias, mu),
    # then one lane-dense full-tile store.
    rating = jnp.sum(u_rows * i_rows, axis=0, keepdims=True)            # (1, TB)
    out_ref[...] = rating.astype(out_ref.dtype)


def _round_up(x, m):
    return (x + m - 1) // m * m


def _hi_lo_table(aug, n, n_pad, k_aug, k_pad):
    """(n, k_aug) f32 augmented table -> (2*k_pad, n_pad) bf16 [hi; lo] stack."""
    aug = jnp.pad(aug, ((0, n_pad - n), (0, k_pad - k_aug)))   # zero rows/cols: no-op in dot
    t = aug.T                                                  # (k_pad, n_pad) f32
    hi = t.astype(jnp.bfloat16)
    lo = (t - hi.astype(jnp.float32)).astype(jnp.bfloat16)     # exact residual, then bf16
    return jnp.concatenate([hi, lo], axis=0)                   # (2*k_pad, n_pad) bf16


def biasmf_forward(user_indices, item_indices, params):
    u_emb = params["U_embedding"].astype(jnp.float32)   # (user_num, k)
    i_emb = params["I_embedding"].astype(jnp.float32)   # (item_num, k)
    u_bias = params["u_bias"].astype(jnp.float32).reshape(-1, 1)
    i_bias = params["i_bias"].astype(jnp.float32).reshape(-1, 1)
    mu = params["mu"].astype(jnp.float32).reshape(1, 1)

    user_num, k = u_emb.shape
    item_num = i_emb.shape[0]

    # Augmented tables: U_aug = [U | u_bias | 1], I_aug = [I | 1 | i_bias + mu]
    #   => U_aug[u] . I_aug[i] = <U[u], I[i]> + u_bias[u] + i_bias[i] + mu
    k_aug = k + 2
    k_pad = _round_up(k_aug, 8)
    u_pad_n = _round_up(user_num, _LANES)
    i_pad_n = _round_up(item_num, _LANES)
    ones_u = jnp.ones((user_num, 1), jnp.float32)
    ones_i = jnp.ones((item_num, 1), jnp.float32)
    u_tab = _hi_lo_table(jnp.concatenate([u_emb, u_bias, ones_u], axis=1),
                         user_num, u_pad_n, k_aug, k_pad)
    i_tab = _hi_lo_table(jnp.concatenate([i_emb, ones_i, i_bias + mu], axis=1),
                         item_num, i_pad_n, k_aug, k_pad)

    # Batch laid out as a single lane-major (1, b_pad) row; 4096 elements per
    # grid step; step count rounded up to even for a balanced v7x 2-core split.
    B = user_indices.shape[0]
    n_steps = pl.cdiv(B, _TB)
    n_steps += n_steps % 2
    b_pad = n_steps * _TB

    def pad_idx(idx):
        idx = idx.astype(jnp.int32).reshape(-1)
        # Pad with index 0 (always a valid row); padded outputs are sliced off.
        # Note: out-of-range indices silently yield a 0 rating (all-zero one-hot).
        return jnp.pad(idx, (0, b_pad - B)).reshape(1, b_pad)

    u_idx2 = pad_idx(user_indices)
    i_idx2 = pad_idx(item_indices)

    out = pl.pallas_call(
        biasmf_kernel,
        out_shape=jax.ShapeDtypeStruct((1, b_pad), jnp.float32),
        grid=(n_steps,),
        in_specs=[
            pl.BlockSpec((1, _TB), lambda b: (0, b)),            # user idx tile
            pl.BlockSpec((1, _TB), lambda b: (0, b)),            # item idx tile
            # Resident tables: constant index_map -> fetched once, reused.
            # TODO(synk): pipeline_mode=pl.Buffered(1) / DMA-gather once the
            # tables approach the v7x 64 MiB/TC VMEM budget.
            pl.BlockSpec((2 * k_pad, u_pad_n), lambda b: (0, 0)),
            pl.BlockSpec((2 * k_pad, i_pad_n), lambda b: (0, 0)),
        ],
        out_specs=pl.BlockSpec((1, _TB), lambda b: (0, b)),
        compiler_params=pltpu.CompilerParams(
            dimension_semantics=("parallel",),                   # megacore on v7x
            vmem_limit_bytes=48 * 1024 * 1024),
    )(u_idx2, i_idx2, u_tab, i_tab)

    return out.reshape(-1)[:B]                                   # (B,)


def init_params(key, user_num, item_num, k):
    k1, k2, k3, k4, k5 = jax.random.split(key, 5)
    # torch defaults: Embedding ~ N(0,1); biases/mu are 0-init in the module —
    # use small random values here so the bias path is numerically exercised.
    return {
        "U_embedding": jax.random.normal(k1, (user_num, k), jnp.float32),
        "I_embedding": jax.random.normal(k2, (item_num, k), jnp.float32),
        "u_bias": 0.1 * jax.random.normal(k3, (user_num, 1), jnp.float32),
        "i_bias": 0.1 * jax.random.normal(k4, (item_num, 1), jnp.float32),
        "mu": 0.05 * jax.random.normal(k5, (1,), jnp.float32),
    }


def biasmf_reference(user_indices, item_indices, params):
    U = params["U_embedding"][user_indices]              # (B, k)
    I = params["I_embedding"][item_indices]              # (B, k)
    inner = jnp.sum(U * I, axis=1)                       # (B,)
    bias = (params["mu"].reshape(())
            + params["u_bias"][user_indices].reshape(-1)
            + params["i_bias"][item_indices].reshape(-1))
    return inner + bias


if __name__ == "__main__":
    user_num, item_num, k, B = 100, 200, 32, 2500

    key = jax.random.PRNGKey(0)
    pkey, ukey, ikey = jax.random.split(key, 3)
    params = init_params(pkey, user_num, item_num, k)

    user_indices = jax.random.randint(ukey, (B,), 0, user_num, dtype=jnp.int32)
    item_indices = jax.random.randint(ikey, (B,), 0, item_num, dtype=jnp.int32)

    fwd = jax.jit(biasmf_forward)
    out = jax.block_until_ready(fwd(user_indices, item_indices, params))

    ref = biasmf_reference(user_indices, item_indices, params)
    assert out.shape == (B,)
    max_err = float(jnp.max(jnp.abs(out - ref)))
    assert jnp.allclose(out, ref, atol=1e-3, rtol=1e-3), max_err

    print("KERNEL_OK")
</pallas_src>

<mosaic_0001>
module attributes {stable_mosaic.version = 11 : i64} {
  func.func @biasmf_kernel(%arg0: i32, %arg1: memref<1x4096xi32, #tpu.memory_space<vmem>>, %arg2: memref<1x4096xi32, #tpu.memory_space<vmem>>, %arg3: memref<80x128xbf16, #tpu.memory_space<vmem>>, %arg4: memref<80x256xbf16, #tpu.memory_space<vmem>>, %arg5: memref<1x4096xf32, #tpu.memory_space<vmem>>) attributes {dimension_semantics = [#tpu.dimension_semantics<parallel>], iteration_bounds = array<i64: 2>, scalar_prefetch = 0 : i64, scratch_operands = 0 : i64, tpu.core_type = #tpu.core_type<tc>, window_params = [{transform_indices = @transform_0, window_bounds = array<i64: 1, 4096>}, {transform_indices = @transform_1, window_bounds = array<i64: 1, 4096>}, {pipeline_mode = #tpu.pipeline_mode<synchronous>, transform_indices = @transform_2, window_bounds = array<i64: 80, 128>}, {pipeline_mode = #tpu.pipeline_mode<synchronous>, transform_indices = @transform_3, window_bounds = array<i64: 80, 256>}, {transform_indices = @transform_4, window_bounds = array<i64: 1, 4096>}]} {
    %c0 = arith.constant 0 : index
    %c0_0 = arith.constant 0 : index
    %0 = vector.load %arg1[%c0, %c0_0] : memref<1x4096xi32, #tpu.memory_space<vmem>>, vector<1x4096xi32>
    %c0_1 = arith.constant 0 : index
    %c0_2 = arith.constant 0 : index
    %1 = vector.load %arg2[%c0_1, %c0_2] : memref<1x4096xi32, #tpu.memory_space<vmem>>, vector<1x4096xi32>
    %c0_3 = arith.constant 0 : index
    %c0_4 = arith.constant 0 : index
    %2 = vector.load %arg3[%c0_3, %c0_4] : memref<80x128xbf16, #tpu.memory_space<vmem>>, vector<80x128xbf16>
    %c0_5 = arith.constant 0 : index
    %c0_6 = arith.constant 0 : index
    %3 = vector.load %arg4[%c0_5, %c0_6] : memref<80x256xbf16, #tpu.memory_space<vmem>>, vector<80x256xbf16>
    %4 = tpu.iota {dimensions = array<i32: 0>} : vector<128x4096xi32>
    %5 = tpu.iota {dimensions = array<i32: 0>} : vector<256x4096xi32>
    %6 = vector.broadcast %0 : vector<1x4096xi32> to vector<128x4096xi32>
    %7 = arith.cmpi eq, %4, %6 : vector<128x4096xi32>
    %8 = arith.extui %7 : vector<128x4096xi1> to vector<128x4096xi32>
    %9 = arith.sitofp %8 : vector<128x4096xi32> to vector<128x4096xf32>
    %10 = arith.truncf %9 : vector<128x4096xf32> to vector<128x4096xbf16>
    %11 = vector.broadcast %1 : vector<1x4096xi32> to vector<256x4096xi32>
    %12 = arith.cmpi eq, %5, %11 : vector<256x4096xi32>
    %13 = arith.extui %12 : vector<256x4096xi1> to vector<256x4096xi32>
    %14 = arith.sitofp %13 : vector<256x4096xi32> to vector<256x4096xf32>
    %15 = arith.truncf %14 : vector<256x4096xf32> to vector<256x4096xbf16>
    %cst = arith.constant dense<0.000000e+00> : vector<80x4096xf32>
    %16 = tpu.matmul %2, %10, %cst {dimension_numbers = #tpu.dot_dimension_numbers<[1], [0], [0], [1], [0, 0, 1, 1], [], []>} : vector<80x128xbf16>, vector<128x4096xbf16>, vector<80x4096xf32> -> vector<80x4096xf32>
    %cst_7 = arith.constant dense<0.000000e+00> : vector<80x4096xf32>
    %17 = tpu.matmul %3, %15, %cst_7 {dimension_numbers = #tpu.dot_dimension_numbers<[1], [0], [0], [1], [0, 0, 1, 1], [], []>} : vector<80x256xbf16>, vector<256x4096xbf16>, vector<80x4096xf32> -> vector<80x4096xf32>
    %18 = vector.extract_strided_slice %16 {offsets = [0, 0], sizes = [40, 4096], strides = [1, 1]} : vector<80x4096xf32> to vector<40x4096xf32>
    %19 = vector.extract_strided_slice %16 {offsets = [40, 0], sizes = [40, 4096], strides = [1, 1]} : vector<80x4096xf32> to vector<40x4096xf32>
    %20 = arith.addf %18, %19 : vector<40x4096xf32>
    %21 = vector.extract_strided_slice %17 {offsets = [0, 0], sizes = [40, 4096], strides = [1, 1]} : vector<80x4096xf32> to vector<40x4096xf32>
    %22 = vector.extract_strided_slice %17 {offsets = [40, 0], sizes = [40, 4096], strides = [1, 1]} : vector<80x4096xf32> to vector<40x4096xf32>
    %23 = arith.addf %21, %22 : vector<40x4096xf32>
    %24 = arith.mulf %20, %23 : vector<40x4096xf32>
    %cst_8 = arith.constant dense<0.000000e+00> : vector<4096xf32>
    %25 = vector.multi_reduction <add>, %24, %cst_8 [0] : vector<40x4096xf32> to vector<4096xf32>
    %26 = vector.shape_cast %25 : vector<4096xf32> to vector<1x4096xf32>
    %c0_9 = arith.constant 0 : index
    %c0_10 = arith.constant 0 : index
    %27 = vector.load %arg5[%c0_9, %c0_10] : memref<1x4096xf32, #tpu.memory_space<vmem>>, vector<1x4096xf32>
    tpu.vector_store %arg5[%c0_9, %c0_10], %26 {strides = array<i32>} : memref<1x4096xf32, #tpu.memory_space<vmem>>, vector<1x4096xf32>,
    return
  }
  func.func @transform_0(%arg0: i32) -> (i32, i32) {
    %c0_i32 = arith.constant 0 : i32
    %c0_i32_0 = arith.constant 0 : i32
    return %c0_i32, %arg0 : i32, i32
  }
  func.func @transform_1(%arg0: i32) -> (i32, i32) {
    %c0_i32 = arith.constant 0 : i32
    %c0_i32_0 = arith.constant 0 : i32
    return %c0_i32, %arg0 : i32, i32
  }
  func.func @transform_2(%arg0: i32) -> (i32, i32) {
    %c0_i32 = arith.constant 0 : i32
    %c0_i32_0 = arith.constant 0 : i32
    %c0_i32_1 = arith.constant 0 : i32
    return %c0_i32, %c0_i32_0 : i32, i32
  }
  func.func @transform_3(%arg0: i32) -> (i32, i32) {
    %c0_i32 = arith.constant 0 : i32
    %c0_i32_0 = arith.constant 0 : i32
    %c0_i32_1 = arith.constant 0 : i32
    return %c0_i32, %c0_i32_0 : i32, i32
  }
  func.func @transform_4(%arg0: i32) -> (i32, i32) {
    %c0_i32 = arith.constant 0 : i32
    %c0_i32_0 = arith.constant 0 : i32
    return %c0_i32, %arg0 : i32, i32
  }
}

</mosaic_0001>

<llo_original>
// kernel: biasmf_forward.1
$region0: #{biasmf_forward.1}
  #allocation0 [shape = 'u32[]', space=smem, size = 0x4, offset = 0x4, fixed_abs, tag = 'smem constant byte address 0x4 - core index']
  #allocation1 [shape = 'u32[144,128]{1,0:T(1,128)}', space=vmem, size = 0x12000, scoped, tag = 'internal scratch']
  %s0 = inlined_call_operand.vmem [shape: s32[1,8192], index: 0, kind: input, shape index: {}]
  %s1 = inlined_call_operand.vmem [shape: s32[1,8192], index: 1, kind: input, shape index: {}]
  %s2 = inlined_call_operand.vmem [shape: bf16[80,128], index: 2, kind: input, shape index: {}]
  %s3 = inlined_call_operand.vmem [shape: bf16[80,256], index: 3, kind: input, shape index: {}]
  %s4 = inlined_call_operand.vmem [shape: f32[1,8192], index: 4, kind: output, shape index: {}]
  %s5 = sld [smem:[#allocation0]]
  $region49: #{biasmf_forward.1} parent=0
    _
  %s7 = ssub.s32 1, %s5
  %s8 = scalar_select 0, %s7, %s5
  loop: start=0, step=1, limit=4
  $region2: #{biasmf_forward.1} parent=0 // loop_pre_header
    _
  $region3: #{biasmf_forward.1} parent=0 // loop_header
    %s10 = sphi 0, %s14
    %p11 = scmp.ge.s32.totalorder %s10, 4
    %s20 = sphi 0, %s22
    %s23 = sphi 0, %s20
    %s24 = sphi 0, %s23
    %s40 = sphi 0, %s24
    %s46 = sphi 0, %s48
    %s49 = sphi 0, %s46
    %s50 = sphi 0, %s49
    %s66 = sphi 0, %s50
    %s70 = sphi 0, %s70
    %s72 = sphi 0, %s70
    %s73 = sphi 0, %s72
    %s87 = sphi 0, %s73
    %s91 = sphi 0, %s91
    %s93 = sphi 0, %s91
    %s94 = sphi 0, %s93
    %s108 = sphi 0, %s94
    %s114 = sphi 0, %s116
    %s117 = sphi 0, %s114
    %s118 = sphi 0, %s117
    %s134 = sphi 0, %s118
  $region4: #{biasmf_forward.1} parent=0 // loop_header_branch
    %13 = sbr.rel (%p11) target = $region8
  $region5: #{biasmf_forward.1} parent=0 // loop_body
    %s15 = ssub.s32 %s10, 1
    %s16 = ssub.s32 %s10, 2
    %s17 = sadd.s32 %s10, 1
    %s18 = ssub.s32 %s10, %s17
    %p19 = scmp.eq.s32.totalorder %s18, 0
    %s21 = sadd.s32 %s20, 1
    %s22 = scalar_select %p19, %s20, %s21
    %p25 = pneg %p19
    %p26 = scmp.eq.s32.totalorder %s10, 1
    %p27 = por %p25, %p26
    %p28 = scmp.ne.s32.totalorder %s20, %s23
    %p29 = scmp.eq.s32.totalorder %s10, 0
    %p30 = por %p28, %p29
    %p31 = scmp.ne.s32.totalorder %s20, %s23
    %p32 = scmp.eq.s32.totalorder %s15, 1
    %p33 = por %p31, %p32
    %p34 = scmp.ne.s32.totalorder %s23, %s24
    %p35 = scmp.eq.s32.totalorder %s15, 0
    %p36 = por %p34, %p35
    %p37 = scmp.ne.s32.totalorder %s23, %s24
    %p38 = scmp.eq.s32.totalorder %s16, 1
    %p39 = por %p37, %p38
    %p41 = scmp.ne.s32.totalorder %s24, %s40
    %p42 = scmp.eq.s32.totalorder %s16, 0
    %p43 = por %p41, %p42
    %s44 = ssub.s32 %s10, %s17
    %p45 = scmp.eq.s32.totalorder %s44, 0
    %s47 = sadd.s32 %s46, 1
    %s48 = scalar_select %p45, %s46, %s47
    %p51 = pneg %p45
    %p52 = scmp.eq.s32.totalorder %s10, 1
    %p53 = por %p51, %p52
    %p54 = scmp.ne.s32.totalorder %s46, %s49
    %p55 = scmp.eq.s32.totalorder %s10, 0
    %p56 = por %p54, %p55
    %p57 = scmp.ne.s32.totalorder %s46, %s49
    %p58 = scmp.eq.s32.totalorder %s15, 1
    %p59 = por %p57, %p58
    %p60 = scmp.ne.s32.totalorder %s49, %s50
    %p61 = scmp.eq.s32.totalorder %s15, 0
    %p62 = por %p60, %p61
    %p63 = scmp.ne.s32.totalorder %s49, %s50
    %p64 = scmp.eq.s32.totalorder %s16, 1
    %p65 = por %p63, %p64
    %p67 = scmp.ne.s32.totalorder %s50, %s66
    %p68 = scmp.eq.s32.totalorder %s16, 0
    %p69 = por %p67, %p68
    %s71 = sadd.s32 %s70, 1
    %p74 = scmp.eq.s32.totalorder %s10, 1
    %p75 = scmp.ne.s32.totalorder %s70, %s72
    %p76 = scmp.eq.s32.totalorder %s10, 0
    %p77 = por %p75, %p76
    %p78 = scmp.ne.s32.totalorder %s70, %s72
    %p79 = scmp.eq.s32.totalorder %s15, 1
    %p80 = por %p78, %p79
    %p81 = scmp.ne.s32.totalorder %s72, %s73
    %p82 = scmp.eq.s32.totalorder %s15, 0
    %p83 = por %p81, %p82
    %p84 = scmp.ne.s32.totalorder %s72, %s73
    %p85 = scmp.eq.s32.totalorder %s16, 1
    %p86 = por %p84, %p85
    %p88 = scmp.ne.s32.totalorder %s73, %s87
    %p89 = scmp.eq.s32.totalorder %s16, 0
    %p90 = por %p88, %p89
    %s92 = sadd.s32 %s91, 1
    %p95 = scmp.eq.s32.totalorder %s10, 1
    %p96 = scmp.ne.s32.totalorder %s91, %s93
    %p97 = scmp.eq.s32.totalorder %s10, 0
    %p98 = por %p96, %p97
    %p99 = scmp.ne.s32.totalorder %s91, %s93
    %p100 = scmp.eq.s32.totalorder %s15, 1
    %p101 = por %p99, %p100
    %p102 = scmp.ne.s32.totalorder %s93, %s94
    %p103 = scmp.eq.s32.totalorder %s15, 0
    %p104 = por %p102, %p103
    %p105 = scmp.ne.s32.totalorder %s93, %s94
    %p106 = scmp.eq.s32.totalorder %s16, 1
    %p107 = por %p105, %p106
    %p109 = scmp.ne.s32.totalorder %s94, %s108
    %p110 = scmp.eq.s32.totalorder %s16, 0
    %p111 = por %p109, %p110
    %s112 = ssub.s32 %s10, %s17
    %p113 = scmp.eq.s32.totalorder %s112, 0
    %s115 = sadd.s32 %s114, 1
    %s116 = scalar_select %p113, %s114, %s115
    %p119 = pneg %p113
    %p120 = scmp.eq.s32.totalorder %s10, 1
    %p121 = por %p119, %p120
    %p122 = scmp.ne.s32.totalorder %s114, %s117
    %p123 = scmp.eq.s32.totalorder %s10, 0
    %p124 = por %p122, %p123
    %p125 = scmp.ne.s32.totalorder %s114, %s117
    %p126 = scmp.eq.s32.totalorder %s15, 1
    %p127 = por %p125, %p126
    %p128 = scmp.ne.s32.totalorder %s117, %s118
    %p129 = scmp.eq.s32.totalorder %s15, 0
    %p130 = por %p128, %p129
    %p131 = scmp.ne.s32.totalorder %s117, %s118
    %p132 = scmp.eq.s32.totalorder %s16, 1
    %p133 = por %p131, %p132
    %p135 = scmp.ne.s32.totalorder %s118, %s134
    %p136 = scmp.eq.s32.totalorder %s16, 0
    %p137 = por %p135, %p136
    %p138 = scmp.le.s32.totalorder 1, %s10
    %p139 = scmp.lt.s32.totalorder %s10, 3
    %p140 = pnand %p138, %p139
    %p141 = pneg %p140
    // Predicated region
    $region9: #{biasmf_forward.1} parent=5 // pred_check
      _
    $region10: #{biasmf_forward.1} parent=5 // pred_check_branch
      %143 = sbr.rel (%p140) target = $region12
    $region11: #{biasmf_forward.1} parent=5 // pred_region
      %s144 = ssub.s32 %s10, 1
      // Predicated region
      $region13: #{biasmf_forward.1} parent=11 // pred_check
        %p145 = pneg %p83
      $region14: #{biasmf_forward.1} parent=11 // pred_check_branch
        %147 = sbr.rel (%p145) target = $region16
      $region15: #{biasmf_forward.1} parent=11 // pred_region
        _
      $region16: #{biasmf_forward.1} parent=11 // pred_fallthru
        _
      // Predicated region
      $region17: #{biasmf_forward.1} parent=11 // pred_check
        %p148 = pneg %p104
      $region18: #{biasmf_forward.1} parent=11 // pred_check_branch
        %150 = sbr.rel (%p148) target = $region20
      $region19: #{biasmf_forward.1} parent=11 // pred_region
        _
      $region20: #{biasmf_forward.1} parent=11 // pred_fallthru
        _
    $region12: #{biasmf_forward.1} parent=5 // pred_fallthru
      _
    %p151 = scmp.lt.s32.totalorder %s10, 2
    // Predicated region
    $region21: #{biasmf_forward.1} parent=5 // pred_check
      %p152 = pneg %p151
    $region22: #{biasmf_forward.1} parent=5 // pred_check_branch
      %154 = sbr.rel (%p152) target = $region24
    $region23: #{biasmf_forward.1} parent=5 // pred_region
      // Predicated region
      $region25: #{biasmf_forward.1} parent=23 // pred_check
        %p155 = pneg %p30
      $region26: #{biasmf_forward.1} parent=23 // pred_check_branch
        %157 = sbr.rel (%p155) target = $region28
      $region27: #{biasmf_forward.1} parent=23 // pred_region
        %s158 = smul.u32 32, %s10
        %p159 = scmp.lt.s32.totalorder %s158, 63
        %s160 = scalar_select %p159, %s158, 63
        %s161 = scalar_lea.vmem %s0, %s160
        %s162 = smul.u32 32, %s10
      $region28: #{biasmf_forward.1} parent=23 // pred_fallthru
        _
      // Predicated region
      $region29: #{biasmf_forward.1} parent=23 // pred_check
        %p163 = pneg %p56
      $region30: #{biasmf_forward.1} parent=23 // pred_check_branch
        %165 = sbr.rel (%p163) target = $region32
      $region31: #{biasmf_forward.1} parent=23 // pred_region
        %s166 = smul.u32 32, %s10
        %p167 = scmp.lt.s32.totalorder %s166, 63
        %s168 = scalar_select %p167, %s166, 63
        %s169 = scalar_lea.vmem %s1, %s168
        %s170 = smul.u32 32, %s10
      $region32: #{biasmf_forward.1} parent=23 // pred_fallthru
        _
    $region24: #{biasmf_forward.1} parent=5 // pred_fallthru
      _
    %p171 = scmp.le.s32.totalorder 1, %s10
    %p172 = scmp.lt.s32.totalorder %s10, 3
    %p173 = pnand %p171, %p172
    %p174 = pneg %p173
    // Predicated region
    $region33: #{biasmf_forward.1} parent=5 // pred_check
      _
    $region34: #{biasmf_forward.1} parent=5 // pred_check_branch
      %176 = sbr.rel (%p173) target = $region36
    $region35: #{biasmf_forward.1} parent=5 // pred_region
      %s177 = ssub.s32 %s10, 1
      %s178 = smul.u32 32, %s15
      %p179 = scmp.lt.s32.totalorder %s178, 63
      %s180 = scalar_select %p179, %s178, 63
      %s181 = scalar_lea.vmem %s0, %s180
      %p182 = pneg %p36
      %p183 = pneg %p33
      %s184 = smul.u32 32, %s15
      %p185 = scmp.lt.s32.totalorder %s184, 63
      %s186 = scalar_select %p185, %s184, 63
      %s187 = scalar_lea.vmem %s1, %s186
      %p188 = pneg %p62
      %p189 = pneg %p59
      %p190 = pneg %p83
      %p191 = pneg %p80
      %p192 = pneg %p104
      %p193 = pneg %p101
      %p194 = pneg %p130
      %p195 = pneg %p127
      %s196 = smul.u32 32, %s15
      %p197 = scmp.lt.s32.totalorder %s196, 63
      %s198 = scalar_select %p197, %s196, 63
      %s199 = scalar_lea.vmem %s4, %s198
      %s200 = smul.u32 32, %s15
      %p201 = scmp.lt.s32.totalorder %s200, 63
      %s202 = scalar_select %p201, %s200, 63
      %s203 = scalar_lea.vmem %s0, %s202
      %s204 = smul.u32 32, %s15
      %s205 = smul.u32 32, %s15
      %p206 = scmp.lt.s32.totalorder %s205, 63
      %s207 = scalar_select %p206, %s205, 63
      %s208 = scalar_lea.vmem %s1, %s207
      %s209 = smul.u32 32, %s15
      %s210 = smul.u32 32, %s15
      %p211 = scmp.lt.s32.totalorder %s210, 63
      %s212 = scalar_select %p211, %s210, 63
      %s213 = scalar_lea.vmem %s4, %s212
      %s214 = smul.u32 32, %s15
      %v216 = vld [vmem:[%s203] sm:$0xff]
      %v217 = vld [vmem:[%s203 + $0x8] sm:$0xff]
      %v218 = vld [vmem:[%s203 + $0x10] sm:$0xff]
      %v219 = vld [vmem:[%s203 + $0x18] sm:$0xff]
      %v220 = vld [vmem:[%s208] sm:$0xff]
      %v221 = vld [vmem:[%s208 + $0x8] sm:$0xff]
      %v222 = vld [vmem:[%s208 + $0x10] sm:$0xff]
      %v223 = vld [vmem:[%s208 + $0x18] sm:$0xff]
      %v224 = vld [vmem:[%s2] sm:$0xf]
      %v225 = vld [vmem:[%s2 + $0x4] sm:$0xf]
      %v226 = vld [vmem:[%s2 + $0x8] sm:$0xf]
      %v227 = vld [vmem:[%s2 + $0xc] sm:$0xf]
      %v228 = vld [vmem:[%s2 + $0x10] sm:$0xf]
      %v229 = vld [vmem:[%s2 + $0x14] sm:$0xf]
      %v230 = vld [vmem:[%s2 + $0x18] sm:$0xf]
      %v231 = vld [vmem:[%s2 + $0x1c] sm:$0xf]
      %v232 = vld [vmem:[%s2 + $0x20] sm:$0xf]
      %v233 = vld [vmem:[%s2 + $0x24] sm:$0xf]
      %v234 = vld [vmem:[%s3] sm:$0xff]
      %v235 = vld [vmem:[%s3 + $0x8] sm:$0xff]
      %v236 = vld [vmem:[%s3 + $0x10] sm:$0xff]
      %v237 = vld [vmem:[%s3 + $0x18] sm:$0xff]
      %v238 = vld [vmem:[%s3 + $0x20] sm:$0xff]
      %v239 = vld [vmem:[%s3 + $0x28] sm:$0xff]
      %v240 = vld [vmem:[%s3 + $0x30] sm:$0xff]
      %v241 = vld [vmem:[%s3 + $0x38] sm:$0xff]
      %v242 = vld [vmem:[%s3 + $0x40] sm:$0xff]
      %v243 = vld [vmem:[%s3 + $0x48] sm:$0xff]
      %v244 = vlaneseq
      %v245 = vshrl.u32 %v244, 7
      %v246 = vadd.s32 %v245, 8
      %v247 = vadd.s32 %v245, 16
      %v248 = vadd.s32 %v245, 24
      %v249 = vadd.s32 %v245, 32
      %v250 = vadd.s32 %v245, 40
      %v251 = vadd.s32 %v245, 48
      %v252 = vadd.s32 %v245, 56
      %v253 = vadd.s32 %v245, 64
      %v254 = vadd.s32 %v245, 72
      %v255 = vadd.s32 %v245, 80
      %v256 = vadd.s32 %v245, 88
      %v257 = vadd.s32 %v245, 96
      %v258 = vadd.s32 %v245, 104
      %v259 = vadd.s32 %v245, 112
      %v260 = vadd.s32 %v245, 120
      %v261 = vadd.s32 %v245, 128
      %v262 = vadd.s32 %v245, 136
      %v263 = vadd.s32 %v245, 144
      %v264 = vadd.s32 %v245, 152
      %v265 = vadd.s32 %v245, 160
      %v266 = vadd.s32 %v245, 168
      %v267 = vadd.s32 %v245, 176
      %v268 = vadd.s32 %v245, 184
      %v269 = vadd.s32 %v245, 192
      %v270 = vadd.s32 %v245, 200
      %v271 = vadd.s32 %v245, 208
      %v272 = vadd.s32 %v245, 216
      %v273 = vadd.s32 %v245, 224
      %v274 = vadd.s32 %v245, 232
      %v275 = vadd.s32 %v245, 240
      %v276 = vadd.s32 %v245, 248
      %v277 = vlaneseq
      %v278 = vshrl.u32 %v277, 7
      %v279 = vsub.s32 0, %v278
      %v280 = vrot.slane %v216, %v279
      %v281 = vlaneseq
      %v282 = vshrl.u32 %v281, 7
      %v283 = vsub.s32 1, %v282
      %v284 = vrot.slane %v216, %v283
      %v285 = vlaneseq
      %v286 = vshrl.u32 %v285, 7
      %v287 = vsub.s32 2, %v286
      %v288 = vrot.slane %v216, %v287
      %v289 = vlaneseq
      %v290 = vshrl.u32 %v289, 7
      %v291 = vsub.s32 3, %v290
      %v292 = vrot.slane %v216, %v291
      %v293 = vlaneseq
      %v294 = vshrl.u32 %v293, 7
      %v295 = vsub.s32 4, %v294
      %v296 = vrot.slane %v216, %v295
      %v297 = vlaneseq
      %v298 = vshrl.u32 %v297, 7
      %v299 = vsub.s32 5, %v298
      %v300 = vrot.slane %v216, %v299
      %v301 = vlaneseq
      %v302 = vshrl.u32 %v301, 7
      %v303 = vsub.s32 6, %v302
      %v304 = vrot.slane %v216, %v303
      %v305 = vlaneseq
      %v306 = vshrl.u32 %v305, 7
      %v307 = vsub.s32 7, %v306
      %v308 = vrot.slane %v216, %v307
      %v309 = vlaneseq
      %v310 = vshrl.u32 %v309, 7
      %v311 = vsub.s32 0, %v310
      %v312 = vrot.slane %v217, %v311
      %v313 = vlaneseq
      %v314 = vshrl.u32 %v313, 7
      %v315 = vsub.s32 1, %v314
      %v316 = vrot.slane %v217, %v315
      %v317 = vlaneseq
      %v318 = vshrl.u32 %v317, 7
      %v319 = vsub.s32 2, %v318
      %v320 = vrot.slane %v217, %v319
      %v321 = vlaneseq
      %v322 = vshrl.u32 %v321, 7
      %v323 = vsub.s32 3, %v322
      %v324 = vrot.slane %v217, %v323
      %v325 = vlaneseq
      %v326 = vshrl.u32 %v325, 7
      %v327 = vsub.s32 4, %v326
      %v328 = vrot.slane %v217, %v327
      %v329 = vlaneseq
      %v330 = vshrl.u32 %v329, 7
      %v331 = vsub.s32 5, %v330
      %v332 = vrot.slane %v217, %v331
      %v333 = vlaneseq
      %v334 = vshrl.u32 %v333, 7
      %v335 = vsub.s32 6, %v334
      %v336 = vrot.slane %v217, %v335
      %v337 = vlaneseq
      %v338 = vshrl.u32 %v337, 7
      %v339 = vsub.s32 7, %v338
      %v340 = vrot.slane %v217, %v339
      %v341 = vlaneseq
      %v342 = vshrl.u32 %v341, 7
      %v343 = vsub.s32 0, %v342
      %v344 = vrot.slane %v218, %v343
      %v345 = vlaneseq
      %v346 = vshrl.u32 %v345, 7
      %v347 = vsub.s32 1, %v346
      %v348 = vrot.slane %v218, %v347
      %v349 = vlaneseq
      %v350 = vshrl.u32 %v349, 7
      %v351 = vsub.s32 2, %v350
      %v352 = vrot.slane %v218, %v351
      %v353 = vlaneseq
      %v354 = vshrl.u32 %v353, 7
      %v355 = vsub.s32 3, %v354
      %v356 = vrot.slane %v218, %v355
      %v357 = vlaneseq
      %v358 = vshrl.u32 %v357, 7
      %v359 = vsub.s32 4, %v358
      %v360 = vrot.slane %v218, %v359
      %v361 = vlaneseq
      %v362 = vshrl.u32 %v361, 7
      %v363 = vsub.s32 5, %v362
      %v364 = vrot.slane %v218, %v363
      %v365 = vlaneseq
      %v366 = vshrl.u32 %v365, 7
      %v367 = vsub.s32 6, %v366
      %v368 = vrot.slane %v218, %v367
      %v369 = vlaneseq
      %v370 = vshrl.u32 %v369, 7
      %v371 = vsub.s32 7, %v370
      %v372 = vrot.slane %v218, %v371
      %v373 = vlaneseq
      %v374 = vshrl.u32 %v373, 7
      %v375 = vsub.s32 0, %v374
      %v376 = vrot.slane %v219, %v375
      %v377 = vlaneseq
      %v378 = vshrl.u32 %v377, 7
      %v379 = vsub.s32 1, %v378
      %v380 = vrot.slane %v219, %v379
      %v381 = vlaneseq
      %v382 = vshrl.u32 %v381, 7
      %v383 = vsub.s32 2, %v382
      %v384 = vrot.slane %v219, %v383
      %v385 = vlaneseq
      %v386 = vshrl.u32 %v385, 7
      %v387 = vsub.s32 3, %v386
      %v388 = vrot.slane %v219, %v387
      %v389 = vlaneseq
      %v390 = vshrl.u32 %v389, 7
      %v391 = vsub.s32 4, %v390
      %v392 = vrot.slane %v219, %v391
      %v393 = vlaneseq
      %v394 = vshrl.u32 %v393, 7
      %v395 = vsub.s32 5, %v394
      %v396 = vrot.slane %v219, %v395
      %v397 = vlaneseq
      %v398 = vshrl.u32 %v397, 7
      %v399 = vsub.s32 6, %v398
      %v400 = vrot.slane %v219, %v399
      %v401 = vlaneseq
      %v402 = vshrl.u32 %v401, 7
      %v403 = vsub.s32 7, %v402
      %v404 = vrot.slane %v219, %v403
      %vm405 = vcmp.eq.s32.totalorder %v245, %v280
      %vm406 = vcmp.eq.s32.totalorder %v245, %v284
      %vm407 = vcmp.eq.s32.totalorder %v245, %v288
      %vm408 = vcmp.eq.s32.totalorder %v245, %v292
      %vm409 = vcmp.eq.s32.totalorder %v245, %v296
      %vm410 = vcmp.eq.s32.totalorder %v245, %v300
      %vm411 = vcmp.eq.s32.totalorder %v245, %v304
      %vm412 = vcmp.eq.s32.totalorder %v245, %v308
      %vm413 = vcmp.eq.s32.totalorder %v245, %v312
      %vm414 = vcmp.eq.s32.totalorder %v245, %v316
      %vm415 = vcmp.eq.s32.totalorder %v245, %v320
      %vm416 = vcmp.eq.s32.totalorder %v245, %v324
      %vm417 = vcmp.eq.s32.totalorder %v245, %v328
      %vm418 = vcmp.eq.s32.totalorder %v245, %v332
      %vm419 = vcmp.eq.s32.totalorder %v245, %v336
      %vm420 = vcmp.eq.s32.totalorder %v245, %v340
      %vm421 = vcmp.eq.s32.totalorder %v245, %v344
      %vm422 = vcmp.eq.s32.totalorder %v245, %v348
      %vm423 = vcmp.eq.s32.totalorder %v245, %v352
      %vm424 = vcmp.eq.s32.totalorder %v245, %v356
      %vm425 = vcmp.eq.s32.totalorder %v245, %v360
      %vm426 = vcmp.eq.s32.totalorder %v245, %v364
      %vm427 = vcmp.eq.s32.totalorder %v245, %v368
      %vm428 = vcmp.eq.s32.totalorder %v245, %v372
      %vm429 = vcmp.eq.s32.totalorder %v245, %v376
      %vm430 = vcmp.eq.s32.totalorder %v245, %v380
      %vm431 = vcmp.eq.s32.totalorder %v245, %v384
      %vm432 = vcmp.eq.s32.totalorder %v245, %v388
      %vm433 = vcmp.eq.s32.totalorder %v245, %v392
      %vm434 = vcmp.eq.s32.totalorder %v245, %v396
      %vm435 = vcmp.eq.s32.totalorder %v245, %v400
      %vm436 = vcmp.eq.s32.totalorder %v245, %v404
      %vm437 = vcmp.eq.s32.totalorder %v246, %v280
      %vm438 = vcmp.eq.s32.totalorder %v246, %v284
      %vm439 = vcmp.eq.s32.totalorder %v246, %v288
      %vm440 = vcmp.eq.s32.totalorder %v246, %v292
      %vm441 = vcmp.eq.s32.totalorder %v246, %v296
      %vm442 = vcmp.eq.s32.totalorder %v246, %v300
      %vm443 = vcmp.eq.s32.totalorder %v246, %v304
      %vm444 = vcmp.eq.s32.totalorder %v246, %v308
      %vm445 = vcmp.eq.s32.totalorder %v246, %v312
      %vm446 = vcmp.eq.s32.totalorder %v246, %v316
      %vm447 = vcmp.eq.s32.totalorder %v246, %v320
      %vm448 = vcmp.eq.s32.totalorder %v246, %v324
      %vm449 = vcmp.eq.s32.totalorder %v246, %v328
      %vm450 = vcmp.eq.s32.totalorder %v246, %v332
      %vm451 = vcmp.eq.s32.totalorder %v246, %v336
      %vm452 = vcmp.eq.s32.totalorder %v246, %v340
      %vm453 = vcmp.eq.s32.totalorder %v246, %v344
      %vm454 = vcmp.eq.s32.totalorder %v246, %v348
      %vm455 = vcmp.eq.s32.totalorder %v246, %v352
      %vm456 = vcmp.eq.s32.totalorder %v246, %v356
      %vm457 = vcmp.eq.s32.totalorder %v246, %v360
      %vm458 = vcmp.eq.s32.totalorder %v246, %v364
      %vm459 = vcmp.eq.s32.totalorder %v246, %v368
      %vm460 = vcmp.eq.s32.totalorder %v246, %v372
      %vm461 = vcmp.eq.s32.totalorder %v246, %v376
      %vm462 = vcmp.eq.s32.totalorder %v246, %v380
      %vm463 = vcmp.eq.s32.totalorder %v246, %v384
      %vm464 = vcmp.eq.s32.totalorder %v246, %v388
      %vm465 = vcmp.eq.s32.totalorder %v246, %v392
      %vm466 = vcmp.eq.s32.totalorder %v246, %v396
      %vm467 = vcmp.eq.s32.totalorder %v246, %v400
      %vm468 = vcmp.eq.s32.totalorder %v246, %v404
      %vm469 = vcmp.eq.s32.totalorder %v247, %v280
      %vm470 = vcmp.eq.s32.totalorder %v247, %v284
      %vm471 = vcmp.eq.s32.totalorder %v247, %v288
      %vm472 = vcmp.eq.s32.totalorder %v247, %v292
      %vm473 = vcmp.eq.s32.totalorder %v247, %v296
      %vm474 = vcmp.eq.s32.totalorder %v247, %v300
      %vm475 = vcmp.eq.s32.totalorder %v247, %v304
      %vm476 = vcmp.eq.s32.totalorder %v247, %v308
      %vm477 = vcmp.eq.s32.totalorder %v247, %v312
      %vm478 = vcmp.eq.s32.totalorder %v247, %v316
      %vm479 = vcmp.eq.s32.totalorder %v247, %v320
      %vm480 = vcmp.eq.s32.totalorder %v247, %v324
      %vm481 = vcmp.eq.s32.totalorder %v247, %v328
      %vm482 = vcmp.eq.s32.totalorder %v247, %v332
      %vm483 = vcmp.eq.s32.totalorder %v247, %v336
      %vm484 = vcmp.eq.s32.totalorder %v247, %v340
      %vm485 = vcmp.eq.s32.totalorder %v247, %v344
      %vm486 = vcmp.eq.s32.totalorder %v247, %v348
      %vm487 = vcmp.eq.s32.totalorder %v247, %v352
      %vm488 = vcmp.eq.s32.totalorder %v247, %v356
      %vm489 = vcmp.eq.s32.totalorder %v247, %v360
      %vm490 = vcmp.eq.s32.totalorder %v247, %v364
      %vm491 = vcmp.eq.s32.totalorder %v247, %v368
      %vm492 = vcmp.eq.s32.totalorder %v247, %v372
      %vm493 = vcmp.eq.s32.totalorder %v247, %v376
      %vm494 = vcmp.eq.s32.totalorder %v247, %v380
      %vm495 = vcmp.eq.s32.totalorder %v247, %v384
      %vm496 = vcmp.eq.s32.totalorder %v247, %v388
      %vm497 = vcmp.eq.s32.totalorder %v247, %v392
      %vm498 = vcmp.eq.s32.totalorder %v247, %v396
      %vm499 = vcmp.eq.s32.totalorder %v247, %v400
      %vm500 = vcmp.eq.s32.totalorder %v247, %v404
      %vm501 = vcmp.eq.s32.totalorder %v248, %v280
      %vm502 = vcmp.eq.s32.totalorder %v248, %v284
      %vm503 = vcmp.eq.s32.totalorder %v248, %v288
      %vm504 = vcmp.eq.s32.totalorder %v248, %v292
      %vm505 = vcmp.eq.s32.totalorder %v248, %v296
      %vm506 = vcmp.eq.s32.totalorder %v248, %v300
      %vm507 = vcmp.eq.s32.totalorder %v248, %v304
      %vm508 = vcmp.eq.s32.totalorder %v248, %v308
      %vm509 = vcmp.eq.s32.totalorder %v248, %v312
      %vm510 = vcmp.eq.s32.totalorder %v248, %v316
      %vm511 = vcmp.eq.s32.totalorder %v248, %v320
      %vm512 = vcmp.eq.s32.totalorder %v248, %v324
      %vm513 = vcmp.eq.s32.totalorder %v248, %v328
      %vm514 = vcmp.eq.s32.totalorder %v248, %v332
      %vm515 = vcmp.eq.s32.totalorder %v248, %v336
      %vm516 = vcmp.eq.s32.totalorder %v248, %v340
      %vm517 = vcmp.eq.s32.totalorder %v248, %v344
      %vm518 = vcmp.eq.s32.totalorder %v248, %v348
      %vm519 = vcmp.eq.s32.totalorder %v248, %v352
      %vm520 = vcmp.eq.s32.totalorder %v248, %v356
      %vm521 = vcmp.eq.s32.totalorder %v248, %v360
      %vm522 = vcmp.eq.s32.totalorder %v248, %v364
      %vm523 = vcmp.eq.s32.totalorder %v248, %v368
      %vm524 = vcmp.eq.s32.totalorder %v248, %v372
      %vm525 = vcmp.eq.s32.totalorder %v248, %v376
      %vm526 = vcmp.eq.s32.totalorder %v248, %v380
      %vm527 = vcmp.eq.s32.totalorder %v248, %v384
      %vm528 = vcmp.eq.s32.totalorder %v248, %v388
      %vm529 = vcmp.eq.s32.totalorder %v248, %v392
      %vm530 = vcmp.eq.s32.totalorder %v248, %v396
      %vm531 = vcmp.eq.s32.totalorder %v248, %v400
      %vm532 = vcmp.eq.s32.totalorder %v248, %v404
      %vm533 = vcmp.eq.s32.totalorder %v249, %v280
      %vm534 = vcmp.eq.s32.totalorder %v249, %v284
      %vm535 = vcmp.eq.s32.totalorder %v249, %v288
      %vm536 = vcmp.eq.s32.totalorder %v249, %v292
      %vm537 = vcmp.eq.s32.totalorder %v249, %v296
      %vm538 = vcmp.eq.s32.totalorder %v249, %v300
      %vm539 = vcmp.eq.s32.totalorder %v249, %v304
      %vm540 = vcmp.eq.s32.totalorder %v249, %v308
      %vm541 = vcmp.eq.s32.totalorder %v249, %v312
      %vm542 = vcmp.eq.s32.totalorder %v249, %v316
      %vm543 = vcmp.eq.s32.totalorder %v249, %v320
      %vm544 = vcmp.eq.s32.totalorder %v249, %v324
      %vm545 = vcmp.eq.s32.totalorder %v249, %v328
      %vm546 = vcmp.eq.s32.totalorder %v249, %v332
      %vm547 = vcmp.eq.s32.totalorder %v249, %v336
      %vm548 = vcmp.eq.s32.totalorder %v249, %v340
      %vm549 = vcmp.eq.s32.totalorder %v249, %v344
      %vm550 = vcmp.eq.s32.totalorder %v249, %v348
      %vm551 = vcmp.eq.s32.totalorder %v249, %v352
      %vm552 = vcmp.eq.s32.totalorder %v249, %v356
      %vm553 = vcmp.eq.s32.totalorder %v249, %v360
      %vm554 = vcmp.eq.s32.totalorder %v249, %v364
      %vm555 = vcmp.eq.s32.totalorder %v249, %v368
      %vm556 = vcmp.eq.s32.totalorder %v249, %v372
      %vm557 = vcmp.eq.s32.totalorder %v249, %v376
      %vm558 = vcmp.eq.s32.totalorder %v249, %v380
      %vm559 = vcmp.eq.s32.totalorder %v249, %v384
      %vm560 = vcmp.eq.s32.totalorder %v249, %v388
      %vm561 = vcmp.eq.s32.totalorder %v249, %v392
      %vm562 = vcmp.eq.s32.totalorder %v249, %v396
      %vm563 = vcmp.eq.s32.totalorder %v249, %v400
      %vm564 = vcmp.eq.s32.totalorder %v249, %v404
      %vm565 = vcmp.eq.s32.totalorder %v250, %v280
      %vm566 = vcmp.eq.s32.totalorder %v250, %v284
      %vm567 = vcmp.eq.s32.totalorder %v250, %v288
      %vm568 = vcmp.eq.s32.totalorder %v250, %v292
      %vm569 = vcmp.eq.s32.totalorder %v250, %v296
      %vm570 = vcmp.eq.s32.totalorder %v250, %v300
      %vm571 = vcmp.eq.s32.totalorder %v250, %v304
      %vm572 = vcmp.eq.s32.totalorder %v250, %v308
      %vm573 = vcmp.eq.s32.totalorder %v250, %v312
      %vm574 = vcmp.eq.s32.totalorder %v250, %v316
      %vm575 = vcmp.eq.s32.totalorder %v250, %v320
      %vm576 = vcmp.eq.s32.totalorder %v250, %v324
      %vm577 = vcmp.eq.s32.totalorder %v250, %v328
      %vm578 = vcmp.eq.s32.totalorder %v250, %v332
      %vm579 = vcmp.eq.s32.totalorder %v250, %v336
      %vm580 = vcmp.eq.s32.totalorder %v250, %v340
      %vm581 = vcmp.eq.s32.totalorder %v250, %v344
      %vm582 = vcmp.eq.s32.totalorder %v250, %v348
      %vm583 = vcmp.eq.s32.totalorder %v250, %v352
      %vm584 = vcmp.eq.s32.totalorder %v250, %v356
      %vm585 = vcmp.eq.s32.totalorder %v250, %v360
      %vm586 = vcmp.eq.s32.totalorder %v250, %v364
      %vm587 = vcmp.eq.s32.totalorder %v250, %v368
      %vm588 = vcmp.eq.s32.totalorder %v250, %v372
      %vm589 = vcmp.eq.s32.totalorder %v250, %v376
      %vm590 = vcmp.eq.s32.totalorder %v250, %v380
      %vm591 = vcmp.eq.s32.totalorder %v250, %v384
      %vm592 = vcmp.eq.s32.totalorder %v250, %v388
      %vm593 = vcmp.eq.s32.totalorder %v250, %v392
      %vm594 = vcmp.eq.s32.totalorder %v250, %v396
      %vm595 = vcmp.eq.s32.totalorder %v250, %v400
      %vm596 = vcmp.eq.s32.totalorder %v250, %v404
      %vm597 = vcmp.eq.s32.totalorder %v251, %v280
      %vm598 = vcmp.eq.s32.totalorder %v251, %v284
      %vm599 = vcmp.eq.s32.totalorder %v251, %v288
      %vm600 = vcmp.eq.s32.totalorder %v251, %v292
      %vm601 = vcmp.eq.s32.totalorder %v251, %v296
      %vm602 = vcmp.eq.s32.totalorder %v251, %v300
      %vm603 = vcmp.eq.s32.totalorder %v251, %v304
      %vm604 = vcmp.eq.s32.totalorder %v251, %v308
      %vm605 = vcmp.eq.s32.totalorder %v251, %v312
      %vm606 = vcmp.eq.s32.totalorder %v251, %v316
      %vm607 = vcmp.eq.s32.totalorder %v251, %v320
      %vm608 = vcmp.eq.s32.totalorder %v251, %v324
      %vm609 = vcmp.eq.s32.totalorder %v251, %v328
      %vm610 = vcmp.eq.s32.totalorder %v251, %v332
      %vm611 = vcmp.eq.s32.totalorder %v251, %v336
      %vm612 = vcmp.eq.s32.totalorder %v251, %v340
      %vm613 = vcmp.eq.s32.totalorder %v251, %v344
      %vm614 = vcmp.eq.s32.totalorder %v251, %v348
      %vm615 = vcmp.eq.s32.totalorder %v251, %v352
      %vm616 = vcmp.eq.s32.totalorder %v251, %v356
      %vm617 = vcmp.eq.s32.totalorder %v251, %v360
      %vm618 = vcmp.eq.s32.totalorder %v251, %v364
      %vm619 = vcmp.eq.s32.totalorder %v251, %v368
      %vm620 = vcmp.eq.s32.totalorder %v251, %v372
      %vm621 = vcmp.eq.s32.totalorder %v251, %v376
      %vm622 = vcmp.eq.s32.totalorder %v251, %v380
      %vm623 = vcmp.eq.s32.totalorder %v251, %v384
      %vm624 = vcmp.eq.s32.totalorder %v251, %v388
      %vm625 = vcmp.eq.s32.totalorder %v251, %v392
      %vm626 = vcmp.eq.s32.totalorder %v251, %v396
      %vm627 = vcmp.eq.s32.totalorder %v251, %v400
      %vm628 = vcmp.eq.s32.totalorder %v251, %v404
      %vm629 = vcmp.eq.s32.totalorder %v252, %v280
      %vm630 = vcmp.eq.s32.totalorder %v252, %v284
      %vm631 = vcmp.eq.s32.totalorder %v252, %v288
      %vm632 = vcmp.eq.s32.totalorder %v252, %v292
      %vm633 = vcmp.eq.s32.totalorder %v252, %v296
      %vm634 = vcmp.eq.s32.totalorder %v252, %v300
      %vm635 = vcmp.eq.s32.totalorder %v252, %v304
      %vm636 = vcmp.eq.s32.totalorder %v252, %v308
      %vm637 = vcmp.eq.s32.totalorder %v252, %v312
      %vm638 = vcmp.eq.s32.totalorder %v252, %v316
      %vm639 = vcmp.eq.s32.totalorder %v252, %v320
      %vm640 = vcmp.eq.s32.totalorder %v252, %v324
      %vm641 = vcmp.eq.s32.totalorder %v252, %v328
      %vm642 = vcmp.eq.s32.totalorder %v252, %v332
      %vm643 = vcmp.eq.s32.totalorder %v252, %v336
      %vm644 = vcmp.eq.s32.totalorder %v252, %v340
      %vm645 = vcmp.eq.s32.totalorder %v252, %v344
      %vm646 = vcmp.eq.s32.totalorder %v252, %v348
      %vm647 = vcmp.eq.s32.totalorder %v252, %v352
      %vm648 = vcmp.eq.s32.totalorder %v252, %v356
      %vm649 = vcmp.eq.s32.totalorder %v252, %v360
      %vm650 = vcmp.eq.s32.totalorder %v252, %v364
      %vm651 = vcmp.eq.s32.totalorder %v252, %v368
      %vm652 = vcmp.eq.s32.totalorder %v252, %v372
      %vm653 = vcmp.eq.s32.totalorder %v252, %v376
      %vm654 = vcmp.eq.s32.totalorder %v252, %v380
      %vm655 = vcmp.eq.s32.totalorder %v252, %v384
      %vm656 = vcmp.eq.s32.totalorder %v252, %v388
      %vm657 = vcmp.eq.s32.totalorder %v252, %v392
      %vm658 = vcmp.eq.s32.totalorder %v252, %v396
      %vm659 = vcmp.eq.s32.totalorder %v252, %v400
      %vm660 = vcmp.eq.s32.totalorder %v252, %v404
      %vm661 = vcmp.eq.s32.totalorder %v253, %v280
      %vm662 = vcmp.eq.s32.totalorder %v253, %v284
      %vm663 = vcmp.eq.s32.totalorder %v253, %v288
      %vm664 = vcmp.eq.s32.totalorder %v253, %v292
      %vm665 = vcmp.eq.s32.totalorder %v253, %v296
      %vm666 = vcmp.eq.s32.totalorder %v253, %v300
      %vm667 = vcmp.eq.s32.totalorder %v253, %v304
      %vm668 = vcmp.eq.s32.totalorder %v253, %v308
      %vm669 = vcmp.eq.s32.totalorder %v253, %v312
      %vm670 = vcmp.eq.s32.totalorder %v253, %v316
      %vm671 = vcmp.eq.s32.totalorder %v253, %v320
      %vm672 = vcmp.eq.s32.totalorder %v253, %v324
      %vm673 = vcmp.eq.s32.totalorder %v253, %v328
      %vm674 = vcmp.eq.s32.totalorder %v253, %v332
      %vm675 = vcmp.eq.s32.totalorder %v253, %v336
      %vm676 = vcmp.eq.s32.totalorder %v253, %v340
      %vm677 = vcmp.eq.s32.totalorder %v253, %v344
      %vm678 = vcmp.eq.s32.totalorder %v253, %v348
      %vm679 = vcmp.eq.s32.totalorder %v253, %v352
      %vm680 = vcmp.eq.s32.totalorder %v253, %v356
      %vm681 = vcmp.eq.s32.totalorder %v253, %v360
      %vm682 = vcmp.eq.s32.totalorder %v253, %v364
      %vm683 = vcmp.eq.s32.totalorder %v253, %v368
      %vm684 = vcmp.eq.s32.totalorder %v253, %v372
      %vm685 = vcmp.eq.s32.totalorder %v253, %v376
      %vm686 = vcmp.eq.s32.totalorder %v253, %v380
      %vm687 = vcmp.eq.s32.totalorder %v253, %v384
      %vm688 = vcmp.eq.s32.totalorder %v253, %v388
      %vm689 = vcmp.eq.s32.totalorder %v253, %v392
      %vm690 = vcmp.eq.s32.totalorder %v253, %v396
      %vm691 = vcmp.eq.s32.totalorder %v253, %v400
      %vm692 = vcmp.eq.s32.totalorder %v253, %v404
      %vm693 = vcmp.eq.s32.totalorder %v254, %v280
      %vm694 = vcmp.eq.s32.totalorder %v254, %v284
      %vm695 = vcmp.eq.s32.totalorder %v254, %v288
      %vm696 = vcmp.eq.s32.totalorder %v254, %v292
      %vm697 = vcmp.eq.s32.totalorder %v254, %v296
      %vm698 = vcmp.eq.s32.totalorder %v254, %v300
      %vm699 = vcmp.eq.s32.totalorder %v254, %v304
      %vm700 = vcmp.eq.s32.totalorder %v254, %v308
      %vm701 = vcmp.eq.s32.totalorder %v254, %v312
      %vm702 = vcmp.eq.s32.totalorder %v254, %v316
      %vm703 = vcmp.eq.s32.totalorder %v254, %v320
      %vm704 = vcmp.eq.s32.totalorder %v254, %v324
      %vm705 = vcmp.eq.s32.totalorder %v254, %v328
      %vm706 = vcmp.eq.s32.totalorder %v254, %v332
      %vm707 = vcmp.eq.s32.totalorder %v254, %v336
      %vm708 = vcmp.eq.s32.totalorder %v254, %v340
      %vm709 = vcmp.eq.s32.totalorder %v254, %v344
      %vm710 = vcmp.eq.s32.totalorder %v254, %v348
      %vm711 = vcmp.eq.s32.totalorder %v254, %v352
      %vm712 = vcmp.eq.s32.totalorder %v254, %v356
      %vm713 = vcmp.eq.s32.totalorder %v254, %v360
      %vm714 = vcmp.eq.s32.totalorder %v254, %v364
      %vm715 = vcmp.eq.s32.totalorder %v254, %v368
      %vm716 = vcmp.eq.s32.totalorder %v254, %v372
      %vm717 = vcmp.eq.s32.totalorder %v254, %v376
      %vm718 = vcmp.eq.s32.totalorder %v254, %v380
      %vm719 = vcmp.eq.s32.totalorder %v254, %v384
      %vm720 = vcmp.eq.s32.totalorder %v254, %v388
      %vm721 = vcmp.eq.s32.totalorder %v254, %v392
      %vm722 = vcmp.eq.s32.totalorder %v254, %v396
      %vm723 = vcmp.eq.s32.totalorder %v254, %v400
      %vm724 = vcmp.eq.s32.totalorder %v254, %v404
      %vm725 = vcmp.eq.s32.totalorder %v255, %v280
      %vm726 = vcmp.eq.s32.totalorder %v255, %v284
      %vm727 = vcmp.eq.s32.totalorder %v255, %v288
      %vm728 = vcmp.eq.s32.totalorder %v255, %v292
      %vm729 = vcmp.eq.s32.totalorder %v255, %v296
      %vm730 = vcmp.eq.s32.totalorder %v255, %v300
      %vm731 = vcmp.eq.s32.totalorder %v255, %v304
      %vm732 = vcmp.eq.s32.totalorder %v255, %v308
      %vm733 = vcmp.eq.s32.totalorder %v255, %v312
      %vm734 = vcmp.eq.s32.totalorder %v255, %v316
      %vm735 = vcmp.eq.s32.totalorder %v255, %v320
      %vm736 = vcmp.eq.s32.totalorder %v255, %v324
      %vm737 = vcmp.eq.s32.totalorder %v255, %v328
      %vm738 = vcmp.eq.s32.totalorder %v255, %v332
      %vm739 = vcmp.eq.s32.totalorder %v255, %v336
      %vm740 = vcmp.eq.s32.totalorder %v255, %v340
      %vm741 = vcmp.eq.s32.totalorder %v255, %v344
      %vm742 = vcmp.eq.s32.totalorder %v255, %v348
      %vm743 = vcmp.eq.s32.totalorder %v255, %v352
      %vm744 = vcmp.eq.s32.totalorder %v255, %v356
      %vm745 = vcmp.eq.s32.totalorder %v255, %v360
      %vm746 = vcmp.eq.s32.totalorder %v255, %v364
      %vm747 = vcmp.eq.s32.totalorder %v255, %v368
      %vm748 = vcmp.eq.s32.totalorder %v255, %v372
      %vm749 = vcmp.eq.s32.totalorder %v255, %v376
      %vm750 = vcmp.eq.s32.totalorder %v255, %v380
      %vm751 = vcmp.eq.s32.totalorder %v255, %v384
      %vm752 = vcmp.eq.s32.totalorder %v255, %v388
      %vm753 = vcmp.eq.s32.totalorder %v255, %v392
      %vm754 = vcmp.eq.s32.totalorder %v255, %v396
      %vm755 = vcmp.eq.s32.totalorder %v255, %v400
      %vm756 = vcmp.eq.s32.totalorder %v255, %v404
      %vm757 = vcmp.eq.s32.totalorder %v256, %v280
      %vm758 = vcmp.eq.s32.totalorder %v256, %v284
      %vm759 = vcmp.eq.s32.totalorder %v256, %v288
      %vm760 = vcmp.eq.s32.totalorder %v256, %v292
      %vm761 = vcmp.eq.s32.totalorder %v256, %v296
      %vm762 = vcmp.eq.s32.totalorder %v256, %v300
      %vm763 = vcmp.eq.s32.totalorder %v256, %v304
      %vm764 = vcmp.eq.s32.totalorder %v256, %v308
      %vm765 = vcmp.eq.s32.totalorder %v256, %v312
      %vm766 = vcmp.eq.s32.totalorder %v256, %v316
      %vm767 = vcmp.eq.s32.totalorder %v256, %v320
      %vm768 = vcmp.eq.s32.totalorder %v256, %v324
      %vm769 = vcmp.eq.s32.totalorder %v256, %v328
      %vm770 = vcmp.eq.s32.totalorder %v256, %v332
      %vm771 = vcmp.eq.s32.totalorder %v256, %v336
      %vm772 = vcmp.eq.s32.totalorder %v256, %v340
      %vm773 = vcmp.eq.s32.totalorder %v256, %v344
      %vm774 = vcmp.eq.s32.totalorder %v256, %v348
      %vm775 = vcmp.eq.s32.totalorder %v256, %v352
      %vm776 = vcmp.eq.s32.totalorder %v256, %v356
      %vm777 = vcmp.eq.s32.totalorder %v256, %v360
      %vm778 = vcmp.eq.s32.totalorder %v256, %v364
      %vm779 = vcmp.eq.s32.totalorder %v256, %v368
      %vm780 = vcmp.eq.s32.totalorder %v256, %v372
      %vm781 = vcmp.eq.s32.totalorder %v256, %v376
      %vm782 = vcmp.eq.s32.totalorder %v256, %v380
      %vm783 = vcmp.eq.s32.totalorder %v256, %v384
      %vm784 = vcmp.eq.s32.totalorder %v256, %v388
      %vm785 = vcmp.eq.s32.totalorder %v256, %v392
      %vm786 = vcmp.eq.s32.totalorder %v256, %v396
      %vm787 = vcmp.eq.s32.totalorder %v256, %v400
      %vm788 = vcmp.eq.s32.totalorder %v256, %v404
      %vm789 = vcmp.eq.s32.totalorder %v257, %v280
      %vm790 = vcmp.eq.s32.totalorder %v257, %v284
      %vm791 = vcmp.eq.s32.totalorder %v257, %v288
      %vm792 = vcmp.eq.s32.totalorder %v257, %v292
      %vm793 = vcmp.eq.s32.totalorder %v257, %v296
      %vm794 = vcmp.eq.s32.totalorder %v257, %v300
      %vm795 = vcmp.eq.s32.totalorder %v257, %v304
      %vm796 = vcmp.eq.s32.totalorder %v257, %v308
      %vm797 = vcmp.eq.s32.totalorder %v257, %v312
      %vm798 = vcmp.eq.s32.totalorder %v257, %v316
      %vm799 = vcmp.eq.s32.totalorder %v257, %v320
      %vm800 = vcmp.eq.s32.totalorder %v257, %v324
      %vm801 = vcmp.eq.s32.totalorder %v257, %v328
      %vm802 = vcmp.eq.s32.totalorder %v257, %v332
      %vm803 = vcmp.eq.s32.totalorder %v257, %v336
      %vm804 = vcmp.eq.s32.totalorder %v257, %v340
      %vm805 = vcmp.eq.s32.totalorder %v257, %v344
      %vm806 = vcmp.eq.s32.totalorder %v257, %v348
      %vm807 = vcmp.eq.s32.totalorder %v257, %v352
      %vm808 = vcmp.eq.s32.totalorder %v257, %v356
      %vm809 = vcmp.eq.s32.totalorder %v257, %v360
      %vm810 = vcmp.eq.s32.totalorder %v257, %v364
      %vm811 = vcmp.eq.s32.totalorder %v257, %v368
      %vm812 = vcmp.eq.s32.totalorder %v257, %v372
      %vm813 = vcmp.eq.s32.totalorder %v257, %v376
      %vm814 = vcmp.eq.s32.totalorder %v257, %v380
      %vm815 = vcmp.eq.s32.totalorder %v257, %v384
      %vm816 = vcmp.eq.s32.totalorder %v257, %v388
      %vm817 = vcmp.eq.s32.totalorder %v257, %v392
      %vm818 = vcmp.eq.s32.totalorder %v257, %v396
      %vm819 = vcmp.eq.s32.totalorder %v257, %v400
      %vm820 = vcmp.eq.s32.totalorder %v257, %v404
      %vm821 = vcmp.eq.s32.totalorder %v258, %v280
      %vm822 = vcmp.eq.s32.totalorder %v258, %v284
      %vm823 = vcmp.eq.s32.totalorder %v258, %v288
      %vm824 = vcmp.eq.s32.totalorder %v258, %v292
      %vm825 = vcmp.eq.s32.totalorder %v258, %v296
      %vm826 = vcmp.eq.s32.totalorder %v258, %v300
      %vm827 = vcmp.eq.s32.totalorder %v258, %v304
      %vm828 = vcmp.eq.s32.totalorder %v258, %v308
      %vm829 = vcmp.eq.s32.totalorder %v258, %v312
      %vm830 = vcmp.eq.s32.totalorder %v258, %v316
      %vm831 = vcmp.eq.s32.totalorder %v258, %v320
      %vm832 = vcmp.eq.s32.totalorder %v258, %v324
      %vm833 = vcmp.eq.s32.totalorder %v258, %v328
      %vm834 = vcmp.eq.s32.totalorder %v258, %v332
      %vm835 = vcmp.eq.s32.totalorder %v258, %v336
      %vm836 = vcmp.eq.s32.totalorder %v258, %v340
      %vm837 = vcmp.eq.s32.totalorder %v258, %v344
      %vm838 = vcmp.eq.s32.totalorder %v258, %v348
      %vm839 = vcmp.eq.s32.totalorder %v258, %v352
      %vm840 = vcmp.eq.s32.totalorder %v258, %v356
      %vm841 = vcmp.eq.s32.totalorder %v258, %v360
      %vm842 = vcmp.eq.s32.totalorder %v258, %v364
      %vm843 = vcmp.eq.s32.totalorder %v258, %v368
      %vm844 = vcmp.eq.s32.totalorder %v258, %v372
      %vm845 = vcmp.eq.s32.totalorder %v258, %v376
      %vm846 = vcmp.eq.s32.totalorder %v258, %v380
      %vm847 = vcmp.eq.s32.totalorder %v258, %v384
      %vm848 = vcmp.eq.s32.totalorder %v258, %v388
      %vm849 = vcmp.eq.s32.totalorder %v258, %v392
      %vm850 = vcmp.eq.s32.totalorder %v258, %v396
      %vm851 = vcmp.eq.s32.totalorder %v258, %v400
      %vm852 = vcmp.eq.s32.totalorder %v258, %v404
      %vm853 = vcmp.eq.s32.totalorder %v259, %v280
      %vm854 = vcmp.eq.s32.totalorder %v259, %v284
      %vm855 = vcmp.eq.s32.totalorder %v259, %v288
      %vm856 = vcmp.eq.s32.totalorder %v259, %v292
      %vm857 = vcmp.eq.s32.totalorder %v259, %v296
      %vm858 = vcmp.eq.s32.totalorder %v259, %v300
      %vm859 = vcmp.eq.s32.totalorder %v259, %v304
      %vm860 = vcmp.eq.s32.totalorder %v259, %v308
      %vm861 = vcmp.eq.s32.totalorder %v259, %v312
      %vm862 = vcmp.eq.s32.totalorder %v259, %v316
      %vm863 = vcmp.eq.s32.totalorder %v259, %v320
      %vm864 = vcmp.eq.s32.totalorder %v259, %v324
      %vm865 = vcmp.eq.s32.totalorder %v259, %v328
      %vm866 = vcmp.eq.s32.totalorder %v259, %v332
      %vm867 = vcmp.eq.s32.totalorder %v259, %v336
      %vm868 = vcmp.eq.s32.totalorder %v259, %v340
      %vm869 = vcmp.eq.s32.totalorder %v259, %v344
      %vm870 = vcmp.eq.s32.totalorder %v259, %v348
      %vm871 = vcmp.eq.s32.totalorder %v259, %v352
      %vm872 = vcmp.eq.s32.totalorder %v259, %v356
      %vm873 = vcmp.eq.s32.totalorder %v259, %v360
      %vm874 = vcmp.eq.s32.totalorder %v259, %v364
      %vm875 = vcmp.eq.s32.totalorder %v259, %v368
      %vm876 = vcmp.eq.s32.totalorder %v259, %v372
      %vm877 = vcmp.eq.s32.totalorder %v259, %v376
      %vm878 = vcmp.eq.s32.totalorder %v259, %v380
      %vm879 = vcmp.eq.s32.totalorder %v259, %v384
      %vm880 = vcmp.eq.s32.totalorder %v259, %v388
      %vm881 = vcmp.eq.s32.totalorder %v259, %v392
      %vm882 = vcmp.eq.s32.totalorder %v259, %v396
      %vm883 = vcmp.eq.s32.totalorder %v259, %v400
      %vm884 = vcmp.eq.s32.totalorder %v259, %v404
      %vm885 = vcmp.eq.s32.totalorder %v260, %v280
      %vm886 = vcmp.eq.s32.totalorder %v260, %v284
      %vm887 = vcmp.eq.s32.totalorder %v260, %v288
      %vm888 = vcmp.eq.s32.totalorder %v260, %v292
      %vm889 = vcmp.eq.s32.totalorder %v260, %v296
      %vm890 = vcmp.eq.s32.totalorder %v260, %v300
      %vm891 = vcmp.eq.s32.totalorder %v260, %v304
      %vm892 = vcmp.eq.s32.totalorder %v260, %v308
      %vm893 = vcmp.eq.s32.totalorder %v260, %v312
      %vm894 = vcmp.eq.s32.totalorder %v260, %v316
      %vm895 = vcmp.eq.s32.totalorder %v260, %v320
      %vm896 = vcmp.eq.s32.totalorder %v260, %v324
      %vm897 = vcmp.eq.s32.totalorder %v260, %v328
      %vm898 = vcmp.eq.s32.totalorder %v260, %v332
      %vm899 = vcmp.eq.s32.totalorder %v260, %v336
      %vm900 = vcmp.eq.s32.totalorder %v260, %v340
      %vm901 = vcmp.eq.s32.totalorder %v260, %v344
      %vm902 = vcmp.eq.s32.totalorder %v260, %v348
      %vm903 = vcmp.eq.s32.totalorder %v260, %v352
      %vm904 = vcmp.eq.s32.totalorder %v260, %v356
      %vm905 = vcmp.eq.s32.totalorder %v260, %v360
      %vm906 = vcmp.eq.s32.totalorder %v260, %v364
      %vm907 = vcmp.eq.s32.totalorder %v260, %v368
      %vm908 = vcmp.eq.s32.totalorder %v260, %v372
      %vm909 = vcmp.eq.s32.totalorder %v260, %v376
      %vm910 = vcmp.eq.s32.totalorder %v260, %v380
      %vm911 = vcmp.eq.s32.totalorder %v260, %v384
      %vm912 = vcmp.eq.s32.totalorder %v260, %v388
      %vm913 = vcmp.eq.s32.totalorder %v260, %v392
      %vm914 = vcmp.eq.s32.totalorder %v260, %v396
      %vm915 = vcmp.eq.s32.totalorder %v260, %v400
      %vm916 = vcmp.eq.s32.totalorder %v260, %v404
      %v917 = vsel %vm405, 1, 0
      %v918 = vsel %vm406, 1, 0
      %v919 = vsel %vm407, 1, 0
      %v920 = vsel %vm408, 1, 0
      %v921 = vsel %vm409, 1, 0
      %v922 = vsel %vm410, 1, 0
      %v923 = vsel %vm411, 1, 0
      %v924 = vsel %vm412, 1, 0
      %v925 = vsel %vm413, 1, 0
      %v926 = vsel %vm414, 1, 0
      %v927 = vsel %vm415, 1, 0
      %v928 = vsel %vm416, 1, 0
      %v929 = vsel %vm417, 1, 0
      %v930 = vsel %vm418, 1, 0
      %v931 = vsel %vm419, 1, 0
      %v932 = vsel %vm420, 1, 0
      %v933 = vsel %vm421, 1, 0
      %v934 = vsel %vm422, 1, 0
      %v935 = vsel %vm423, 1, 0
      %v936 = vsel %vm424, 1, 0
      %v937 = vsel %vm425, 1, 0
      %v938 = vsel %vm426, 1, 0
      %v939 = vsel %vm427, 1, 0
      %v940 = vsel %vm428, 1, 0
      %v941 = vsel %vm429, 1, 0
      %v942 = vsel %vm430, 1, 0
      %v943 = vsel %vm431, 1, 0
      %v944 = vsel %vm432, 1, 0
      %v945 = vsel %vm433, 1, 0
      %v946 = vsel %vm434, 1, 0
      %v947 = vsel %vm435, 1, 0
      %v948 = vsel %vm436, 1, 0
      %v949 = vsel %vm437, 1, 0
      %v950 = vsel %vm438, 1, 0
      %v951 = vsel %vm439, 1, 0
      %v952 = vsel %vm440, 1, 0
      %v953 = vsel %vm441, 1, 0
      %v954 = vsel %vm442, 1, 0
      %v955 = vsel %vm443, 1, 0
      %v956 = vsel %vm444, 1, 0
      %v957 = vsel %vm445, 1, 0
      %v958 = vsel %vm446, 1, 0
      %v959 = vsel %vm447, 1, 0
      %v960 = vsel %vm448, 1, 0
      %v961 = vsel %vm449, 1, 0
      %v962 = vsel %vm450, 1, 0
      %v963 = vsel %vm451, 1, 0
      %v964 = vsel %vm452, 1, 0
      %v965 = vsel %vm453, 1, 0
      %v966 = vsel %vm454, 1, 0
      %v967 = vsel %vm455, 1, 0
      %v968 = vsel %vm456, 1, 0
      %v969 = vsel %vm457, 1, 0
      %v970 = vsel %vm458, 1, 0
      %v971 = vsel %vm459, 1, 0
      %v972 = vsel %vm460, 1, 0
      %v973 = vsel %vm461, 1, 0
      %v974 = vsel %vm462, 1, 0
      %v975 = vsel %vm463, 1, 0
      %v976 = vsel %vm464, 1, 0
      %v977 = vsel %vm465, 1, 0
      %v978 = vsel %vm466, 1, 0
      %v979 = vsel %vm467, 1, 0
      %v980 = vsel %vm468, 1, 0
      %v981 = vsel %vm469, 1, 0
      %v982 = vsel %vm470, 1, 0
      %v983 = vsel %vm471, 1, 0
      %v984 = vsel %vm472, 1, 0
      %v985 = vsel %vm473, 1, 0
      %v986 = vsel %vm474, 1, 0
      %v987 = vsel %vm475, 1, 0
      %v988 = vsel %vm476, 1, 0
      %v989 = vsel %vm477, 1, 0
      %v990 = vsel %vm478, 1, 0
      %v991 = vsel %vm479, 1, 0
      %v992 = vsel %vm480, 1, 0
      %v993 = vsel %vm481, 1, 0
      %v994 = vsel %vm482, 1, 0
      %v995 = vsel %vm483, 1, 0
      %v996 = vsel %vm484, 1, 0
      %v997 = vsel %vm485, 1, 0
      %v998 = vsel %vm486, 1, 0
      %v999 = vsel %vm487, 1, 0
      %v1000 = vsel %vm488, 1, 0
      %v1001 = vsel %vm489, 1, 0
      %v1002 = vsel %vm490, 1, 0
      %v1003 = vsel %vm491, 1, 0
      %v1004 = vsel %vm492, 1, 0
      %v1005 = vsel %vm493, 1, 0
      %v1006 = vsel %vm494, 1, 0
      %v1007 = vsel %vm495, 1, 0
      %v1008 = vsel %vm496, 1, 0
      %v1009 = vsel %vm497, 1, 0
      %v1010 = vsel %vm498, 1, 0
      %v1011 = vsel %vm499, 1, 0
      %v1012 = vsel %vm500, 1, 0
      %v1013 = vsel %vm501, 1, 0
      %v1014 = vsel %vm502, 1, 0
      %v1015 = vsel %vm503, 1, 0
      %v1016 = vsel %vm504, 1, 0
      %v1017 = vsel %vm505, 1, 0
      %v1018 = vsel %vm506, 1, 0
      %v1019 = vsel %vm507, 1, 0
      %v1020 = vsel %vm508, 1, 0
      %v1021 = vsel %vm509, 1, 0
      %v1022 = vsel %vm510, 1, 0
      %v1023 = vsel %vm511, 1, 0
      %v1024 = vsel %vm512, 1, 0
      %v1025 = vsel %vm513, 1, 0
      %v1026 = vsel %vm514, 1, 0
      %v1027 = vsel %vm515, 1, 0
      %v1028 = vsel %vm516, 1, 0
      %v1029 = vsel %vm517, 1, 0
      %v1030 = vsel %vm518, 1, 0
      %v1031 = vsel %vm519, 1, 0
      %v1032 = vsel %vm520, 1, 0
      %v1033 = vsel %vm521, 1, 0
      %v1034 = vsel %vm522, 1, 0
      %v1035 = vsel %vm523, 1, 0
      %v1036 = vsel %vm524, 1, 0
      %v1037 = vsel %vm525, 1, 0
      %v1038 = vsel %vm526, 1, 0
      %v1039 = vsel %vm527, 1, 0
      %v1040 = vsel %vm528, 1, 0
      %v1041 = vsel %vm529, 1, 0
      %v1042 = vsel %vm530, 1, 0
      %v1043 = vsel %vm531, 1, 0
      %v1044 = vsel %vm532, 1, 0
      %v1045 = vsel %vm533, 1, 0
      %v1046 = vsel %vm534, 1, 0
      %v1047 = vsel %vm535, 1, 0
      %v1048 = vsel %vm536, 1, 0
      %v1049 = vsel %vm537, 1, 0
      %v1050 = vsel %vm538, 1, 0
      %v1051 = vsel %vm539, 1, 0
      %v1052 = vsel %vm540, 1, 0
      %v1053 = vsel %vm541, 1, 0
      %v1054 = vsel %vm542, 1, 0
      %v1055 = vsel %vm543, 1, 0
      %v1056 = vsel %vm544, 1, 0
      %v1057 = vsel %vm545, 1, 0
      %v1058 = vsel %vm546, 1, 0
      %v1059 = vsel %vm547, 1, 0
      %v1060 = vsel %vm548, 1, 0
      %v1061 = vsel %vm549, 1, 0
      %v1062 = vsel %vm550, 1, 0
      %v1063 = vsel %vm551, 1, 0
      %v1064 = vsel %vm552, 1, 0
      %v1065 = vsel %vm553, 1, 0
      %v1066 = vsel %vm554, 1, 0
      %v1067 = vsel %vm555, 1, 0
      %v1068 = vsel %vm556, 1, 0
      %v1069 = vsel %vm557, 1, 0
      %v1070 = vsel %vm558, 1, 0
      %v1071 = vsel %vm559, 1, 0
      %v1072 = vsel %vm560, 1, 0
      %v1073 = vsel %vm561, 1, 0
      %v1074 = vsel %vm562, 1, 0
      %v1075 = vsel %vm563, 1, 0
      %v1076 = vsel %vm564, 1, 0
      %v1077 = vsel %vm565, 1, 0
      %v1078 = vsel %vm566, 1, 0
      %v1079 = vsel %vm567, 1, 0
      %v1080 = vsel %vm568, 1, 0
      %v1081 = vsel %vm569, 1, 0
      %v1082 = vsel %vm570, 1, 0
      %v1083 = vsel %vm571, 1, 0
      %v1084 = vsel %vm572, 1, 0
      %v1085 = vsel %vm573, 1, 0
      %v1086 = vsel %vm574, 1, 0
      %v1087 = vsel %vm575, 1, 0
      %v1088 = vsel %vm576, 1, 0
      %v1089 = vsel %vm577, 1, 0
      %v1090 = vsel %vm578, 1, 0
      %v1091 = vsel %vm579, 1, 0
      %v1092 = vsel %vm580, 1, 0
      %v1093 = vsel %vm581, 1, 0
      %v1094 = vsel %vm582, 1, 0
      %v1095 = vsel %vm583, 1, 0
      %v1096 = vsel %vm584, 1, 0
      %v1097 = vsel %vm585, 1, 0
      %v1098 = vsel %vm586, 1, 0
      %v1099 = vsel %vm587, 1, 0
      %v1100 = vsel %vm588, 1, 0
      %v1101 = vsel %vm589, 1, 0
      %v1102 = vsel %vm590, 1, 0
      %v1103 = vsel %vm591, 1, 0
      %v1104 = vsel %vm592, 1, 0
      %v1105 = vsel %vm593, 1, 0
      %v1106 = vsel %vm594, 1, 0
      %v1107 = vsel %vm595, 1, 0
      %v1108 = vsel %vm596, 1, 0
      %v1109 = vsel %vm597, 1, 0
      %v1110 = vsel %vm598, 1, 0
      %v1111 = vsel %vm599, 1, 0
      %v1112 = vsel %vm600, 1, 0
      %v1113 = vsel %vm601, 1, 0
      %v1114 = vsel %vm602, 1, 0
      %v1115 = vsel %vm603, 1, 0
      %v1116 = vsel %vm604, 1, 0
      %v1117 = vsel %vm605, 1, 0
      %v1118 = vsel %vm606, 1, 0
      %v1119 = vsel %vm607, 1, 0
      %v1120 = vsel %vm608, 1, 0
      %v1121 = vsel %vm609, 1, 0
      %v1122 = vsel %vm610, 1, 0
      %v1123 = vsel %vm611, 1, 0
      %v1124 = vsel %vm612, 1, 0
      %v1125 = vsel %vm613, 1, 0
      %v1126 = vsel %vm614, 1, 0
      %v1127 = vsel %vm615, 1, 0
      %v1128 = vsel %vm616, 1, 0
      %v1129 = vsel %vm617, 1, 0
      %v1130 = vsel %vm618, 1, 0
      %v1131 = vsel %vm619, 1, 0
      %v1132 = vsel %vm620, 1, 0
      %v1133 = vsel %vm621, 1, 0
      %v1134 = vsel %vm622, 1, 0
      %v1135 = vsel %vm623, 1, 0
      %v1136 = vsel %vm624, 1, 0
      %v1137 = vsel %vm625, 1, 0
      %v1138 = vsel %vm626, 1, 0
      %v1139 = vsel %vm627, 1, 0
      %v1140 = vsel %vm628, 1, 0
      %v1141 = vsel %vm629, 1, 0
      %v1142 = vsel %vm630, 1, 0
      %v1143 = vsel %vm631, 1, 0
      %v1144 = vsel %vm632, 1, 0
      %v1145 = vsel %vm633, 1, 0
      %v1146 = vsel %vm634, 1, 0
      %v1147 = vsel %vm635, 1, 0
      %v1148 = vsel %vm636, 1, 0
      %v1149 = vsel %vm637, 1, 0
      %v1150 = vsel %vm638, 1, 0
      %v1151 = vsel %vm639, 1, 0
      %v1152 = vsel %vm640, 1, 0
      %v1153 = vsel %vm641, 1, 0
      %v1154 = vsel %vm642, 1, 0
      %v1155 = vsel %vm643, 1, 0
      %v1156 = vsel %vm644, 1, 0
      %v1157 = vsel %vm645, 1, 0
      %v1158 = vsel %vm646, 1, 0
      %v1159 = vsel %vm647, 1, 0
      %v1160 = vsel %vm648, 1, 0
      %v1161 = vsel %vm649, 1, 0
      %v1162 = vsel %vm650, 1, 0
      %v1163 = vsel %vm651, 1, 0
      %v1164 = vsel %vm652, 1, 0
      %v1165 = vsel %vm653, 1, 0
      %v1166 = vsel %vm654, 1, 0
      %v1167 = vsel %vm655, 1, 0
      %v1168 = vsel %vm656, 1, 0
      %v1169 = vsel %vm657, 1, 0
      %v1170 = vsel %vm658, 1, 0
      %v1171 = vsel %vm659, 1, 0
      %v1172 = vsel %vm660, 1, 0
      %v1173 = vsel %vm661, 1, 0
      %v1174 = vsel %vm662, 1, 0
      %v1175 = vsel %vm663, 1, 0
      %v1176 = vsel %vm664, 1, 0
      %v1177 = vsel %vm665, 1, 0
      %v1178 = vsel %vm666, 1, 0
      %v1179 = vsel %vm667, 1, 0
      %v1180 = vsel %vm668, 1, 0
      %v1181 = vsel %vm669, 1, 0
      %v1182 = vsel %vm670, 1, 0
      %v1183 = vsel %vm671, 1, 0
      %v1184 = vsel %vm672, 1, 0
      %v1185 = vsel %vm673, 1, 0
      %v1186 = vsel %vm674, 1, 0
      %v1187 = vsel %vm675, 1, 0
      %v1188 = vsel %vm676, 1, 0
      %v1189 = vsel %vm677, 1, 0
      %v1190 = vsel %vm678, 1, 0
      %v1191 = vsel %vm679, 1, 0
      %v1192 = vsel %vm680, 1, 0
      %v1193 = vsel %vm681, 1, 0
      %v1194 = vsel %vm682, 1, 0
      %v1195 = vsel %vm683, 1, 0
      %v1196 = vsel %vm684, 1, 0
      %v1197 = vsel %vm685, 1, 0
      %v1198 = vsel %vm686, 1, 0
      %v1199 = vsel %vm687, 1, 0
      %v1200 = vsel %vm688, 1, 0
      %v1201 = vsel %vm689, 1, 0
      %v1202 = vsel %vm690, 1, 0
      %v1203 = vsel %vm691, 1, 0
      %v1204 = vsel %vm692, 1, 0
      %v1205 = vsel %vm693, 1, 0
      %v1206 = vsel %vm694, 1, 0
      %v1207 = vsel %vm695, 1, 0
      %v1208 = vsel %vm696, 1, 0
      %v1209 = vsel %vm697, 1, 0
      %v1210 = vsel %vm698, 1, 0
      %v1211 = vsel %vm699, 1, 0
      %v1212 = vsel %vm700, 1, 0
      %v1213 = vsel %vm701, 1, 0
      %v1214 = vsel %vm702, 1, 0
      %v1215 = vsel %vm703, 1, 0
      %v1216 = vsel %vm704, 1, 0
      %v1217 = vsel %vm705, 1, 0
      %v1218 = vsel %vm706, 1, 0
      %v1219 = vsel %vm707, 1, 0
      %v1220 = vsel %vm708, 1, 0
      %v1221 = vsel %vm709, 1, 0
      %v1222 = vsel %vm710, 1, 0
      %v1223 = vsel %vm711, 1, 0
      %v1224 = vsel %vm712, 1, 0
      %v1225 = vsel %vm713, 1, 0
      %v1226 = vsel %vm714, 1, 0
      %v1227 = vsel %vm715, 1, 0
      %v1228 = vsel %vm716, 1, 0
      %v1229 = vsel %vm717, 1, 0
      %v1230 = vsel %vm718, 1, 0
      %v1231 = vsel %vm719, 1, 0
      %v1232 = vsel %vm720, 1, 0
      %v1233 = vsel %vm721, 1, 0
      %v1234 = vsel %vm722, 1, 0
      %v1235 = vsel %vm723, 1, 0
      %v1236 = vsel %vm724, 1, 0
      %v1237 = vsel %vm725, 1, 0
      %v1238 = vsel %vm726, 1, 0
      %v1239 = vsel %vm727, 1, 0
      %v1240 = vsel %vm728, 1, 0
      %v1241 = vsel %vm729, 1, 0
      %v1242 = vsel %vm730, 1, 0
      %v1243 = vsel %vm731, 1, 0
      %v1244 = vsel %vm732, 1, 0
      %v1245 = vsel %vm733, 1, 0
      %v1246 = vsel %vm734, 1, 0
      %v1247 = vsel %vm735, 1, 0
      %v1248 = vsel %vm736, 1, 0
      %v1249 = vsel %vm737, 1, 0
      %v1250 = vsel %vm738, 1, 0
      %v1251 = vsel %vm739, 1, 0
      %v1252 = vsel %vm740, 1, 0
      %v1253 = vsel %vm741, 1, 0
      %v1254 = vsel %vm742, 1, 0
      %v1255 = vsel %vm743, 1, 0
      %v1256 = vsel %vm744, 1, 0
      %v1257 = vsel %vm745, 1, 0
      %v1258 = vsel %vm746, 1, 0
      %v1259 = vsel %vm747, 1, 0
      %v1260 = vsel %vm748, 1, 0
      %v1261 = vsel %vm749, 1, 0
      %v1262 = vsel %vm750, 1, 0
      %v1263 = vsel %vm751, 1, 0
      %v1264 = vsel %vm752, 1, 0
      %v1265 = vsel %vm753, 1, 0
      %v1266 = vsel %vm754, 1, 0
      %v1267 = vsel %vm755, 1, 0
      %v1268 = vsel %vm756, 1, 0
      %v1269 = vsel %vm757, 1, 0
      %v1270 = vsel %vm758, 1, 0
      %v1271 = vsel %vm759, 1, 0
      %v1272 = vsel %vm760, 1, 0
      %v1273 = vsel %vm761, 1, 0
      %v1274 = vsel %vm762, 1, 0
      %v1275 = vsel %vm763, 1, 0
      %v1276 = vsel %vm764, 1, 0
      %v1277 = vsel %vm765, 1, 0
      %v1278 = vsel %vm766, 1, 0
      %v1279 = vsel %vm767, 1, 0
      %v1280 = vsel %vm768, 1, 0
      %v1281 = vsel %vm769, 1, 0
      %v1282 = vsel %vm770, 1, 0
      %v1283 = vsel %vm771, 1, 0
      %v1284 = vsel %vm772, 1, 0
      %v1285 = vsel %vm773, 1, 0
      %v1286 = vsel %vm774, 1, 0
      %v1287 = vsel %vm775, 1, 0
      %v1288 = vsel %vm776, 1, 0
      %v1289 = vsel %vm777, 1, 0
      %v1290 = vsel %vm778, 1, 0
      %v1291 = vsel %vm779, 1, 0
      %v1292 = vsel %vm780, 1, 0
      %v1293 = vsel %vm781, 1, 0
      %v1294 = vsel %vm782, 1, 0
      %v1295 = vsel %vm783, 1, 0
      %v1296 = vsel %vm784, 1, 0
      %v1297 = vsel %vm785, 1, 0
      %v1298 = vsel %vm786, 1, 0
      %v1299 = vsel %vm787, 1, 0
      %v1300 = vsel %vm788, 1, 0
      %v1301 = vsel %vm789, 1, 0
      %v1302 = vsel %vm790, 1, 0
      %v1303 = vsel %vm791, 1, 0
      %v1304 = vsel %vm792, 1, 0
      %v1305 = vsel %vm793, 1, 0
      %v1306 = vsel %vm794, 1, 0
      %v1307 = vsel %vm795, 1, 0
      %v1308 = vsel %vm796, 1, 0
      %v1309 = vsel %vm797, 1, 0
      %v1310 = vsel %vm798, 1, 0
      %v1311 = vsel %vm799, 1, 0
      %v1312 = vsel %vm800, 1, 0
      %v1313 = vsel %vm801, 1, 0
      %v1314 = vsel %vm802, 1, 0
      %v1315 = vsel %vm803, 1, 0
      %v1316 = vsel %vm804, 1, 0
      %v1317 = vsel %vm805, 1, 0
      %v1318 = vsel %vm806, 1, 0
      %v1319 = vsel %vm807, 1, 0
      %v1320 = vsel %vm808, 1, 0
      %v1321 = vsel %vm809, 1, 0
      %v1322 = vsel %vm810, 1, 0
      %v1323 = vsel %vm811, 1, 0
      %v1324 = vsel %vm812, 1, 0
      %v1325 = vsel %vm813, 1, 0
      %v1326 = vsel %vm814, 1, 0
      %v1327 = vsel %vm815, 1, 0
      %v1328 = vsel %vm816, 1, 0
      %v1329 = vsel %vm817, 1, 0
      %v1330 = vsel %vm818, 1, 0
      %v1331 = vsel %vm819, 1, 0
      %v1332 = vsel %vm820, 1, 0
      %v1333 = vsel %vm821, 1, 0
      %v1334 = vsel %vm822, 1, 0
      %v1335 = vsel %vm823, 1, 0
      %v1336 = vsel %vm824, 1, 0
      %v1337 = vsel %vm825, 1, 0
      %v1338 = vsel %vm826, 1, 0
      %v1339 = vsel %vm827, 1, 0
      %v1340 = vsel %vm828, 1, 0
      %v1341 = vsel %vm829, 1, 0
      %v1342 = vsel %vm830, 1, 0
      %v1343 = vsel %vm831, 1, 0
      %v1344 = vsel %vm832, 1, 0
      %v1345 = vsel %vm833, 1, 0
      %v1346 = vsel %vm834, 1, 0
      %v1347 = vsel %vm835, 1, 0
      %v1348 = vsel %vm836, 1, 0
      %v1349 = vsel %vm837, 1, 0
      %v1350 = vsel %vm838, 1, 0
      %v1351 = vsel %vm839, 1, 0
      %v1352 = vsel %vm840, 1, 0
      %v1353 = vsel %vm841, 1, 0
      %v1354 = vsel %vm842, 1, 0
      %v1355 = vsel %vm843, 1, 0
      %v1356 = vsel %vm844, 1, 0
      %v1357 = vsel %vm845, 1, 0
      %v1358 = vsel %vm846, 1, 0
      %v1359 = vsel %vm847, 1, 0
      %v1360 = vsel %vm848, 1, 0
      %v1361 = vsel %vm849, 1, 0
      %v1362 = vsel %vm850, 1, 0
      %v1363 = vsel %vm851, 1, 0
      %v1364 = vsel %vm852, 1, 0
      %v1365 = vsel %vm853, 1, 0
      %v1366 = vsel %vm854, 1, 0
      %v1367 = vsel %vm855, 1, 0
      %v1368 = vsel %vm856, 1, 0
      %v1369 = vsel %vm857, 1, 0
      %v1370 = vsel %vm858, 1, 0
      %v1371 = vsel %vm859, 1, 0
      %v1372 = vsel %vm860, 1, 0
      %v1373 = vsel %vm861, 1, 0
      %v1374 = vsel %vm862, 1, 0
      %v1375 = vsel %vm863, 1, 0
      %v1376 = vsel %vm864, 1, 0
      %v1377 = vsel %vm865, 1, 0
      %v1378 = vsel %vm866, 1, 0
      %v1379 = vsel %vm867, 1, 0
      %v1380 = vsel %vm868, 1, 0
      %v1381 = vsel %vm869, 1, 0
      %v1382 = vsel %vm870, 1, 0
      %v1383 = vsel %vm871, 1, 0
      %v1384 = vsel %vm872, 1, 0
      %v1385 = vsel %vm873, 1, 0
      %v1386 = vsel %vm874, 1, 0
      %v1387 = vsel %vm875, 1, 0
      %v1388 = vsel %vm876, 1, 0
      %v1389 = vsel %vm877, 1, 0
      %v1390 = vsel %vm878, 1, 0
      %v1391 = vsel %vm879, 1, 0
      %v1392 = vsel %vm880, 1, 0
      %v1393 = vsel %vm881, 1, 0
      %v1394 = vsel %vm882, 1, 0
      %v1395 = vsel %vm883, 1, 0
      %v1396 = vsel %vm884, 1, 0
      %v1397 = vsel %vm885, 1, 0
      %v1398 = vsel %vm886, 1, 0
      %v1399 = vsel %vm887, 1, 0
      %v1400 = vsel %vm888, 1, 0
      %v1401 = vsel %vm889, 1, 0
      %v1402 = vsel %vm890, 1, 0
      %v1403 = vsel %vm891, 1, 0
      %v1404 = vsel %vm892, 1, 0
      %v1405 = vsel %vm893, 1, 0
      %v1406 = vsel %vm894, 1, 0
      %v1407 = vsel %vm895, 1, 0
      %v1408 = vsel %vm896, 1, 0
      %v1409 = vsel %vm897, 1, 0
      %v1410 = vsel %vm898, 1, 0
      %v1411 = vsel %vm899, 1, 0
      %v1412 = vsel %vm900, 1, 0
      %v1413 = vsel %vm901, 1, 0
      %v1414 = vsel %vm902, 1, 0
      %v1415 = vsel %vm903, 1, 0
      %v1416 = vsel %vm904, 1, 0
      %v1417 = vsel %vm905, 1, 0
      %v1418 = vsel %vm906, 1, 0
      %v1419 = vsel %vm907, 1, 0
      %v1420 = vsel %vm908, 1, 0
      %v1421 = vsel %vm909, 1, 0
      %v1422 = vsel %vm910, 1, 0
      %v1423 = vsel %vm911, 1, 0
      %v1424 = vsel %vm912, 1, 0
      %v1425 = vsel %vm913, 1, 0
      %v1426 = vsel %vm914, 1, 0
      %v1427 = vsel %vm915, 1, 0
      %v1428 = vsel %vm916, 1, 0
      %v1429 = vcvt.s32.f32 %v917
      %v1430 = vcvt.s32.f32 %v918
      %v1431 = vcvt.s32.f32 %v919
      %v1432 = vcvt.s32.f32 %v920
      %v1433 = vcvt.s32.f32 %v921
      %v1434 = vcvt.s32.f32 %v922
      %v1435 = vcvt.s32.f32 %v923
      %v1436 = vcvt.s32.f32 %v924
      %v1437 = vcvt.s32.f32 %v925
      %v1438 = vcvt.s32.f32 %v926
      %v1439 = vcvt.s32.f32 %v927
      %v1440 = vcvt.s32.f32 %v928
      %v1441 = vcvt.s32.f32 %v929
      %v1442 = vcvt.s32.f32 %v930
      %v1443 = vcvt.s32.f32 %v931
      %v1444 = vcvt.s32.f32 %v932
      %v1445 = vcvt.s32.f32 %v933
      %v1446 = vcvt.s32.f32 %v934
      %v1447 = vcvt.s32.f32 %v935
      %v1448 = vcvt.s32.f32 %v936
      %v1449 = vcvt.s32.f32 %v937
      %v1450 = vcvt.s32.f32 %v938
      %v1451 = vcvt.s32.f32 %v939
      %v1452 = vcvt.s32.f32 %v940
      %v1453 = vcvt.s32.f32 %v941
      %v1454 = vcvt.s32.f32 %v942
      %v1455 = vcvt.s32.f32 %v943
      %v1456 = vcvt.s32.f32 %v944
      %v1457 = vcvt.s32.f32 %v945
      %v1458 = vcvt.s32.f32 %v946
      %v1459 = vcvt.s32.f32 %v947
      %v1460 = vcvt.s32.f32 %v948
      %v1461 = vcvt.s32.f32 %v949
      %v1462 = vcvt.s32.f32 %v950
      %v1463 = vcvt.s32.f32 %v951
      %v1464 = vcvt.s32.f32 %v952
      %v1465 = vcvt.s32.f32 %v953
      %v1466 = vcvt.s32.f32 %v954
      %v1467 = vcvt.s32.f32 %v955
      %v1468 = vcvt.s32.f32 %v956
      %v1469 = vcvt.s32.f32 %v957
      %v1470 = vcvt.s32.f32 %v958
      %v1471 = vcvt.s32.f32 %v959
      %v1472 = vcvt.s32.f32 %v960
      %v1473 = vcvt.s32.f32 %v961
      %v1474 = vcvt.s32.f32 %v962
      %v1475 = vcvt.s32.f32 %v963
      %v1476 = vcvt.s32.f32 %v964
      %v1477 = vcvt.s32.f32 %v965
      %v1478 = vcvt.s32.f32 %v966
      %v1479 = vcvt.s32.f32 %v967
      %v1480 = vcvt.s32.f32 %v968
      %v1481 = vcvt.s32.f32 %v969
      %v1482 = vcvt.s32.f32 %v970
      %v1483 = vcvt.s32.f32 %v971
      %v1484 = vcvt.s32.f32 %v972
      %v1485 = vcvt.s32.f32 %v973
      %v1486 = vcvt.s32.f32 %v974
      %v1487 = vcvt.s32.f32 %v975
      %v1488 = vcvt.s32.f32 %v976
      %v1489 = vcvt.s32.f32 %v977
      %v1490 = vcvt.s32.f32 %v978
      %v1491 = vcvt.s32.f32 %v979
      %v1492 = vcvt.s32.f32 %v980
      %v1493 = vcvt.s32.f32 %v981
      %v1494 = vcvt.s32.f32 %v982
      %v1495 = vcvt.s32.f32 %v983
      %v1496 = vcvt.s32.f32 %v984
      %v1497 = vcvt.s32.f32 %v985
      %v1498 = vcvt.s32.f32 %v986
      %v1499 = vcvt.s32.f32 %v987
      %v1500 = vcvt.s32.f32 %v988
      %v1501 = vcvt.s32.f32 %v989
      %v1502 = vcvt.s32.f32 %v990
      %v1503 = vcvt.s32.f32 %v991
      %v1504 = vcvt.s32.f32 %v992
      %v1505 = vcvt.s32.f32 %v993
      %v1506 = vcvt.s32.f32 %v994
      %v1507 = vcvt.s32.f32 %v995
      %v1508 = vcvt.s32.f32 %v996
      %v1509 = vcvt.s32.f32 %v997
      %v1510 = vcvt.s32.f32 %v998
      %v1511 = vcvt.s32.f32 %v999
      %v1512 = vcvt.s32.f32 %v1000
      %v1513 = vcvt.s32.f32 %v1001
      %v1514 = vcvt.s32.f32 %v1002
      %v1515 = vcvt.s32.f32 %v1003
      %v1516 = vcvt.s32.f32 %v1004
      %v1517 = vcvt.s32.f32 %v1005
      %v1518 = vcvt.s32.f32 %v1006
      %v1519 = vcvt.s32.f32 %v1007
      %v1520 = vcvt.s32.f32 %v1008
      %v1521 = vcvt.s32.f32 %v1009
      %v1522 = vcvt.s32.f32 %v1010
      %v1523 = vcvt.s32.f32 %v1011
      %v1524 = vcvt.s32.f32 %v1012
      %v1525 = vcvt.s32.f32 %v1013
      %v1526 = vcvt.s32.f32 %v1014
      %v1527 = vcvt.s32.f32 %v1015
      %v1528 = vcvt.s32.f32 %v1016
      %v1529 = vcvt.s32.f32 %v1017
      %v1530 = vcvt.s32.f32 %v1018
      %v1531 = vcvt.s32.f32 %v1019
      %v1532 = vcvt.s32.f32 %v1020
      %v1533 = vcvt.s32.f32 %v1021
      %v1534 = vcvt.s32.f32 %v1022
      %v1535 = vcvt.s32.f32 %v1023
      %v1536 = vcvt.s32.f32 %v1024
      %v1537 = vcvt.s32.f32 %v1025
      %v1538 = vcvt.s32.f32 %v1026
      %v1539 = vcvt.s32.f32 %v1027
      %v1540 = vcvt.s32.f32 %v1028
      %v1541 = vcvt.s32.f32 %v1029
      %v1542 = vcvt.s32.f32 %v1030
      %v1543 = vcvt.s32.f32 %v1031
      %v1544 = vcvt.s32.f32 %v1032
      %v1545 = vcvt.s32.f32 %v1033
      %v1546 = vcvt.s32.f32 %v1034
      %v1547 = vcvt.s32.f32 %v1035
      %v1548 = vcvt.s32.f32 %v1036
      %v1549 = vcvt.s32.f32 %v1037
      %v1550 = vcvt.s32.f32 %v1038
      %v1551 = vcvt.s32.f32 %v1039
      %v1552 = vcvt.s32.f32 %v1040
      %v1553 = vcvt.s32.f32 %v1041
      %v1554 = vcvt.s32.f32 %v1042
      %v1555 = vcvt.s32.f32 %v1043
      %v1556 = vcvt.s32.f32 %v1044
      %v1557 = vcvt.s32.f32 %v1045
      %v1558 = vcvt.s32.f32 %v1046
      %v1559 = vcvt.s32.f32 %v1047
      %v1560 = vcvt.s32.f32 %v1048
      %v1561 = vcvt.s32.f32 %v1049
      %v1562 = vcvt.s32.f32 %v1050
      %v1563 = vcvt.s32.f32 %v1051
      %v1564 = vcvt.s32.f32 %v1052
      %v1565 = vcvt.s32.f32 %v1053
      %v1566 = vcvt.s32.f32 %v1054
      %v1567 = vcvt.s32.f32 %v1055
      %v1568 = vcvt.s32.f32 %v1056
      %v1569 = vcvt.s32.f32 %v1057
      %v1570 = vcvt.s32.f32 %v1058
      %v1571 = vcvt.s32.f32 %v1059
      %v1572 = vcvt.s32.f32 %v1060
      %v1573 = vcvt.s32.f32 %v1061
      %v1574 = vcvt.s32.f32 %v1062
      %v1575 = vcvt.s32.f32 %v1063
      %v1576 = vcvt.s32.f32 %v1064
      %v1577 = vcvt.s32.f32 %v1065
      %v1578 = vcvt.s32.f32 %v1066
      %v1579 = vcvt.s32.f32 %v1067
      %v1580 = vcvt.s32.f32 %v1068
      %v1581 = vcvt.s32.f32 %v1069
      %v1582 = vcvt.s32.f32 %v1070
      %v1583 = vcvt.s32.f32 %v1071
      %v1584 = vcvt.s32.f32 %v1072
      %v1585 = vcvt.s32.f32 %v1073
      %v1586 = vcvt.s32.f32 %v1074
      %v1587 = vcvt.s32.f32 %v1075
      %v1588 = vcvt.s32.f32 %v1076
      %v1589 = vcvt.s32.f32 %v1077
      %v1590 = vcvt.s32.f32 %v1078
      %v1591 = vcvt.s32.f32 %v1079
      %v1592 = vcvt.s32.f32 %v1080
      %v1593 = vcvt.s32.f32 %v1081
      %v1594 = vcvt.s32.f32 %v1082
      %v1595 = vcvt.s32.f32 %v1083
      %v1596 = vcvt.s32.f32 %v1084
      %v1597 = vcvt.s32.f32 %v1085
      %v1598 = vcvt.s32.f32 %v1086
      %v1599 = vcvt.s32.f32 %v1087
      %v1600 = vcvt.s32.f32 %v1088
      %v1601 = vcvt.s32.f32 %v1089
      %v1602 = vcvt.s32.f32 %v1090
      %v1603 = vcvt.s32.f32 %v1091
      %v1604 = vcvt.s32.f32 %v1092
      %v1605 = vcvt.s32.f32 %v1093
      %v1606 = vcvt.s32.f32 %v1094
      %v1607 = vcvt.s32.f32 %v1095
      %v1608 = vcvt.s32.f32 %v1096
      %v1609 = vcvt.s32.f32 %v1097
      %v1610 = vcvt.s32.f32 %v1098
      %v1611 = vcvt.s32.f32 %v1099
      %v1612 = vcvt.s32.f32 %v1100
      %v1613 = vcvt.s32.f32 %v1101
      %v1614 = vcvt.s32.f32 %v1102
      %v1615 = vcvt.s32.f32 %v1103
      %v1616 = vcvt.s32.f32 %v1104
      %v1617 = vcvt.s32.f32 %v1105
      %v1618 = vcvt.s32.f32 %v1106
      %v1619 = vcvt.s32.f32 %v1107
      %v1620 = vcvt.s32.f32 %v1108
      %v1621 = vcvt.s32.f32 %v1109
      %v1622 = vcvt.s32.f32 %v1110
      %v1623 = vcvt.s32.f32 %v1111
      %v1624 = vcvt.s32.f32 %v1112
      %v1625 = vcvt.s32.f32 %v1113
      %v1626 = vcvt.s32.f32 %v1114
      %v1627 = vcvt.s32.f32 %v1115
      %v1628 = vcvt.s32.f32 %v1116
      %v1629 = vcvt.s32.f32 %v1117
      %v1630 = vcvt.s32.f32 %v1118
      %v1631 = vcvt.s32.f32 %v1119
      %v1632 = vcvt.s32.f32 %v1120
      %v1633 = vcvt.s32.f32 %v1121
      %v1634 = vcvt.s32.f32 %v1122
      %v1635 = vcvt.s32.f32 %v1123
      %v1636 = vcvt.s32.f32 %v1124
      %v1637 = vcvt.s32.f32 %v1125
      %v1638 = vcvt.s32.f32 %v1126
      %v1639 = vcvt.s32.f32 %v1127
      %v1640 = vcvt.s32.f32 %v1128
      %v1641 = vcvt.s32.f32 %v1129
      %v1642 = vcvt.s32.f32 %v1130
      %v1643 = vcvt.s32.f32 %v1131
      %v1644 = vcvt.s32.f32 %v1132
      %v1645 = vcvt.s32.f32 %v1133
      %v1646 = vcvt.s32.f32 %v1134
      %v1647 = vcvt.s32.f32 %v1135
      %v1648 = vcvt.s32.f32 %v1136
      %v1649 = vcvt.s32.f32 %v1137
      %v1650 = vcvt.s32.f32 %v1138
      %v1651 = vcvt.s32.f32 %v1139
      %v1652 = vcvt.s32.f32 %v1140
      %v1653 = vcvt.s32.f32 %v1141
      %v1654 = vcvt.s32.f32 %v1142
      %v1655 = vcvt.s32.f32 %v1143
      %v1656 = vcvt.s32.f32 %v1144
      %v1657 = vcvt.s32.f32 %v1145
      %v1658 = vcvt.s32.f32 %v1146
      %v1659 = vcvt.s32.f32 %v1147
      %v1660 = vcvt.s32.f32 %v1148
      %v1661 = vcvt.s32.f32 %v1149
      %v1662 = vcvt.s32.f32 %v1150
      %v1663 = vcvt.s32.f32 %v1151
      %v1664 = vcvt.s32.f32 %v1152
      %v1665 = vcvt.s32.f32 %v1153
      %v1666 = vcvt.s32.f32 %v1154
      %v1667 = vcvt.s32.f32 %v1155
      %v1668 = vcvt.s32.f32 %v1156
      %v1669 = vcvt.s32.f32 %v1157
      %v1670 = vcvt.s32.f32 %v1158
      %v1671 = vcvt.s32.f32 %v1159
      %v1672 = vcvt.s32.f32 %v1160
      %v1673 = vcvt.s32.f32 %v1161
      %v1674 = vcvt.s32.f32 %v1162
      %v1675 = vcvt.s32.f32 %v1163
      %v1676 = vcvt.s32.f32 %v1164
      %v1677 = vcvt.s32.f32 %v1165
      %v1678 = vcvt.s32.f32 %v1166
      %v1679 = vcvt.s32.f32 %v1167
      %v1680 = vcvt.s32.f32 %v1168
      %v1681 = vcvt.s32.f32 %v1169
      %v1682 = vcvt.s32.f32 %v1170
      %v1683 = vcvt.s32.f32 %v1171
      %v1684 = vcvt.s32.f32 %v1172
      %v1685 = vcvt.s32.f32 %v1173
      %v1686 = vcvt.s32.f32 %v1174
      %v1687 = vcvt.s32.f32 %v1175
      %v1688 = vcvt.s32.f32 %v1176
      %v1689 = vcvt.s32.f32 %v1177
      %v1690 = vcvt.s32.f32 %v1178
      %v1691 = vcvt.s32.f32 %v1179
      %v1692 = vcvt.s32.f32 %v1180
      %v1693 = vcvt.s32.f32 %v1181
      %v1694 = vcvt.s32.f32 %v1182
      %v1695 = vcvt.s32.f32 %v1183
      %v1696 = vcvt.s32.f32 %v1184
      %v1697 = vcvt.s32.f32 %v1185
      %v1698 = vcvt.s32.f32 %v1186
      %v1699 = vcvt.s32.f32 %v1187
      %v1700 = vcvt.s32.f32 %v1188
      %v1701 = vcvt.s32.f32 %v1189
      %v1702 = vcvt.s32.f32 %v1190
      %v1703 = vcvt.s32.f32 %v1191
      %v1704 = vcvt.s32.f32 %v1192
      %v1705 = vcvt.s32.f32 %v1193
      %v1706 = vcvt.s32.f32 %v1194
      %v1707 = vcvt.s32.f32 %v1195
      %v1708 = vcvt.s32.f32 %v1196
      %v1709 = vcvt.s32.f32 %v1197
      %v1710 = vcvt.s32.f32 %v1198
      %v1711 = vcvt.s32.f32 %v1199
      %v1712 = vcvt.s32.f32 %v1200
      %v1713 = vcvt.s32.f32 %v1201
      %v1714 = vcvt.s32.f32 %v1202
      %v1715 = vcvt.s32.f32 %v1203
      %v1716 = vcvt.s32.f32 %v1204
      %v1717 = vcvt.s32.f32 %v1205
      %v1718 = vcvt.s32.f32 %v1206
      %v1719 = vcvt.s32.f32 %v1207
      %v1720 = vcvt.s32.f32 %v1208
      %v1721 = vcvt.s32.f32 %v1209
      %v1722 = vcvt.s32.f32 %v1210
      %v1723 = vcvt.s32.f32 %v1211
      %v1724 = vcvt.s32.f32 %v1212
      %v1725 = vcvt.s32.f32 %v1213
      %v1726 = vcvt.s32.f32 %v1214
      %v1727 = vcvt.s32.f32 %v1215
      %v1728 = vcvt.s32.f32 %v1216
      %v1729 = vcvt.s32.f32 %v1217
      %v1730 = vcvt.s32.f32 %v1218
      %v1731 = vcvt.s32.f32 %v1219
      %v1732 = vcvt.s32.f32 %v1220
      %v1733 = vcvt.s32.f32 %v1221
      %v1734 = vcvt.s32.f32 %v1222
      %v1735 = vcvt.s32.f32 %v1223
      %v1736 = vcvt.s32.f32 %v1224
      %v1737 = vcvt.s32.f32 %v1225
      %v1738 = vcvt.s32.f32 %v1226
      %v1739 = vcvt.s32.f32 %v1227
      %v1740 = vcvt.s32.f32 %v1228
      %v1741 = vcvt.s32.f32 %v1229
      %v1742 = vcvt.s32.f32 %v1230
      %v1743 = vcvt.s32.f32 %v1231
      %v1744 = vcvt.s32.f32 %v1232
      %v1745 = vcvt.s32.f32 %v1233
      %v1746 = vcvt.s32.f32 %v1234
      %v1747 = vcvt.s32.f32 %v1235
      %v1748 = vcvt.s32.f32 %v1236
      %v1749 = vcvt.s32.f32 %v1237
      %v1750 = vcvt.s32.f32 %v1238
      %v1751 = vcvt.s32.f32 %v1239
      %v1752 = vcvt.s32.f32 %v1240
      %v1753 = vcvt.s32.f32 %v1241
      %v1754 = vcvt.s32.f32 %v1242
      %v1755 = vcvt.s32.f32 %v1243
      %v1756 = vcvt.s32.f32 %v1244
      %v1757 = vcvt.s32.f32 %v1245
      %v1758 = vcvt.s32.f32 %v1246
      %v1759 = vcvt.s32.f32 %v1247
      %v1760 = vcvt.s32.f32 %v1248
      %v1761 = vcvt.s32.f32 %v1249
      %v1762 = vcvt.s32.f32 %v1250
      %v1763 = vcvt.s32.f32 %v1251
      %v1764 = vcvt.s32.f32 %v1252
      %v1765 = vcvt.s32.f32 %v1253
      %v1766 = vcvt.s32.f32 %v1254
      %v1767 = vcvt.s32.f32 %v1255
      %v1768 = vcvt.s32.f32 %v1256
      %v1769 = vcvt.s32.f32 %v1257
      %v1770 = vcvt.s32.f32 %v1258
      %v1771 = vcvt.s32.f32 %v1259
      %v1772 = vcvt.s32.f32 %v1260
      %v1773 = vcvt.s32.f32 %v1261
      %v1774 = vcvt.s32.f32 %v1262
      %v1775 = vcvt.s32.f32 %v1263
      %v1776 = vcvt.s32.f32 %v1264
      %v1777 = vcvt.s32.f32 %v1265
      %v1778 = vcvt.s32.f32 %v1266
      %v1779 = vcvt.s32.f32 %v1267
      %v1780 = vcvt.s32.f32 %v1268
      %v1781 = vcvt.s32.f32 %v1269
      %v1782 = vcvt.s32.f32 %v1270
      %v1783 = vcvt.s32.f32 %v1271
      %v1784 = vcvt.s32.f32 %v1272
      %v1785 = vcvt.s32.f32 %v1273
      %v1786 = vcvt.s32.f32 %v1274
      %v1787 = vcvt.s32.f32 %v1275
      %v1788 = vcvt.s32.f32 %v1276
      %v1789 = vcvt.s32.f32 %v1277
      %v1790 = vcvt.s32.f32 %v1278
      %v1791 = vcvt.s32.f32 %v1279
      %v1792 = vcvt.s32.f32 %v1280
      %v1793 = vcvt.s32.f32 %v1281
      %v1794 = vcvt.s32.f32 %v1282
      %v1795 = vcvt.s32.f32 %v1283
      %v1796 = vcvt.s32.f32 %v1284
      %v1797 = vcvt.s32.f32 %v1285
      %v1798 = vcvt.s32.f32 %v1286
      %v1799 = vcvt.s32.f32 %v1287
      %v1800 = vcvt.s32.f32 %v1288
      %v1801 = vcvt.s32.f32 %v1289
      %v1802 = vcvt.s32.f32 %v1290
      %v1803 = vcvt.s32.f32 %v1291
      %v1804 = vcvt.s32.f32 %v1292
      %v1805 = vcvt.s32.f32 %v1293
      %v1806 = vcvt.s32.f32 %v1294
      %v1807 = vcvt.s32.f32 %v1295
      %v1808 = vcvt.s32.f32 %v1296
      %v1809 = vcvt.s32.f32 %v1297
      %v1810 = vcvt.s32.f32 %v1298
      %v1811 = vcvt.s32.f32 %v1299
      %v1812 = vcvt.s32.f32 %v1300
      %v1813 = vcvt.s32.f32 %v1301
      %v1814 = vcvt.s32.f32 %v1302
      %v1815 = vcvt.s32.f32 %v1303
      %v1816 = vcvt.s32.f32 %v1304
      %v1817 = vcvt.s32.f32 %v1305
      %v1818 = vcvt.s32.f32 %v1306
      %v1819 = vcvt.s32.f32 %v1307
      %v1820 = vcvt.s32.f32 %v1308
      %v1821 = vcvt.s32.f32 %v1309
      %v1822 = vcvt.s32.f32 %v1310
      %v1823 = vcvt.s32.f32 %v1311
      %v1824 = vcvt.s32.f32 %v1312
      %v1825 = vcvt.s32.f32 %v1313
      %v1826 = vcvt.s32.f32 %v1314
      %v1827 = vcvt.s32.f32 %v1315
      %v1828 = vcvt.s32.f32 %v1316
      %v1829 = vcvt.s32.f32 %v1317
      %v1830 = vcvt.s32.f32 %v1318
      %v1831 = vcvt.s32.f32 %v1319
      %v1832 = vcvt.s32.f32 %v1320
      %v1833 = vcvt.s32.f32 %v1321
      %v1834 = vcvt.s32.f32 %v1322
      %v1835 = vcvt.s32.f32 %v1323
      %v1836 = vcvt.s32.f32 %v1324
      %v1837 = vcvt.s32.f32 %v1325
      %v1838 = vcvt.s32.f32 %v1326
      %v1839 = vcvt.s32.f32 %v1327
      %v1840 = vcvt.s32.f32 %v1328
      %v1841 = vcvt.s32.f32 %v1329
      %v1842 = vcvt.s32.f32 %v1330
      %v1843 = vcvt.s32.f32 %v1331
      %v1844 = vcvt.s32.f32 %v1332
      %v1845 = vcvt.s32.f32 %v1333
      %v1846 = vcvt.s32.f32 %v1334
      %v1847 = vcvt.s32.f32 %v1335
      %v1848 = vcvt.s32.f32 %v1336
      %v1849 = vcvt.s32.f32 %v1337
      %v1850 = vcvt.s32.f32 %v1338
      %v1851 = vcvt.s32.f32 %v1339
      %v1852 = vcvt.s32.f32 %v1340
      %v1853 = vcvt.s32.f32 %v1341
      %v1854 = vcvt.s32.f32 %v1342
      %v1855 = vcvt.s32.f32 %v1343
      %v1856 = vcvt.s32.f32 %v1344
      %v1857 = vcvt.s32.f32 %v1345
      %v1858 = vcvt.s32.f32 %v1346
      %v1859 = vcvt.s32.f32 %v1347
      %v1860 = vcvt.s32.f32 %v1348
      %v1861 = vcvt.s32.f32 %v1349
      %v1862 = vcvt.s32.f32 %v1350
      %v1863 = vcvt.s32.f32 %v1351
      %v1864 = vcvt.s32.f32 %v1352
      %v1865 = vcvt.s32.f32 %v1353
      %v1866 = vcvt.s32.f32 %v1354
      %v1867 = vcvt.s32.f32 %v1355
      %v1868 = vcvt.s32.f32 %v1356
      %v1869 = vcvt.s32.f32 %v1357
      %v1870 = vcvt.s32.f32 %v1358
      %v1871 = vcvt.s32.f32 %v1359
      %v1872 = vcvt.s32.f32 %v1360
      %v1873 = vcvt.s32.f32 %v1361
      %v1874 = vcvt.s32.f32 %v1362
      %v1875 = vcvt.s32.f32 %v1363
      %v1876 = vcvt.s32.f32 %v1364
      %v1877 = vcvt.s32.f32 %v1365
      %v1878 = vcvt.s32.f32 %v1366
      %v1879 = vcvt.s32.f32 %v1367
      %v1880 = vcvt.s32.f32 %v1368
      %v1881 = vcvt.s32.f32 %v1369
      %v1882 = vcvt.s32.f32 %v1370
      %v1883 = vcvt.s32.f32 %v1371
      %v1884 = vcvt.s32.f32 %v1372
      %v1885 = vcvt.s32.f32 %v1373
      %v1886 = vcvt.s32.f32 %v1374
      %v1887 = vcvt.s32.f32 %v1375
      %v1888 = vcvt.s32.f32 %v1376
      %v1889 = vcvt.s32.f32 %v1377
      %v1890 = vcvt.s32.f32 %v1378
      %v1891 = vcvt.s32.f32 %v1379
      %v1892 = vcvt.s32.f32 %v1380
      %v1893 = vcvt.s32.f32 %v1381
      %v1894 = vcvt.s32.f32 %v1382
      %v1895 = vcvt.s32.f32 %v1383
      %v1896 = vcvt.s32.f32 %v1384
      %v1897 = vcvt.s32.f32 %v1385
      %v1898 = vcvt.s32.f32 %v1386
      %v1899 = vcvt.s32.f32 %v1387
      %v1900 = vcvt.s32.f32 %v1388
      %v1901 = vcvt.s32.f32 %v1389
      %v1902 = vcvt.s32.f32 %v1390
      %v1903 = vcvt.s32.f32 %v1391
      %v1904 = vcvt.s32.f32 %v1392
      %v1905 = vcvt.s32.f32 %v1393
      %v1906 = vcvt.s32.f32 %v1394
      %v1907 = vcvt.s32.f32 %v1395
      %v1908 = vcvt.s32.f32 %v1396
      %v1909 = vcvt.s32.f32 %v1397
      %v1910 = vcvt.s32.f32 %v1398
      %v1911 = vcvt.s32.f32 %v1399
      %v1912 = vcvt.s32.f32 %v1400
      %v1913 = vcvt.s32.f32 %v1401
      %v1914 = vcvt.s32.f32 %v1402
      %v1915 = vcvt.s32.f32 %v1403
      %v1916 = vcvt.s32.f32 %v1404
      %v1917 = vcvt.s32.f32 %v1405
      %v1918 = vcvt.s32.f32 %v1406
      %v1919 = vcvt.s32.f32 %v1407
      %v1920 = vcvt.s32.f32 %v1408
      %v1921 = vcvt.s32.f32 %v1409
      %v1922 = vcvt.s32.f32 %v1410
      %v1923 = vcvt.s32.f32 %v1411
      %v1924 = vcvt.s32.f32 %v1412
      %v1925 = vcvt.s32.f32 %v1413
      %v1926 = vcvt.s32.f32 %v1414
      %v1927 = vcvt.s32.f32 %v1415
      %v1928 = vcvt.s32.f32 %v1416
      %v1929 = vcvt.s32.f32 %v1417
      %v1930 = vcvt.s32.f32 %v1418
      %v1931 = vcvt.s32.f32 %v1419
      %v1932 = vcvt.s32.f32 %v1420
      %v1933 = vcvt.s32.f32 %v1421
      %v1934 = vcvt.s32.f32 %v1422
      %v1935 = vcvt.s32.f32 %v1423
      %v1936 = vcvt.s32.f32 %v1424
      %v1937 = vcvt.s32.f32 %v1425
      %v1938 = vcvt.s32.f32 %v1426
      %v1939 = vcvt.s32.f32 %v1427
      %v1940 = vcvt.s32.f32 %v1428
      %v1941 = vpack.c.bf16 %v1461, %v1429
      %v1942 = vpack.c.bf16 %v1462, %v1430
      %v1943 = vpack.c.bf16 %v1463, %v1431
      %v1944 = vpack.c.bf16 %v1464, %v1432
      %v1945 = vpack.c.bf16 %v1465, %v1433
      %v1946 = vpack.c.bf16 %v1466, %v1434
      %v1947 = vpack.c.bf16 %v1467, %v1435
      %v1948 = vpack.c.bf16 %v1468, %v1436
      %v1949 = vpack.c.bf16 %v1469, %v1437
      %v1950 = vpack.c.bf16 %v1470, %v1438
      %v1951 = vpack.c.bf16 %v1471, %v1439
      %v1952 = vpack.c.bf16 %v1472, %v1440
      %v1953 = vpack.c.bf16 %v1473, %v1441
      %v1954 = vpack.c.bf16 %v1474, %v1442
      %v1955 = vpack.c.bf16 %v1475, %v1443
      %v1956 = vpack.c.bf16 %v1476, %v1444
      %v1957 = vpack.c.bf16 %v1477, %v1445
      %v1958 = vpack.c.bf16 %v1478, %v1446
      %v1959 = vpack.c.bf16 %v1479, %v1447
      %v1960 = vpack.c.bf16 %v1480, %v1448
      %v1961 = vpack.c.bf16 %v1481, %v1449
      %v1962 = vpack.c.bf16 %v1482, %v1450
      %v1963 = vpack.c.bf16 %v1483, %v1451
      %v1964 = vpack.c.bf16 %v1484, %v1452
      %v1965 = vpack.c.bf16 %v1485, %v1453
      %v1966 = vpack.c.bf16 %v1486, %v1454
      %v1967 = vpack.c.bf16 %v1487, %v1455
      %v1968 = vpack.c.bf16 %v1488, %v1456
      %v1969 = vpack.c.bf16 %v1489, %v1457
      %v1970 = vpack.c.bf16 %v1490, %v1458
      %v1971 = vpack.c.bf16 %v1491, %v1459
      %v1972 = vpack.c.bf16 %v1492, %v1460
      %v1973 = vpack.c.bf16 %v1525, %v1493
      %v1974 = vpack.c.bf16 %v1526, %v1494
      %v1975 = vpack.c.bf16 %v1527, %v1495
      %v1976 = vpack.c.bf16 %v1528, %v1496
      %v1977 = vpack.c.bf16 %v1529, %v1497
      %v1978 = vpack.c.bf16 %v1530, %v1498
      %v1979 = vpack.c.bf16 %v1531, %v1499
      %v1980 = vpack.c.bf16 %v1532, %v1500
      %v1981 = vpack.c.bf16 %v1533, %v1501
      %v1982 = vpack.c.bf16 %v1534, %v1502
      %v1983 = vpack.c.bf16 %v1535, %v1503
      %v1984 = vpack.c.bf16 %v1536, %v1504
      %v1985 = vpack.c.bf16 %v1537, %v1505
      %v1986 = vpack.c.bf16 %v1538, %v1506
      %v1987 = vpack.c.bf16 %v1539, %v1507
      %v1988 = vpack.c.bf16 %v1540, %v1508
      %v1989 = vpack.c.bf16 %v1541, %v1509
      %v1990 = vpack.c.bf16 %v1542, %v1510
      %v1991 = vpack.c.bf16 %v1543, %v1511
      %v1992 = vpack.c.bf16 %v1544, %v1512
      %v1993 = vpack.c.bf16 %v1545, %v1513
      %v1994 = vpack.c.bf16 %v1546, %v1514
      %v1995 = vpack.c.bf16 %v1547, %v1515
      %v1996 = vpack.c.bf16 %v1548, %v1516
      %v1997 = vpack.c.bf16 %v1549, %v1517
      %v1998 = vpack.c.bf16 %v1550, %v1518
      %v1999 = vpack.c.bf16 %v1551, %v1519
      %v2000 = vpack.c.bf16 %v1552, %v1520
      %v2001 = vpack.c.bf16 %v1553, %v1521
      %v2002 = vpack.c.bf16 %v1554, %v1522
      %v2003 = vpack.c.bf16 %v1555, %v1523
      %v2004 = vpack.c.bf16 %v1556, %v1524
      %v2005 = vpack.c.bf16 %v1589, %v1557
      %v2006 = vpack.c.bf16 %v1590, %v1558
      %v2007 = vpack.c.bf16 %v1591, %v1559
      %v2008 = vpack.c.bf16 %v1592, %v1560
      %v2009 = vpack.c.bf16 %v1593, %v1561
      %v2010 = vpack.c.bf16 %v1594, %v1562
      %v2011 = vpack.c.bf16 %v1595, %v1563
      %v2012 = vpack.c.bf16 %v1596, %v1564
      %v2013 = vpack.c.bf16 %v1597, %v1565
      %v2014 = vpack.c.bf16 %v1598, %v1566
      %v2015 = vpack.c.bf16 %v1599, %v1567
      %v2016 = vpack.c.bf16 %v1600, %v1568
      %v2017 = vpack.c.bf16 %v1601, %v1569
      %v2018 = vpack.c.bf16 %v1602, %v1570
      %v2019 = vpack.c.bf16 %v1603, %v1571
      %v2020 = vpack.c.bf16 %v1604, %v1572
      %v2021 = vpack.c.bf16 %v1605, %v1573
      %v2022 = vpack.c.bf16 %v1606, %v1574
      %v2023 = vpack.c.bf16 %v1607, %v1575
      %v2024 = vpack.c.bf16 %v1608, %v1576
      %v2025 = vpack.c.bf16 %v1609, %v1577
      %v2026 = vpack.c.bf16 %v1610, %v1578
      %v2027 = vpack.c.bf16 %v1611, %v1579
      %v2028 = vpack.c.bf16 %v1612, %v1580
      %v2029 = vpack.c.bf16 %v1613, %v1581
      %v2030 = vpack.c.bf16 %v1614, %v1582
      %v2031 = vpack.c.bf16 %v1615, %v1583
      %v2032 = vpack.c.bf16 %v1616, %v1584
      %v2033 = vpack.c.bf16 %v1617, %v1585
      %v2034 = vpack.c.bf16 %v1618, %v1586
      %v2035 = vpack.c.bf16 %v1619, %v1587
      %v2036 = vpack.c.bf16 %v1620, %v1588
      %v2037 = vpack.c.bf16 %v1653, %v1621
      %v2038 = vpack.c.bf16 %v1654, %v1622
      %v2039 = vpack.c.bf16 %v1655, %v1623
      %v2040 = vpack.c.bf16 %v1656, %v1624
      %v2041 = vpack.c.bf16 %v1657, %v1625
      %v2042 = vpack.c.bf16 %v1658, %v1626
      %v2043 = vpack.c.bf16 %v1659, %v1627
      %v2044 = vpack.c.bf16 %v1660, %v1628
      %v2045 = vpack.c.bf16 %v1661, %v1629
      %v2046 = vpack.c.bf16 %v1662, %v1630
      %v2047 = vpack.c.bf16 %v1663, %v1631
      %v2048 = vpack.c.bf16 %v1664, %v1632
      %v2049 = vpack.c.bf16 %v1665, %v1633
      %v2050 = vpack.c.bf16 %v1666, %v1634
      %v2051 = vpack.c.bf16 %v1667, %v1635
      %v2052 = vpack.c.bf16 %v1668, %v1636
      %v2053 = vpack.c.bf16 %v1669, %v1637
      %v2054 = vpack.c.bf16 %v1670, %v1638
      %v2055 = vpack.c.bf16 %v1671, %v1639
      %v2056 = vpack.c.bf16 %v1672, %v1640
      %v2057 = vpack.c.bf16 %v1673, %v1641
      %v2058 = vpack.c.bf16 %v1674, %v1642
      %v2059 = vpack.c.bf16 %v1675, %v1643
      %v2060 = vpack.c.bf16 %v1676, %v1644
      %v2061 = vpack.c.bf16 %v1677, %v1645
      %v2062 = vpack.c.bf16 %v1678, %v1646
      %v2063 = vpack.c.bf16 %v1679, %v1647
      %v2064 = vpack.c.bf16 %v1680, %v1648
      %v2065 = vpack.c.bf16 %v1681, %v1649
      %v2066 = vpack.c.bf16 %v1682, %v1650
      %v2067 = vpack.c.bf16 %v1683, %v1651
      %v2068 = vpack.c.bf16 %v1684, %v1652
      %v2069 = vpack.c.bf16 %v1717, %v1685
      %v2070 = vpack.c.bf16 %v1718, %v1686
      %v2071 = vpack.c.bf16 %v1719, %v1687
      %v2072 = vpack.c.bf16 %v1720, %v1688
      %v2073 = vpack.c.bf16 %v1721, %v1689
      %v2074 = vpack.c.bf16 %v1722, %v1690
      %v2075 = vpack.c.bf16 %v1723, %v1691
      %v2076 = vpack.c.bf16 %v1724, %v1692
      %v2077 = vpack.c.bf16 %v1725, %v1693
      %v2078 = vpack.c.bf16 %v1726, %v1694
      %v2079 = vpack.c.bf16 %v1727, %v1695
      %v2080 = vpack.c.bf16 %v1728, %v1696
      %v2081 = vpack.c.bf16 %v1729, %v1697
      %v2082 = vpack.c.bf16 %v1730, %v1698
      %v2083 = vpack.c.bf16 %v1731, %v1699
      %v2084 = vpack.c.bf16 %v1732, %v1700
      %v2085 = vpack.c.bf16 %v1733, %v1701
      %v2086 = vpack.c.bf16 %v1734, %v1702
      %v2087 = vpack.c.bf16 %v1735, %v1703
      %v2088 = vpack.c.bf16 %v1736, %v1704
      %v2089 = vpack.c.bf16 %v1737, %v1705
      %v2090 = vpack.c.bf16 %v1738, %v1706
      %v2091 = vpack.c.bf16 %v1739, %v1707
      %v2092 = vpack.c.bf16 %v1740, %v1708
      %v2093 = vpack.c.bf16 %v1741, %v1709
      %v2094 = vpack.c.bf16 %v1742, %v1710
      %v2095 = vpack.c.bf16 %v1743, %v1711
      %v2096 = vpack.c.bf16 %v1744, %v1712
      %v2097 = vpack.c.bf16 %v1745, %v1713
      %v2098 = vpack.c.bf16 %v1746, %v1714
      %v2099 = vpack.c.bf16 %v1747, %v1715
      %v2100 = vpack.c.bf16 %v1748, %v1716
      %v2101 = vpack.c.bf16 %v1781, %v1749
      %v2102 = vpack.c.bf16 %v1782, %v1750
      %v2103 = vpack.c.bf16 %v1783, %v1751
      %v2104 = vpack.c.bf16 %v1784, %v1752
      %v2105 = vpack.c.bf16 %v1785, %v1753
      %v2106 = vpack.c.bf16 %v1786, %v1754
      %v2107 = vpack.c.bf16 %v1787, %v1755
      %v2108 = vpack.c.bf16 %v1788, %v1756
      %v2109 = vpack.c.bf16 %v1789, %v1757
      %v2110 = vpack.c.bf16 %v1790, %v1758
      %v2111 = vpack.c.bf16 %v1791, %v1759
      %v2112 = vpack.c.bf16 %v1792, %v1760
      %v2113 = vpack.c.bf16 %v1793, %v1761
      %v2114 = vpack.c.bf16 %v1794, %v1762
      %v2115 = vpack.c.bf16 %v1795, %v1763
      %v2116 = vpack.c.bf16 %v1796, %v1764
      %v2117 = vpack.c.bf16 %v1797, %v1765
      %v2118 = vpack.c.bf16 %v1798, %v1766
      %v2119 = vpack.c.bf16 %v1799, %v1767
      %v2120 = vpack.c.bf16 %v1800, %v1768
      %v2121 = vpack.c.bf16 %v1801, %v1769
      %v2122 = vpack.c.bf16 %v1802, %v1770
      %v2123 = vpack.c.bf16 %v1803, %v1771
      %v2124 = vpack.c.bf16 %v1804, %v1772
      %v2125 = vpack.c.bf16 %v1805, %v1773
      %v2126 = vpack.c.bf16 %v1806, %v1774
      %v2127 = vpack.c.bf16 %v1807, %v1775
      %v2128 = vpack.c.bf16 %v1808, %v1776
      %v2129 = vpack.c.bf16 %v1809, %v1777
      %v2130 = vpack.c.bf16 %v1810, %v1778
      %v2131 = vpack.c.bf16 %v1811, %v1779
      %v2132 = vpack.c.bf16 %v1812, %v1780
      %v2133 = vpack.c.bf16 %v1845, %v1813
      %v2134 = vpack.c.bf16 %v1846, %v1814
      %v2135 = vpack.c.bf16 %v1847, %v1815
      %v2136 = vpack.c.bf16 %v1848, %v1816
      %v2137 = vpack.c.bf16 %v1849, %v1817
      %v2138 = vpack.c.bf16 %v1850, %v1818
      %v2139 = vpack.c.bf16 %v1851, %v1819
      %v2140 = vpack.c.bf16 %v1852, %v1820
      %v2141 = vpack.c.bf16 %v1853, %v1821
      %v2142 = vpack.c.bf16 %v1854, %v1822
      %v2143 = vpack.c.bf16 %v1855, %v1823
      %v2144 = vpack.c.bf16 %v1856, %v1824
      %v2145 = vpack.c.bf16 %v1857, %v1825
      %v2146 = vpack.c.bf16 %v1858, %v1826
      %v2147 = vpack.c.bf16 %v1859, %v1827
      %v2148 = vpack.c.bf16 %v1860, %v1828
      %v2149 = vpack.c.bf16 %v1861, %v1829
      %v2150 = vpack.c.bf16 %v1862, %v1830
      %v2151 = vpack.c.bf16 %v1863, %v1831
      %v2152 = vpack.c.bf16 %v1864, %v1832
      %v2153 = vpack.c.bf16 %v1865, %v1833
      %v2154 = vpack.c.bf16 %v1866, %v1834
      %v2155 = vpack.c.bf16 %v1867, %v1835
      %v2156 = vpack.c.bf16 %v1868, %v1836
      %v2157 = vpack.c.bf16 %v1869, %v1837
      %v2158 = vpack.c.bf16 %v1870, %v1838
      %v2159 = vpack.c.bf16 %v1871, %v1839
      %v2160 = vpack.c.bf16 %v1872, %v1840
      %v2161 = vpack.c.bf16 %v1873, %v1841
      %v2162 = vpack.c.bf16 %v1874, %v1842
      %v2163 = vpack.c.bf16 %v1875, %v1843
      %v2164 = vpack.c.bf16 %v1876, %v1844
      %v2165 = vpack.c.bf16 %v1909, %v1877
      %v2166 = vpack.c.bf16 %v1910, %v1878
      %v2167 = vpack.c.bf16 %v1911, %v1879
      %v2168 = vpack.c.bf16 %v1912, %v1880
      %v2169 = vpack.c.bf16 %v1913, %v1881
      %v2170 = vpack.c.bf16 %v1914, %v1882
      %v2171 = vpack.c.bf16 %v1915, %v1883
      %v2172 = vpack.c.bf16 %v1916, %v1884
      %v2173 = vpack.c.bf16 %v1917, %v1885
      %v2174 = vpack.c.bf16 %v1918, %v1886
      %v2175 = vpack.c.bf16 %v1919, %v1887
      %v2176 = vpack.c.bf16 %v1920, %v1888
      %v2177 = vpack.c.bf16 %v1921, %v1889
      %v2178 = vpack.c.bf16 %v1922, %v1890
      %v2179 = vpack.c.bf16 %v1923, %v1891
      %v2180 = vpack.c.bf16 %v1924, %v1892
      %v2181 = vpack.c.bf16 %v1925, %v1893
      %v2182 = vpack.c.bf16 %v1926, %v1894
      %v2183 = vpack.c.bf16 %v1927, %v1895
      %v2184 = vpack.c.bf16 %v1928, %v1896
      %v2185 = vpack.c.bf16 %v1929, %v1897
      %v2186 = vpack.c.bf16 %v1930, %v1898
      %v2187 = vpack.c.bf16 %v1931, %v1899
      %v2188 = vpack.c.bf16 %v1932, %v1900
      %v2189 = vpack.c.bf16 %v1933, %v1901
      %v2190 = vpack.c.bf16 %v1934, %v1902
      %v2191 = vpack.c.bf16 %v1935, %v1903
      %v2192 = vpack.c.bf16 %v1936, %v1904
      %v2193 = vpack.c.bf16 %v1937, %v1905
      %v2194 = vpack.c.bf16 %v1938, %v1906
      %v2195 = vpack.c.bf16 %v1939, %v1907
      %v2196 = vpack.c.bf16 %v1940, %v1908
      %v2197 = vlaneseq
      %v2198 = vshrl.u32 %v2197, 7
      %v2199 = vsub.s32 0, %v2198
      %v2200 = vrot.slane %v220, %v2199
      %v2201 = vlaneseq
      %v2202 = vshrl.u32 %v2201, 7
      %v2203 = vsub.s32 1, %v2202
      %v2204 = vrot.slane %v220, %v2203
      %v2205 = vlaneseq
      %v2206 = vshrl.u32 %v2205, 7
      %v2207 = vsub.s32 2, %v2206
      %v2208 = vrot.slane %v220, %v2207
      %v2209 = vlaneseq
      %v2210 = vshrl.u32 %v2209, 7
      %v2211 = vsub.s32 3, %v2210
      %v2212 = vrot.slane %v220, %v2211
      %v2213 = vlaneseq
      %v2214 = vshrl.u32 %v2213, 7
      %v2215 = vsub.s32 4, %v2214
      %v2216 = vrot.slane %v220, %v2215
      %v2217 = vlaneseq
      %v2218 = vshrl.u32 %v2217, 7
      %v2219 = vsub.s32 5, %v2218
      %v2220 = vrot.slane %v220, %v2219
      %v2221 = vlaneseq
      %v2222 = vshrl.u32 %v2221, 7
      %v2223 = vsub.s32 6, %v2222
      %v2224 = vrot.slane %v220, %v2223
      %v2225 = vlaneseq
      %v2226 = vshrl.u32 %v2225, 7
      %v2227 = vsub.s32 7, %v2226
      %v2228 = vrot.slane %v220, %v2227
      %v2229 = vlaneseq
      %v2230 = vshrl.u32 %v2229, 7
      %v2231 = vsub.s32 0, %v2230
      %v2232 = vrot.slane %v221, %v2231
      %v2233 = vlaneseq
      %v2234 = vshrl.u32 %v2233, 7
      %v2235 = vsub.s32 1, %v2234
      %v2236 = vrot.slane %v221, %v2235
      %v2237 = vlaneseq
      %v2238 = vshrl.u32 %v2237, 7
      %v2239 = vsub.s32 2, %v2238
      %v2240 = vrot.slane %v221, %v2239
      %v2241 = vlaneseq
      %v2242 = vshrl.u32 %v2241, 7
      %v2243 = vsub.s32 3, %v2242
      %v2244 = vrot.slane %v221, %v2243
      %v2245 = vlaneseq
      %v2246 = vshrl.u32 %v2245, 7
      %v2247 = vsub.s32 4, %v2246
      %v2248 = vrot.slane %v221, %v2247
      %v2249 = vlaneseq
      %v2250 = vshrl.u32 %v2249, 7
      %v2251 = vsub.s32 5, %v2250
      %v2252 = vrot.slane %v221, %v2251
      %v2253 = vlaneseq
      %v2254 = vshrl.u32 %v2253, 7
      %v2255 = vsub.s32 6, %v2254
      %v2256 = vrot.slane %v221, %v2255
      %v2257 = vlaneseq
      %v2258 = vshrl.u32 %v2257, 7
      %v2259 = vsub.s32 7, %v2258
      %v2260 = vrot.slane %v221, %v2259
      %v2261 = vlaneseq
      %v2262 = vshrl.u32 %v2261, 7
      %v2263 = vsub.s32 0, %v2262
      %v2264 = vrot.slane %v222, %v2263
      %v2265 = vlaneseq
      %v2266 = vshrl.u32 %v2265, 7
      %v2267 = vsub.s32 1, %v2266
      %v2268 = vrot.slane %v222, %v2267
      %v2269 = vlaneseq
      %v2270 = vshrl.u32 %v2269, 7
      %v2271 = vsub.s32 2, %v2270
      %v2272 = vrot.slane %v222, %v2271
      %v2273 = vlaneseq
      %v2274 = vshrl.u32 %v2273, 7
      %v2275 = vsub.s32 3, %v2274
      %v2276 = vrot.slane %v222, %v2275
      %v2277 = vlaneseq
      %v2278 = vshrl.u32 %v2277, 7
      %v2279 = vsub.s32 4, %v2278
      %v2280 = vrot.slane %v222, %v2279
      %v2281 = vlaneseq
      %v2282 = vshrl.u32 %v2281, 7
      %v2283 = vsub.s32 5, %v2282
      %v2284 = vrot.slane %v222, %v2283
      %v2285 = vlaneseq
      %v2286 = vshrl.u32 %v2285, 7
      %v2287 = vsub.s32 6, %v2286
      %v2288 = vrot.slane %v222, %v2287
      %v2289 = vlaneseq
      %v2290 = vshrl.u32 %v2289, 7
      %v2291 = vsub.s32 7, %v2290
      %v2292 = vrot.slane %v222, %v2291
      %v2293 = vlaneseq
      %v2294 = vshrl.u32 %v2293, 7
      %v2295 = vsub.s32 0, %v2294
      %v2296 = vrot.slane %v223, %v2295
      %v2297 = vlaneseq
      %v2298 = vshrl.u32 %v2297, 7
      %v2299 = vsub.s32 1, %v2298
      %v2300 = vrot.slane %v223, %v2299
      %v2301 = vlaneseq
      %v2302 = vshrl.u32 %v2301, 7
      %v2303 = vsub.s32 2, %v2302
      %v2304 = vrot.slane %v223, %v2303
      %v2305 = vlaneseq
      %v2306 = vshrl.u32 %v2305, 7
      %v2307 = vsub.s32 3, %v2306
      %v2308 = vrot.slane %v223, %v2307
      %v2309 = vlaneseq
      %v2310 = vshrl.u32 %v2309, 7
      %v2311 = vsub.s32 4, %v2310
      %v2312 = vrot.slane %v223, %v2311
      %v2313 = vlaneseq
      %v2314 = vshrl.u32 %v2313, 7
      %v2315 = vsub.s32 5, %v2314
      %v2316 = vrot.slane %v223, %v2315
      %v2317 = vlaneseq
      %v2318 = vshrl.u32 %v2317, 7
      %v2319 = vsub.s32 6, %v2318
      %v2320 = vrot.slane %v223, %v2319
      %v2321 = vlaneseq
      %v2322 = vshrl.u32 %v2321, 7
      %v2323 = vsub.s32 7, %v2322
      %v2324 = vrot.slane %v223, %v2323
      %vm2325 = vcmp.eq.s32.totalorder %v245, %v2200
      %vm2326 = vcmp.eq.s32.totalorder %v245, %v2204
      %vm2327 = vcmp.eq.s32.totalorder %v245, %v2208
      %vm2328 = vcmp.eq.s32.totalorder %v245, %v2212
      %vm2329 = vcmp.eq.s32.totalorder %v245, %v2216
      %vm2330 = vcmp.eq.s32.totalorder %v245, %v2220
      %vm2331 = vcmp.eq.s32.totalorder %v245, %v2224
      %vm2332 = vcmp.eq.s32.totalorder %v245, %v2228
      %vm2333 = vcmp.eq.s32.totalorder %v245, %v2232
      %vm2334 = vcmp.eq.s32.totalorder %v245, %v2236
      %vm2335 = vcmp.eq.s32.totalorder %v245, %v2240
      %vm2336 = vcmp.eq.s32.totalorder %v245, %v2244
      %vm2337 = vcmp.eq.s32.totalorder %v245, %v2248
      %vm2338 = vcmp.eq.s32.totalorder %v245, %v2252
      %vm2339 = vcmp.eq.s32.totalorder %v245, %v2256
      %vm2340 = vcmp.eq.s32.totalorder %v245, %v2260
      %vm2341 = vcmp.eq.s32.totalorder %v245, %v2264
      %vm2342 = vcmp.eq.s32.totalorder %v245, %v2268
      %vm2343 = vcmp.eq.s32.totalorder %v245, %v2272
      %vm2344 = vcmp.eq.s32.totalorder %v245, %v2276
      %vm2345 = vcmp.eq.s32.totalorder %v245, %v2280
      %vm2346 = vcmp.eq.s32.totalorder %v245, %v2284
      %vm2347 = vcmp.eq.s32.totalorder %v245, %v2288
      %vm2348 = vcmp.eq.s32.totalorder %v245, %v2292
      %vm2349 = vcmp.eq.s32.totalorder %v245, %v2296
      %vm2350 = vcmp.eq.s32.totalorder %v245, %v2300
      %vm2351 = vcmp.eq.s32.totalorder %v245, %v2304
      %vm2352 = vcmp.eq.s32.totalorder %v245, %v2308
      %vm2353 = vcmp.eq.s32.totalorder %v245, %v2312
      %vm2354 = vcmp.eq.s32.totalorder %v245, %v2316
      %vm2355 = vcmp.eq.s32.totalorder %v245, %v2320
      %vm2356 = vcmp.eq.s32.totalorder %v245, %v2324
      %vm2357 = vcmp.eq.s32.totalorder %v246, %v2200
      %vm2358 = vcmp.eq.s32.totalorder %v246, %v2204
      %vm2359 = vcmp.eq.s32.totalorder %v246, %v2208
      %vm2360 = vcmp.eq.s32.totalorder %v246, %v2212
      %vm2361 = vcmp.eq.s32.totalorder %v246, %v2216
      %vm2362 = vcmp.eq.s32.totalorder %v246, %v2220
      %vm2363 = vcmp.eq.s32.totalorder %v246, %v2224
      %vm2364 = vcmp.eq.s32.totalorder %v246, %v2228
      %vm2365 = vcmp.eq.s32.totalorder %v246, %v2232
      %vm2366 = vcmp.eq.s32.totalorder %v246, %v2236
      %vm2367 = vcmp.eq.s32.totalorder %v246, %v2240
      %vm2368 = vcmp.eq.s32.totalorder %v246, %v2244
      %vm2369 = vcmp.eq.s32.totalorder %v246, %v2248
      %vm2370 = vcmp.eq.s32.totalorder %v246, %v2252
      %vm2371 = vcmp.eq.s32.totalorder %v246, %v2256
      %vm2372 = vcmp.eq.s32.totalorder %v246, %v2260
      %vm2373 = vcmp.eq.s32.totalorder %v246, %v2264
      %vm2374 = vcmp.eq.s32.totalorder %v246, %v2268
      %vm2375 = vcmp.eq.s32.totalorder %v246, %v2272
      %vm2376 = vcmp.eq.s32.totalorder %v246, %v2276
      %vm2377 = vcmp.eq.s32.totalorder %v246, %v2280
      %vm2378 = vcmp.eq.s32.totalorder %v246, %v2284
      %vm2379 = vcmp.eq.s32.totalorder %v246, %v2288
      %vm2380 = vcmp.eq.s32.totalorder %v246, %v2292
      %vm2381 = vcmp.eq.s32.totalorder %v246, %v2296
      %vm2382 = vcmp.eq.s32.totalorder %v246, %v2300
      %vm2383 = vcmp.eq.s32.totalorder %v246, %v2304
      %vm2384 = vcmp.eq.s32.totalorder %v246, %v2308
      %vm2385 = vcmp.eq.s32.totalorder %v246, %v2312
      %vm2386 = vcmp.eq.s32.totalorder %v246, %v2316
      %vm2387 = vcmp.eq.s32.totalorder %v246, %v2320
      %vm2388 = vcmp.eq.s32.totalorder %v246, %v2324
      %vm2389 = vcmp.eq.s32.totalorder %v247, %v2200
      %vm2390 = vcmp.eq.s32.totalorder %v247, %v2204
      %vm2391 = vcmp.eq.s32.totalorder %v247, %v2208
      %vm2392 = vcmp.eq.s32.totalorder %v247, %v2212
      %vm2393 = vcmp.eq.s32.totalorder %v247, %v2216
      %vm2394 = vcmp.eq.s32.totalorder %v247, %v2220
      %vm2395 = vcmp.eq.s32.totalorder %v247, %v2224
      %vm2396 = vcmp.eq.s32.totalorder %v247, %v2228
      %vm2397 = vcmp.eq.s32.totalorder %v247, %v2232
      %vm2398 = vcmp.eq.s32.totalorder %v247, %v2236
      %vm2399 = vcmp.eq.s32.totalorder %v247, %v2240
      %vm2400 = vcmp.eq.s32.totalorder %v247, %v2244
      %vm2401 = vcmp.eq.s32.totalorder %v247, %v2248
      %vm2402 = vcmp.eq.s32.totalorder %v247, %v2252
      %vm2403 = vcmp.eq.s32.totalorder %v247, %v2256
      %vm2404 = vcmp.eq.s32.totalorder %v247, %v2260
      %vm2405 = vcmp.eq.s32.totalorder %v247, %v2264
      %vm2406 = vcmp.eq.s32.totalorder %v247, %v2268
      %vm2407 = vcmp.eq.s32.totalorder %v247, %v2272
      %vm2408 = vcmp.eq.s32.totalorder %v247, %v2276
      %vm2409 = vcmp.eq.s32.totalorder %v247, %v2280
      %vm2410 = vcmp.eq.s32.totalorder %v247, %v2284
      %vm2411 = vcmp.eq.s32.totalorder %v247, %v2288
      %vm2412 = vcmp.eq.s32.totalorder %v247, %v2292
      %vm2413 = vcmp.eq.s32.totalorder %v247, %v2296
      %vm2414 = vcmp.eq.s32.totalorder %v247, %v2300
      %vm2415 = vcmp.eq.s32.totalorder %v247, %v2304
      %vm2416 = vcmp.eq.s32.totalorder %v247, %v2308
      %vm2417 = vcmp.eq.s32.totalorder %v247, %v2312
      %vm2418 = vcmp.eq.s32.totalorder %v247, %v2316
      %vm2419 = vcmp.eq.s32.totalorder %v247, %v2320
      %vm2420 = vcmp.eq.s32.totalorder %v247, %v2324
      %vm2421 = vcmp.eq.s32.totalorder %v248, %v2200
      %vm2422 = vcmp.eq.s32.totalorder %v248, %v2204
      %vm2423 = vcmp.eq.s32.totalorder %v248, %v2208
      %vm2424 = vcmp.eq.s32.totalorder %v248, %v2212
      %vm2425 = vcmp.eq.s32.totalorder %v248, %v2216
      %vm2426 = vcmp.eq.s32.totalorder %v248, %v2220
      %vm2427 = vcmp.eq.s32.totalorder %v248, %v2224
      %vm2428 = vcmp.eq.s32.totalorder %v248, %v2228
      %vm2429 = vcmp.eq.s32.totalorder %v248, %v2232
      %vm2430 = vcmp.eq.s32.totalorder %v248, %v2236
      %vm2431 = vcmp.eq.s32.totalorder %v248, %v2240
      %vm2432 = vcmp.eq.s32.totalorder %v248, %v2244
      %vm2433 = vcmp.eq.s32.totalorder %v248, %v2248
      %vm2434 = vcmp.eq.s32.totalorder %v248, %v2252
      %vm2435 = vcmp.eq.s32.totalorder %v248, %v2256
      %vm2436 = vcmp.eq.s32.totalorder %v248, %v2260
      %vm2437 = vcmp.eq.s32.totalorder %v248, %v2264
      %vm2438 = vcmp.eq.s32.totalorder %v248, %v2268
      %vm2439 = vcmp.eq.s32.totalorder %v248, %v2272
      %vm2440 = vcmp.eq.s32.totalorder %v248, %v2276
      %vm2441 = vcmp.eq.s32.totalorder %v248, %v2280
      %vm2442 = vcmp.eq.s32.totalorder %v248, %v2284
      %vm2443 = vcmp.eq.s32.totalorder %v248, %v2288
      %vm2444 = vcmp.eq.s32.totalorder %v248, %v2292
      %vm2445 = vcmp.eq.s32.totalorder %v248, %v2296
      %vm2446 = vcmp.eq.s32.totalorder %v248, %v2300
      %vm2447 = vcmp.eq.s32.totalorder %v248, %v2304
      %vm2448 = vcmp.eq.s32.totalorder %v248, %v2308
      %vm2449 = vcmp.eq.s32.totalorder %v248, %v2312
      %vm2450 = vcmp.eq.s32.totalorder %v248, %v2316
      %vm2451 = vcmp.eq.s32.totalorder %v248, %v2320
      %vm2452 = vcmp.eq.s32.totalorder %v248, %v2324
      %vm2453 = vcmp.eq.s32.totalorder %v249, %v2200
      %vm2454 = vcmp.eq.s32.totalorder %v249, %v2204
      %vm2455 = vcmp.eq.s32.totalorder %v249, %v2208
      %vm2456 = vcmp.eq.s32.totalorder %v249, %v2212
      %vm2457 = vcmp.eq.s32.totalorder %v249, %v2216
      %vm2458 = vcmp.eq.s32.totalorder %v249, %v2220
      %vm2459 = vcmp.eq.s32.totalorder %v249, %v2224
      %vm2460 = vcmp.eq.s32.totalorder %v249, %v2228
      %vm2461 = vcmp.eq.s32.totalorder %v249, %v2232
      %vm2462 = vcmp.eq.s32.totalorder %v249, %v2236
      %vm2463 = vcmp.eq.s32.totalorder %v249, %v2240
      %vm2464 = vcmp.eq.s32.totalorder %v249, %v2244
      %vm2465 = vcmp.eq.s32.totalorder %v249, %v2248
      %vm2466 = vcmp.eq.s32.totalorder %v249, %v2252
      %vm2467 = vcmp.eq.s32.totalorder %v249, %v2256
      %vm2468 = vcmp.eq.s32.totalorder %v249, %v2260
      %vm2469 = vcmp.eq.s32.totalorder %v249, %v2264
      %vm2470 = vcmp.eq.s32.totalorder %v249, %v2268
      %vm2471 = vcmp.eq.s32.totalorder %v249, %v2272
      %vm2472 = vcmp.eq.s32.totalorder %v249, %v2276
      %vm2473 = vcmp.eq.s32.totalorder %v249, %v2280
      %vm2474 = vcmp.eq.s32.totalorder %v249, %v2284
      %vm2475 = vcmp.eq.s32.totalorder %v249, %v2288
      %vm2476 = vcmp.eq.s32.totalorder %v249, %v2292
      %vm2477 = vcmp.eq.s32.totalorder %v249, %v2296
      %vm2478 = vcmp.eq.s32.totalorder %v249, %v2300
      %vm2479 = vcmp.eq.s32.totalorder %v249, %v2304
      %vm2480 = vcmp.eq.s32.totalorder %v249, %v2308
      %vm2481 = vcmp.eq.s32.totalorder %v249, %v2312
      %vm2482 = vcmp.eq.s32.totalorder %v249, %v2316
      %vm2483 = vcmp.eq.s32.totalorder %v249, %v2320
      %vm2484 = vcmp.eq.s32.totalorder %v249, %v2324
      %vm2485 = vcmp.eq.s32.totalorder %v250, %v2200
      %vm2486 = vcmp.eq.s32.totalorder %v250, %v2204
      %vm2487 = vcmp.eq.s32.totalorder %v250, %v2208
      %vm2488 = vcmp.eq.s32.totalorder %v250, %v2212
      %vm2489 = vcmp.eq.s32.totalorder %v250, %v2216
      %vm2490 = vcmp.eq.s32.totalorder %v250, %v2220
      %vm2491 = vcmp.eq.s32.totalorder %v250, %v2224
      %vm2492 = vcmp.eq.s32.totalorder %v250, %v2228
      %vm2493 = vcmp.eq.s32.totalorder %v250, %v2232
      %vm2494 = vcmp.eq.s32.totalorder %v250, %v2236
      %vm2495 = vcmp.eq.s32.totalorder %v250, %v2240
      %vm2496 = vcmp.eq.s32.totalorder %v250, %v2244
      %vm2497 = vcmp.eq.s32.totalorder %v250, %v2248
      %vm2498 = vcmp.eq.s32.totalorder %v250, %v2252
      %vm2499 = vcmp.eq.s32.totalorder %v250, %v2256
      %vm2500 = vcmp.eq.s32.totalorder %v250, %v2260
      %vm2501 = vcmp.eq.s32.totalorder %v250, %v2264
      %vm2502 = vcmp.eq.s32.totalorder %v250, %v2268
      %vm2503 = vcmp.eq.s32.totalorder %v250, %v2272
      %vm2504 = vcmp.eq.s32.totalorder %v250, %v2276
      %vm2505 = vcmp.eq.s32.totalorder %v250, %v2280
      %vm2506 = vcmp.eq.s32.totalorder %v250, %v2284
      %vm2507 = vcmp.eq.s32.totalorder %v250, %v2288
      %vm2508 = vcmp.eq.s32.totalorder %v250, %v2292
      %vm2509 = vcmp.eq.s32.totalorder %v250, %v2296
      %vm2510 = vcmp.eq.s32.totalorder %v250, %v2300
      %vm2511 = vcmp.eq.s32.totalorder %v250, %v2304
      %vm2512 = vcmp.eq.s32.totalorder %v250, %v2308
      %vm2513 = vcmp.eq.s32.totalorder %v250, %v2312
      %vm2514 = vcmp.eq.s32.totalorder %v250, %v2316
      %vm2515 = vcmp.eq.s32.totalorder %v250, %v2320
      %vm2516 = vcmp.eq.s32.totalorder %v250, %v2324
      %vm2517 = vcmp.eq.s32.totalorder %v251, %v2200
      %vm2518 = vcmp.eq.s32.totalorder %v251, %v2204
      %vm2519 = vcmp.eq.s32.totalorder %v251, %v2208
      %vm2520 = vcmp.eq.s32.totalorder %v251, %v2212
      %vm2521 = vcmp.eq.s32.totalorder %v251, %v2216
      %vm2522 = vcmp.eq.s32.totalorder %v251, %v2220
      %vm2523 = vcmp.eq.s32.totalorder %v251, %v2224
      %vm2524 = vcmp.eq.s32.totalorder %v251, %v2228
      %vm2525 = vcmp.eq.s32.totalorder %v251, %v2232
      %vm2526 = vcmp.eq.s32.totalorder %v251, %v2236
      %vm2527 = vcmp.eq.s32.totalorder %v251, %v2240
      %vm2528 = vcmp.eq.s32.totalorder %v251, %v2244
      %vm2529 = vcmp.eq.s32.totalorder %v251, %v2248
      %vm2530 = vcmp.eq.s32.totalorder %v251, %v2252
      %vm2531 = vcmp.eq.s32.totalorder %v251, %v2256
      %vm2532 = vcmp.eq.s32.totalorder %v251, %v2260
      %vm2533 = vcmp.eq.s32.totalorder %v251, %v2264
      %vm2534 = vcmp.eq.s32.totalorder %v251, %v2268
      %vm2535 = vcmp.eq.s32.totalorder %v251, %v2272
      %vm2536 = vcmp.eq.s32.totalorder %v251, %v2276
      %vm2537 = vcmp.eq.s32.totalorder %v251, %v2280
      %vm2538 = vcmp.eq.s32.totalorder %v251, %v2284
      %vm2539 = vcmp.eq.s32.totalorder %v251, %v2288
      %vm2540 = vcmp.eq.s32.totalorder %v251, %v2292
      %vm2541 = vcmp.eq.s32.totalorder %v251, %v2296
      %vm2542 = vcmp.eq.s32.totalorder %v251, %v2300
      %vm2543 = vcmp.eq.s32.totalorder %v251, %v2304
      %vm2544 = vcmp.eq.s32.totalorder %v251, %v2308
      %vm2545 = vcmp.eq.s32.totalorder %v251, %v2312
      %vm2546 = vcmp.eq.s32.totalorder %v251, %v2316
      %vm2547 = vcmp.eq.s32.totalorder %v251, %v2320
      %vm2548 = vcmp.eq.s32.totalorder %v251, %v2324
      %vm2549 = vcmp.eq.s32.totalorder %v252, %v2200
      %vm2550 = vcmp.eq.s32.totalorder %v252, %v2204
      %vm2551 = vcmp.eq.s32.totalorder %v252, %v2208
      %vm2552 = vcmp.eq.s32.totalorder %v252, %v2212
      %vm2553 = vcmp.eq.s32.totalorder %v252, %v2216
      %vm2554 = vcmp.eq.s32.totalorder %v252, %v2220
      %vm2555 = vcmp.eq.s32.totalorder %v252, %v2224
      %vm2556 = vcmp.eq.s32.totalorder %v252, %v2228
      %vm2557 = vcmp.eq.s32.totalorder %v252, %v2232
      %vm2558 = vcmp.eq.s32.totalorder %v252, %v2236
      %vm2559 = vcmp.eq.s32.totalorder %v252, %v2240
      %vm2560 = vcmp.eq.s32.totalorder %v252, %v2244
      %vm2561 = vcmp.eq.s32.totalorder %v252, %v2248
      %vm2562 = vcmp.eq.s32.totalorder %v252, %v2252
      %vm2563 = vcmp.eq.s32.totalorder %v252, %v2256
      %vm2564 = vcmp.eq.s32.totalorder %v252, %v2260
      %vm2565 = vcmp.eq.s32.totalorder %v252, %v2264
      %vm2566 = vcmp.eq.s32.totalorder %v252, %v2268
      %vm2567 = vcmp.eq.s32.totalorder %v252, %v2272
      %vm2568 = vcmp.eq.s32.totalorder %v252, %v2276
      %vm2569 = vcmp.eq.s32.totalorder %v252, %v2280
      %vm2570 = vcmp.eq.s32.totalorder %v252, %v2284
      %vm2571 = vcmp.eq.s32.totalorder %v252, %v2288
      %vm2572 = vcmp.eq.s32.totalorder %v252, %v2292
      %vm2573 = vcmp.eq.s32.totalorder %v252, %v2296
      %vm2574 = vcmp.eq.s32.totalorder %v252, %v2300
      %vm2575 = vcmp.eq.s32.totalorder %v252, %v2304
      %vm2576 = vcmp.eq.s32.totalorder %v252, %v2308
      %vm2577 = vcmp.eq.s32.totalorder %v252, %v2312
      %vm2578 = vcmp.eq.s32.totalorder %v252, %v2316
      %vm2579 = vcmp.eq.s32.totalorder %v252, %v2320
      %vm2580 = vcmp.eq.s32.totalorder %v252, %v2324
      %vm2581 = vcmp.eq.s32.totalorder %v253, %v2200
      %vm2582 = vcmp.eq.s32.totalorder %v253, %v2204
      %vm2583 = vcmp.eq.s32.totalorder %v253, %v2208
      %vm2584 = vcmp.eq.s32.totalorder %v253, %v2212
      %vm2585 = vcmp.eq.s32.totalorder %v253, %v2216
      %vm2586 = vcmp.eq.s32.totalorder %v253, %v2220
      %vm2587 = vcmp.eq.s32.totalorder %v253, %v2224
      %vm2588 = vcmp.eq.s32.totalorder %v253, %v2228
      %vm2589 = vcmp.eq.s32.totalorder %v253, %v2232
      %vm2590 = vcmp.eq.s32.totalorder %v253, %v2236
      %vm2591 = vcmp.eq.s32.totalorder %v253, %v2240
      %vm2592 = vcmp.eq.s32.totalorder %v253, %v2244
      %vm2593 = vcmp.eq.s32.totalorder %v253, %v2248
      %vm2594 = vcmp.eq.s32.totalorder %v253, %v2252
      %vm2595 = vcmp.eq.s32.totalorder %v253, %v2256
      %vm2596 = vcmp.eq.s32.totalorder %v253, %v2260
      %vm2597 = vcmp.eq.s32.totalorder %v253, %v2264
      %vm2598 = vcmp.eq.s32.totalorder %v253, %v2268
      %vm2599 = vcmp.eq.s32.totalorder %v253, %v2272
      %vm2600 = vcmp.eq.s32.totalorder %v253, %v2276
      %vm2601 = vcmp.eq.s32.totalorder %v253, %v2280
      %vm2602 = vcmp.eq.s32.totalorder %v253, %v2284
      %vm2603 = vcmp.eq.s32.totalorder %v253, %v2288
      %vm2604 = vcmp.eq.s32.totalorder %v253, %v2292
      %vm2605 = vcmp.eq.s32.totalorder %v253, %v2296
      %vm2606 = vcmp.eq.s32.totalorder %v253, %v2300
      %vm2607 = vcmp.eq.s32.totalorder %v253, %v2304
      %vm2608 = vcmp.eq.s32.totalorder %v253, %v2308
      %vm2609 = vcmp.eq.s32.totalorder %v253, %v2312
      %vm2610 = vcmp.eq.s32.totalorder %v253, %v2316
      %vm2611 = vcmp.eq.s32.totalorder %v253, %v2320
      %vm2612 = vcmp.eq.s32.totalorder %v253, %v2324
      %vm2613 = vcmp.eq.s32.totalorder %v254, %v2200
      %vm2614 = vcmp.eq.s32.totalorder %v254, %v2204
      %vm2615 = vcmp.eq.s32.totalorder %v254, %v2208
      %vm2616 = vcmp.eq.s32.totalorder %v254, %v2212
      %vm2617 = vcmp.eq.s32.totalorder %v254, %v2216
      %vm2618 = vcmp.eq.s32.totalorder %v254, %v2220
      %vm2619 = vcmp.eq.s32.totalorder %v254, %v2224
      %vm2620 = vcmp.eq.s32.totalorder %v254, %v2228
      %vm2621 = vcmp.eq.s32.totalorder %v254, %v2232
      %vm2622 = vcmp.eq.s32.totalorder %v254, %v2236
      %vm2623 = vcmp.eq.s32.totalorder %v254, %v2240
      %vm2624 = vcmp.eq.s32.totalorder %v254, %v2244
      %vm2625 = vcmp.eq.s32.totalorder %v254, %v2248
      %vm2626 = vcmp.eq.s32.totalorder %v254, %v2252
      %vm2627 = vcmp.eq.s32.totalorder %v254, %v2256
      %vm2628 = vcmp.eq.s32.totalorder %v254, %v2260
      %vm2629 = vcmp.eq.s32.totalorder %v254, %v2264
      %vm2630 = vcmp.eq.s32.totalorder %v254, %v2268
      %vm2631 = vcmp.eq.s32.totalorder %v254, %v2272
      %vm2632 = vcmp.eq.s32.totalorder %v254, %v2276
      %vm2633 = vcmp.eq.s32.totalorder %v254, %v2280
      %vm2634 = vcmp.eq.s32.totalorder %v254, %v2284
      %vm2635 = vcmp.eq.s32.totalorder %v254, %v2288
      %vm2636 = vcmp.eq.s32.totalorder %v254, %v2292
      %vm2637 = vcmp.eq.s32.totalorder %v254, %v2296
      %vm2638 = vcmp.eq.s32.totalorder %v254, %v2300
      %vm2639 = vcmp.eq.s32.totalorder %v254, %v2304
      %vm2640 = vcmp.eq.s32.totalorder %v254, %v2308
      %vm2641 = vcmp.eq.s32.totalorder %v254, %v2312
      %vm2642 = vcmp.eq.s32.totalorder %v254, %v2316
      %vm2643 = vcmp.eq.s32.totalorder %v254, %v2320
      %vm2644 = vcmp.eq.s32.totalorder %v254, %v2324
      %vm2645 = vcmp.eq.s32.totalorder %v255, %v2200
      %vm2646 = vcmp.eq.s32.totalorder %v255, %v2204
      %vm2647 = vcmp.eq.s32.totalorder %v255, %v2208
      %vm2648 = vcmp.eq.s32.totalorder %v255, %v2212
      %vm2649 = vcmp.eq.s32.totalorder %v255, %v2216
      %vm2650 = vcmp.eq.s32.totalorder %v255, %v2220
      %vm2651 = vcmp.eq.s32.totalorder %v255, %v2224
      %vm2652 = vcmp.eq.s32.totalorder %v255, %v2228
      %vm2653 = vcmp.eq.s32.totalorder %v255, %v2232
      %vm2654 = vcmp.eq.s32.totalorder %v255, %v2236
      %vm2655 = vcmp.eq.s32.totalorder %v255, %v2240
      %vm2656 = vcmp.eq.s32.totalorder %v255, %v2244
      %vm2657 = vcmp.eq.s32.totalorder %v255, %v2248
      %vm2658 = vcmp.eq.s32.totalorder %v255, %v2252
      %vm2659 = vcmp.eq.s32.totalorder %v255, %v2256
      %vm2660 = vcmp.eq.s32.totalorder %v255, %v2260
      %vm2661 = vcmp.eq.s32.totalorder %v255, %v2264
      %vm2662 = vcmp.eq.s32.totalorder %v255, %v2268
      %vm2663 = vcmp.eq.s32.totalorder %v255, %v2272
      %vm2664 = vcmp.eq.s32.totalorder %v255, %v2276
      %vm2665 = vcmp.eq.s32.totalorder %v255, %v2280
      %vm2666 = vcmp.eq.s32.totalorder %v255, %v2284
      %vm2667 = vcmp.eq.s32.totalorder %v255, %v2288
      %vm2668 = vcmp.eq.s32.totalorder %v255, %v2292
      %vm2669 = vcmp.eq.s32.totalorder %v255, %v2296
      %vm2670 = vcmp.eq.s32.totalorder %v255, %v2300
      %vm2671 = vcmp.eq.s32.totalorder %v255, %v2304
      %vm2672 = vcmp.eq.s32.totalorder %v255, %v2308
      %vm2673 = vcmp.eq.s32.totalorder %v255, %v2312
      %vm2674 = vcmp.eq.s32.totalorder %v255, %v2316
      %vm2675 = vcmp.eq.s32.totalorder %v255, %v2320
      %vm2676 = vcmp.eq.s32.totalorder %v255, %v2324
      %vm2677 = vcmp.eq.s32.totalorder %v256, %v2200
      %vm2678 = vcmp.eq.s32.totalorder %v256, %v2204
      %vm2679 = vcmp.eq.s32.totalorder %v256, %v2208
      %vm2680 = vcmp.eq.s32.totalorder %v256, %v2212
      %vm2681 = vcmp.eq.s32.totalorder %v256, %v2216
      %vm2682 = vcmp.eq.s32.totalorder %v256, %v2220
      %vm2683 = vcmp.eq.s32.totalorder %v256, %v2224
      %vm2684 = vcmp.eq.s32.totalorder %v256, %v2228
      %vm2685 = vcmp.eq.s32.totalorder %v256, %v2232
      %vm2686 = vcmp.eq.s32.totalorder %v256, %v2236
      %vm2687 = vcmp.eq.s32.totalorder %v256, %v2240
      %vm2688 = vcmp.eq.s32.totalorder %v256, %v2244
      %vm2689 = vcmp.eq.s32.totalorder %v256, %v2248
      %vm2690 = vcmp.eq.s32.totalorder %v256, %v2252
      %vm2691 = vcmp.eq.s32.totalorder %v256, %v2256
      %vm2692 = vcmp.eq.s32.totalorder %v256, %v2260
      %vm2693 = vcmp.eq.s32.totalorder %v256, %v2264
      %vm2694 = vcmp.eq.s32.totalorder %v256, %v2268
      %vm2695 = vcmp.eq.s32.totalorder %v256, %v2272
      %vm2696 = vcmp.eq.s32.totalorder %v256, %v2276
      %vm2697 = vcmp.eq.s32.totalorder %v256, %v2280
      %vm2698 = vcmp.eq.s32.totalorder %v256, %v2284
      %vm2699 = vcmp.eq.s32.totalorder %v256, %v2288
      %vm2700 = vcmp.eq.s32.totalorder %v256, %v2292
      %vm2701 = vcmp.eq.s32.totalorder %v256, %v2296
      %vm2702 = vcmp.eq.s32.totalorder %v256, %v2300
      %vm2703 = vcmp.eq.s32.totalorder %v256, %v2304
      %vm2704 = vcmp.eq.s32.totalorder %v256, %v2308
      %vm2705 = vcmp.eq.s32.totalorder %v256, %v2312
      %vm2706 = vcmp.eq.s32.totalorder %v256, %v2316
      %vm2707 = vcmp.eq.s32.totalorder %v256, %v2320
      %vm2708 = vcmp.eq.s32.totalorder %v256, %v2324
      %vm2709 = vcmp.eq.s32.totalorder %v257, %v2200
      %vm2710 = vcmp.eq.s32.totalorder %v257, %v2204
      %vm2711 = vcmp.eq.s32.totalorder %v257, %v2208
      %vm2712 = vcmp.eq.s32.totalorder %v257, %v2212
      %vm2713 = vcmp.eq.s32.totalorder %v257, %v2216
      %vm2714 = vcmp.eq.s32.totalorder %v257, %v2220
      %vm2715 = vcmp.eq.s32.totalorder %v257, %v2224
      %vm2716 = vcmp.eq.s32.totalorder %v257, %v2228
      %vm2717 = vcmp.eq.s32.totalorder %v257, %v2232
      %vm2718 = vcmp.eq.s32.totalorder %v257, %v2236
      %vm2719 = vcmp.eq.s32.totalorder %v257, %v2240
      %vm2720 = vcmp.eq.s32.totalorder %v257, %v2244
      %vm2721 = vcmp.eq.s32.totalorder %v257, %v2248
      %vm2722 = vcmp.eq.s32.totalorder %v257, %v2252
      %vm2723 = vcmp.eq.s32.totalorder %v257, %v2256
      %vm2724 = vcmp.eq.s32.totalorder %v257, %v2260
      %vm2725 = vcmp.eq.s32.totalorder %v257, %v2264
      %vm2726 = vcmp.eq.s32.totalorder %v257, %v2268
      %vm2727 = vcmp.eq.s32.totalorder %v257, %v2272
      %vm2728 = vcmp.eq.s32.totalorder %v257, %v2276
      %vm2729 = vcmp.eq.s32.totalorder %v257, %v2280
      %vm2730 = vcmp.eq.s32.totalorder %v257, %v2284
      %vm2731 = vcmp.eq.s32.totalorder %v257, %v2288
      %vm2732 = vcmp.eq.s32.totalorder %v257, %v2292
      %vm2733 = vcmp.eq.s32.totalorder %v257, %v2296
      %vm2734 = vcmp.eq.s32.totalorder %v257, %v2300
      %vm2735 = vcmp.eq.s32.totalorder %v257, %v2304
      %vm2736 = vcmp.eq.s32.totalorder %v257, %v2308
      %vm2737 = vcmp.eq.s32.totalorder %v257, %v2312
      %vm2738 = vcmp.eq.s32.totalorder %v257, %v2316
      %vm2739 = vcmp.eq.s32.totalorder %v257, %v2320
      %vm2740 = vcmp.eq.s32.totalorder %v257, %v2324
      %vm2741 = vcmp.eq.s32.totalorder %v258, %v2200
      %vm2742 = vcmp.eq.s32.totalorder %v258, %v2204
      %vm2743 = vcmp.eq.s32.totalorder %v258, %v2208
      %vm2744 = vcmp.eq.s32.totalorder %v258, %v2212
      %vm2745 = vcmp.eq.s32.totalorder %v258, %v2216
      %vm2746 = vcmp.eq.s32.totalorder %v258, %v2220
      %vm2747 = vcmp.eq.s32.totalorder %v258, %v2224
      %vm2748 = vcmp.eq.s32.totalorder %v258, %v2228
      %vm2749 = vcmp.eq.s32.totalorder %v258, %v2232
      %vm2750 = vcmp.eq.s32.totalorder %v258, %v2236
      %vm2751 = vcmp.eq.s32.totalorder %v258, %v2240
      %vm2752 = vcmp.eq.s32.totalorder %v258, %v2244
      %vm2753 = vcmp.eq.s32.totalorder %v258, %v2248
      %vm2754 = vcmp.eq.s32.totalorder %v258, %v2252
      %vm2755 = vcmp.eq.s32.totalorder %v258, %v2256
      %vm2756 = vcmp.eq.s32.totalorder %v258, %v2260
      %vm2757 = vcmp.eq.s32.totalorder %v258, %v2264
      %vm2758 = vcmp.eq.s32.totalorder %v258, %v2268
      %vm2759 = vcmp.eq.s32.totalorder %v258, %v2272
      %vm2760 = vcmp.eq.s32.totalorder %v258, %v2276
      %vm2761 = vcmp.eq.s32.totalorder %v258, %v2280
      %vm2762 = vcmp.eq.s32.totalorder %v258, %v2284
      %vm2763 = vcmp.eq.s32.totalorder %v258, %v2288
      %vm2764 = vcmp.eq.s32.totalorder %v258, %v2292
      %vm2765 = vcmp.eq.s32.totalorder %v258, %v2296
      %vm2766 = vcmp.eq.s32.totalorder %v258, %v2300
      %vm2767 = vcmp.eq.s32.totalorder %v258, %v2304
      %vm2768 = vcmp.eq.s32.totalorder %v258, %v2308
      %vm2769 = vcmp.eq.s32.totalorder %v258, %v2312
      %vm2770 = vcmp.eq.s32.totalorder %v258, %v2316
      %vm2771 = vcmp.eq.s32.totalorder %v258, %v2320
      %vm2772 = vcmp.eq.s32.totalorder %v258, %v2324
      %vm2773 = vcmp.eq.s32.totalorder %v259, %v2200
      %vm2774 = vcmp.eq.s32.totalorder %v259, %v2204
      %vm2775 = vcmp.eq.s32.totalorder %v259, %v2208
      %vm2776 = vcmp.eq.s32.totalorder %v259, %v2212
      %vm2777 = vcmp.eq.s32.totalorder %v259, %v2216
      %vm2778 = vcmp.eq.s32.totalorder %v259, %v2220
      %vm2779 = vcmp.eq.s32.totalorder %v259, %v2224
      %vm2780 = vcmp.eq.s32.totalorder %v259, %v2228
      %vm2781 = vcmp.eq.s32.totalorder %v259, %v2232
      %vm2782 = vcmp.eq.s32.totalorder %v259, %v2236
      %vm2783 = vcmp.eq.s32.totalorder %v259, %v2240
      %vm2784 = vcmp.eq.s32.totalorder %v259, %v2244
      %vm2785 = vcmp.eq.s32.totalorder %v259, %v2248
      %vm2786 = vcmp.eq.s32.totalorder %v259, %v2252
      %vm2787 = vcmp.eq.s32.totalorder %v259, %v2256
      %vm2788 = vcmp.eq.s32.totalorder %v259, %v2260
      %vm2789 = vcmp.eq.s32.totalorder %v259, %v2264
      %vm2790 = vcmp.eq.s32.totalorder %v259, %v2268
      %vm2791 = vcmp.eq.s32.totalorder %v259, %v2272
      %vm2792 = vcmp.eq.s32.totalorder %v259, %v2276
      %vm2793 = vcmp.eq.s32.totalorder %v259, %v2280
      %vm2794 = vcmp.eq.s32.totalorder %v259, %v2284
      %vm2795 = vcmp.eq.s32.totalorder %v259, %v2288
      %vm2796 = vcmp.eq.s32.totalorder %v259, %v2292
      %vm2797 = vcmp.eq.s32.totalorder %v259, %v2296
      %vm2798 = vcmp.eq.s32.totalorder %v259, %v2300
      %vm2799 = vcmp.eq.s32.totalorder %v259, %v2304
      %vm2800 = vcmp.eq.s32.totalorder %v259, %v2308
      %vm2801 = vcmp.eq.s32.totalorder %v259, %v2312
      %vm2802 = vcmp.eq.s32.totalorder %v259, %v2316
      %vm2803 = vcmp.eq.s32.totalorder %v259, %v2320
      %vm2804 = vcmp.eq.s32.totalorder %v259, %v2324
      %vm2805 = vcmp.eq.s32.totalorder %v260, %v2200
      %vm2806 = vcmp.eq.s32.totalorder %v260, %v2204
      %vm2807 = vcmp.eq.s32.totalorder %v260, %v2208
      %vm2808 = vcmp.eq.s32.totalorder %v260, %v2212
      %vm2809 = vcmp.eq.s32.totalorder %v260, %v2216
      %vm2810 = vcmp.eq.s32.totalorder %v260, %v2220
      %vm2811 = vcmp.eq.s32.totalorder %v260, %v2224
      %vm2812 = vcmp.eq.s32.totalorder %v260, %v2228
      %vm2813 = vcmp.eq.s32.totalorder %v260, %v2232
      %vm2814 = vcmp.eq.s32.totalorder %v260, %v2236
      %vm2815 = vcmp.eq.s32.totalorder %v260, %v2240
      %vm2816 = vcmp.eq.s32.totalorder %v260, %v2244
      %vm2817 = vcmp.eq.s32.totalorder %v260, %v2248
      %vm2818 = vcmp.eq.s32.totalorder %v260, %v2252
      %vm2819 = vcmp.eq.s32.totalorder %v260, %v2256
      %vm2820 = vcmp.eq.s32.totalorder %v260, %v2260
      %vm2821 = vcmp.eq.s32.totalorder %v260, %v2264
      %vm2822 = vcmp.eq.s32.totalorder %v260, %v2268
      %vm2823 = vcmp.eq.s32.totalorder %v260, %v2272
      %vm2824 = vcmp.eq.s32.totalorder %v260, %v2276
      %vm2825 = vcmp.eq.s32.totalorder %v260, %v2280
      %vm2826 = vcmp.eq.s32.totalorder %v260, %v2284
      %vm2827 = vcmp.eq.s32.totalorder %v260, %v2288
      %vm2828 = vcmp.eq.s32.totalorder %v260, %v2292
      %vm2829 = vcmp.eq.s32.totalorder %v260, %v2296
      %vm2830 = vcmp.eq.s32.totalorder %v260, %v2300
      %vm2831 = vcmp.eq.s32.totalorder %v260, %v2304
      %vm2832 = vcmp.eq.s32.totalorder %v260, %v2308
      %vm2833 = vcmp.eq.s32.totalorder %v260, %v2312
      %vm2834 = vcmp.eq.s32.totalorder %v260, %v2316
      %vm2835 = vcmp.eq.s32.totalorder %v260, %v2320
      %vm2836 = vcmp.eq.s32.totalorder %v260, %v2324
      %vm2837 = vcmp.eq.s32.totalorder %v261, %v2200
      %vm2838 = vcmp.eq.s32.totalorder %v261, %v2204
      %vm2839 = vcmp.eq.s32.totalorder %v261, %v2208
      %vm2840 = vcmp.eq.s32.totalorder %v261, %v2212
      %vm2841 = vcmp.eq.s32.totalorder %v261, %v2216
      %vm2842 = vcmp.eq.s32.totalorder %v261, %v2220
      %vm2843 = vcmp.eq.s32.totalorder %v261, %v2224
      %vm2844 = vcmp.eq.s32.totalorder %v261, %v2228
      %vm2845 = vcmp.eq.s32.totalorder %v261, %v2232
      %vm2846 = vcmp.eq.s32.totalorder %v261, %v2236
      %vm2847 = vcmp.eq.s32.totalorder %v261, %v2240
      %vm2848 = vcmp.eq.s32.totalorder %v261, %v2244
      %vm2849 = vcmp.eq.s32.totalorder %v261, %v2248
      %vm2850 = vcmp.eq.s32.totalorder %v261, %v2252
      %vm2851 = vcmp.eq.s32.totalorder %v261, %v2256
      %vm2852 = vcmp.eq.s32.totalorder %v261, %v2260
      %vm2853 = vcmp.eq.s32.totalorder %v261, %v2264
      %vm2854 = vcmp.eq.s32.totalorder %v261, %v2268
      %vm2855 = vcmp.eq.s32.totalorder %v261, %v2272
      %vm2856 = vcmp.eq.s32.totalorder %v261, %v2276
      %vm2857 = vcmp.eq.s32.totalorder %v261, %v2280
      %vm2858 = vcmp.eq.s32.totalorder %v261, %v2284
      %vm2859 = vcmp.eq.s32.totalorder %v261, %v2288
      %vm2860 = vcmp.eq.s32.totalorder %v261, %v2292
      %vm2861 = vcmp.eq.s32.totalorder %v261, %v2296
      %vm2862 = vcmp.eq.s32.totalorder %v261, %v2300
      %vm2863 = vcmp.eq.s32.totalorder %v261, %v2304
      %vm2864 = vcmp.eq.s32.totalorder %v261, %v2308
      %vm2865 = vcmp.eq.s32.totalorder %v261, %v2312
      %vm2866 = vcmp.eq.s32.totalorder %v261, %v2316
      %vm2867 = vcmp.eq.s32.totalorder %v261, %v2320
      %vm2868 = vcmp.eq.s32.totalorder %v261, %v2324
      %vm2869 = vcmp.eq.s32.totalorder %v262, %v2200
      %vm2870 = vcmp.eq.s32.totalorder %v262, %v2204
      %vm2871 = vcmp.eq.s32.totalorder %v262, %v2208
      %vm2872 = vcmp.eq.s32.totalorder %v262, %v2212
      %vm2873 = vcmp.eq.s32.totalorder %v262, %v2216
      %vm2874 = vcmp.eq.s32.totalorder %v262, %v2220
      %vm2875 = vcmp.eq.s32.totalorder %v262, %v2224
      %vm2876 = vcmp.eq.s32.totalorder %v262, %v2228
      %vm2877 = vcmp.eq.s32.totalorder %v262, %v2232
      %vm2878 = vcmp.eq.s32.totalorder %v262, %v2236
      %vm2879 = vcmp.eq.s32.totalorder %v262, %v2240
      %vm2880 = vcmp.eq.s32.totalorder %v262, %v2244
      %vm2881 = vcmp.eq.s32.totalorder %v262, %v2248
      %vm2882 = vcmp.eq.s32.totalorder %v262, %v2252
      %vm2883 = vcmp.eq.s32.totalorder %v262, %v2256
      %vm2884 = vcmp.eq.s32.totalorder %v262, %v2260
      %vm2885 = vcmp.eq.s32.totalorder %v262, %v2264
      %vm2886 = vcmp.eq.s32.totalorder %v262, %v2268
      %vm2887 = vcmp.eq.s32.totalorder %v262, %v2272
      %vm2888 = vcmp.eq.s32.totalorder %v262, %v2276
      %vm2889 = vcmp.eq.s32.totalorder %v262, %v2280
      %vm2890 = vcmp.eq.s32.totalorder %v262, %v2284
      %vm2891 = vcmp.eq.s32.totalorder %v262, %v2288
      %vm2892 = vcmp.eq.s32.totalorder %v262, %v2292
      %vm2893 = vcmp.eq.s32.totalorder %v262, %v2296
      %vm2894 = vcmp.eq.s32.totalorder %v262, %v2300
      %vm2895 = vcmp.eq.s32.totalorder %v262, %v2304
      %vm2896 = vcmp.eq.s32.totalorder %v262, %v2308
      %vm2897 = vcmp.eq.s32.totalorder %v262, %v2312
      %vm2898 = vcmp.eq.s32.totalorder %v262, %v2316
      %vm2899 = vcmp.eq.s32.totalorder %v262, %v2320
      %vm2900 = vcmp.eq.s32.totalorder %v262, %v2324
      %vm2901 = vcmp.eq.s32.totalorder %v263, %v2200
      %vm2902 = vcmp.eq.s32.totalorder %v263, %v2204
      %vm2903 = vcmp.eq.s32.totalorder %v263, %v2208
      %vm2904 = vcmp.eq.s32.totalorder %v263, %v2212
      %vm2905 = vcmp.eq.s32.totalorder %v263, %v2216
      %vm2906 = vcmp.eq.s32.totalorder %v263, %v2220
      %vm2907 = vcmp.eq.s32.totalorder %v263, %v2224
      %vm2908 = vcmp.eq.s32.totalorder %v263, %v2228
      %vm2909 = vcmp.eq.s32.totalorder %v263, %v2232
      %vm2910 = vcmp.eq.s32.totalorder %v263, %v2236
      %vm2911 = vcmp.eq.s32.totalorder %v263, %v2240
      %vm2912 = vcmp.eq.s32.totalorder %v263, %v2244
      %vm2913 = vcmp.eq.s32.totalorder %v263, %v2248
      %vm2914 = vcmp.eq.s32.totalorder %v263, %v2252
      %vm2915 = vcmp.eq.s32.totalorder %v263, %v2256
      %vm2916 = vcmp.eq.s32.totalorder %v263, %v2260
      %vm2917 = vcmp.eq.s32.totalorder %v263, %v2264
      %vm2918 = vcmp.eq.s32.totalorder %v263, %v2268
      %vm2919 = vcmp.eq.s32.totalorder %v263, %v2272
      %vm2920 = vcmp.eq.s32.totalorder %v263, %v2276
      %vm2921 = vcmp.eq.s32.totalorder %v263, %v2280
      %vm2922 = vcmp.eq.s32.totalorder %v263, %v2284
      %vm2923 = vcmp.eq.s32.totalorder %v263, %v2288
      %vm2924 = vcmp.eq.s32.totalorder %v263, %v2292
      %vm2925 = vcmp.eq.s32.totalorder %v263, %v2296
      %vm2926 = vcmp.eq.s32.totalorder %v263, %v2300
      %vm2927 = vcmp.eq.s32.totalorder %v263, %v2304
      %vm2928 = vcmp.eq.s32.totalorder %v263, %v2308
      %vm2929 = vcmp.eq.s32.totalorder %v263, %v2312
      %vm2930 = vcmp.eq.s32.totalorder %v263, %v2316
      %vm2931 = vcmp.eq.s32.totalorder %v263, %v2320
      %vm2932 = vcmp.eq.s32.totalorder %v263, %v2324
      %vm2933 = vcmp.eq.s32.totalorder %v264, %v2200
      %vm2934 = vcmp.eq.s32.totalorder %v264, %v2204
      %vm2935 = vcmp.eq.s32.totalorder %v264, %v2208
      %vm2936 = vcmp.eq.s32.totalorder %v264, %v2212
      %vm2937 = vcmp.eq.s32.totalorder %v264, %v2216
      %vm2938 = vcmp.eq.s32.totalorder %v264, %v2220
      %vm2939 = vcmp.eq.s32.totalorder %v264, %v2224
      %vm2940 = vcmp.eq.s32.totalorder %v264, %v2228
      %vm2941 = vcmp.eq.s32.totalorder %v264, %v2232
      %vm2942 = vcmp.eq.s32.totalorder %v264, %v2236
      %vm2943 = vcmp.eq.s32.totalorder %v264, %v2240
      %vm2944 = vcmp.eq.s32.totalorder %v264, %v2244
      %vm2945 = vcmp.eq.s32.totalorder %v264, %v2248
      %vm2946 = vcmp.eq.s32.totalorder %v264, %v2252
      %vm2947 = vcmp.eq.s32.totalorder %v264, %v2256
      %vm2948 = vcmp.eq.s32.totalorder %v264, %v2260
      %vm2949 = vcmp.eq.s32.totalorder %v264, %v2264
      %vm2950 = vcmp.eq.s32.totalorder %v264, %v2268
      %vm2951 = vcmp.eq.s32.totalorder %v264, %v2272
      %vm2952 = vcmp.eq.s32.totalorder %v264, %v2276
      %vm2953 = vcmp.eq.s32.totalorder %v264, %v2280
      %vm2954 = vcmp.eq.s32.totalorder %v264, %v2284
      %vm2955 = vcmp.eq.s32.totalorder %v264, %v2288
      %vm2956 = vcmp.eq.s32.totalorder %v264, %v2292
      %vm2957 = vcmp.eq.s32.totalorder %v264, %v2296
      %vm2958 = vcmp.eq.s32.totalorder %v264, %v2300
      %vm2959 = vcmp.eq.s32.totalorder %v264, %v2304
      %vm2960 = vcmp.eq.s32.totalorder %v264, %v2308
      %vm2961 = vcmp.eq.s32.totalorder %v264, %v2312
      %vm2962 = vcmp.eq.s32.totalorder %v264, %v2316
      %vm2963 = vcmp.eq.s32.totalorder %v264, %v2320
      %vm2964 = vcmp.eq.s32.totalorder %v264, %v2324
      %vm2965 = vcmp.eq.s32.totalorder %v265, %v2200
      %vm2966 = vcmp.eq.s32.totalorder %v265, %v2204
      %vm2967 = vcmp.eq.s32.totalorder %v265, %v2208
      %vm2968 = vcmp.eq.s32.totalorder %v265, %v2212
      %vm2969 = vcmp.eq.s32.totalorder %v265, %v2216
      %vm2970 = vcmp.eq.s32.totalorder %v265, %v2220
      %vm2971 = vcmp.eq.s32.totalorder %v265, %v2224
      %vm2972 = vcmp.eq.s32.totalorder %v265, %v2228
      %vm2973 = vcmp.eq.s32.totalorder %v265, %v2232
      %vm2974 = vcmp.eq.s32.totalorder %v265, %v2236
      %vm2975 = vcmp.eq.s32.totalorder %v265, %v2240
      %vm2976 = vcmp.eq.s32.totalorder %v265, %v2244
      %vm2977 = vcmp.eq.s32.totalorder %v265, %v2248
      %vm2978 = vcmp.eq.s32.totalorder %v265, %v2252
      %vm2979 = vcmp.eq.s32.totalorder %v265, %v2256
      %vm2980 = vcmp.eq.s32.totalorder %v265, %v2260
      %vm2981 = vcmp.eq.s32.totalorder %v265, %v2264
      %vm2982 = vcmp.eq.s32.totalorder %v265, %v2268
      %vm2983 = vcmp.eq.s32.totalorder %v265, %v2272
      %vm2984 = vcmp.eq.s32.totalorder %v265, %v2276
      %vm2985 = vcmp.eq.s32.totalorder %v265, %v2280
      %vm2986 = vcmp.eq.s32.totalorder %v265, %v2284
      %vm2987 = vcmp.eq.s32.totalorder %v265, %v2288
      %vm2988 = vcmp.eq.s32.totalorder %v265, %v2292
      %vm2989 = vcmp.eq.s32.totalorder %v265, %v2296
      %vm2990 = vcmp.eq.s32.totalorder %v265, %v2300
      %vm2991 = vcmp.eq.s32.totalorder %v265, %v2304
      %vm2992 = vcmp.eq.s32.totalorder %v265, %v2308
      %vm2993 = vcmp.eq.s32.totalorder %v265, %v2312
      %vm2994 = vcmp.eq.s32.totalorder %v265, %v2316
      %vm2995 = vcmp.eq.s32.totalorder %v265, %v2320
      %vm2996 = vcmp.eq.s32.totalorder %v265, %v2324
      %vm2997 = vcmp.eq.s32.totalorder %v266, %v2200
      %vm2998 = vcmp.eq.s32.totalorder %v266, %v2204
      %vm2999 = vcmp.eq.s32.totalorder %v266, %v2208
      %vm3000 = vcmp.eq.s32.totalorder %v266, %v2212
      %vm3001 = vcmp.eq.s32.totalorder %v266, %v2216
      %vm3002 = vcmp.eq.s32.totalorder %v266, %v2220
      %vm3003 = vcmp.eq.s32.totalorder %v266, %v2224
      %vm3004 = vcmp.eq.s32.totalorder %v266, %v2228
      %vm3005 = vcmp.eq.s32.totalorder %v266, %v2232
      %vm3006 = vcmp.eq.s32.totalorder %v266, %v2236
      %vm3007 = vcmp.eq.s32.totalorder %v266, %v2240
      %vm3008 = vcmp.eq.s32.totalorder %v266, %v2244
      %vm3009 = vcmp.eq.s32.totalorder %v266, %v2248
      %vm3010 = vcmp.eq.s32.totalorder %v266, %v2252
      %vm3011 = vcmp.eq.s32.totalorder %v266, %v2256
      %vm3012 = vcmp.eq.s32.totalorder %v266, %v2260
      %vm3013 = vcmp.eq.s32.totalorder %v266, %v2264
      %vm3014 = vcmp.eq.s32.totalorder %v266, %v2268
      %vm3015 = vcmp.eq.s32.totalorder %v266, %v2272
      %vm3016 = vcmp.eq.s32.totalorder %v266, %v2276
      %vm3017 = vcmp.eq.s32.totalorder %v266, %v2280
      %vm3018 = vcmp.eq.s32.totalorder %v266, %v2284
      %vm3019 = vcmp.eq.s32.totalorder %v266, %v2288
      %vm3020 = vcmp.eq.s32.totalorder %v266, %v2292
      %vm3021 = vcmp.eq.s32.totalorder %v266, %v2296
      %vm3022 = vcmp.eq.s32.totalorder %v266, %v2300
      %vm3023 = vcmp.eq.s32.totalorder %v266, %v2304
      %vm3024 = vcmp.eq.s32.totalorder %v266, %v2308
      %vm3025 = vcmp.eq.s32.totalorder %v266, %v2312
      %vm3026 = vcmp.eq.s32.totalorder %v266, %v2316
      %vm3027 = vcmp.eq.s32.totalorder %v266, %v2320
      %vm3028 = vcmp.eq.s32.totalorder %v266, %v2324
      %vm3029 = vcmp.eq.s32.totalorder %v267, %v2200
      %vm3030 = vcmp.eq.s32.totalorder %v267, %v2204
      %vm3031 = vcmp.eq.s32.totalorder %v267, %v2208
      %vm3032 = vcmp.eq.s32.totalorder %v267, %v2212
      %vm3033 = vcmp.eq.s32.totalorder %v267, %v2216
      %vm3034 = vcmp.eq.s32.totalorder %v267, %v2220
      %vm3035 = vcmp.eq.s32.totalorder %v267, %v2224
      %vm3036 = vcmp.eq.s32.totalorder %v267, %v2228
      %vm3037 = vcmp.eq.s32.totalorder %v267, %v2232
      %vm3038 = vcmp.eq.s32.totalorder %v267, %v2236
      %vm3039 = vcmp.eq.s32.totalorder %v267, %v2240
      %vm3040 = vcmp.eq.s32.totalorder %v267, %v2244
      %vm3041 = vcmp.eq.s32.totalorder %v267, %v2248
      %vm3042 = vcmp.eq.s32.totalorder %v267, %v2252
      %vm3043 = vcmp.eq.s32.totalorder %v267, %v2256
      %vm3044 = vcmp.eq.s32.totalorder %v267, %v2260
      %vm3045 = vcmp.eq.s32.totalorder %v267, %v2264
      %vm3046 = vcmp.eq.s32.totalorder %v267, %v2268
      %vm3047 = vcmp.eq.s32.totalorder %v267, %v2272
      %vm3048 = vcmp.eq.s32.totalorder %v267, %v2276
      %vm3049 = vcmp.eq.s32.totalorder %v267, %v2280
      %vm3050 = vcmp.eq.s32.totalorder %v267, %v2284
      %vm3051 = vcmp.eq.s32.totalorder %v267, %v2288
      %vm3052 = vcmp.eq.s32.totalorder %v267, %v2292
      %vm3053 = vcmp.eq.s32.totalorder %v267, %v2296
      %vm3054 = vcmp.eq.s32.totalorder %v267, %v2300
      %vm3055 = vcmp.eq.s32.totalorder %v267, %v2304
      %vm3056 = vcmp.eq.s32.totalorder %v267, %v2308
      %vm3057 = vcmp.eq.s32.totalorder %v267, %v2312
      %vm3058 = vcmp.eq.s32.totalorder %v267, %v2316
      %vm3059 = vcmp.eq.s32.totalorder %v267, %v2320
      %vm3060 = vcmp.eq.s32.totalorder %v267, %v2324
      %vm3061 = vcmp.eq.s32.totalorder %v268, %v2200
      %vm3062 = vcmp.eq.s32.totalorder %v268, %v2204
      %vm3063 = vcmp.eq.s32.totalorder %v268, %v2208
      %vm3064 = vcmp.eq.s32.totalorder %v268, %v2212
      %vm3065 = vcmp.eq.s32.totalorder %v268, %v2216
      %vm3066 = vcmp.eq.s32.totalorder %v268, %v2220
      %vm3067 = vcmp.eq.s32.totalorder %v268, %v2224
      %vm3068 = vcmp.eq.s32.totalorder %v268, %v2228
      %vm3069 = vcmp.eq.s32.totalorder %v268, %v2232
      %vm3070 = vcmp.eq.s32.totalorder %v268, %v2236
      %vm3071 = vcmp.eq.s32.totalorder %v268, %v2240
      %vm3072 = vcmp.eq.s32.totalorder %v268, %v2244
      %vm3073 = vcmp.eq.s32.totalorder %v268, %v2248
      %vm3074 = vcmp.eq.s32.totalorder %v268, %v2252
      %vm3075 = vcmp.eq.s32.totalorder %v268, %v2256
      %vm3076 = vcmp.eq.s32.totalorder %v268, %v2260
      %vm3077 = vcmp.eq.s32.totalorder %v268, %v2264
      %vm3078 = vcmp.eq.s32.totalorder %v268, %v2268
      %vm3079 = vcmp.eq.s32.totalorder %v268, %v2272
      %vm3080 = vcmp.eq.s32.totalorder %v268, %v2276
      %vm3081 = vcmp.eq.s32.totalorder %v268, %v2280
      %vm3082 = vcmp.eq.s32.totalorder %v268, %v2284
      %vm3083 = vcmp.eq.s32.totalorder %v268, %v2288
      %vm3084 = vcmp.eq.s32.totalorder %v268, %v2292
      %vm3085 = vcmp.eq.s32.totalorder %v268, %v2296
      %vm3086 = vcmp.eq.s32.totalorder %v268, %v2300
      %vm3087 = vcmp.eq.s32.totalorder %v268, %v2304
      %vm3088 = vcmp.eq.s32.totalorder %v268, %v2308
      %vm3089 = vcmp.eq.s32.totalorder %v268, %v2312
      %vm3090 = vcmp.eq.s32.totalorder %v268, %v2316
      %vm3091 = vcmp.eq.s32.totalorder %v268, %v2320
      %vm3092 = vcmp.eq.s32.totalorder %v268, %v2324
      %vm3093 = vcmp.eq.s32.totalorder %v269, %v2200
      %vm3094 = vcmp.eq.s32.totalorder %v269, %v2204
      %vm3095 = vcmp.eq.s32.totalorder %v269, %v2208
      %vm3096 = vcmp.eq.s32.totalorder %v269, %v2212
      %vm3097 = vcmp.eq.s32.totalorder %v269, %v2216
      %vm3098 = vcmp.eq.s32.totalorder %v269, %v2220
      %vm3099 = vcmp.eq.s32.totalorder %v269, %v2224
      %vm3100 = vcmp.eq.s32.totalorder %v269, %v2228
      %vm3101 = vcmp.eq.s32.totalorder %v269, %v2232
      %vm3102 = vcmp.eq.s32.totalorder %v269, %v2236
      %vm3103 = vcmp.eq.s32.totalorder %v269, %v2240
      %vm3104 = vcmp.eq.s32.totalorder %v269, %v2244
      %vm3105 = vcmp.eq.s32.totalorder %v269, %v2248
      %vm3106 = vcmp.eq.s32.totalorder %v269, %v2252
      %vm3107 = vcmp.eq.s32.totalorder %v269, %v2256
      %vm3108 = vcmp.eq.s32.totalorder %v269, %v2260
      %vm3109 = vcmp.eq.s32.totalorder %v269, %v2264
      %vm3110 = vcmp.eq.s32.totalorder %v269, %v2268
      %vm3111 = vcmp.eq.s32.totalorder %v269, %v2272
      %vm3112 = vcmp.eq.s32.totalorder %v269, %v2276
      %vm3113 = vcmp.eq.s32.totalorder %v269, %v2280
      %vm3114 = vcmp.eq.s32.totalorder %v269, %v2284
      %vm3115 = vcmp.eq.s32.totalorder %v269, %v2288
      %vm3116 = vcmp.eq.s32.totalorder %v269, %v2292
      %vm3117 = vcmp.eq.s32.totalorder %v269, %v2296
      %vm3118 = vcmp.eq.s32.totalorder %v269, %v2300
      %vm3119 = vcmp.eq.s32.totalorder %v269, %v2304
      %vm3120 = vcmp.eq.s32.totalorder %v269, %v2308
      %vm3121 = vcmp.eq.s32.totalorder %v269, %v2312
      %vm3122 = vcmp.eq.s32.totalorder %v269, %v2316
      %vm3123 = vcmp.eq.s32.totalorder %v269, %v2320
      %vm3124 = vcmp.eq.s32.totalorder %v269, %v2324
      %vm3125 = vcmp.eq.s32.totalorder %v270, %v2200
      %vm3126 = vcmp.eq.s32.totalorder %v270, %v2204
      %vm3127 = vcmp.eq.s32.totalorder %v270, %v2208
      %vm3128 = vcmp.eq.s32.totalorder %v270, %v2212
      %vm3129 = vcmp.eq.s32.totalorder %v270, %v2216
      %vm3130 = vcmp.eq.s32.totalorder %v270, %v2220
      %vm3131 = vcmp.eq.s32.totalorder %v270, %v2224
      %vm3132 = vcmp.eq.s32.totalorder %v270, %v2228
      %vm3133 = vcmp.eq.s32.totalorder %v270, %v2232
      %vm3134 = vcmp.eq.s32.totalorder %v270, %v2236
      %vm3135 = vcmp.eq.s32.totalorder %v270, %v2240
      %vm3136 = vcmp.eq.s32.totalorder %v270, %v2244
      %vm3137 = vcmp.eq.s32.totalorder %v270, %v2248
      %vm3138 = vcmp.eq.s32.totalorder %v270, %v2252
      %vm3139 = vcmp.eq.s32.totalorder %v270, %v2256
      %vm3140 = vcmp.eq.s32.totalorder %v270, %v2260
      %vm3141 = vcmp.eq.s32.totalorder %v270, %v2264
      %vm3142 = vcmp.eq.s32.totalorder %v270, %v2268
      %vm3143 = vcmp.eq.s32.totalorder %v270, %v2272
      %vm3144 = vcmp.eq.s32.totalorder %v270, %v2276
      %vm3145 = vcmp.eq.s32.totalorder %v270, %v2280
      %vm3146 = vcmp.eq.s32.totalorder %v270, %v2284
      %vm3147 = vcmp.eq.s32.totalorder %v270, %v2288
      %vm3148 = vcmp.eq.s32.totalorder %v270, %v2292
      %vm3149 = vcmp.eq.s32.totalorder %v270, %v2296
      %vm3150 = vcmp.eq.s32.totalorder %v270, %v2300
      %vm3151 = vcmp.eq.s32.totalorder %v270, %v2304
      %vm3152 = vcmp.eq.s32.totalorder %v270, %v2308
      %vm3153 = vcmp.eq.s32.totalorder %v270, %v2312
      %vm3154 = vcmp.eq.s32.totalorder %v270, %v2316
      %vm3155 = vcmp.eq.s32.totalorder %v270, %v2320
      %vm3156 = vcmp.eq.s32.totalorder %v270, %v2324
      %vm3157 = vcmp.eq.s32.totalorder %v271, %v2200
      %vm3158 = vcmp.eq.s32.totalorder %v271, %v2204
      %vm3159 = vcmp.eq.s32.totalorder %v271, %v2208
      %vm3160 = vcmp.eq.s32.totalorder %v271, %v2212
      %vm3161 = vcmp.eq.s32.totalorder %v271, %v2216
      %vm3162 = vcmp.eq.s32.totalorder %v271, %v2220
      %vm3163 = vcmp.eq.s32.totalorder %v271, %v2224
      %vm3164 = vcmp.eq.s32.totalorder %v271, %v2228
      %vm3165 = vcmp.eq.s32.totalorder %v271, %v2232
      %vm3166 = vcmp.eq.s32.totalorder %v271, %v2236
      %vm3167 = vcmp.eq.s32.totalorder %v271, %v2240
      %vm3168 = vcmp.eq.s32.totalorder %v271, %v2244
      %vm3169 = vcmp.eq.s32.totalorder %v271, %v2248
      %vm3170 = vcmp.eq.s32.totalorder %v271, %v2252
      %vm3171 = vcmp.eq.s32.totalorder %v271, %v2256
      %vm3172 = vcmp.eq.s32.totalorder %v271, %v2260
      %vm3173 = vcmp.eq.s32.totalorder %v271, %v2264
      %vm3174 = vcmp.eq.s32.totalorder %v271, %v2268
      %vm3175 = vcmp.eq.s32.totalorder %v271, %v2272
      %vm3176 = vcmp.eq.s32.totalorder %v271, %v2276
      %vm3177 = vcmp.eq.s32.totalorder %v271, %v2280
      %vm3178 = vcmp.eq.s32.totalorder %v271, %v2284
      %vm3179 = vcmp.eq.s32.totalorder %v271, %v2288
      %vm3180 = vcmp.eq.s32.totalorder %v271, %v2292
      %vm3181 = vcmp.eq.s32.totalorder %v271, %v2296
      %vm3182 = vcmp.eq.s32.totalorder %v271, %v2300
      %vm3183 = vcmp.eq.s32.totalorder %v271, %v2304
      %vm3184 = vcmp.eq.s32.totalorder %v271, %v2308
      %vm3185 = vcmp.eq.s32.totalorder %v271, %v2312
      %vm3186 = vcmp.eq.s32.totalorder %v271, %v2316
      %vm3187 = vcmp.eq.s32.totalorder %v271, %v2320
      %vm3188 = vcmp.eq.s32.totalorder %v271, %v2324
      %vm3189 = vcmp.eq.s32.totalorder %v272, %v2200
      %vm3190 = vcmp.eq.s32.totalorder %v272, %v2204
      %vm3191 = vcmp.eq.s32.totalorder %v272, %v2208
      %vm3192 = vcmp.eq.s32.totalorder %v272, %v2212
      %vm3193 = vcmp.eq.s32.totalorder %v272, %v2216
      %vm3194 = vcmp.eq.s32.totalorder %v272, %v2220
      %vm3195 = vcmp.eq.s32.totalorder %v272, %v2224
      %vm3196 = vcmp.eq.s32.totalorder %v272, %v2228
      %vm3197 = vcmp.eq.s32.totalorder %v272, %v2232
      %vm3198 = vcmp.eq.s32.totalorder %v272, %v2236
      %vm3199 = vcmp.eq.s32.totalorder %v272, %v2240
      %vm3200 = vcmp.eq.s32.totalorder %v272, %v2244
      %vm3201 = vcmp.eq.s32.totalorder %v272, %v2248
      %vm3202 = vcmp.eq.s32.totalorder %v272, %v2252
      %vm3203 = vcmp.eq.s32.totalorder %v272, %v2256
      %vm3204 = vcmp.eq.s32.totalorder %v272, %v2260
      %vm3205 = vcmp.eq.s32.totalorder %v272, %v2264
      %vm3206 = vcmp.eq.s32.totalorder %v272, %v2268
      %vm3207 = vcmp.eq.s32.totalorder %v272, %v2272
      %vm3208 = vcmp.eq.s32.totalorder %v272, %v2276
      %vm3209 = vcmp.eq.s32.totalorder %v272, %v2280
      %vm3210 = vcmp.eq.s32.totalorder %v272, %v2284
      %vm3211 = vcmp.eq.s32.totalorder %v272, %v2288
      %vm3212 = vcmp.eq.s32.totalorder %v272, %v2292
      %vm3213 = vcmp.eq.s32.totalorder %v272, %v2296
      %vm3214 = vcmp.eq.s32.totalorder %v272, %v2300
      %vm3215 = vcmp.eq.s32.totalorder %v272, %v2304
      %vm3216 = vcmp.eq.s32.totalorder %v272, %v2308
      %vm3217 = vcmp.eq.s32.totalorder %v272, %v2312
      %vm3218 = vcmp.eq.s32.totalorder %v272, %v2316
      %vm3219 = vcmp.eq.s32.totalorder %v272, %v2320
      %vm3220 = vcmp.eq.s32.totalorder %v272, %v2324
      %vm3221 = vcmp.eq.s32.totalorder %v273, %v2200
      %vm3222 = vcmp.eq.s32.totalorder %v273, %v2204
      %vm3223 = vcmp.eq.s32.totalorder %v273, %v2208
      %vm3224 = vcmp.eq.s32.totalorder %v273, %v2212
      %vm3225 = vcmp.eq.s32.totalorder %v273, %v2216
      %vm3226 = vcmp.eq.s32.totalorder %v273, %v2220
      %vm3227 = vcmp.eq.s32.totalorder %v273, %v2224
      %vm3228 = vcmp.eq.s32.totalorder %v273, %v2228
      %vm3229 = vcmp.eq.s32.totalorder %v273, %v2232
      %vm3230 = vcmp.eq.s32.totalorder %v273, %v2236
      %vm3231 = vcmp.eq.s32.totalorder %v273, %v2240
      %vm3232 = vcmp.eq.s32.totalorder %v273, %v2244
      %vm3233 = vcmp.eq.s32.totalorder %v273, %v2248
      %vm3234 = vcmp.eq.s32.totalorder %v273, %v2252
      %vm3235 = vcmp.eq.s32.totalorder %v273, %v2256
      %vm3236 = vcmp.eq.s32.totalorder %v273, %v2260
      %vm3237 = vcmp.eq.s32.totalorder %v273, %v2264
      %vm3238 = vcmp.eq.s32.totalorder %v273, %v2268
      %vm3239 = vcmp.eq.s32.totalorder %v273, %v2272
      %vm3240 = vcmp.eq.s32.totalorder %v273, %v2276
      %vm3241 = vcmp.eq.s32.totalorder %v273, %v2280
      %vm3242 = vcmp.eq.s32.totalorder %v273, %v2284
      %vm3243 = vcmp.eq.s32.totalorder %v273, %v2288
      %vm3244 = vcmp.eq.s32.totalorder %v273, %v2292
      %vm3245 = vcmp.eq.s32.totalorder %v273, %v2296
      %vm3246 = vcmp.eq.s32.totalorder %v273, %v2300
      %vm3247 = vcmp.eq.s32.totalorder %v273, %v2304
      %vm3248 = vcmp.eq.s32.totalorder %v273, %v2308
      %vm3249 = vcmp.eq.s32.totalorder %v273, %v2312
      %vm3250 = vcmp.eq.s32.totalorder %v273, %v2316
      %vm3251 = vcmp.eq.s32.totalorder %v273, %v2320
      %vm3252 = vcmp.eq.s32.totalorder %v273, %v2324
      %vm3253 = vcmp.eq.s32.totalorder %v274, %v2200
      %vm3254 = vcmp.eq.s32.totalorder %v274, %v2204
      %vm3255 = vcmp.eq.s32.totalorder %v274, %v2208
      %vm3256 = vcmp.eq.s32.totalorder %v274, %v2212
      %vm3257 = vcmp.eq.s32.totalorder %v274, %v2216
      %vm3258 = vcmp.eq.s32.totalorder %v274, %v2220
      %vm3259 = vcmp.eq.s32.totalorder %v274, %v2224
      %vm3260 = vcmp.eq.s32.totalorder %v274, %v2228
      %vm3261 = vcmp.eq.s32.totalorder %v274, %v2232
      %vm3262 = vcmp.eq.s32.totalorder %v274, %v2236
      %vm3263 = vcmp.eq.s32.totalorder %v274, %v2240
      %vm3264 = vcmp.eq.s32.totalorder %v274, %v2244
      %vm3265 = vcmp.eq.s32.totalorder %v274, %v2248
      %vm3266 = vcmp.eq.s32.totalorder %v274, %v2252
      %vm3267 = vcmp.eq.s32.totalorder %v274, %v2256
      %vm3268 = vcmp.eq.s32.totalorder %v274, %v2260
      %vm3269 = vcmp.eq.s32.totalorder %v274, %v2264
      %vm3270 = vcmp.eq.s32.totalorder %v274, %v2268
      %vm3271 = vcmp.eq.s32.totalorder %v274, %v2272
      %vm3272 = vcmp.eq.s32.totalorder %v274, %v2276
      %vm3273 = vcmp.eq.s32.totalorder %v274, %v2280
      %vm3274 = vcmp.eq.s32.totalorder %v274, %v2284
      %vm3275 = vcmp.eq.s32.totalorder %v274, %v2288
      %vm3276 = vcmp.eq.s32.totalorder %v274, %v2292
      %vm3277 = vcmp.eq.s32.totalorder %v274, %v2296
      %vm3278 = vcmp.eq.s32.totalorder %v274, %v2300
      %vm3279 = vcmp.eq.s32.totalorder %v274, %v2304
      %vm3280 = vcmp.eq.s32.totalorder %v274, %v2308
      %vm3281 = vcmp.eq.s32.totalorder %v274, %v2312
      %vm3282 = vcmp.eq.s32.totalorder %v274, %v2316
      %vm3283 = vcmp.eq.s32.totalorder %v274, %v2320
      %vm3284 = vcmp.eq.s32.totalorder %v274, %v2324
      %vm3285 = vcmp.eq.s32.totalorder %v275, %v2200
      %vm3286 = vcmp.eq.s32.totalorder %v275, %v2204
      %vm3287 = vcmp.eq.s32.totalorder %v275, %v2208
      %vm3288 = vcmp.eq.s32.totalorder %v275, %v2212
      %vm3289 = vcmp.eq.s32.totalorder %v275, %v2216
      %vm3290 = vcmp.eq.s32.totalorder %v275, %v2220
      %vm3291 = vcmp.eq.s32.totalorder %v275, %v2224
      %vm3292 = vcmp.eq.s32.totalorder %v275, %v2228
      %vm3293 = vcmp.eq.s32.totalorder %v275, %v2232
      %vm3294 = vcmp.eq.s32.totalorder %v275, %v2236
      %vm3295 = vcmp.eq.s32.totalorder %v275, %v2240
      %vm3296 = vcmp.eq.s32.totalorder %v275, %v2244
      %vm3297 = vcmp.eq.s32.totalorder %v275, %v2248
      %vm3298 = vcmp.eq.s32.totalorder %v275, %v2252
      %vm3299 = vcmp.eq.s32.totalorder %v275, %v2256
      %vm3300 = vcmp.eq.s32.totalorder %v275, %v2260
      %vm3301 = vcmp.eq.s32.totalorder %v275, %v2264
      %vm3302 = vcmp.eq.s32.totalorder %v275, %v2268
      %vm3303 = vcmp.eq.s32.totalorder %v275, %v2272
      %vm3304 = vcmp.eq.s32.totalorder %v275, %v2276
      %vm3305 = vcmp.eq.s32.totalorder %v275, %v2280
      %vm3306 = vcmp.eq.s32.totalorder %v275, %v2284
      %vm3307 = vcmp.eq.s32.totalorder %v275, %v2288
      %vm3308 = vcmp.eq.s32.totalorder %v275, %v2292
      %vm3309 = vcmp.eq.s32.totalorder %v275, %v2296
      %vm3310 = vcmp.eq.s32.totalorder %v275, %v2300
      %vm3311 = vcmp.eq.s32.totalorder %v275, %v2304
      %vm3312 = vcmp.eq.s32.totalorder %v275, %v2308
      %vm3313 = vcmp.eq.s32.totalorder %v275, %v2312
      %vm3314 = vcmp.eq.s32.totalorder %v275, %v2316
      %vm3315 = vcmp.eq.s32.totalorder %v275, %v2320
      %vm3316 = vcmp.eq.s32.totalorder %v275, %v2324
      %vm3317 = vcmp.eq.s32.totalorder %v276, %v2200
      %vm3318 = vcmp.eq.s32.totalorder %v276, %v2204
      %vm3319 = vcmp.eq.s32.totalorder %v276, %v2208
      %vm3320 = vcmp.eq.s32.totalorder %v276, %v2212
      %vm3321 = vcmp.eq.s32.totalorder %v276, %v2216
      %vm3322 = vcmp.eq.s32.totalorder %v276, %v2220
      %vm3323 = vcmp.eq.s32.totalorder %v276, %v2224
      %vm3324 = vcmp.eq.s32.totalorder %v276, %v2228
      %vm3325 = vcmp.eq.s32.totalorder %v276, %v2232
      %vm3326 = vcmp.eq.s32.totalorder %v276, %v2236
      %vm3327 = vcmp.eq.s32.totalorder %v276, %v2240
      %vm3328 = vcmp.eq.s32.totalorder %v276, %v2244
      %vm3329 = vcmp.eq.s32.totalorder %v276, %v2248
      %vm3330 = vcmp.eq.s32.totalorder %v276, %v2252
      %vm3331 = vcmp.eq.s32.totalorder %v276, %v2256
      %vm3332 = vcmp.eq.s32.totalorder %v276, %v2260
      %vm3333 = vcmp.eq.s32.totalorder %v276, %v2264
      %vm3334 = vcmp.eq.s32.totalorder %v276, %v2268
      %vm3335 = vcmp.eq.s32.totalorder %v276, %v2272
      %vm3336 = vcmp.eq.s32.totalorder %v276, %v2276
      %vm3337 = vcmp.eq.s32.totalorder %v276, %v2280
      %vm3338 = vcmp.eq.s32.totalorder %v276, %v2284
      %vm3339 = vcmp.eq.s32.totalorder %v276, %v2288
      %vm3340 = vcmp.eq.s32.totalorder %v276, %v2292
      %vm3341 = vcmp.eq.s32.totalorder %v276, %v2296
      %vm3342 = vcmp.eq.s32.totalorder %v276, %v2300
      %vm3343 = vcmp.eq.s32.totalorder %v276, %v2304
      %vm3344 = vcmp.eq.s32.totalorder %v276, %v2308
      %vm3345 = vcmp.eq.s32.totalorder %v276, %v2312
      %vm3346 = vcmp.eq.s32.totalorder %v276, %v2316
      %vm3347 = vcmp.eq.s32.totalorder %v276, %v2320
      %vm3348 = vcmp.eq.s32.totalorder %v276, %v2324
      %v3349 = vsel %vm2325, 1, 0
      %v3350 = vsel %vm2326, 1, 0
      %v3351 = vsel %vm2327, 1, 0
      %v3352 = vsel %vm2328, 1, 0
      %v3353 = vsel %vm2329, 1, 0
      %v3354 = vsel %vm2330, 1, 0
      %v3355 = vsel %vm2331, 1, 0
      %v3356 = vsel %vm2332, 1, 0
      %v3357 = vsel %vm2333, 1, 0
      %v3358 = vsel %vm2334, 1, 0
      %v3359 = vsel %vm2335, 1, 0
      %v3360 = vsel %vm2336, 1, 0
      %v3361 = vsel %vm2337, 1, 0
      %v3362 = vsel %vm2338, 1, 0
      %v3363 = vsel %vm2339, 1, 0
      %v3364 = vsel %vm2340, 1, 0
      %v3365 = vsel %vm2341, 1, 0
      %v3366 = vsel %vm2342, 1, 0
      %v3367 = vsel %vm2343, 1, 0
      %v3368 = vsel %vm2344, 1, 0
      %v3369 = vsel %vm2345, 1, 0
      %v3370 = vsel %vm2346, 1, 0
      %v3371 = vsel %vm2347, 1, 0
      %v3372 = vsel %vm2348, 1, 0
      %v3373 = vsel %vm2349, 1, 0
      %v3374 = vsel %vm2350, 1, 0
      %v3375 = vsel %vm2351, 1, 0
      %v3376 = vsel %vm2352, 1, 0
      %v3377 = vsel %vm2353, 1, 0
      %v3378 = vsel %vm2354, 1, 0
      %v3379 = vsel %vm2355, 1, 0
      %v3380 = vsel %vm2356, 1, 0
      %v3381 = vsel %vm2357, 1, 0
      %v3382 = vsel %vm2358, 1, 0
      %v3383 = vsel %vm2359, 1, 0
      %v3384 = vsel %vm2360, 1, 0
      %v3385 = vsel %vm2361, 1, 0
      %v3386 = vsel %vm2362, 1, 0
      %v3387 = vsel %vm2363, 1, 0
      %v3388 = vsel %vm2364, 1, 0
      %v3389 = vsel %vm2365, 1, 0
      %v3390 = vsel %vm2366, 1, 0
      %v3391 = vsel %vm2367, 1, 0
      %v3392 = vsel %vm2368, 1, 0
      %v3393 = vsel %vm2369, 1, 0
      %v3394 = vsel %vm2370, 1, 0
      %v3395 = vsel %vm2371, 1, 0
      %v3396 = vsel %vm2372, 1, 0
      %v3397 = vsel %vm2373, 1, 0
      %v3398 = vsel %vm2374, 1, 0
      %v3399 = vsel %vm2375, 1, 0
      %v3400 = vsel %vm2376, 1, 0
      %v3401 = vsel %vm2377, 1, 0
      %v3402 = vsel %vm2378, 1, 0
      %v3403 = vsel %vm2379, 1, 0
      %v3404 = vsel %vm2380, 1, 0
      %v3405 = vsel %vm2381, 1, 0
      %v3406 = vsel %vm2382, 1, 0
      %v3407 = vsel %vm2383, 1, 0
      %v3408 = vsel %vm2384, 1, 0
      %v3409 = vsel %vm2385, 1, 0
      %v3410 = vsel %vm2386, 1, 0
      %v3411 = vsel %vm2387, 1, 0
      %v3412 = vsel %vm2388, 1, 0
      %v3413 = vsel %vm2389, 1, 0
      %v3414 = vsel %vm2390, 1, 0
      %v3415 = vsel %vm2391, 1, 0
      %v3416 = vsel %vm2392, 1, 0
      %v3417 = vsel %vm2393, 1, 0
      %v3418 = vsel %vm2394, 1, 0
      %v3419 = vsel %vm2395, 1, 0
      %v3420 = vsel %vm2396, 1, 0
      %v3421 = vsel %vm2397, 1, 0
      %v3422 = vsel %vm2398, 1, 0
      %v3423 = vsel %vm2399, 1, 0
      %v3424 = vsel %vm2400, 1, 0
      %v3425 = vsel %vm2401, 1, 0
      %v3426 = vsel %vm2402, 1, 0
      %v3427 = vsel %vm2403, 1, 0
      %v3428 = vsel %vm2404, 1, 0
      %v3429 = vsel %vm2405, 1, 0
      %v3430 = vsel %vm2406, 1, 0
      %v3431 = vsel %vm2407, 1, 0
      %v3432 = vsel %vm2408, 1, 0
      %v3433 = vsel %vm2409, 1, 0
      %v3434 = vsel %vm2410, 1, 0
      %v3435 = vsel %vm2411, 1, 0
      %v3436 = vsel %vm2412, 1, 0
      %v3437 = vsel %vm2413, 1, 0
      %v3438 = vsel %vm2414, 1, 0
      %v3439 = vsel %vm2415, 1, 0
      %v3440 = vsel %vm2416, 1, 0
      %v3441 = vsel %vm2417, 1, 0
      %v3442 = vsel %vm2418, 1, 0
      %v3443 = vsel %vm2419, 1, 0
      %v3444 = vsel %vm2420, 1, 0
      %v3445 = vsel %vm2421, 1, 0
      %v3446 = vsel %vm2422, 1, 0
      %v3447 = vsel %vm2423, 1, 0
      %v3448 = vsel %vm2424, 1, 0
      %v3449 = vsel %vm2425, 1, 0
      %v3450 = vsel %vm2426, 1, 0
      %v3451 = vsel %vm2427, 1, 0
      %v3452 = vsel %vm2428, 1, 0
      %v3453 = vsel %vm2429, 1, 0
      %v3454 = vsel %vm2430, 1, 0
      %v3455 = vsel %vm2431, 1, 0
      %v3456 = vsel %vm2432, 1, 0
      %v3457 = vsel %vm2433, 1, 0
      %v3458 = vsel %vm2434, 1, 0
      %v3459 = vsel %vm2435, 1, 0
      %v3460 = vsel %vm2436, 1, 0
      %v3461 = vsel %vm2437, 1, 0
      %v3462 = vsel %vm2438, 1, 0
      %v3463 = vsel %vm2439, 1, 0
      %v3464 = vsel %vm2440, 1, 0
      %v3465 = vsel %vm2441, 1, 0
      %v3466 = vsel %vm2442, 1, 0
      %v3467 = vsel %vm2443, 1, 0
      %v3468 = vsel %vm2444, 1, 0
      %v3469 = vsel %vm2445, 1, 0
      %v3470 = vsel %vm2446, 1, 0
      %v3471 = vsel %vm2447, 1, 0
      %v3472 = vsel %vm2448, 1, 0
      %v3473 = vsel %vm2449, 1, 0
      %v3474 = vsel %vm2450, 1, 0
      %v3475 = vsel %vm2451, 1, 0
      %v3476 = vsel %vm2452, 1, 0
      %v3477 = vsel %vm2453, 1, 0
      %v3478 = vsel %vm2454, 1, 0
      %v3479 = vsel %vm2455, 1, 0
      %v3480 = vsel %vm2456, 1, 0
      %v3481 = vsel %vm2457, 1, 0
      %v3482 = vsel %vm2458, 1, 0
      %v3483 = vsel %vm2459, 1, 0
      %v3484 = vsel %vm2460, 1, 0
      %v3485 = vsel %vm2461, 1, 0
      %v3486 = vsel %vm2462, 1, 0
      %v3487 = vsel %vm2463, 1, 0
      %v3488 = vsel %vm2464, 1, 0
      %v3489 = vsel %vm2465, 1, 0
      %v3490 = vsel %vm2466, 1, 0
      %v3491 = vsel %vm2467, 1, 0
      %v3492 = vsel %vm2468, 1, 0
      %v3493 = vsel %vm2469, 1, 0
      %v3494 = vsel %vm2470, 1, 0
      %v3495 = vsel %vm2471, 1, 0
      %v3496 = vsel %vm2472, 1, 0
      %v3497 = vsel %vm2473, 1, 0
      %v3498 = vsel %vm2474, 1, 0
      %v3499 = vsel %vm2475, 1, 0
      %v3500 = vsel %vm2476, 1, 0
      %v3501 = vsel %vm2477, 1, 0
      %v3502 = vsel %vm2478, 1, 0
      %v3503 = vsel %vm2479, 1, 0
      %v3504 = vsel %vm2480, 1, 0
      %v3505 = vsel %vm2481, 1, 0
      %v3506 = vsel %vm2482, 1, 0
      %v3507 = vsel %vm2483, 1, 0
      %v3508 = vsel %vm2484, 1, 0
      %v3509 = vsel %vm2485, 1, 0
      %v3510 = vsel %vm2486, 1, 0
      %v3511 = vsel %vm2487, 1, 0
      %v3512 = vsel %vm2488, 1, 0
      %v3513 = vsel %vm2489, 1, 0
      %v3514 = vsel %vm2490, 1, 0
      %v3515 = vsel %vm2491, 1, 0
      %v3516 = vsel %vm2492, 1, 0
      %v3517 = vsel %vm2493, 1, 0
      %v3518 = vsel %vm2494, 1, 0
      %v3519 = vsel %vm2495, 1, 0
      %v3520 = vsel %vm2496, 1, 0
      %v3521 = vsel %vm2497, 1, 0
      %v3522 = vsel %vm2498, 1, 0
      %v3523 = vsel %vm2499, 1, 0
      %v3524 = vsel %vm2500, 1, 0
      %v3525 = vsel %vm2501, 1, 0
      %v3526 = vsel %vm2502, 1, 0
      %v3527 = vsel %vm2503, 1, 0
      %v3528 = vsel %vm2504, 1, 0
      %v3529 = vsel %vm2505, 1, 0
      %v3530 = vsel %vm2506, 1, 0
      %v3531 = vsel %vm2507, 1, 0
      %v3532 = vsel %vm2508, 1, 0
      %v3533 = vsel %vm2509, 1, 0
      %v3534 = vsel %vm2510, 1, 0
      %v3535 = vsel %vm2511, 1, 0
      %v3536 = vsel %vm2512, 1, 0
      %v3537 = vsel %vm2513, 1, 0
      %v3538 = vsel %vm2514, 1, 0
      %v3539 = vsel %vm2515, 1, 0
      %v3540 = vsel %vm2516, 1, 0
      %v3541 = vsel %vm2517, 1, 0
      %v3542 = vsel %vm2518, 1, 0
      %v3543 = vsel %vm2519, 1, 0
      %v3544 = vsel %vm2520, 1, 0
      %v3545 = vsel %vm2521, 1, 0
      %v3546 = vsel %vm2522, 1, 0
      %v3547 = vsel %vm2523, 1, 0
      %v3548 = vsel %vm2524, 1, 0
      %v3549 = vsel %vm2525, 1, 0
      %v3550 = vsel %vm2526, 1, 0
      %v3551 = vsel %vm2527, 1, 0
      %v3552 = vsel %vm2528, 1, 0
      %v3553 = vsel %vm2529, 1, 0
      %v3554 = vsel %vm2530, 1, 0
      %v3555 = vsel %vm2531, 1, 0
      %v3556 = vsel %vm2532, 1, 0
      %v3557 = vsel %vm2533, 1, 0
      %v3558 = vsel %vm2534, 1, 0
      %v3559 = vsel %vm2535, 1, 0
      %v3560 = vsel %vm2536, 1, 0
      %v3561 = vsel %vm2537, 1, 0
      %v3562 = vsel %vm2538, 1, 0
      %v3563 = vsel %vm2539, 1, 0
      %v3564 = vsel %vm2540, 1, 0
      %v3565 = vsel %vm2541, 1, 0
      %v3566 = vsel %vm2542, 1, 0
      %v3567 = vsel %vm2543, 1, 0
      %v3568 = vsel %vm2544, 1, 0
      %v3569 = vsel %vm2545, 1, 0
      %v3570 = vsel %vm2546, 1, 0
      %v3571 = vsel %vm2547, 1, 0
      %v3572 = vsel %vm2548, 1, 0
      %v3573 = vsel %vm2549, 1, 0
      %v3574 = vsel %vm2550, 1, 0
      %v3575 = vsel %vm2551, 1, 0
      %v3576 = vsel %vm2552, 1, 0
      %v3577 = vsel %vm2553, 1, 0
      %v3578 = vsel %vm2554, 1, 0
      %v3579 = vsel %vm2555, 1, 0
      %v3580 = vsel %vm2556, 1, 0
      %v3581 = vsel %vm2557, 1, 0
      %v3582 = vsel %vm2558, 1, 0
      %v3583 = vsel %vm2559, 1, 0
      %v3584 = vsel %vm2560, 1, 0
      %v3585 = vsel %vm2561, 1, 0
      %v3586 = vsel %vm2562, 1, 0
      %v3587 = vsel %vm2563, 1, 0
      %v3588 = vsel %vm2564, 1, 0
      %v3589 = vsel %vm2565, 1, 0
      %v3590 = vsel %vm2566, 1, 0
      %v3591 = vsel %vm2567, 1, 0
      %v3592 = vsel %vm2568, 1, 0
      %v3593 = vsel %vm2569, 1, 0
      %v3594 = vsel %vm2570, 1, 0
      %v3595 = vsel %vm2571, 1, 0
      %v3596 = vsel %vm2572, 1, 0
      %v3597 = vsel %vm2573, 1, 0
      %v3598 = vsel %vm2574, 1, 0
      %v3599 = vsel %vm2575, 1, 0
      %v3600 = vsel %vm2576, 1, 0
      %v3601 = vsel %vm2577, 1, 0
      %v3602 = vsel %vm2578, 1, 0
      %v3603 = vsel %vm2579, 1, 0
      %v3604 = vsel %vm2580, 1, 0
      %v3605 = vsel %vm2581, 1, 0
      %v3606 = vsel %vm2582, 1, 0
      %v3607 = vsel %vm2583, 1, 0
      %v3608 = vsel %vm2584, 1, 0
      %v3609 = vsel %vm2585, 1, 0
      %v3610 = vsel %vm2586, 1, 0
      %v3611 = vsel %vm2587, 1, 0
      %v3612 = vsel %vm2588, 1, 0
      %v3613 = vsel %vm2589, 1, 0
      %v3614 = vsel %vm2590, 1, 0
      %v3615 = vsel %vm2591, 1, 0
      %v3616 = vsel %vm2592, 1, 0
      %v3617 = vsel %vm2593, 1, 0
      %v3618 = vsel %vm2594, 1, 0
      %v3619 = vsel %vm2595, 1, 0
      %v3620 = vsel %vm2596, 1, 0
      %v3621 = vsel %vm2597, 1, 0
      %v3622 = vsel %vm2598, 1, 0
      %v3623 = vsel %vm2599, 1, 0
      %v3624 = vsel %vm2600, 1, 0
      %v3625 = vsel %vm2601, 1, 0
      %v3626 = vsel %vm2602, 1, 0
      %v3627 = vsel %vm2603, 1, 0
      %v3628 = vsel %vm2604, 1, 0
      %v3629 = vsel %vm2605, 1, 0
      %v3630 = vsel %vm2606, 1, 0
      %v3631 = vsel %vm2607, 1, 0
      %v3632 = vsel %vm2608, 1, 0
      %v3633 = vsel %vm2609, 1, 0
      %v3634 = vsel %vm2610, 1, 0
      %v3635 = vsel %vm2611, 1, 0
      %v3636 = vsel %vm2612, 1, 0
      %v3637 = vsel %vm2613, 1, 0
      %v3638 = vsel %vm2614, 1, 0
      %v3639 = vsel %vm2615, 1, 0
      %v3640 = vsel %vm2616, 1, 0
      %v3641 = vsel %vm2617, 1, 0
      %v3642 = vsel %vm2618, 1, 0
      %v3643 = vsel %vm2619, 1, 0
      %v3644 = vsel %vm2620, 1, 0
      %v3645 = vsel %vm2621, 1, 0
      %v3646 = vsel %vm2622, 1, 0
      %v3647 = vsel %vm2623, 1, 0
      %v3648 = vsel %vm2624, 1, 0
      %v3649 = vsel %vm2625, 1, 0
      %v3650 = vsel %vm2626, 1, 0
      %v3651 = vsel %vm2627, 1, 0
      %v3652 = vsel %vm2628, 1, 0
      %v3653 = vsel %vm2629, 1, 0
      %v3654 = vsel %vm2630, 1, 0
      %v3655 = vsel %vm2631, 1, 0
      %v3656 = vsel %vm2632, 1, 0
      %v3657 = vsel %vm2633, 1, 0
      %v3658 = vsel %vm2634, 1, 0
      %v3659 = vsel %vm2635, 1, 0
      %v3660 = vsel %vm2636, 1, 0
      %v3661 = vsel %vm2637, 1, 0
      %v3662 = vsel %vm2638, 1, 0
      %v3663 = vsel %vm2639, 1, 0
      %v3664 = vsel %vm2640, 1, 0
      %v3665 = vsel %vm2641, 1, 0
      %v3666 = vsel %vm2642, 1, 0
      %v3667 = vsel %vm2643, 1, 0
      %v3668 = vsel %vm2644, 1, 0
      %v3669 = vsel %vm2645, 1, 0
      %v3670 = vsel %vm2646, 1, 0
      %v3671 = vsel %vm2647, 1, 0
      %v3672 = vsel %vm2648, 1, 0
      %v3673 = vsel %vm2649, 1, 0
      %v3674 = vsel %vm2650, 1, 0
      %v3675 = vsel %vm2651, 1, 0
      %v3676 = vsel %vm2652, 1, 0
      %v3677 = vsel %vm2653, 1, 0
      %v3678 = vsel %vm2654, 1, 0
      %v3679 = vsel %vm2655, 1, 0
      %v3680 = vsel %vm2656, 1, 0
      %v3681 = vsel %vm2657, 1, 0
      %v3682 = vsel %vm2658, 1, 0
      %v3683 = vsel %vm2659, 1, 0
      %v3684 = vsel %vm2660, 1, 0
      %v3685 = vsel %vm2661, 1, 0
      %v3686 = vsel %vm2662, 1, 0
      %v3687 = vsel %vm2663, 1, 0
      %v3688 = vsel %vm2664, 1, 0
      %v3689 = vsel %vm2665, 1, 0
      %v3690 = vsel %vm2666, 1, 0
      %v3691 = vsel %vm2667, 1, 0
      %v3692 = vsel %vm2668, 1, 0
      %v3693 = vsel %vm2669, 1, 0
      %v3694 = vsel %vm2670, 1, 0
      %v3695 = vsel %vm2671, 1, 0
      %v3696 = vsel %vm2672, 1, 0
      %v3697 = vsel %vm2673, 1, 0
      %v3698 = vsel %vm2674, 1, 0
      %v3699 = vsel %vm2675, 1, 0
      %v3700 = vsel %vm2676, 1, 0
      %v3701 = vsel %vm2677, 1, 0
      %v3702 = vsel %vm2678, 1, 0
      %v3703 = vsel %vm2679, 1, 0
      %v3704 = vsel %vm2680, 1, 0
      %v3705 = vsel %vm2681, 1, 0
      %v3706 = vsel %vm2682, 1, 0
      %v3707 = vsel %vm2683, 1, 0
      %v3708 = vsel %vm2684, 1, 0
      %v3709 = vsel %vm2685, 1, 0
      %v3710 = vsel %vm2686, 1, 0
      %v3711 = vsel %vm2687, 1, 0
      %v3712 = vsel %vm2688, 1, 0
      %v3713 = vsel %vm2689, 1, 0
      %v3714 = vsel %vm2690, 1, 0
      %v3715 = vsel %vm2691, 1, 0
      %v3716 = vsel %vm2692, 1, 0
      %v3717 = vsel %vm2693, 1, 0
      %v3718 = vsel %vm2694, 1, 0
      %v3719 = vsel %vm2695, 1, 0
      %v3720 = vsel %vm2696, 1, 0
      %v3721 = vsel %vm2697, 1, 0
      %v3722 = vsel %vm2698, 1, 0
      %v3723 = vsel %vm2699, 1, 0
      %v3724 = vsel %vm2700, 1, 0
      %v3725 = vsel %vm2701, 1, 0
      %v3726 = vsel %vm2702, 1, 0
      %v3727 = vsel %vm2703, 1, 0
      %v3728 = vsel %vm2704, 1, 0
      %v3729 = vsel %vm2705, 1, 0
      %v3730 = vsel %vm2706, 1, 0
      %v3731 = vsel %vm2707, 1, 0
      %v3732 = vsel %vm2708, 1, 0
      %v3733 = vsel %vm2709, 1, 0
      %v3734 = vsel %vm2710, 1, 0
      %v3735 = vsel %vm2711, 1, 0
      %v3736 = vsel %vm2712, 1, 0
      %v3737 = vsel %vm2713, 1, 0
      %v3738 = vsel %vm2714, 1, 0
      %v3739 = vsel %vm2715, 1, 0
      %v3740 = vsel %vm2716, 1, 0
      %v3741 = vsel %vm2717, 1, 0
      %v3742 = vsel %vm2718, 1, 0
      %v3743 = vsel %vm2719, 1, 0
      %v3744 = vsel %vm2720, 1, 0
      %v3745 = vsel %vm2721, 1, 0
      %v3746 = vsel %vm2722, 1, 0
      %v3747 = vsel %vm2723, 1, 0
      %v3748 = vsel %vm2724, 1, 0
      %v3749 = vsel %vm2725, 1, 0
      %v3750 = vsel %vm2726, 1, 0
      %v3751 = vsel %vm2727, 1, 0
      %v3752 = vsel %vm2728, 1, 0
      %v3753 = vsel %vm2729, 1, 0
      %v3754 = vsel %vm2730, 1, 0
      %v3755 = vsel %vm2731, 1, 0
      %v3756 = vsel %vm2732, 1, 0
      %v3757 = vsel %vm2733, 1, 0
      %v3758 = vsel %vm2734, 1, 0
      %v3759 = vsel %vm2735, 1, 0
      %v3760 = vsel %vm2736, 1, 0
      %v3761 = vsel %vm2737, 1, 0
      %v3762 = vsel %vm2738, 1, 0
      %v3763 = vsel %vm2739, 1, 0
      %v3764 = vsel %vm2740, 1, 0
      %v3765 = vsel %vm2741, 1, 0
      %v3766 = vsel %vm2742, 1, 0
      %v3767 = vsel %vm2743, 1, 0
      %v3768 = vsel %vm2744, 1, 0
      %v3769 = vsel %vm2745, 1, 0
      %v3770 = vsel %vm2746, 1, 0
      %v3771 = vsel %vm2747, 1, 0
      %v3772 = vsel %vm2748, 1, 0
      %v3773 = vsel %vm2749, 1, 0
      %v3774 = vsel %vm2750, 1, 0
      %v3775 = vsel %vm2751, 1, 0
      %v3776 = vsel %vm2752, 1, 0
      %v3777 = vsel %vm2753, 1, 0
      %v3778 = vsel %vm2754, 1, 0
      %v3779 = vsel %vm2755, 1, 0
      %v3780 = vsel %vm2756, 1, 0
      %v3781 = vsel %vm2757, 1, 0
      %v3782 = vsel %vm2758, 1, 0
      %v3783 = vsel %vm2759, 1, 0
      %v3784 = vsel %vm2760, 1, 0
      %v3785 = vsel %vm2761, 1, 0
      %v3786 = vsel %vm2762, 1, 0
      %v3787 = vsel %vm2763, 1, 0
      %v3788 = vsel %vm2764, 1, 0
      %v3789 = vsel %vm2765, 1, 0
      %v3790 = vsel %vm2766, 1, 0
      %v3791 = vsel %vm2767, 1, 0
      %v3792 = vsel %vm2768, 1, 0
      %v3793 = vsel %vm2769, 1, 0
      %v3794 = vsel %vm2770, 1, 0
      %v3795 = vsel %vm2771, 1, 0
      %v3796 = vsel %vm2772, 1, 0
      %v3797 = vsel %vm2773, 1, 0
      %v3798 = vsel %vm2774, 1, 0
      %v3799 = vsel %vm2775, 1, 0
      %v3800 = vsel %vm2776, 1, 0
      %v3801 = vsel %vm2777, 1, 0
      %v3802 = vsel %vm2778, 1, 0
      %v3803 = vsel %vm2779, 1, 0
      %v3804 = vsel %vm2780, 1, 0
      %v3805 = vsel %vm2781, 1, 0
      %v3806 = vsel %vm2782, 1, 0
      %v3807 = vsel %vm2783, 1, 0
      %v3808 = vsel %vm2784, 1, 0
      %v3809 = vsel %vm2785, 1, 0
      %v3810 = vsel %vm2786, 1, 0
      %v3811 = vsel %vm2787, 1, 0
      %v3812 = vsel %vm2788, 1, 0
      %v3813 = vsel %vm2789, 1, 0
      %v3814 = vsel %vm2790, 1, 0
      %v3815 = vsel %vm2791, 1, 0
      %v3816 = vsel %vm2792, 1, 0
      %v3817 = vsel %vm2793, 1, 0
      %v3818 = vsel %vm2794, 1, 0
      %v3819 = vsel %vm2795, 1, 0
      %v3820 = vsel %vm2796, 1, 0
      %v3821 = vsel %vm2797, 1, 0
      %v3822 = vsel %vm2798, 1, 0
      %v3823 = vsel %vm2799, 1, 0
      %v3824 = vsel %vm2800, 1, 0
      %v3825 = vsel %vm2801, 1, 0
      %v3826 = vsel %vm2802, 1, 0
      %v3827 = vsel %vm2803, 1, 0
      %v3828 = vsel %vm2804, 1, 0
      %v3829 = vsel %vm2805, 1, 0
      %v3830 = vsel %vm2806, 1, 0
      %v3831 = vsel %vm2807, 1, 0
      %v3832 = vsel %vm2808, 1, 0
      %v3833 = vsel %vm2809, 1, 0
      %v3834 = vsel %vm2810, 1, 0
      %v3835 = vsel %vm2811, 1, 0
      %v3836 = vsel %vm2812, 1, 0
      %v3837 = vsel %vm2813, 1, 0
      %v3838 = vsel %vm2814, 1, 0
      %v3839 = vsel %vm2815, 1, 0
      %v3840 = vsel %vm2816, 1, 0
      %v3841 = vsel %vm2817, 1, 0
      %v3842 = vsel %vm2818, 1, 0
      %v3843 = vsel %vm2819, 1, 0
      %v3844 = vsel %vm2820, 1, 0
      %v3845 = vsel %vm2821, 1, 0
      %v3846 = vsel %vm2822, 1, 0
      %v3847 = vsel %vm2823, 1, 0
      %v3848 = vsel %vm2824, 1, 0
      %v3849 = vsel %vm2825, 1, 0
      %v3850 = vsel %vm2826, 1, 0
      %v3851 = vsel %vm2827, 1, 0
      %v3852 = vsel %vm2828, 1, 0
      %v3853 = vsel %vm2829, 1, 0
      %v3854 = vsel %vm2830, 1, 0
      %v3855 = vsel %vm2831, 1, 0
      %v3856 = vsel %vm2832, 1, 0
      %v3857 = vsel %vm2833, 1, 0
      %v3858 = vsel %vm2834, 1, 0
      %v3859 = vsel %vm2835, 1, 0
      %v3860 = vsel %vm2836, 1, 0
      %v3861 = vsel %vm2837, 1, 0
      %v3862 = vsel %vm2838, 1, 0
      %v3863 = vsel %vm2839, 1, 0
      %v3864 = vsel %vm2840, 1, 0
      %v3865 = vsel %vm2841, 1, 0
      %v3866 = vsel %vm2842, 1, 0
      %v3867 = vsel %vm2843, 1, 0
      %v3868 = vsel %vm2844, 1, 0
      %v3869 = vsel %vm2845, 1, 0
      %v3870 = vsel %vm2846, 1, 0
      %v3871 = vsel %vm2847, 1, 0
      %v3872 = vsel %vm2848, 1, 0
      %v3873 = vsel %vm2849, 1, 0
      %v3874 = vsel %vm2850, 1, 0
      %v3875 = vsel %vm2851, 1, 0
      %v3876 = vsel %vm2852, 1, 0
      %v3877 = vsel %vm2853, 1, 0
      %v3878 = vsel %vm2854, 1, 0
      %v3879 = vsel %vm2855, 1, 0
      %v3880 = vsel %vm2856, 1, 0
      %v3881 = vsel %vm2857, 1, 0
      %v3882 = vsel %vm2858, 1, 0
      %v3883 = vsel %vm2859, 1, 0
      %v3884 = vsel %vm2860, 1, 0
      %v3885 = vsel %vm2861, 1, 0
      %v3886 = vsel %vm2862, 1, 0
      %v3887 = vsel %vm2863, 1, 0
      %v3888 = vsel %vm2864, 1, 0
      %v3889 = vsel %vm2865, 1, 0
      %v3890 = vsel %vm2866, 1, 0
      %v3891 = vsel %vm2867, 1, 0
      %v3892 = vsel %vm2868, 1, 0
      %v3893 = vsel %vm2869, 1, 0
      %v3894 = vsel %vm2870, 1, 0
      %v3895 = vsel %vm2871, 1, 0
      %v3896 = vsel %vm2872, 1, 0
      %v3897 = vsel %vm2873, 1, 0
      %v3898 = vsel %vm2874, 1, 0
      %v3899 = vsel %vm2875, 1, 0
      %v3900 = vsel %vm2876, 1, 0
      %v3901 = vsel %vm2877, 1, 0
      %v3902 = vsel %vm2878, 1, 0
      %v3903 = vsel %vm2879, 1, 0
      %v3904 = vsel %vm2880, 1, 0
      %v3905 = vsel %vm2881, 1, 0
      %v3906 = vsel %vm2882, 1, 0
      %v3907 = vsel %vm2883, 1, 0
      %v3908 = vsel %vm2884, 1, 0
      %v3909 = vsel %vm2885, 1, 0
      %v3910 = vsel %vm2886, 1, 0
      %v3911 = vsel %vm2887, 1, 0
      %v3912 = vsel %vm2888, 1, 0
      %v3913 = vsel %vm2889, 1, 0
      %v3914 = vsel %vm2890, 1, 0
      %v3915 = vsel %vm2891, 1, 0
      %v3916 = vsel %vm2892, 1, 0
      %v3917 = vsel %vm2893, 1, 0
      %v3918 = vsel %vm2894, 1, 0
      %v3919 = vsel %vm2895, 1, 0
      %v3920 = vsel %vm2896, 1, 0
      %v3921 = vsel %vm2897, 1, 0
      %v3922 = vsel %vm2898, 1, 0
      %v3923 = vsel %vm2899, 1, 0
      %v3924 = vsel %vm2900, 1, 0
      %v3925 = vsel %vm2901, 1, 0
      %v3926 = vsel %vm2902, 1, 0
      %v3927 = vsel %vm2903, 1, 0
      %v3928 = vsel %vm2904, 1, 0
      %v3929 = vsel %vm2905, 1, 0
      %v3930 = vsel %vm2906, 1, 0
      %v3931 = vsel %vm2907, 1, 0
      %v3932 = vsel %vm2908, 1, 0
      %v3933 = vsel %vm2909, 1, 0
      %v3934 = vsel %vm2910, 1, 0
      %v3935 = vsel %vm2911, 1, 0
      %v3936 = vsel %vm2912, 1, 0
      %v3937 = vsel %vm2913, 1, 0
      %v3938 = vsel %vm2914, 1, 0
      %v3939 = vsel %vm2915, 1, 0
      %v3940 = vsel %vm2916, 1, 0
      %v3941 = vsel %vm2917, 1, 0
      %v3942 = vsel %vm2918, 1, 0
      %v3943 = vsel %vm2919, 1, 0
      %v3944 = vsel %vm2920, 1, 0
      %v3945 = vsel %vm2921, 1, 0
      %v3946 = vsel %vm2922, 1, 0
      %v3947 = vsel %vm2923, 1, 0
      %v3948 = vsel %vm2924, 1, 0
      %v3949 = vsel %vm2925, 1, 0
      %v3950 = vsel %vm2926, 1, 0
      %v3951 = vsel %vm2927, 1, 0
      %v3952 = vsel %vm2928, 1, 0
      %v3953 = vsel %vm2929, 1, 0
      %v3954 = vsel %vm2930, 1, 0
      %v3955 = vsel %vm2931, 1, 0
      %v3956 = vsel %vm2932, 1, 0
      %v3957 = vsel %vm2933, 1, 0
      %v3958 = vsel %vm2934, 1, 0
      %v3959 = vsel %vm2935, 1, 0
      %v3960 = vsel %vm2936, 1, 0
      %v3961 = vsel %vm2937, 1, 0
      %v3962 = vsel %vm2938, 1, 0
      %v3963 = vsel %vm2939, 1, 0
      %v3964 = vsel %vm2940, 1, 0
      %v3965 = vsel %vm2941, 1, 0
      %v3966 = vsel %vm2942, 1, 0
      %v3967 = vsel %vm2943, 1, 0
      %v3968 = vsel %vm2944, 1, 0
      %v3969 = vsel %vm2945, 1, 0
      %v3970 = vsel %vm2946, 1, 0
      %v3971 = vsel %vm2947, 1, 0
      %v3972 = vsel %vm2948, 1, 0
      %v3973 = vsel %vm2949, 1, 0
      %v3974 = vsel %vm2950, 1, 0
      %v3975 = vsel %vm2951, 1, 0
      %v3976 = vsel %vm2952, 1, 0
      %v3977 = vsel %vm2953, 1, 0
      %v3978 = vsel %vm2954, 1, 0
      %v3979 = vsel %vm2955, 1, 0
      %v3980 = vsel %vm2956, 1, 0
      %v3981 = vsel %vm2957, 1, 0
      %v3982 = vsel %vm2958, 1, 0
      %v3983 = vsel %vm2959, 1, 0
      %v3984 = vsel %vm2960, 1, 0
      %v3985 = vsel %vm2961, 1, 0
      %v3986 = vsel %vm2962, 1, 0
      %v3987 = vsel %vm2963, 1, 0
      %v3988 = vsel %vm2964, 1, 0
      %v3989 = vsel %vm2965, 1, 0
      %v3990 = vsel %vm2966, 1, 0
      %v3991 = vsel %vm2967, 1, 0
      %v3992 = vsel %vm2968, 1, 0
      %v3993 = vsel %vm2969, 1, 0
      %v3994 = vsel %vm2970, 1, 0
      %v3995 = vsel %vm2971, 1, 0
      %v3996 = vsel %vm2972, 1, 0
      %v3997 = vsel %vm2973, 1, 0
      %v3998 = vsel %vm2974, 1, 0
      %v3999 = vsel %vm2975, 1, 0
      %v4000 = vsel %vm2976, 1, 0
      %v4001 = vsel %vm2977, 1, 0
      %v4002 = vsel %vm2978, 1, 0
      %v4003 = vsel %vm2979, 1, 0
      %v4004 = vsel %vm2980, 1, 0
      %v4005 = vsel %vm2981, 1, 0
      %v4006 = vsel %vm2982, 1, 0
      %v4007 = vsel %vm2983, 1, 0
      %v4008 = vsel %vm2984, 1, 0
      %v4009 = vsel %vm2985, 1, 0
      %v4010 = vsel %vm2986, 1, 0
      %v4011 = vsel %vm2987, 1, 0
      %v4012 = vsel %vm2988, 1, 0
      %v4013 = vsel %vm2989, 1, 0
      %v4014 = vsel %vm2990, 1, 0
      %v4015 = vsel %vm2991, 1, 0
      %v4016 = vsel %vm2992, 1, 0
      %v4017 = vsel %vm2993, 1, 0
      %v4018 = vsel %vm2994, 1, 0
      %v4019 = vsel %vm2995, 1, 0
      %v4020 = vsel %vm2996, 1, 0
      %v4021 = vsel %vm2997, 1, 0
      %v4022 = vsel %vm2998, 1, 0
      %v4023 = vsel %vm2999, 1, 0
      %v4024 = vsel %vm3000, 1, 0
      %v4025 = vsel %vm3001, 1, 0
      %v4026 = vsel %vm3002, 1, 0
      %v4027 = vsel %vm3003, 1, 0
      %v4028 = vsel %vm3004, 1, 0
      %v4029 = vsel %vm3005, 1, 0
      %v4030 = vsel %vm3006, 1, 0
      %v4031 = vsel %vm3007, 1, 0
      %v4032 = vsel %vm3008, 1, 0
      %v4033 = vsel %vm3009, 1, 0
      %v4034 = vsel %vm3010, 1, 0
      %v4035 = vsel %vm3011, 1, 0
      %v4036 = vsel %vm3012, 1, 0
      %v4037 = vsel %vm3013, 1, 0
      %v4038 = vsel %vm3014, 1, 0
      %v4039 = vsel %vm3015, 1, 0
      %v4040 = vsel %vm3016, 1, 0
      %v4041 = vsel %vm3017, 1, 0
      %v4042 = vsel %vm3018, 1, 0
      %v4043 = vsel %vm3019, 1, 0
      %v4044 = vsel %vm3020, 1, 0
      %v4045 = vsel %vm3021, 1, 0
      %v4046 = vsel %vm3022, 1, 0
      %v4047 = vsel %vm3023, 1, 0
      %v4048 = vsel %vm3024, 1, 0
      %v4049 = vsel %vm3025, 1, 0
      %v4050 = vsel %vm3026, 1, 0
      %v4051 = vsel %vm3027, 1, 0
      %v4052 = vsel %vm3028, 1, 0
      %v4053 = vsel %vm3029, 1, 0
      %v4054 = vsel %vm3030, 1, 0
      %v4055 = vsel %vm3031, 1, 0
      %v4056 = vsel %vm3032, 1, 0
      %v4057 = vsel %vm3033, 1, 0
      %v4058 = vsel %vm3034, 1, 0
      %v4059 = vsel %vm3035, 1, 0
      %v4060 = vsel %vm3036, 1, 0
      %v4061 = vsel %vm3037, 1, 0
      %v4062 = vsel %vm3038, 1, 0
      %v4063 = vsel %vm3039, 1, 0
      %v4064 = vsel %vm3040, 1, 0
      %v4065 = vsel %vm3041, 1, 0
      %v4066 = vsel %vm3042, 1, 0
      %v4067 = vsel %vm3043, 1, 0
      %v4068 = vsel %vm3044, 1, 0
      %v4069 = vsel %vm3045, 1, 0
      %v4070 = vsel %vm3046, 1, 0
      %v4071 = vsel %vm3047, 1, 0
      %v4072 = vsel %vm3048, 1, 0
      %v4073 = vsel %vm3049, 1, 0
      %v4074 = vsel %vm3050, 1, 0
      %v4075 = vsel %vm3051, 1, 0
      %v4076 = vsel %vm3052, 1, 0
      %v4077 = vsel %vm3053, 1, 0
      %v4078 = vsel %vm3054, 1, 0
      %v4079 = vsel %vm3055, 1, 0
      %v4080 = vsel %vm3056, 1, 0
      %v4081 = vsel %vm3057, 1, 0
      %v4082 = vsel %vm3058, 1, 0
      %v4083 = vsel %vm3059, 1, 0
      %v4084 = vsel %vm3060, 1, 0
      %v4085 = vsel %vm3061, 1, 0
      %v4086 = vsel %vm3062, 1, 0
      %v4087 = vsel %vm3063, 1, 0
      %v4088 = vsel %vm3064, 1, 0
      %v4089 = vsel %vm3065, 1, 0
      %v4090 = vsel %vm3066, 1, 0
      %v4091 = vsel %vm3067, 1, 0
      %v4092 = vsel %vm3068, 1, 0
      %v4093 = vsel %vm3069, 1, 0
      %v4094 = vsel %vm3070, 1, 0
      %v4095 = vsel %vm3071, 1, 0
      %v4096 = vsel %vm3072, 1, 0
      %v4097 = vsel %vm3073, 1, 0
      %v4098 = vsel %vm3074, 1, 0
      %v4099 = vsel %vm3075, 1, 0
      %v4100 = vsel %vm3076, 1, 0
      %v4101 = vsel %vm3077, 1, 0
      %v4102 = vsel %vm3078, 1, 0
      %v4103 = vsel %vm3079, 1, 0
      %v4104 = vsel %vm3080, 1, 0
      %v4105 = vsel %vm3081, 1, 0
      %v4106 = vsel %vm3082, 1, 0
      %v4107 = vsel %vm3083, 1, 0
      %v4108 = vsel %vm3084, 1, 0
      %v4109 = vsel %vm3085, 1, 0
      %v4110 = vsel %vm3086, 1, 0
      %v4111 = vsel %vm3087, 1, 0
      %v4112 = vsel %vm3088, 1, 0
      %v4113 = vsel %vm3089, 1, 0
      %v4114 = vsel %vm3090, 1, 0
      %v4115 = vsel %vm3091, 1, 0
      %v4116 = vsel %vm3092, 1, 0
      %v4117 = vsel %vm3093, 1, 0
      %v4118 = vsel %vm3094, 1, 0
      %v4119 = vsel %vm3095, 1, 0
      %v4120 = vsel %vm3096, 1, 0
      %v4121 = vsel %vm3097, 1, 0
      %v4122 = vsel %vm3098, 1, 0
      %v4123 = vsel %vm3099, 1, 0
      %v4124 = vsel %vm3100, 1, 0
      %v4125 = vsel %vm3101, 1, 0
      %v4126 = vsel %vm3102, 1, 0
      %v4127 = vsel %vm3103, 1, 0
      %v4128 = vsel %vm3104, 1, 0
      %v4129 = vsel %vm3105, 1, 0
      %v4130 = vsel %vm3106, 1, 0
      %v4131 = vsel %vm3107, 1, 0
      %v4132 = vsel %vm3108, 1, 0
      %v4133 = vsel %vm3109, 1, 0
      %v4134 = vsel %vm3110, 1, 0
      %v4135 = vsel %vm3111, 1, 0
      %v4136 = vsel %vm3112, 1, 0
      %v4137 = vsel %vm3113, 1, 0
      %v4138 = vsel %vm3114, 1, 0
      %v4139 = vsel %vm3115, 1, 0
      %v4140 = vsel %vm3116, 1, 0
      %v4141 = vsel %vm3117, 1, 0
      %v4142 = vsel %vm3118, 1, 0
      %v4143 = vsel %vm3119, 1, 0
      %v4144 = vsel %vm3120, 1, 0
      %v4145 = vsel %vm3121, 1, 0
      %v4146 = vsel %vm3122, 1, 0
      %v4147 = vsel %vm3123, 1, 0
      %v4148 = vsel %vm3124, 1, 0
      %v4149 = vsel %vm3125, 1, 0
      %v4150 = vsel %vm3126, 1, 0
      %v4151 = vsel %vm3127, 1, 0
      %v4152 = vsel %vm3128, 1, 0
      %v4153 = vsel %vm3129, 1, 0
      %v4154 = vsel %vm3130, 1, 0
      %v4155 = vsel %vm3131, 1, 0
      %v4156 = vsel %vm3132, 1, 0
      %v4157 = vsel %vm3133, 1, 0
      %v4158 = vsel %vm3134, 1, 0
      %v4159 = vsel %vm3135, 1, 0
      %v4160 = vsel %vm3136, 1, 0
      %v4161 = vsel %vm3137, 1, 0
      %v4162 = vsel %vm3138, 1, 0
      %v4163 = vsel %vm3139, 1, 0
      %v4164 = vsel %vm3140, 1, 0
      %v4165 = vsel %vm3141, 1, 0
      %v4166 = vsel %vm3142, 1, 0
      %v4167 = vsel %vm3143, 1, 0
      %v4168 = vsel %vm3144, 1, 0
      %v4169 = vsel %vm3145, 1, 0
      %v4170 = vsel %vm3146, 1, 0
      %v4171 = vsel %vm3147, 1, 0
      %v4172 = vsel %vm3148, 1, 0
      %v4173 = vsel %vm3149, 1, 0
      %v4174 = vsel %vm3150, 1, 0
      %v4175 = vsel %vm3151, 1, 0
      %v4176 = vsel %vm3152, 1, 0
      %v4177 = vsel %vm3153, 1, 0
      %v4178 = vsel %vm3154, 1, 0
      %v4179 = vsel %vm3155, 1, 0
      %v4180 = vsel %vm3156, 1, 0
      %v4181 = vsel %vm3157, 1, 0
      %v4182 = vsel %vm3158, 1, 0
      %v4183 = vsel %vm3159, 1, 0
      %v4184 = vsel %vm3160, 1, 0
      %v4185 = vsel %vm3161, 1, 0
      %v4186 = vsel %vm3162, 1, 0
      %v4187 = vsel %vm3163, 1, 0
      %v4188 = vsel %vm3164, 1, 0
      %v4189 = vsel %vm3165, 1, 0
      %v4190 = vsel %vm3166, 1, 0
      %v4191 = vsel %vm3167, 1, 0
      %v4192 = vsel %vm3168, 1, 0
      %v4193 = vsel %vm3169, 1, 0
      %v4194 = vsel %vm3170, 1, 0
      %v4195 = vsel %vm3171, 1, 0
      %v4196 = vsel %vm3172, 1, 0
      %v4197 = vsel %vm3173, 1, 0
      %v4198 = vsel %vm3174, 1, 0
      %v4199 = vsel %vm3175, 1, 0
      %v4200 = vsel %vm3176, 1, 0
      %v4201 = vsel %vm3177, 1, 0
      %v4202 = vsel %vm3178, 1, 0
      %v4203 = vsel %vm3179, 1, 0
      %v4204 = vsel %vm3180, 1, 0
      %v4205 = vsel %vm3181, 1, 0
      %v4206 = vsel %vm3182, 1, 0
      %v4207 = vsel %vm3183, 1, 0
      %v4208 = vsel %vm3184, 1, 0
      %v4209 = vsel %vm3185, 1, 0
      %v4210 = vsel %vm3186, 1, 0
      %v4211 = vsel %vm3187, 1, 0
      %v4212 = vsel %vm3188, 1, 0
      %v4213 = vsel %vm3189, 1, 0
      %v4214 = vsel %vm3190, 1, 0
      %v4215 = vsel %vm3191, 1, 0
      %v4216 = vsel %vm3192, 1, 0
      %v4217 = vsel %vm3193, 1, 0
      %v4218 = vsel %vm3194, 1, 0
      %v4219 = vsel %vm3195, 1, 0
      %v4220 = vsel %vm3196, 1, 0
      %v4221 = vsel %vm3197, 1, 0
      %v4222 = vsel %vm3198, 1, 0
      %v4223 = vsel %vm3199, 1, 0
      %v4224 = vsel %vm3200, 1, 0
      %v4225 = vsel %vm3201, 1, 0
      %v4226 = vsel %vm3202, 1, 0
      %v4227 = vsel %vm3203, 1, 0
      %v4228 = vsel %vm3204, 1, 0
      %v4229 = vsel %vm3205, 1, 0
      %v4230 = vsel %vm3206, 1, 0
      %v4231 = vsel %vm3207, 1, 0
      %v4232 = vsel %vm3208, 1, 0
      %v4233 = vsel %vm3209, 1, 0
      %v4234 = vsel %vm3210, 1, 0
      %v4235 = vsel %vm3211, 1, 0
      %v4236 = vsel %vm3212, 1, 0
      %v4237 = vsel %vm3213, 1, 0
      %v4238 = vsel %vm3214, 1, 0
      %v4239 = vsel %vm3215, 1, 0
      %v4240 = vsel %vm3216, 1, 0
      %v4241 = vsel %vm3217, 1, 0
      %v4242 = vsel %vm3218, 1, 0
      %v4243 = vsel %vm3219, 1, 0
      %v4244 = vsel %vm3220, 1, 0
      %v4245 = vsel %vm3221, 1, 0
      %v4246 = vsel %vm3222, 1, 0
      %v4247 = vsel %vm3223, 1, 0
      %v4248 = vsel %vm3224, 1, 0
      %v4249 = vsel %vm3225, 1, 0
      %v4250 = vsel %vm3226, 1, 0
      %v4251 = vsel %vm3227, 1, 0
      %v4252 = vsel %vm3228, 1, 0
      %v4253 = vsel %vm3229, 1, 0
      %v4254 = vsel %vm3230, 1, 0
      %v4255 = vsel %vm3231, 1, 0
      %v4256 = vsel %vm3232, 1, 0
      %v4257 = vsel %vm3233, 1, 0
      %v4258 = vsel %vm3234, 1, 0
      %v4259 = vsel %vm3235, 1, 0
      %v4260 = vsel %vm3236, 1, 0
      %v4261 = vsel %vm3237, 1, 0
      %v4262 = vsel %vm3238, 1, 0
      %v4263 = vsel %vm3239, 1, 0
      %v4264 = vsel %vm3240, 1, 0
      %v4265 = vsel %vm3241, 1, 0
      %v4266 = vsel %vm3242, 1, 0
      %v4267 = vsel %vm3243, 1, 0
      %v4268 = vsel %vm3244, 1, 0
      %v4269 = vsel %vm3245, 1, 0
      %v4270 = vsel %vm3246, 1, 0
      %v4271 = vsel %vm3247, 1, 0
      %v4272 = vsel %vm3248, 1, 0
      %v4273 = vsel %vm3249, 1, 0
      %v4274 = vsel %vm3250, 1, 0
      %v4275 = vsel %vm3251, 1, 0
      %v4276 = vsel %vm3252, 1, 0
      %v4277 = vsel %vm3253, 1, 0
      %v4278 = vsel %vm3254, 1, 0
      %v4279 = vsel %vm3255, 1, 0
      %v4280 = vsel %vm3256, 1, 0
      %v4281 = vsel %vm3257, 1, 0
      %v4282 = vsel %vm3258, 1, 0
      %v4283 = vsel %vm3259, 1, 0
      %v4284 = vsel %vm3260, 1, 0
      %v4285 = vsel %vm3261, 1, 0
      %v4286 = vsel %vm3262, 1, 0
      %v4287 = vsel %vm3263, 1, 0
      %v4288 = vsel %vm3264, 1, 0
      %v4289 = vsel %vm3265, 1, 0
      %v4290 = vsel %vm3266, 1, 0
      %v4291 = vsel %vm3267, 1, 0
      %v4292 = vsel %vm3268, 1, 0
      %v4293 = vsel %vm3269, 1, 0
      %v4294 = vsel %vm3270, 1, 0
      %v4295 = vsel %vm3271, 1, 0
      %v4296 = vsel %vm3272, 1, 0
      %v4297 = vsel %vm3273, 1, 0
      %v4298 = vsel %vm3274, 1, 0
      %v4299 = vsel %vm3275, 1, 0
      %v4300 = vsel %vm3276, 1, 0
      %v4301 = vsel %vm3277, 1, 0
      %v4302 = vsel %vm3278, 1, 0
      %v4303 = vsel %vm3279, 1, 0
      %v4304 = vsel %vm3280, 1, 0
      %v4305 = vsel %vm3281, 1, 0
      %v4306 = vsel %vm3282, 1, 0
      %v4307 = vsel %vm3283, 1, 0
      %v4308 = vsel %vm3284, 1, 0
      %v4309 = vsel %vm3285, 1, 0
      %v4310 = vsel %vm3286, 1, 0
      %v4311 = vsel %vm3287, 1, 0
      %v4312 = vsel %vm3288, 1, 0
      %v4313 = vsel %vm3289, 1, 0
      %v4314 = vsel %vm3290, 1, 0
      %v4315 = vsel %vm3291, 1, 0
      %v4316 = vsel %vm3292, 1, 0
      %v4317 = vsel %vm3293, 1, 0
      %v4318 = vsel %vm3294, 1, 0
      %v4319 = vsel %vm3295, 1, 0
      %v4320 = vsel %vm3296, 1, 0
      %v4321 = vsel %vm3297, 1, 0
      %v4322 = vsel %vm3298, 1, 0
      %v4323 = vsel %vm3299, 1, 0
      %v4324 = vsel %vm3300, 1, 0
      %v4325 = vsel %vm3301, 1, 0
      %v4326 = vsel %vm3302, 1, 0
      %v4327 = vsel %vm3303, 1, 0
      %v4328 = vsel %vm3304, 1, 0
      %v4329 = vsel %vm3305, 1, 0
      %v4330 = vsel %vm3306, 1, 0
      %v4331 = vsel %vm3307, 1, 0
      %v4332 = vsel %vm3308, 1, 0
      %v4333 = vsel %vm3309, 1, 0
      %v4334 = vsel %vm3310, 1, 0
      %v4335 = vsel %vm3311, 1, 0
      %v4336 = vsel %vm3312, 1, 0
      %v4337 = vsel %vm3313, 1, 0
      %v4338 = vsel %vm3314, 1, 0
      %v4339 = vsel %vm3315, 1, 0
      %v4340 = vsel %vm3316, 1, 0
      %v4341 = vsel %vm3317, 1, 0
      %v4342 = vsel %vm3318, 1, 0
      %v4343 = vsel %vm3319, 1, 0
      %v4344 = vsel %vm3320, 1, 0
      %v4345 = vsel %vm3321, 1, 0
      %v4346 = vsel %vm3322, 1, 0
      %v4347 = vsel %vm3323, 1, 0
      %v4348 = vsel %vm3324, 1, 0
      %v4349 = vsel %vm3325, 1, 0
      %v4350 = vsel %vm3326, 1, 0
      %v4351 = vsel %vm3327, 1, 0
      %v4352 = vsel %vm3328, 1, 0
      %v4353 = vsel %vm3329, 1, 0
      %v4354 = vsel %vm3330, 1, 0
      %v4355 = vsel %vm3331, 1, 0
      %v4356 = vsel %vm3332, 1, 0
      %v4357 = vsel %vm3333, 1, 0
      %v4358 = vsel %vm3334, 1, 0
      %v4359 = vsel %vm3335, 1, 0
      %v4360 = vsel %vm3336, 1, 0
      %v4361 = vsel %vm3337, 1, 0
      %v4362 = vsel %vm3338, 1, 0
      %v4363 = vsel %vm3339, 1, 0
      %v4364 = vsel %vm3340, 1, 0
      %v4365 = vsel %vm3341, 1, 0
      %v4366 = vsel %vm3342, 1, 0
      %v4367 = vsel %vm3343, 1, 0
      %v4368 = vsel %vm3344, 1, 0
      %v4369 = vsel %vm3345, 1, 0
      %v4370 = vsel %vm3346, 1, 0
      %v4371 = vsel %vm3347, 1, 0
      %v4372 = vsel %vm3348, 1, 0
      %v4373 = vcvt.s32.f32 %v3349
      %v4374 = vcvt.s32.f32 %v3350
      %v4375 = vcvt.s32.f32 %v3351
      %v4376 = vcvt.s32.f32 %v3352
      %v4377 = vcvt.s32.f32 %v3353
      %v4378 = vcvt.s32.f32 %v3354
      %v4379 = vcvt.s32.f32 %v3355
      %v4380 = vcvt.s32.f32 %v3356
      %v4381 = vcvt.s32.f32 %v3357
      %v4382 = vcvt.s32.f32 %v3358
      %v4383 = vcvt.s32.f32 %v3359
      %v4384 = vcvt.s32.f32 %v3360
      %v4385 = vcvt.s32.f32 %v3361
      %v4386 = vcvt.s32.f32 %v3362
      %v4387 = vcvt.s32.f32 %v3363
      %v4388 = vcvt.s32.f32 %v3364
      %v4389 = vcvt.s32.f32 %v3365
      %v4390 = vcvt.s32.f32 %v3366
      %v4391 = vcvt.s32.f32 %v3367
      %v4392 = vcvt.s32.f32 %v3368
      %v4393 = vcvt.s32.f32 %v3369
      %v4394 = vcvt.s32.f32 %v3370
      %v4395 = vcvt.s32.f32 %v3371
      %v4396 = vcvt.s32.f32 %v3372
      %v4397 = vcvt.s32.f32 %v3373
      %v4398 = vcvt.s32.f32 %v3374
      %v4399 = vcvt.s32.f32 %v3375
      %v4400 = vcvt.s32.f32 %v3376
      %v4401 = vcvt.s32.f32 %v3377
      %v4402 = vcvt.s32.f32 %v3378
      %v4403 = vcvt.s32.f32 %v3379
      %v4404 = vcvt.s32.f32 %v3380
      %v4405 = vcvt.s32.f32 %v3381
      %v4406 = vcvt.s32.f32 %v3382
      %v4407 = vcvt.s32.f32 %v3383
      %v4408 = vcvt.s32.f32 %v3384
      %v4409 = vcvt.s32.f32 %v3385
      %v4410 = vcvt.s32.f32 %v3386
      %v4411 = vcvt.s32.f32 %v3387
      %v4412 = vcvt.s32.f32 %v3388
      %v4413 = vcvt.s32.f32 %v3389
      %v4414 = vcvt.s32.f32 %v3390
      %v4415 = vcvt.s32.f32 %v3391
      %v4416 = vcvt.s32.f32 %v3392
      %v4417 = vcvt.s32.f32 %v3393
      %v4418 = vcvt.s32.f32 %v3394
      %v4419 = vcvt.s32.f32 %v3395
      %v4420 = vcvt.s32.f32 %v3396
      %v4421 = vcvt.s32.f32 %v3397
      %v4422 = vcvt.s32.f32 %v3398
      %v4423 = vcvt.s32.f32 %v3399
      %v4424 = vcvt.s32.f32 %v3400
      %v4425 = vcvt.s32.f32 %v3401
      %v4426 = vcvt.s32.f32 %v3402
      %v4427 = vcvt.s32.f32 %v3403
      %v4428 = vcvt.s32.f32 %v3404
      %v4429 = vcvt.s32.f32 %v3405
      %v4430 = vcvt.s32.f32 %v3406
      %v4431 = vcvt.s32.f32 %v3407
      %v4432 = vcvt.s32.f32 %v3408
      %v4433 = vcvt.s32.f32 %v3409
      %v4434 = vcvt.s32.f32 %v3410
      %v4435 = vcvt.s32.f32 %v3411
      %v4436 = vcvt.s32.f32 %v3412
      %v4437 = vcvt.s32.f32 %v3413
      %v4438 = vcvt.s32.f32 %v3414
      %v4439 = vcvt.s32.f32 %v3415
      %v4440 = vcvt.s32.f32 %v3416
      %v4441 = vcvt.s32.f32 %v3417
      %v4442 = vcvt.s32.f32 %v3418
      %v4443 = vcvt.s32.f32 %v3419
      %v4444 = vcvt.s32.f32 %v3420
      %v4445 = vcvt.s32.f32 %v3421
      %v4446 = vcvt.s32.f32 %v3422
      %v4447 = vcvt.s32.f32 %v3423
      %v4448 = vcvt.s32.f32 %v3424
      %v4449 = vcvt.s32.f32 %v3425
      %v4450 = vcvt.s32.f32 %v3426
      %v4451 = vcvt.s32.f32 %v3427
      %v4452 = vcvt.s32.f32 %v3428
      %v4453 = vcvt.s32.f32 %v3429
      %v4454 = vcvt.s32.f32 %v3430
      %v4455 = vcvt.s32.f32 %v3431
      %v4456 = vcvt.s32.f32 %v3432
      %v4457 = vcvt.s32.f32 %v3433
      %v4458 = vcvt.s32.f32 %v3434
      %v4459 = vcvt.s32.f32 %v3435
      %v4460 = vcvt.s32.f32 %v3436
      %v4461 = vcvt.s32.f32 %v3437
      %v4462 = vcvt.s32.f32 %v3438
      %v4463 = vcvt.s32.f32 %v3439
      %v4464 = vcvt.s32.f32 %v3440
      %v4465 = vcvt.s32.f32 %v3441
      %v4466 = vcvt.s32.f32 %v3442
      %v4467 = vcvt.s32.f32 %v3443
      %v4468 = vcvt.s32.f32 %v3444
      %v4469 = vcvt.s32.f32 %v3445
      %v4470 = vcvt.s32.f32 %v3446
      %v4471 = vcvt.s32.f32 %v3447
      %v4472 = vcvt.s32.f32 %v3448
      %v4473 = vcvt.s32.f32 %v3449
      %v4474 = vcvt.s32.f32 %v3450
      %v4475 = vcvt.s32.f32 %v3451
      %v4476 = vcvt.s32.f32 %v3452
      %v4477 = vcvt.s32.f32 %v3453
      %v4478 = vcvt.s32.f32 %v3454
      %v4479 = vcvt.s32.f32 %v3455
      %v4480 = vcvt.s32.f32 %v3456
      %v4481 = vcvt.s32.f32 %v3457
      %v4482 = vcvt.s32.f32 %v3458
      %v4483 = vcvt.s32.f32 %v3459
      %v4484 = vcvt.s32.f32 %v3460
      %v4485 = vcvt.s32.f32 %v3461
      %v4486 = vcvt.s32.f32 %v3462
      %v4487 = vcvt.s32.f32 %v3463
      %v4488 = vcvt.s32.f32 %v3464
      %v4489 = vcvt.s32.f32 %v3465
      %v4490 = vcvt.s32.f32 %v3466
      %v4491 = vcvt.s32.f32 %v3467
      %v4492 = vcvt.s32.f32 %v3468
      %v4493 = vcvt.s32.f32 %v3469
      %v4494 = vcvt.s32.f32 %v3470
      %v4495 = vcvt.s32.f32 %v3471
      %v4496 = vcvt.s32.f32 %v3472
      %v4497 = vcvt.s32.f32 %v3473
      %v4498 = vcvt.s32.f32 %v3474
      %v4499 = vcvt.s32.f32 %v3475
      %v4500 = vcvt.s32.f32 %v3476
      %v4501 = vcvt.s32.f32 %v3477
      %v4502 = vcvt.s32.f32 %v3478
      %v4503 = vcvt.s32.f32 %v3479
      %v4504 = vcvt.s32.f32 %v3480
      %v4505 = vcvt.s32.f32 %v3481
      %v4506 = vcvt.s32.f32 %v3482
      %v4507 = vcvt.s32.f32 %v3483
      %v4508 = vcvt.s32.f32 %v3484
      %v4509 = vcvt.s32.f32 %v3485
      %v4510 = vcvt.s32.f32 %v3486
      %v4511 = vcvt.s32.f32 %v3487
      %v4512 = vcvt.s32.f32 %v3488
      %v4513 = vcvt.s32.f32 %v3489
      %v4514 = vcvt.s32.f32 %v3490
      %v4515 = vcvt.s32.f32 %v3491
      %v4516 = vcvt.s32.f32 %v3492
      %v4517 = vcvt.s32.f32 %v3493
      %v4518 = vcvt.s32.f32 %v3494
      %v4519 = vcvt.s32.f32 %v3495
      %v4520 = vcvt.s32.f32 %v3496
      %v4521 = vcvt.s32.f32 %v3497
      %v4522 = vcvt.s32.f32 %v3498
      %v4523 = vcvt.s32.f32 %v3499
      %v4524 = vcvt.s32.f32 %v3500
      %v4525 = vcvt.s32.f32 %v3501
      %v4526 = vcvt.s32.f32 %v3502
      %v4527 = vcvt.s32.f32 %v3503
      %v4528 = vcvt.s32.f32 %v3504
      %v4529 = vcvt.s32.f32 %v3505
      %v4530 = vcvt.s32.f32 %v3506
      %v4531 = vcvt.s32.f32 %v3507
      %v4532 = vcvt.s32.f32 %v3508
      %v4533 = vcvt.s32.f32 %v3509
      %v4534 = vcvt.s32.f32 %v3510
      %v4535 = vcvt.s32.f32 %v3511
      %v4536 = vcvt.s32.f32 %v3512
      %v4537 = vcvt.s32.f32 %v3513
      %v4538 = vcvt.s32.f32 %v3514
      %v4539 = vcvt.s32.f32 %v3515
      %v4540 = vcvt.s32.f32 %v3516
      %v4541 = vcvt.s32.f32 %v3517
      %v4542 = vcvt.s32.f32 %v3518
      %v4543 = vcvt.s32.f32 %v3519
      %v4544 = vcvt.s32.f32 %v3520
      %v4545 = vcvt.s32.f32 %v3521
      %v4546 = vcvt.s32.f32 %v3522
      %v4547 = vcvt.s32.f32 %v3523
      %v4548 = vcvt.s32.f32 %v3524
      %v4549 = vcvt.s32.f32 %v3525
      %v4550 = vcvt.s32.f32 %v3526
      %v4551 = vcvt.s32.f32 %v3527
      %v4552 = vcvt.s32.f32 %v3528
      %v4553 = vcvt.s32.f32 %v3529
      %v4554 = vcvt.s32.f32 %v3530
      %v4555 = vcvt.s32.f32 %v3531
      %v4556 = vcvt.s32.f32 %v3532
      %v4557 = vcvt.s32.f32 %v3533
      %v4558 = vcvt.s32.f32 %v3534
      %v4559 = vcvt.s32.f32 %v3535
      %v4560 = vcvt.s32.f32 %v3536
      %v4561 = vcvt.s32.f32 %v3537
      %v4562 = vcvt.s32.f32 %v3538
      %v4563 = vcvt.s32.f32 %v3539
      %v4564 = vcvt.s32.f32 %v3540
      %v4565 = vcvt.s32.f32 %v3541
      %v4566 = vcvt.s32.f32 %v3542
      %v4567 = vcvt.s32.f32 %v3543
      %v4568 = vcvt.s32.f32 %v3544
      %v4569 = vcvt.s32.f32 %v3545
      %v4570 = vcvt.s32.f32 %v3546
      %v4571 = vcvt.s32.f32 %v3547
      %v4572 = vcvt.s32.f32 %v3548
      %v4573 = vcvt.s32.f32 %v3549
      %v4574 = vcvt.s32.f32 %v3550
      %v4575 = vcvt.s32.f32 %v3551
      %v4576 = vcvt.s32.f32 %v3552
      %v4577 = vcvt.s32.f32 %v3553
      %v4578 = vcvt.s32.f32 %v3554
      %v4579 = vcvt.s32.f32 %v3555
      %v4580 = vcvt.s32.f32 %v3556
      %v4581 = vcvt.s32.f32 %v3557
      %v4582 = vcvt.s32.f32 %v3558
      %v4583 = vcvt.s32.f32 %v3559
      %v4584 = vcvt.s32.f32 %v3560
      %v4585 = vcvt.s32.f32 %v3561
      %v4586 = vcvt.s32.f32 %v3562
      %v4587 = vcvt.s32.f32 %v3563
      %v4588 = vcvt.s32.f32 %v3564
      %v4589 = vcvt.s32.f32 %v3565
      %v4590 = vcvt.s32.f32 %v3566
      %v4591 = vcvt.s32.f32 %v3567
      %v4592 = vcvt.s32.f32 %v3568
      %v4593 = vcvt.s32.f32 %v3569
      %v4594 = vcvt.s32.f32 %v3570
      %v4595 = vcvt.s32.f32 %v3571
      %v4596 = vcvt.s32.f32 %v3572
      %v4597 = vcvt.s32.f32 %v3573
      %v4598 = vcvt.s32.f32 %v3574
      %v4599 = vcvt.s32.f32 %v3575
      %v4600 = vcvt.s32.f32 %v3576
      %v4601 = vcvt.s32.f32 %v3577
      %v4602 = vcvt.s32.f32 %v3578
      %v4603 = vcvt.s32.f32 %v3579
      %v4604 = vcvt.s32.f32 %v3580
      %v4605 = vcvt.s32.f32 %v3581
      %v4606 = vcvt.s32.f32 %v3582
      %v4607 = vcvt.s32.f32 %v3583
      %v4608 = vcvt.s32.f32 %v3584
      %v4609 = vcvt.s32.f32 %v3585
      %v4610 = vcvt.s32.f32 %v3586
      %v4611 = vcvt.s32.f32 %v3587
      %v4612 = vcvt.s32.f32 %v3588
      %v4613 = vcvt.s32.f32 %v3589
      %v4614 = vcvt.s32.f32 %v3590
      %v4615 = vcvt.s32.f32 %v3591
      %v4616 = vcvt.s32.f32 %v3592
      %v4617 = vcvt.s32.f32 %v3593
      %v4618 = vcvt.s32.f32 %v3594
      %v4619 = vcvt.s32.f32 %v3595
      %v4620 = vcvt.s32.f32 %v3596
      %v4621 = vcvt.s32.f32 %v3597
      %v4622 = vcvt.s32.f32 %v3598
      %v4623 = vcvt.s32.f32 %v3599
      %v4624 = vcvt.s32.f32 %v3600
      %v4625 = vcvt.s32.f32 %v3601
      %v4626 = vcvt.s32.f32 %v3602
      %v4627 = vcvt.s32.f32 %v3603
      %v4628 = vcvt.s32.f32 %v3604
      %v4629 = vcvt.s32.f32 %v3605
      %v4630 = vcvt.s32.f32 %v3606
      %v4631 = vcvt.s32.f32 %v3607
      %v4632 = vcvt.s32.f32 %v3608
      %v4633 = vcvt.s32.f32 %v3609
      %v4634 = vcvt.s32.f32 %v3610
      %v4635 = vcvt.s32.f32 %v3611
      %v4636 = vcvt.s32.f32 %v3612
      %v4637 = vcvt.s32.f32 %v3613
      %v4638 = vcvt.s32.f32 %v3614
      %v4639 = vcvt.s32.f32 %v3615
      %v4640 = vcvt.s32.f32 %v3616
      %v4641 = vcvt.s32.f32 %v3617
      %v4642 = vcvt.s32.f32 %v3618
      %v4643 = vcvt.s32.f32 %v3619
      %v4644 = vcvt.s32.f32 %v3620
      %v4645 = vcvt.s32.f32 %v3621
      %v4646 = vcvt.s32.f32 %v3622
      %v4647 = vcvt.s32.f32 %v3623
      %v4648 = vcvt.s32.f32 %v3624
      %v4649 = vcvt.s32.f32 %v3625
      %v4650 = vcvt.s32.f32 %v3626
      %v4651 = vcvt.s32.f32 %v3627
      %v4652 = vcvt.s32.f32 %v3628
      %v4653 = vcvt.s32.f32 %v3629
      %v4654 = vcvt.s32.f32 %v3630
      %v4655 = vcvt.s32.f32 %v3631
      %v4656 = vcvt.s32.f32 %v3632
      %v4657 = vcvt.s32.f32 %v3633
      %v4658 = vcvt.s32.f32 %v3634
      %v4659 = vcvt.s32.f32 %v3635
      %v4660 = vcvt.s32.f32 %v3636
      %v4661 = vcvt.s32.f32 %v3637
      %v4662 = vcvt.s32.f32 %v3638
      %v4663 = vcvt.s32.f32 %v3639
      %v4664 = vcvt.s32.f32 %v3640
      %v4665 = vcvt.s32.f32 %v3641
      %v4666 = vcvt.s32.f32 %v3642
      %v4667 = vcvt.s32.f32 %v3643
      %v4668 = vcvt.s32.f32 %v3644
      %v4669 = vcvt.s32.f32 %v3645
      %v4670 = vcvt.s32.f32 %v3646
      %v4671 = vcvt.s32.f32 %v3647
      %v4672 = vcvt.s32.f32 %v3648
      %v4673 = vcvt.s32.f32 %v3649
      %v4674 = vcvt.s32.f32 %v3650
      %v4675 = vcvt.s32.f32 %v3651
      %v4676 = vcvt.s32.f32 %v3652
      %v4677 = vcvt.s32.f32 %v3653
      %v4678 = vcvt.s32.f32 %v3654
      %v4679 = vcvt.s32.f32 %v3655
      %v4680 = vcvt.s32.f32 %v3656
      %v4681 = vcvt.s32.f32 %v3657
      %v4682 = vcvt.s32.f32 %v3658
      %v4683 = vcvt.s32.f32 %v3659
      %v4684 = vcvt.s32.f32 %v3660
      %v4685 = vcvt.s32.f32 %v3661
      %v4686 = vcvt.s32.f32 %v3662
      %v4687 = vcvt.s32.f32 %v3663
      %v4688 = vcvt.s32.f32 %v3664
      %v4689 = vcvt.s32.f32 %v3665
      %v4690 = vcvt.s32.f32 %v3666
      %v4691 = vcvt.s32.f32 %v3667
      %v4692 = vcvt.s32.f32 %v3668
      %v4693 = vcvt.s32.f32 %v3669
      %v4694 = vcvt.s32.f32 %v3670
      %v4695 = vcvt.s32.f32 %v3671
      %v4696 = vcvt.s32.f32 %v3672
      %v4697 = vcvt.s32.f32 %v3673
      %v4698 = vcvt.s32.f32 %v3674
      %v4699 = vcvt.s32.f32 %v3675
      %v4700 = vcvt.s32.f32 %v3676
      %v4701 = vcvt.s32.f32 %v3677
      %v4702 = vcvt.s32.f32 %v3678
      %v4703 = vcvt.s32.f32 %v3679
      %v4704 = vcvt.s32.f32 %v3680
      %v4705 = vcvt.s32.f32 %v3681
      %v4706 = vcvt.s32.f32 %v3682
      %v4707 = vcvt.s32.f32 %v3683
      %v4708 = vcvt.s32.f32 %v3684
      %v4709 = vcvt.s32.f32 %v3685
      %v4710 = vcvt.s32.f32 %v3686
      %v4711 = vcvt.s32.f32 %v3687
      %v4712 = vcvt.s32.f32 %v3688
      %v4713 = vcvt.s32.f32 %v3689
      %v4714 = vcvt.s32.f32 %v3690
      %v4715 = vcvt.s32.f32 %v3691
      %v4716 = vcvt.s32.f32 %v3692
      %v4717 = vcvt.s32.f32 %v3693
      %v4718 = vcvt.s32.f32 %v3694
      %v4719 = vcvt.s32.f32 %v3695
      %v4720 = vcvt.s32.f32 %v3696
      %v4721 = vcvt.s32.f32 %v3697
      %v4722 = vcvt.s32.f32 %v3698
      %v4723 = vcvt.s32.f32 %v3699
      %v4724 = vcvt.s32.f32 %v3700
      %v4725 = vcvt.s32.f32 %v3701
      %v4726 = vcvt.s32.f32 %v3702
      %v4727 = vcvt.s32.f32 %v3703
      %v4728 = vcvt.s32.f32 %v3704
      %v4729 = vcvt.s32.f32 %v3705
      %v4730 = vcvt.s32.f32 %v3706
      %v4731 = vcvt.s32.f32 %v3707
      %v4732 = vcvt.s32.f32 %v3708
      %v4733 = vcvt.s32.f32 %v3709
      %v4734 = vcvt.s32.f32 %v3710
      %v4735 = vcvt.s32.f32 %v3711
      %v4736 = vcvt.s32.f32 %v3712
      %v4737 = vcvt.s32.f32 %v3713
      %v4738 = vcvt.s32.f32 %v3714
      %v4739 = vcvt.s32.f32 %v3715
      %v4740 = vcvt.s32.f32 %v3716
      %v4741 = vcvt.s32.f32 %v3717
      %v4742 = vcvt.s32.f32 %v3718
      %v4743 = vcvt.s32.f32 %v3719
      %v4744 = vcvt.s32.f32 %v3720
      %v4745 = vcvt.s32.f32 %v3721
      %v4746 = vcvt.s32.f32 %v3722
      %v4747 = vcvt.s32.f32 %v3723
      %v4748 = vcvt.s32.f32 %v3724
      %v4749 = vcvt.s32.f32 %v3725
      %v4750 = vcvt.s32.f32 %v3726
      %v4751 = vcvt.s32.f32 %v3727
      %v4752 = vcvt.s32.f32 %v3728
      %v4753 = vcvt.s32.f32 %v3729
      %v4754 = vcvt.s32.f32 %v3730
      %v4755 = vcvt.s32.f32 %v3731
      %v4756 = vcvt.s32.f32 %v3732
      %v4757 = vcvt.s32.f32 %v3733
      %v4758 = vcvt.s32.f32 %v3734
      %v4759 = vcvt.s32.f32 %v3735
      %v4760 = vcvt.s32.f32 %v3736
      %v4761 = vcvt.s32.f32 %v3737
      %v4762 = vcvt.s32.f32 %v3738
      %v4763 = vcvt.s32.f32 %v3739
      %v4764 = vcvt.s32.f32 %v3740
      %v4765 = vcvt.s32.f32 %v3741
      %v4766 = vcvt.s32.f32 %v3742
      %v4767 = vcvt.s32.f32 %v3743
      %v4768 = vcvt.s32.f32 %v3744
      %v4769 = vcvt.s32.f32 %v3745
      %v4770 = vcvt.s32.f32 %v3746
      %v4771 = vcvt.s32.f32 %v3747
      %v4772 = vcvt.s32.f32 %v3748
      %v4773 = vcvt.s32.f32 %v3749
      %v4774 = vcvt.s32.f32 %v3750
      %v4775 = vcvt.s32.f32 %v3751
      %v4776 = vcvt.s32.f32 %v3752
      %v4777 = vcvt.s32.f32 %v3753
      %v4778 = vcvt.s32.f32 %v3754
      %v4779 = vcvt.s32.f32 %v3755
      %v4780 = vcvt.s32.f32 %v3756
      %v4781 = vcvt.s32.f32 %v3757
      %v4782 = vcvt.s32.f32 %v3758
      %v4783 = vcvt.s32.f32 %v3759
      %v4784 = vcvt.s32.f32 %v3760
      %v4785 = vcvt.s32.f32 %v3761
      %v4786 = vcvt.s32.f32 %v3762
      %v4787 = vcvt.s32.f32 %v3763
      %v4788 = vcvt.s32.f32 %v3764
      %v4789 = vcvt.s32.f32 %v3765
      %v4790 = vcvt.s32.f32 %v3766
      %v4791 = vcvt.s32.f32 %v3767
      %v4792 = vcvt.s32.f32 %v3768
      %v4793 = vcvt.s32.f32 %v3769
      %v4794 = vcvt.s32.f32 %v3770
      %v4795 = vcvt.s32.f32 %v3771
      %v4796 = vcvt.s32.f32 %v3772
      %v4797 = vcvt.s32.f32 %v3773
      %v4798 = vcvt.s32.f32 %v3774
      %v4799 = vcvt.s32.f32 %v3775
      %v4800 = vcvt.s32.f32 %v3776
      %v4801 = vcvt.s32.f32 %v3777
      %v4802 = vcvt.s32.f32 %v3778
      %v4803 = vcvt.s32.f32 %v3779
      %v4804 = vcvt.s32.f32 %v3780
      %v4805 = vcvt.s32.f32 %v3781
      %v4806 = vcvt.s32.f32 %v3782
      %v4807 = vcvt.s32.f32 %v3783
      %v4808 = vcvt.s32.f32 %v3784
      %v4809 = vcvt.s32.f32 %v3785
      %v4810 = vcvt.s32.f32 %v3786
      %v4811 = vcvt.s32.f32 %v3787
      %v4812 = vcvt.s32.f32 %v3788
      %v4813 = vcvt.s32.f32 %v3789
      %v4814 = vcvt.s32.f32 %v3790
      %v4815 = vcvt.s32.f32 %v3791
      %v4816 = vcvt.s32.f32 %v3792
      %v4817 = vcvt.s32.f32 %v3793
      %v4818 = vcvt.s32.f32 %v3794
      %v4819 = vcvt.s32.f32 %v3795
      %v4820 = vcvt.s32.f32 %v3796
      %v4821 = vcvt.s32.f32 %v3797
      %v4822 = vcvt.s32.f32 %v3798
      %v4823 = vcvt.s32.f32 %v3799
      %v4824 = vcvt.s32.f32 %v3800
      %v4825 = vcvt.s32.f32 %v3801
      %v4826 = vcvt.s32.f32 %v3802
      %v4827 = vcvt.s32.f32 %v3803
      %v4828 = vcvt.s32.f32 %v3804
      %v4829 = vcvt.s32.f32 %v3805
      %v4830 = vcvt.s32.f32 %v3806
      %v4831 = vcvt.s32.f32 %v3807
      %v4832 = vcvt.s32.f32 %v3808
      %v4833 = vcvt.s32.f32 %v3809
      %v4834 = vcvt.s32.f32 %v3810
      %v4835 = vcvt.s32.f32 %v3811
      %v4836 = vcvt.s32.f32 %v3812
      %v4837 = vcvt.s32.f32 %v3813
      %v4838 = vcvt.s32.f32 %v3814
      %v4839 = vcvt.s32.f32 %v3815
      %v4840 = vcvt.s32.f32 %v3816
      %v4841 = vcvt.s32.f32 %v3817
      %v4842 = vcvt.s32.f32 %v3818
      %v4843 = vcvt.s32.f32 %v3819
      %v4844 = vcvt.s32.f32 %v3820
      %v4845 = vcvt.s32.f32 %v3821
      %v4846 = vcvt.s32.f32 %v3822
      %v4847 = vcvt.s32.f32 %v3823
      %v4848 = vcvt.s32.f32 %v3824
      %v4849 = vcvt.s32.f32 %v3825
      %v4850 = vcvt.s32.f32 %v3826
      %v4851 = vcvt.s32.f32 %v3827
      %v4852 = vcvt.s32.f32 %v3828
      %v4853 = vcvt.s32.f32 %v3829
      %v4854 = vcvt.s32.f32 %v3830
      %v4855 = vcvt.s32.f32 %v3831
      %v4856 = vcvt.s32.f32 %v3832
      %v4857 = vcvt.s32.f32 %v3833
      %v4858 = vcvt.s32.f32 %v3834
      %v4859 = vcvt.s32.f32 %v3835
      %v4860 = vcvt.s32.f32 %v3836
      %v4861 = vcvt.s32.f32 %v3837
      %v4862 = vcvt.s32.f32 %v3838
      %v4863 = vcvt.s32.f32 %v3839
      %v4864 = vcvt.s32.f32 %v3840
      %v4865 = vcvt.s32.f32 %v3841
      %v4866 = vcvt.s32.f32 %v3842
      %v4867 = vcvt.s32.f32 %v3843
      %v4868 = vcvt.s32.f32 %v3844
      %v4869 = vcvt.s32.f32 %v3845
      %v4870 = vcvt.s32.f32 %v3846
      %v4871 = vcvt.s32.f32 %v3847
      %v4872 = vcvt.s32.f32 %v3848
      %v4873 = vcvt.s32.f32 %v3849
      %v4874 = vcvt.s32.f32 %v3850
      %v4875 = vcvt.s32.f32 %v3851
      %v4876 = vcvt.s32.f32 %v3852
      %v4877 = vcvt.s32.f32 %v3853
      %v4878 = vcvt.s32.f32 %v3854
      %v4879 = vcvt.s32.f32 %v3855
      %v4880 = vcvt.s32.f32 %v3856
      %v4881 = vcvt.s32.f32 %v3857
      %v4882 = vcvt.s32.f32 %v3858
      %v4883 = vcvt.s32.f32 %v3859
      %v4884 = vcvt.s32.f32 %v3860
      %v4885 = vcvt.s32.f32 %v3861
      %v4886 = vcvt.s32.f32 %v3862
      %v4887 = vcvt.s32.f32 %v3863
      %v4888 = vcvt.s32.f32 %v3864
      %v4889 = vcvt.s32.f32 %v3865
      %v4890 = vcvt.s32.f32 %v3866
      %v4891 = vcvt.s32.f32 %v3867
      %v4892 = vcvt.s32.f32 %v3868
      %v4893 = vcvt.s32.f32 %v3869
      %v4894 = vcvt.s32.f32 %v3870
      %v4895 = vcvt.s32.f32 %v3871
      %v4896 = vcvt.s32.f32 %v3872
      %v4897 = vcvt.s32.f32 %v3873
      %v4898 = vcvt.s32.f32 %v3874
      %v4899 = vcvt.s32.f32 %v3875
      %v4900 = vcvt.s32.f32 %v3876
      %v4901 = vcvt.s32.f32 %v3877
      %v4902 = vcvt.s32.f32 %v3878
      %v4903 = vcvt.s32.f32 %v3879
      %v4904 = vcvt.s32.f32 %v3880
      %v4905 = vcvt.s32.f32 %v3881
      %v4906 = vcvt.s32.f32 %v3882
      %v4907 = vcvt.s32.f32 %v3883
      %v4908 = vcvt.s32.f32 %v3884
      %v4909 = vcvt.s32.f32 %v3885
      %v4910 = vcvt.s32.f32 %v3886
      %v4911 = vcvt.s32.f32 %v3887
      %v4912 = vcvt.s32.f32 %v3888
      %v4913 = vcvt.s32.f32 %v3889
      %v4914 = vcvt.s32.f32 %v3890
      %v4915 = vcvt.s32.f32 %v3891
      %v4916 = vcvt.s32.f32 %v3892
      %v4917 = vcvt.s32.f32 %v3893
      %v4918 = vcvt.s32.f32 %v3894
      %v4919 = vcvt.s32.f32 %v3895
      %v4920 = vcvt.s32.f32 %v3896
      %v4921 = vcvt.s32.f32 %v3897
      %v4922 = vcvt.s32.f32 %v3898
      %v4923 = vcvt.s32.f32 %v3899
      %v4924 = vcvt.s32.f32 %v3900
      %v4925 = vcvt.s32.f32 %v3901
      %v4926 = vcvt.s32.f32 %v3902
      %v4927 = vcvt.s32.f32 %v3903
      %v4928 = vcvt.s32.f32 %v3904
      %v4929 = vcvt.s32.f32 %v3905
      %v4930 = vcvt.s32.f32 %v3906
      %v4931 = vcvt.s32.f32 %v3907
      %v4932 = vcvt.s32.f32 %v3908
      %v4933 = vcvt.s32.f32 %v3909
      %v4934 = vcvt.s32.f32 %v3910
      %v4935 = vcvt.s32.f32 %v3911
      %v4936 = vcvt.s32.f32 %v3912
      %v4937 = vcvt.s32.f32 %v3913
      %v4938 = vcvt.s32.f32 %v3914
      %v4939 = vcvt.s32.f32 %v3915
      %v4940 = vcvt.s32.f32 %v3916
      %v4941 = vcvt.s32.f32 %v3917
      %v4942 = vcvt.s32.f32 %v3918
      %v4943 = vcvt.s32.f32 %v3919
      %v4944 = vcvt.s32.f32 %v3920
      %v4945 = vcvt.s32.f32 %v3921
      %v4946 = vcvt.s32.f32 %v3922
      %v4947 = vcvt.s32.f32 %v3923
      %v4948 = vcvt.s32.f32 %v3924
      %v4949 = vcvt.s32.f32 %v3925
      %v4950 = vcvt.s32.f32 %v3926
      %v4951 = vcvt.s32.f32 %v3927
      %v4952 = vcvt.s32.f32 %v3928
      %v4953 = vcvt.s32.f32 %v3929
      %v4954 = vcvt.s32.f32 %v3930
      %v4955 = vcvt.s32.f32 %v3931
      %v4956 = vcvt.s32.f32 %v3932
      %v4957 = vcvt.s32.f32 %v3933
      %v4958 = vcvt.s32.f32 %v3934
      %v4959 = vcvt.s32.f32 %v3935
      %v4960 = vcvt.s32.f32 %v3936
      %v4961 = vcvt.s32.f32 %v3937
      %v4962 = vcvt.s32.f32 %v3938
      %v4963 = vcvt.s32.f32 %v3939
      %v4964 = vcvt.s32.f32 %v3940
      %v4965 = vcvt.s32.f32 %v3941
      %v4966 = vcvt.s32.f32 %v3942
      %v4967 = vcvt.s32.f32 %v3943
      %v4968 = vcvt.s32.f32 %v3944
      %v4969 = vcvt.s32.f32 %v3945
      %v4970 = vcvt.s32.f32 %v3946
      %v4971 = vcvt.s32.f32 %v3947
      %v4972 = vcvt.s32.f32 %v3948
      %v4973 = vcvt.s32.f32 %v3949
      %v4974 = vcvt.s32.f32 %v3950
      %v4975 = vcvt.s32.f32 %v3951
      %v4976 = vcvt.s32.f32 %v3952
      %v4977 = vcvt.s32.f32 %v3953
      %v4978 = vcvt.s32.f32 %v3954
      %v4979 = vcvt.s32.f32 %v3955
      %v4980 = vcvt.s32.f32 %v3956
      %v4981 = vcvt.s32.f32 %v3957
      %v4982 = vcvt.s32.f32 %v3958
      %v4983 = vcvt.s32.f32 %v3959
      %v4984 = vcvt.s32.f32 %v3960
      %v4985 = vcvt.s32.f32 %v3961
      %v4986 = vcvt.s32.f32 %v3962
      %v4987 = vcvt.s32.f32 %v3963
      %v4988 = vcvt.s32.f32 %v3964
      %v4989 = vcvt.s32.f32 %v3965
      %v4990 = vcvt.s32.f32 %v3966
      %v4991 = vcvt.s32.f32 %v3967
      %v4992 = vcvt.s32.f32 %v3968
      %v4993 = vcvt.s32.f32 %v3969
      %v4994 = vcvt.s32.f32 %v3970
      %v4995 = vcvt.s32.f32 %v3971
      %v4996 = vcvt.s32.f32 %v3972
      %v4997 = vcvt.s32.f32 %v3973
      %v4998 = vcvt.s32.f32 %v3974
      %v4999 = vcvt.s32.f32 %v3975
      %v5000 = vcvt.s32.f32 %v3976
      %v5001 = vcvt.s32.f32 %v3977
      %v5002 = vcvt.s32.f32 %v3978
      %v5003 = vcvt.s32.f32 %v3979
      %v5004 = vcvt.s32.f32 %v3980
      %v5005 = vcvt.s32.f32 %v3981
      %v5006 = vcvt.s32.f32 %v3982
      %v5007 = vcvt.s32.f32 %v3983
      %v5008 = vcvt.s32.f32 %v3984
      %v5009 = vcvt.s32.f32 %v3985
      %v5010 = vcvt.s32.f32 %v3986
      %v5011 = vcvt.s32.f32 %v3987
      %v5012 = vcvt.s32.f32 %v3988
      %v5013 = vcvt.s32.f32 %v3989
      %v5014 = vcvt.s32.f32 %v3990
      %v5015 = vcvt.s32.f32 %v3991
      %v5016 = vcvt.s32.f32 %v3992
      %v5017 = vcvt.s32.f32 %v3993
      %v5018 = vcvt.s32.f32 %v3994
      %v5019 = vcvt.s32.f32 %v3995
      %v5020 = vcvt.s32.f32 %v3996
      %v5021 = vcvt.s32.f32 %v3997
      %v5022 = vcvt.s32.f32 %v3998
      %v5023 = vcvt.s32.f32 %v3999
      %v5024 = vcvt.s32.f32 %v4000
      %v5025 = vcvt.s32.f32 %v4001
      %v5026 = vcvt.s32.f32 %v4002
      %v5027 = vcvt.s32.f32 %v4003
      %v5028 = vcvt.s32.f32 %v4004
      %v5029 = vcvt.s32.f32 %v4005
      %v5030 = vcvt.s32.f32 %v4006
      %v5031 = vcvt.s32.f32 %v4007
      %v5032 = vcvt.s32.f32 %v4008
      %v5033 = vcvt.s32.f32 %v4009
      %v5034 = vcvt.s32.f32 %v4010
      %v5035 = vcvt.s32.f32 %v4011
      %v5036 = vcvt.s32.f32 %v4012
      %v5037 = vcvt.s32.f32 %v4013
      %v5038 = vcvt.s32.f32 %v4014
      %v5039 = vcvt.s32.f32 %v4015
      %v5040 = vcvt.s32.f32 %v4016
      %v5041 = vcvt.s32.f32 %v4017
      %v5042 = vcvt.s32.f32 %v4018
      %v5043 = vcvt.s32.f32 %v4019
      %v5044 = vcvt.s32.f32 %v4020
      %v5045 = vcvt.s32.f32 %v4021
      %v5046 = vcvt.s32.f32 %v4022
      %v5047 = vcvt.s32.f32 %v4023
      %v5048 = vcvt.s32.f32 %v4024
      %v5049 = vcvt.s32.f32 %v4025
      %v5050 = vcvt.s32.f32 %v4026
      %v5051 = vcvt.s32.f32 %v4027
      %v5052 = vcvt.s32.f32 %v4028
      %v5053 = vcvt.s32.f32 %v4029
      %v5054 = vcvt.s32.f32 %v4030
      %v5055 = vcvt.s32.f32 %v4031
      %v5056 = vcvt.s32.f32 %v4032
      %v5057 = vcvt.s32.f32 %v4033
      %v5058 = vcvt.s32.f32 %v4034
      %v5059 = vcvt.s32.f32 %v4035
      %v5060 = vcvt.s32.f32 %v4036
      %v5061 = vcvt.s32.f32 %v4037
      %v5062 = vcvt.s32.f32 %v4038
      %v5063 = vcvt.s32.f32 %v4039
      %v5064 = vcvt.s32.f32 %v4040
      %v5065 = vcvt.s32.f32 %v4041
      %v5066 = vcvt.s32.f32 %v4042
      %v5067 = vcvt.s32.f32 %v4043
      %v5068 = vcvt.s32.f32 %v4044
      %v5069 = vcvt.s32.f32 %v4045
      %v5070 = vcvt.s32.f32 %v4046
      %v5071 = vcvt.s32.f32 %v4047
      %v5072 = vcvt.s32.f32 %v4048
      %v5073 = vcvt.s32.f32 %v4049
      %v5074 = vcvt.s32.f32 %v4050
      %v5075 = vcvt.s32.f32 %v4051
      %v5076 = vcvt.s32.f32 %v4052
      %v5077 = vcvt.s32.f32 %v4053
      %v5078 = vcvt.s32.f32 %v4054
      %v5079 = vcvt.s32.f32 %v4055
      %v5080 = vcvt.s32.f32 %v4056
      %v5081 = vcvt.s32.f32 %v4057
      %v5082 = vcvt.s32.f32 %v4058
      %v5083 = vcvt.s32.f32 %v4059
      %v5084 = vcvt.s32.f32 %v4060
      %v5085 = vcvt.s32.f32 %v4061
      %v5086 = vcvt.s32.f32 %v4062
      %v5087 = vcvt.s32.f32 %v4063
      %v5088 = vcvt.s32.f32 %v4064
      %v5089 = vcvt.s32.f32 %v4065
      %v5090 = vcvt.s32.f32 %v4066
      %v5091 = vcvt.s32.f32 %v4067
      %v5092 = vcvt.s32.f32 %v4068
      %v5093 = vcvt.s32.f32 %v4069
      %v5094 = vcvt.s32.f32 %v4070
      %v5095 = vcvt.s32.f32 %v4071
      %v5096 = vcvt.s32.f32 %v4072
      %v5097 = vcvt.s32.f32 %v4073
      %v5098 = vcvt.s32.f32 %v4074
      %v5099 = vcvt.s32.f32 %v4075
      %v5100 = vcvt.s32.f32 %v4076
      %v5101 = vcvt.s32.f32 %v4077
      %v5102 = vcvt.s32.f32 %v4078
      %v5103 = vcvt.s32.f32 %v4079
      %v5104 = vcvt.s32.f32 %v4080
      %v5105 = vcvt.s32.f32 %v4081
      %v5106 = vcvt.s32.f32 %v4082
      %v5107 = vcvt.s32.f32 %v4083
      %v5108 = vcvt.s32.f32 %v4084
      %v5109 = vcvt.s32.f32 %v4085
      %v5110 = vcvt.s32.f32 %v4086
      %v5111 = vcvt.s32.f32 %v4087
      %v5112 = vcvt.s32.f32 %v4088
      %v5113 = vcvt.s32.f32 %v4089
      %v5114 = vcvt.s32.f32 %v4090
      %v5115 = vcvt.s32.f32 %v4091
      %v5116 = vcvt.s32.f32 %v4092
      %v5117 = vcvt.s32.f32 %v4093
      %v5118 = vcvt.s32.f32 %v4094
      %v5119 = vcvt.s32.f32 %v4095
      %v5120 = vcvt.s32.f32 %v4096
      %v5121 = vcvt.s32.f32 %v4097
      %v5122 = vcvt.s32.f32 %v4098
      %v5123 = vcvt.s32.f32 %v4099
      %v5124 = vcvt.s32.f32 %v4100
      %v5125 = vcvt.s32.f32 %v4101
      %v5126 = vcvt.s32.f32 %v4102
      %v5127 = vcvt.s32.f32 %v4103
      %v5128 = vcvt.s32.f32 %v4104
      %v5129 = vcvt.s32.f32 %v4105
      %v5130 = vcvt.s32.f32 %v4106
      %v5131 = vcvt.s32.f32 %v4107
      %v5132 = vcvt.s32.f32 %v4108
      %v5133 = vcvt.s32.f32 %v4109
      %v5134 = vcvt.s32.f32 %v4110
      %v5135 = vcvt.s32.f32 %v4111
      %v5136 = vcvt.s32.f32 %v4112
      %v5137 = vcvt.s32.f32 %v4113
      %v5138 = vcvt.s32.f32 %v4114
      %v5139 = vcvt.s32.f32 %v4115
      %v5140 = vcvt.s32.f32 %v4116
      %v5141 = vcvt.s32.f32 %v4117
      %v5142 = vcvt.s32.f32 %v4118
      %v5143 = vcvt.s32.f32 %v4119
      %v5144 = vcvt.s32.f32 %v4120
      %v5145 = vcvt.s32.f32 %v4121
      %v5146 = vcvt.s32.f32 %v4122
      %v5147 = vcvt.s32.f32 %v4123
      %v5148 = vcvt.s32.f32 %v4124
      %v5149 = vcvt.s32.f32 %v4125
      %v5150 = vcvt.s32.f32 %v4126
      %v5151 = vcvt.s32.f32 %v4127
      %v5152 = vcvt.s32.f32 %v4128
      %v5153 = vcvt.s32.f32 %v4129
      %v5154 = vcvt.s32.f32 %v4130
      %v5155 = vcvt.s32.f32 %v4131
      %v5156 = vcvt.s32.f32 %v4132
      %v5157 = vcvt.s32.f32 %v4133
      %v5158 = vcvt.s32.f32 %v4134
      %v5159 = vcvt.s32.f32 %v4135
      %v5160 = vcvt.s32.f32 %v4136
      %v5161 = vcvt.s32.f32 %v4137
      %v5162 = vcvt.s32.f32 %v4138
      %v5163 = vcvt.s32.f32 %v4139
      %v5164 = vcvt.s32.f32 %v4140
      %v5165 = vcvt.s32.f32 %v4141
      %v5166 = vcvt.s32.f32 %v4142
      %v5167 = vcvt.s32.f32 %v4143
      %v5168 = vcvt.s32.f32 %v4144
      %v5169 = vcvt.s32.f32 %v4145
      %v5170 = vcvt.s32.f32 %v4146
      %v5171 = vcvt.s32.f32 %v4147
      %v5172 = vcvt.s32.f32 %v4148
      %v5173 = vcvt.s32.f32 %v4149
      %v5174 = vcvt.s32.f32 %v4150
      %v5175 = vcvt.s32.f32 %v4151
      %v5176 = vcvt.s32.f32 %v4152
      %v5177 = vcvt.s32.f32 %v4153
      %v5178 = vcvt.s32.f32 %v4154
      %v5179 = vcvt.s32.f32 %v4155
      %v5180 = vcvt.s32.f32 %v4156
      %v5181 = vcvt.s32.f32 %v4157
      %v5182 = vcvt.s32.f32 %v4158
      %v5183 = vcvt.s32.f32 %v4159
      %v5184 = vcvt.s32.f32 %v4160
      %v5185 = vcvt.s32.f32 %v4161
      %v5186 = vcvt.s32.f32 %v4162
      %v5187 = vcvt.s32.f32 %v4163
      %v5188 = vcvt.s32.f32 %v4164
      %v5189 = vcvt.s32.f32 %v4165
      %v5190 = vcvt.s32.f32 %v4166
      %v5191 = vcvt.s32.f32 %v4167
      %v5192 = vcvt.s32.f32 %v4168
      %v5193 = vcvt.s32.f32 %v4169
      %v5194 = vcvt.s32.f32 %v4170
      %v5195 = vcvt.s32.f32 %v4171
      %v5196 = vcvt.s32.f32 %v4172
      %v5197 = vcvt.s32.f32 %v4173
      %v5198 = vcvt.s32.f32 %v4174
      %v5199 = vcvt.s32.f32 %v4175
      %v5200 = vcvt.s32.f32 %v4176
      %v5201 = vcvt.s32.f32 %v4177
      %v5202 = vcvt.s32.f32 %v4178
      %v5203 = vcvt.s32.f32 %v4179
      %v5204 = vcvt.s32.f32 %v4180
      %v5205 = vcvt.s32.f32 %v4181
      %v5206 = vcvt.s32.f32 %v4182
      %v5207 = vcvt.s32.f32 %v4183
      %v5208 = vcvt.s32.f32 %v4184
      %v5209 = vcvt.s32.f32 %v4185
      %v5210 = vcvt.s32.f32 %v4186
      %v5211 = vcvt.s32.f32 %v4187
      %v5212 = vcvt.s32.f32 %v4188
      %v5213 = vcvt.s32.f32 %v4189
      %v5214 = vcvt.s32.f32 %v4190
      %v5215 = vcvt.s32.f32 %v4191
      %v5216 = vcvt.s32.f32 %v4192
      %v5217 = vcvt.s32.f32 %v4193
      %v5218 = vcvt.s32.f32 %v4194
      %v5219 = vcvt.s32.f32 %v4195
      %v5220 = vcvt.s32.f32 %v4196
      %v5221 = vcvt.s32.f32 %v4197
      %v5222 = vcvt.s32.f32 %v4198
      %v5223 = vcvt.s32.f32 %v4199
      %v5224 = vcvt.s32.f32 %v4200
      %v5225 = vcvt.s32.f32 %v4201
      %v5226 = vcvt.s32.f32 %v4202
      %v5227 = vcvt.s32.f32 %v4203
      %v5228 = vcvt.s32.f32 %v4204
      %v5229 = vcvt.s32.f32 %v4205
      %v5230 = vcvt.s32.f32 %v4206
      %v5231 = vcvt.s32.f32 %v4207
      %v5232 = vcvt.s32.f32 %v4208
      %v5233 = vcvt.s32.f32 %v4209
      %v5234 = vcvt.s32.f32 %v4210
      %v5235 = vcvt.s32.f32 %v4211
      %v5236 = vcvt.s32.f32 %v4212
      %v5237 = vcvt.s32.f32 %v4213
      %v5238 = vcvt.s32.f32 %v4214
      %v5239 = vcvt.s32.f32 %v4215
      %v5240 = vcvt.s32.f32 %v4216
      %v5241 = vcvt.s32.f32 %v4217
      %v5242 = vcvt.s32.f32 %v4218
      %v5243 = vcvt.s32.f32 %v4219
      %v5244 = vcvt.s32.f32 %v4220
      %v5245 = vcvt.s32.f32 %v4221
      %v5246 = vcvt.s32.f32 %v4222
      %v5247 = vcvt.s32.f32 %v4223
      %v5248 = vcvt.s32.f32 %v4224
      %v5249 = vcvt.s32.f32 %v4225
      %v5250 = vcvt.s32.f32 %v4226
      %v5251 = vcvt.s32.f32 %v4227
      %v5252 = vcvt.s32.f32 %v4228
      %v5253 = vcvt.s32.f32 %v4229
      %v5254 = vcvt.s32.f32 %v4230
      %v5255 = vcvt.s32.f32 %v4231
      %v5256 = vcvt.s32.f32 %v4232
      %v5257 = vcvt.s32.f32 %v4233
      %v5258 = vcvt.s32.f32 %v4234
      %v5259 = vcvt.s32.f32 %v4235
      %v5260 = vcvt.s32.f32 %v4236
      %v5261 = vcvt.s32.f32 %v4237
      %v5262 = vcvt.s32.f32 %v4238
      %v5263 = vcvt.s32.f32 %v4239
      %v5264 = vcvt.s32.f32 %v4240
      %v5265 = vcvt.s32.f32 %v4241
      %v5266 = vcvt.s32.f32 %v4242
      %v5267 = vcvt.s32.f32 %v4243
      %v5268 = vcvt.s32.f32 %v4244
      %v5269 = vcvt.s32.f32 %v4245
      %v5270 = vcvt.s32.f32 %v4246
      %v5271 = vcvt.s32.f32 %v4247
      %v5272 = vcvt.s32.f32 %v4248
      %v5273 = vcvt.s32.f32 %v4249
      %v5274 = vcvt.s32.f32 %v4250
      %v5275 = vcvt.s32.f32 %v4251
      %v5276 = vcvt.s32.f32 %v4252
      %v5277 = vcvt.s32.f32 %v4253
      %v5278 = vcvt.s32.f32 %v4254
      %v5279 = vcvt.s32.f32 %v4255
      %v5280 = vcvt.s32.f32 %v4256
      %v5281 = vcvt.s32.f32 %v4257
      %v5282 = vcvt.s32.f32 %v4258
      %v5283 = vcvt.s32.f32 %v4259
      %v5284 = vcvt.s32.f32 %v4260
      %v5285 = vcvt.s32.f32 %v4261
      %v5286 = vcvt.s32.f32 %v4262
      %v5287 = vcvt.s32.f32 %v4263
      %v5288 = vcvt.s32.f32 %v4264
      %v5289 = vcvt.s32.f32 %v4265
      %v5290 = vcvt.s32.f32 %v4266
      %v5291 = vcvt.s32.f32 %v4267
      %v5292 = vcvt.s32.f32 %v4268
      %v5293 = vcvt.s32.f32 %v4269
      %v5294 = vcvt.s32.f32 %v4270
      %v5295 = vcvt.s32.f32 %v4271
      %v5296 = vcvt.s32.f32 %v4272
      %v5297 = vcvt.s32.f32 %v4273
      %v5298 = vcvt.s32.f32 %v4274
      %v5299 = vcvt.s32.f32 %v4275
      %v5300 = vcvt.s32.f32 %v4276
      %v5301 = vcvt.s32.f32 %v4277
      %v5302 = vcvt.s32.f32 %v4278
      %v5303 = vcvt.s32.f32 %v4279
      %v5304 = vcvt.s32.f32 %v4280
      %v5305 = vcvt.s32.f32 %v4281
      %v5306 = vcvt.s32.f32 %v4282
      %v5307 = vcvt.s32.f32 %v4283
      %v5308 = vcvt.s32.f32 %v4284
      %v5309 = vcvt.s32.f32 %v4285
      %v5310 = vcvt.s32.f32 %v4286
      %v5311 = vcvt.s32.f32 %v4287
      %v5312 = vcvt.s32.f32 %v4288
      %v5313 = vcvt.s32.f32 %v4289
      %v5314 = vcvt.s32.f32 %v4290
      %v5315 = vcvt.s32.f32 %v4291
      %v5316 = vcvt.s32.f32 %v4292
      %v5317 = vcvt.s32.f32 %v4293
      %v5318 = vcvt.s32.f32 %v4294
      %v5319 = vcvt.s32.f32 %v4295
      %v5320 = vcvt.s32.f32 %v4296
      %v5321 = vcvt.s32.f32 %v4297
      %v5322 = vcvt.s32.f32 %v4298
      %v5323 = vcvt.s32.f32 %v4299
      %v5324 = vcvt.s32.f32 %v4300
      %v5325 = vcvt.s32.f32 %v4301
      %v5326 = vcvt.s32.f32 %v4302
      %v5327 = vcvt.s32.f32 %v4303
      %v5328 = vcvt.s32.f32 %v4304
      %v5329 = vcvt.s32.f32 %v4305
      %v5330 = vcvt.s32.f32 %v4306
      %v5331 = vcvt.s32.f32 %v4307
      %v5332 = vcvt.s32.f32 %v4308
      %v5333 = vcvt.s32.f32 %v4309
      %v5334 = vcvt.s32.f32 %v4310
      %v5335 = vcvt.s32.f32 %v4311
      %v5336 = vcvt.s32.f32 %v4312
      %v5337 = vcvt.s32.f32 %v4313
      %v5338 = vcvt.s32.f32 %v4314
      %v5339 = vcvt.s32.f32 %v4315
      %v5340 = vcvt.s32.f32 %v4316
      %v5341 = vcvt.s32.f32 %v4317
      %v5342 = vcvt.s32.f32 %v4318
      %v5343 = vcvt.s32.f32 %v4319
      %v5344 = vcvt.s32.f32 %v4320
      %v5345 = vcvt.s32.f32 %v4321
      %v5346 = vcvt.s32.f32 %v4322
      %v5347 = vcvt.s32.f32 %v4323
      %v5348 = vcvt.s32.f32 %v4324
      %v5349 = vcvt.s32.f32 %v4325
      %v5350 = vcvt.s32.f32 %v4326
      %v5351 = vcvt.s32.f32 %v4327
      %v5352 = vcvt.s32.f32 %v4328
      %v5353 = vcvt.s32.f32 %v4329
      %v5354 = vcvt.s32.f32 %v4330
      %v5355 = vcvt.s32.f32 %v4331
      %v5356 = vcvt.s32.f32 %v4332
      %v5357 = vcvt.s32.f32 %v4333
      %v5358 = vcvt.s32.f32 %v4334
      %v5359 = vcvt.s32.f32 %v4335
      %v5360 = vcvt.s32.f32 %v4336
      %v5361 = vcvt.s32.f32 %v4337
      %v5362 = vcvt.s32.f32 %v4338
      %v5363 = vcvt.s32.f32 %v4339
      %v5364 = vcvt.s32.f32 %v4340
      %v5365 = vcvt.s32.f32 %v4341
      %v5366 = vcvt.s32.f32 %v4342
      %v5367 = vcvt.s32.f32 %v4343
      %v5368 = vcvt.s32.f32 %v4344
      %v5369 = vcvt.s32.f32 %v4345
      %v5370 = vcvt.s32.f32 %v4346
      %v5371 = vcvt.s32.f32 %v4347
      %v5372 = vcvt.s32.f32 %v4348
      %v5373 = vcvt.s32.f32 %v4349
      %v5374 = vcvt.s32.f32 %v4350
      %v5375 = vcvt.s32.f32 %v4351
      %v5376 = vcvt.s32.f32 %v4352
      %v5377 = vcvt.s32.f32 %v4353
      %v5378 = vcvt.s32.f32 %v4354
      %v5379 = vcvt.s32.f32 %v4355
      %v5380 = vcvt.s32.f32 %v4356
      %v5381 = vcvt.s32.f32 %v4357
      %v5382 = vcvt.s32.f32 %v4358
      %v5383 = vcvt.s32.f32 %v4359
      %v5384 = vcvt.s32.f32 %v4360
      %v5385 = vcvt.s32.f32 %v4361
      %v5386 = vcvt.s32.f32 %v4362
      %v5387 = vcvt.s32.f32 %v4363
      %v5388 = vcvt.s32.f32 %v4364
      %v5389 = vcvt.s32.f32 %v4365
      %v5390 = vcvt.s32.f32 %v4366
      %v5391 = vcvt.s32.f32 %v4367
      %v5392 = vcvt.s32.f32 %v4368
      %v5393 = vcvt.s32.f32 %v4369
      %v5394 = vcvt.s32.f32 %v4370
      %v5395 = vcvt.s32.f32 %v4371
      %v5396 = vcvt.s32.f32 %v4372
      %v5397 = vpack.c.bf16 %v4405, %v4373
      %v5398 = vpack.c.bf16 %v4406, %v4374
      %v5399 = vpack.c.bf16 %v4407, %v4375
      %v5400 = vpack.c.bf16 %v4408, %v4376
      %v5401 = vpack.c.bf16 %v4409, %v4377
      %v5402 = vpack.c.bf16 %v4410, %v4378
      %v5403 = vpack.c.bf16 %v4411, %v4379
      %v5404 = vpack.c.bf16 %v4412, %v4380
      %v5405 = vpack.c.bf16 %v4413, %v4381
      %v5406 = vpack.c.bf16 %v4414, %v4382
      %v5407 = vpack.c.bf16 %v4415, %v4383
      %v5408 = vpack.c.bf16 %v4416, %v4384
      %v5409 = vpack.c.bf16 %v4417, %v4385
      %v5410 = vpack.c.bf16 %v4418, %v4386
      %v5411 = vpack.c.bf16 %v4419, %v4387
      %v5412 = vpack.c.bf16 %v4420, %v4388
      %v5413 = vpack.c.bf16 %v4421, %v4389
      %v5414 = vpack.c.bf16 %v4422, %v4390
      %v5415 = vpack.c.bf16 %v4423, %v4391
      %v5416 = vpack.c.bf16 %v4424, %v4392
      %v5417 = vpack.c.bf16 %v4425, %v4393
      %v5418 = vpack.c.bf16 %v4426, %v4394
      %v5419 = vpack.c.bf16 %v4427, %v4395
      %v5420 = vpack.c.bf16 %v4428, %v4396
      %v5421 = vpack.c.bf16 %v4429, %v4397
      %v5422 = vpack.c.bf16 %v4430, %v4398
      %v5423 = vpack.c.bf16 %v4431, %v4399
      %v5424 = vpack.c.bf16 %v4432, %v4400
      %v5425 = vpack.c.bf16 %v4433, %v4401
      %v5426 = vpack.c.bf16 %v4434, %v4402
      %v5427 = vpack.c.bf16 %v4435, %v4403
      %v5428 = vpack.c.bf16 %v4436, %v4404
      %v5429 = vpack.c.bf16 %v4469, %v4437
      %v5430 = vpack.c.bf16 %v4470, %v4438
      %v5431 = vpack.c.bf16 %v4471, %v4439
      %v5432 = vpack.c.bf16 %v4472, %v4440
      %v5433 = vpack.c.bf16 %v4473, %v4441
      %v5434 = vpack.c.bf16 %v4474, %v4442
      %v5435 = vpack.c.bf16 %v4475, %v4443
      %v5436 = vpack.c.bf16 %v4476, %v4444
      %v5437 = vpack.c.bf16 %v4477, %v4445
      %v5438 = vpack.c.bf16 %v4478, %v4446
      %v5439 = vpack.c.bf16 %v4479, %v4447
      %v5440 = vpack.c.bf16 %v4480, %v4448
      %v5441 = vpack.c.bf16 %v4481, %v4449
      %v5442 = vpack.c.bf16 %v4482, %v4450
      %v5443 = vpack.c.bf16 %v4483, %v4451
      %v5444 = vpack.c.bf16 %v4484, %v4452
      %v5445 = vpack.c.bf16 %v4485, %v4453
      %v5446 = vpack.c.bf16 %v4486, %v4454
      %v5447 = vpack.c.bf16 %v4487, %v4455
      %v5448 = vpack.c.bf16 %v4488, %v4456
      %v5449 = vpack.c.bf16 %v4489, %v4457
      %v5450 = vpack.c.bf16 %v4490, %v4458
      %v5451 = vpack.c.bf16 %v4491, %v4459
      %v5452 = vpack.c.bf16 %v4492, %v4460
      %v5453 = vpack.c.bf16 %v4493, %v4461
      %v5454 = vpack.c.bf16 %v4494, %v4462
      %v5455 = vpack.c.bf16 %v4495, %v4463
      %v5456 = vpack.c.bf16 %v4496, %v4464
      %v5457 = vpack.c.bf16 %v4497, %v4465
      %v5458 = vpack.c.bf16 %v4498, %v4466
      %v5459 = vpack.c.bf16 %v4499, %v4467
      %v5460 = vpack.c.bf16 %v4500, %v4468
      %v5461 = vpack.c.bf16 %v4533, %v4501
      %v5462 = vpack.c.bf16 %v4534, %v4502
      %v5463 = vpack.c.bf16 %v4535, %v4503
      %v5464 = vpack.c.bf16 %v4536, %v4504
      %v5465 = vpack.c.bf16 %v4537, %v4505
      %v5466 = vpack.c.bf16 %v4538, %v4506
      %v5467 = vpack.c.bf16 %v4539, %v4507
      %v5468 = vpack.c.bf16 %v4540, %v4508
      %v5469 = vpack.c.bf16 %v4541, %v4509
      %v5470 = vpack.c.bf16 %v4542, %v4510
      %v5471 = vpack.c.bf16 %v4543, %v4511
      %v5472 = vpack.c.bf16 %v4544, %v4512
      %v5473 = vpack.c.bf16 %v4545, %v4513
      %v5474 = vpack.c.bf16 %v4546, %v4514
      %v5475 = vpack.c.bf16 %v4547, %v4515
      %v5476 = vpack.c.bf16 %v4548, %v4516
      %v5477 = vpack.c.bf16 %v4549, %v4517
      %v5478 = vpack.c.bf16 %v4550, %v4518
      %v5479 = vpack.c.bf16 %v4551, %v4519
      %v5480 = vpack.c.bf16 %v4552, %v4520
      %v5481 = vpack.c.bf16 %v4553, %v4521
      %v5482 = vpack.c.bf16 %v4554, %v4522
      %v5483 = vpack.c.bf16 %v4555, %v4523
      %v5484 = vpack.c.bf16 %v4556, %v4524
      %v5485 = vpack.c.bf16 %v4557, %v4525
      %v5486 = vpack.c.bf16 %v4558, %v4526
      %v5487 = vpack.c.bf16 %v4559, %v4527
      %v5488 = vpack.c.bf16 %v4560, %v4528
      %v5489 = vpack.c.bf16 %v4561, %v4529
      %v5490 = vpack.c.bf16 %v4562, %v4530
      %v5491 = vpack.c.bf16 %v4563, %v4531
      %v5492 = vpack.c.bf16 %v4564, %v4532
      %v5493 = vpack.c.bf16 %v4597, %v4565
      %v5494 = vpack.c.bf16 %v4598, %v4566
      %v5495 = vpack.c.bf16 %v4599, %v4567
      %v5496 = vpack.c.bf16 %v4600, %v4568
      %v5497 = vpack.c.bf16 %v4601, %v4569
      %v5498 = vpack.c.bf16 %v4602, %v4570
      %v5499 = vpack.c.bf16 %v4603, %v4571
      %v5500 = vpack.c.bf16 %v4604, %v4572
      %v5501 = vpack.c.bf16 %v4605, %v4573
      %v5502 = vpack.c.bf16 %v4606, %v4574
      %v5503 = vpack.c.bf16 %v4607, %v4575
      %v5504 = vpack.c.bf16 %v4608, %v4576
      %v5505 = vpack.c.bf16 %v4609, %v4577
      %v5506 = vpack.c.bf16 %v4610, %v4578
      %v5507 = vpack.c.bf16 %v4611, %v4579
      %v5508 = vpack.c.bf16 %v4612, %v4580
      %v5509 = vpack.c.bf16 %v4613, %v4581
      %v5510 = vpack.c.bf16 %v4614, %v4582
      %v5511 = vpack.c.bf16 %v4615, %v4583
      %v5512 = vpack.c.bf16 %v4616, %v4584
      %v5513 = vpack.c.bf16 %v4617, %v4585
      %v5514 = vpack.c.bf16 %v4618, %v4586
      %v5515 = vpack.c.bf16 %v4619, %v4587
      %v5516 = vpack.c.bf16 %v4620, %v4588
      %v5517 = vpack.c.bf16 %v4621, %v4589
      %v5518 = vpack.c.bf16 %v4622, %v4590
      %v5519 = vpack.c.bf16 %v4623, %v4591
      %v5520 = vpack.c.bf16 %v4624, %v4592
      %v5521 = vpack.c.bf16 %v4625, %v4593
      %v5522 = vpack.c.bf16 %v4626, %v4594
      %v5523 = vpack.c.bf16 %v4627, %v4595
      %v5524 = vpack.c.bf16 %v4628, %v4596
      %v5525 = vpack.c.bf16 %v4661, %v4629
      %v5526 = vpack.c.bf16 %v4662, %v4630
      %v5527 = vpack.c.bf16 %v4663, %v4631
      %v5528 = vpack.c.bf16 %v4664, %v4632
      %v5529 = vpack.c.bf16 %v4665, %v4633
      %v5530 = vpack.c.bf16 %v4666, %v4634
      %v5531 = vpack.c.bf16 %v4667, %v4635
      %v5532 = vpack.c.bf16 %v4668, %v4636
      %v5533 = vpack.c.bf16 %v4669, %v4637
      %v5534 = vpack.c.bf16 %v4670, %v4638
      %v5535 = vpack.c.bf16 %v4671, %v4639
      %v5536 = vpack.c.bf16 %v4672, %v4640
      %v5537 = vpack.c.bf16 %v4673, %v4641
      %v5538 = vpack.c.bf16 %v4674, %v4642
      %v5539 = vpack.c.bf16 %v4675, %v4643
      %v5540 = vpack.c.bf16 %v4676, %v4644
      %v5541 = vpack.c.bf16 %v4677, %v4645
      %v5542 = vpack.c.bf16 %v4678, %v4646
      %v5543 = vpack.c.bf16 %v4679, %v4647
      %v5544 = vpack.c.bf16 %v4680, %v4648
      %v5545 = vpack.c.bf16 %v4681, %v4649
      %v5546 = vpack.c.bf16 %v4682, %v4650
      %v5547 = vpack.c.bf16 %v4683, %v4651
      %v5548 = vpack.c.bf16 %v4684, %v4652
      %v5549 = vpack.c.bf16 %v4685, %v4653
      %v5550 = vpack.c.bf16 %v4686, %v4654
      %v5551 = vpack.c.bf16 %v4687, %v4655
      %v5552 = vpack.c.bf16 %v4688, %v4656
      %v5553 = vpack.c.bf16 %v4689, %v4657
      %v5554 = vpack.c.bf16 %v4690, %v4658
      %v5555 = vpack.c.bf16 %v4691, %v4659
      %v5556 = vpack.c.bf16 %v4692, %v4660
      %v5557 = vpack.c.bf16 %v4725, %v4693
      %v5558 = vpack.c.bf16 %v4726, %v4694
      %v5559 = vpack.c.bf16 %v4727, %v4695
      %v5560 = vpack.c.bf16 %v4728, %v4696
      %v5561 = vpack.c.bf16 %v4729, %v4697
      %v5562 = vpack.c.bf16 %v4730, %v4698
      %v5563 = vpack.c.bf16 %v4731, %v4699
      %v5564 = vpack.c.bf16 %v4732, %v4700
      %v5565 = vpack.c.bf16 %v4733, %v4701
      %v5566 = vpack.c.bf16 %v4734, %v4702
      %v5567 = vpack.c.bf16 %v4735, %v4703
      %v5568 = vpack.c.bf16 %v4736, %v4704
      %v5569 = vpack.c.bf16 %v4737, %v4705
      %v5570 = vpack.c.bf16 %v4738, %v4706
      %v5571 = vpack.c.bf16 %v4739, %v4707
      %v5572 = vpack.c.bf16 %v4740, %v4708
      %v5573 = vpack.c.bf16 %v4741, %v4709
      %v5574 = vpack.c.bf16 %v4742, %v4710
      %v5575 = vpack.c.bf16 %v4743, %v4711
      %v5576 = vpack.c.bf16 %v4744, %v4712
      %v5577 = vpack.c.bf16 %v4745, %v4713
      %v5578 = vpack.c.bf16 %v4746, %v4714
      %v5579 = vpack.c.bf16 %v4747, %v4715
      %v5580 = vpack.c.bf16 %v4748, %v4716
      %v5581 = vpack.c.bf16 %v4749, %v4717
      %v5582 = vpack.c.bf16 %v4750, %v4718
      %v5583 = vpack.c.bf16 %v4751, %v4719
      %v5584 = vpack.c.bf16 %v4752, %v4720
      %v5585 = vpack.c.bf16 %v4753, %v4721
      %v5586 = vpack.c.bf16 %v4754, %v4722
      %v5587 = vpack.c.bf16 %v4755, %v4723
      %v5588 = vpack.c.bf16 %v4756, %v4724
      %v5589 = vpack.c.bf16 %v4789, %v4757
      %v5590 = vpack.c.bf16 %v4790, %v4758
      %v5591 = vpack.c.bf16 %v4791, %v4759
      %v5592 = vpack.c.bf16 %v4792, %v4760
      %v5593 = vpack.c.bf16 %v4793, %v4761
      %v5594 = vpack.c.bf16 %v4794, %v4762
      %v5595 = vpack.c.bf16 %v4795, %v4763
      %v5596 = vpack.c.bf16 %v4796, %v4764
      %v5597 = vpack.c.bf16 %v4797, %v4765
      %v5598 = vpack.c.bf16 %v4798, %v4766
      %v5599 = vpack.c.bf16 %v4799, %v4767
      %v5600 = vpack.c.bf16 %v4800, %v4768
      %v5601 = vpack.c.bf16 %v4801, %v4769
      %v5602 = vpack.c.bf16 %v4802, %v4770
      %v5603 = vpack.c.bf16 %v4803, %v4771
      %v5604 = vpack.c.bf16 %v4804, %v4772
      %v5605 = vpack.c.bf16 %v4805, %v4773
      %v5606 = vpack.c.bf16 %v4806, %v4774
      %v5607 = vpack.c.bf16 %v4807, %v4775
      %v5608 = vpack.c.bf16 %v4808, %v4776
      %v5609 = vpack.c.bf16 %v4809, %v4777
      %v5610 = vpack.c.bf16 %v4810, %v4778
      %v5611 = vpack.c.bf16 %v4811, %v4779
      %v5612 = vpack.c.bf16 %v4812, %v4780
      %v5613 = vpack.c.bf16 %v4813, %v4781
      %v5614 = vpack.c.bf16 %v4814, %v4782
      %v5615 = vpack.c.bf16 %v4815, %v4783
      %v5616 = vpack.c.bf16 %v4816, %v4784
      %v5617 = vpack.c.bf16 %v4817, %v4785
      %v5618 = vpack.c.bf16 %v4818, %v4786
      %v5619 = vpack.c.bf16 %v4819, %v4787
      %v5620 = vpack.c.bf16 %v4820, %v4788
      %v5621 = vpack.c.bf16 %v4853, %v4821
      %v5622 = vpack.c.bf16 %v4854, %v4822
      %v5623 = vpack.c.bf16 %v4855, %v4823
      %v5624 = vpack.c.bf16 %v4856, %v4824
      %v5625 = vpack.c.bf16 %v4857, %v4825
      %v5626 = vpack.c.bf16 %v4858, %v4826
      %v5627 = vpack.c.bf16 %v4859, %v4827
      %v5628 = vpack.c.bf16 %v4860, %v4828
      %v5629 = vpack.c.bf16 %v4861, %v4829
      %v5630 = vpack.c.bf16 %v4862, %v4830
      %v5631 = vpack.c.bf16 %v4863, %v4831
      %v5632 = vpack.c.bf16 %v4864, %v4832
      %v5633 = vpack.c.bf16 %v4865, %v4833
      %v5634 = vpack.c.bf16 %v4866, %v4834
      %v5635 = vpack.c.bf16 %v4867, %v4835
      %v5636 = vpack.c.bf16 %v4868, %v4836
      %v5637 = vpack.c.bf16 %v4869, %v4837
      %v5638 = vpack.c.bf16 %v4870, %v4838
      %v5639 = vpack.c.bf16 %v4871, %v4839
      %v5640 = vpack.c.bf16 %v4872, %v4840
      %v5641 = vpack.c.bf16 %v4873, %v4841
      %v5642 = vpack.c.bf16 %v4874, %v4842
      %v5643 = vpack.c.bf16 %v4875, %v4843
      %v5644 = vpack.c.bf16 %v4876, %v4844
      %v5645 = vpack.c.bf16 %v4877, %v4845
      %v5646 = vpack.c.bf16 %v4878, %v4846
      %v5647 = vpack.c.bf16 %v4879, %v4847
      %v5648 = vpack.c.bf16 %v4880, %v4848
      %v5649 = vpack.c.bf16 %v4881, %v4849
      %v5650 = vpack.c.bf16 %v4882, %v4850
      %v5651 = vpack.c.bf16 %v4883, %v4851
      %v5652 = vpack.c.bf16 %v4884, %v4852
      %v5653 = vpack.c.bf16 %v4917, %v4885
      %v5654 = vpack.c.bf16 %v4918, %v4886
      %v5655 = vpack.c.bf16 %v4919, %v4887
      %v5656 = vpack.c.bf16 %v4920, %v4888
      %v5657 = vpack.c.bf16 %v4921, %v4889
      %v5658 = vpack.c.bf16 %v4922, %v4890
      %v5659 = vpack.c.bf16 %v4923, %v4891
      %v5660 = vpack.c.bf16 %v4924, %v4892
      %v5661 = vpack.c.bf16 %v4925, %v4893
      %v5662 = vpack.c.bf16 %v4926, %v4894
      %v5663 = vpack.c.bf16 %v4927, %v4895
      %v5664 = vpack.c.bf16 %v4928, %v4896
      %v5665 = vpack.c.bf16 %v4929, %v4897
      %v5666 = vpack.c.bf16 %v4930, %v4898
      %v5667 = vpack.c.bf16 %v4931, %v4899
      %v5668 = vpack.c.bf16 %v4932, %v4900
      %v5669 = vpack.c.bf16 %v4933, %v4901
      %v5670 = vpack.c.bf16 %v4934, %v4902
      %v5671 = vpack.c.bf16 %v4935, %v4903
      %v5672 = vpack.c.bf16 %v4936, %v4904
      %v5673 = vpack.c.bf16 %v4937, %v4905
      %v5674 = vpack.c.bf16 %v4938, %v4906
      %v5675 = vpack.c.bf16 %v4939, %v4907
      %v5676 = vpack.c.bf16 %v4940, %v4908
      %v5677 = vpack.c.bf16 %v4941, %v4909
      %v5678 = vpack.c.bf16 %v4942, %v4910
      %v5679 = vpack.c.bf16 %v4943, %v4911
      %v5680 = vpack.c.bf16 %v4944, %v4912
      %v5681 = vpack.c.bf16 %v4945, %v4913
      %v5682 = vpack.c.bf16 %v4946, %v4914
      %v5683 = vpack.c.bf16 %v4947, %v4915
      %v5684 = vpack.c.bf16 %v4948, %v4916
      %v5685 = vpack.c.bf16 %v4981, %v4949
      %v5686 = vpack.c.bf16 %v4982, %v4950
      %v5687 = vpack.c.bf16 %v4983, %v4951
      %v5688 = vpack.c.bf16 %v4984, %v4952
      %v5689 = vpack.c.bf16 %v4985, %v4953
      %v5690 = vpack.c.bf16 %v4986, %v4954
      %v5691 = vpack.c.bf16 %v4987, %v4955
      %v5692 = vpack.c.bf16 %v4988, %v4956
      %v5693 = vpack.c.bf16 %v4989, %v4957
      %v5694 = vpack.c.bf16 %v4990, %v4958
      %v5695 = vpack.c.bf16 %v4991, %v4959
      %v5696 = vpack.c.bf16 %v4992, %v4960
      %v5697 = vpack.c.bf16 %v4993, %v4961
      %v5698 = vpack.c.bf16 %v4994, %v4962
      %v5699 = vpack.c.bf16 %v4995, %v4963
      %v5700 = vpack.c.bf16 %v4996, %v4964
      %v5701 = vpack.c.bf16 %v4997, %v4965
      %v5702 = vpack.c.bf16 %v4998, %v4966
      %v5703 = vpack.c.bf16 %v4999, %v4967
      %v5704 = vpack.c.bf16 %v5000, %v4968
      %v5705 = vpack.c.bf16 %v5001, %v4969
      %v5706 = vpack.c.bf16 %v5002, %v4970
      %v5707 = vpack.c.bf16 %v5003, %v4971
      %v5708 = vpack.c.bf16 %v5004, %v4972
      %v5709 = vpack.c.bf16 %v5005, %v4973
      %v5710 = vpack.c.bf16 %v5006, %v4974
      %v5711 = vpack.c.bf16 %v5007, %v4975
      %v5712 = vpack.c.bf16 %v5008, %v4976
      %v5713 = vpack.c.bf16 %v5009, %v4977
      %v5714 = vpack.c.bf16 %v5010, %v4978
      %v5715 = vpack.c.bf16 %v5011, %v4979
      %v5716 = vpack.c.bf16 %v5012, %v4980
      %v5717 = vpack.c.bf16 %v5045, %v5013
      %v5718 = vpack.c.bf16 %v5046, %v5014
      %v5719 = vpack.c.bf16 %v5047, %v5015
      %v5720 = vpack.c.bf16 %v5048, %v5016
      %v5721 = vpack.c.bf16 %v5049, %v5017
      %v5722 = vpack.c.bf16 %v5050, %v5018
      %v5723 = vpack.c.bf16 %v5051, %v5019
      %v5724 = vpack.c.bf16 %v5052, %v5020
      %v5725 = vpack.c.bf16 %v5053, %v5021
      %v5726 = vpack.c.bf16 %v5054, %v5022
      %v5727 = vpack.c.bf16 %v5055, %v5023
      %v5728 = vpack.c.bf16 %v5056, %v5024
      %v5729 = vpack.c.bf16 %v5057, %v5025
      %v5730 = vpack.c.bf16 %v5058, %v5026
      %v5731 = vpack.c.bf16 %v5059, %v5027
      %v5732 = vpack.c.bf16 %v5060, %v5028
      %v5733 = vpack.c.bf16 %v5061, %v5029
      %v5734 = vpack.c.bf16 %v5062, %v5030
      %v5735 = vpack.c.bf16 %v5063, %v5031
      %v5736 = vpack.c.bf16 %v5064, %v5032
      %v5737 = vpack.c.bf16 %v5065, %v5033
      %v5738 = vpack.c.bf16 %v5066, %v5034
      %v5739 = vpack.c.bf16 %v5067, %v5035
      %v5740 = vpack.c.bf16 %v5068, %v5036
      %v5741 = vpack.c.bf16 %v5069, %v5037
      %v5742 = vpack.c.bf16 %v5070, %v5038
      %v5743 = vpack.c.bf16 %v5071, %v5039
      %v5744 = vpack.c.bf16 %v5072, %v5040
      %v5745 = vpack.c.bf16 %v5073, %v5041
      %v5746 = vpack.c.bf16 %v5074, %v5042
      %v5747 = vpack.c.bf16 %v5075, %v5043
      %v5748 = vpack.c.bf16 %v5076, %v5044
      %v5749 = vpack.c.bf16 %v5109, %v5077
      %v5750 = vpack.c.bf16 %v5110, %v5078
      %v5751 = vpack.c.bf16 %v5111, %v5079
      %v5752 = vpack.c.bf16 %v5112, %v5080
      %v5753 = vpack.c.bf16 %v5113, %v5081
      %v5754 = vpack.c.bf16 %v5114, %v5082
      %v5755 = vpack.c.bf16 %v5115, %v5083
      %v5756 = vpack.c.bf16 %v5116, %v5084
      %v5757 = vpack.c.bf16 %v5117, %v5085
      %v5758 = vpack.c.bf16 %v5118, %v5086
      %v5759 = vpack.c.bf16 %v5119, %v5087
      %v5760 = vpack.c.bf16 %v5120, %v5088
      %v5761 = vpack.c.bf16 %v5121, %v5089
      %v5762 = vpack.c.bf16 %v5122, %v5090
      %v5763 = vpack.c.bf16 %v5123, %v5091
      %v5764 = vpack.c.bf16 %v5124, %v5092
      %v5765 = vpack.c.bf16 %v5125, %v5093
      %v5766 = vpack.c.bf16 %v5126, %v5094
      %v5767 = vpack.c.bf16 %v5127, %v5095
      %v5768 = vpack.c.bf16 %v5128, %v5096
      %v5769 = vpack.c.bf16 %v5129, %v5097
      %v5770 = vpack.c.bf16 %v5130, %v5098
      %v5771 = vpack.c.bf16 %v5131, %v5099
      %v5772 = vpack.c.bf16 %v5132, %v5100
      %v5773 = vpack.c.bf16 %v5133, %v5101
      %v5774 = vpack.c.bf16 %v5134, %v5102
      %v5775 = vpack.c.bf16 %v5135, %v5103
      %v5776 = vpack.c.bf16 %v5136, %v5104
      %v5777 = vpack.c.bf16 %v5137, %v5105
      %v5778 = vpack.c.bf16 %v5138, %v5106
      %v5779 = vpack.c.bf16 %v5139, %v5107
      %v5780 = vpack.c.bf16 %v5140, %v5108
      %v5781 = vpack.c.bf16 %v5173, %v5141
      %v5782 = vpack.c.bf16 %v5174, %v5142
      %v5783 = vpack.c.bf16 %v5175, %v5143
      %v5784 = vpack.c.bf16 %v5176, %v5144
      %v5785 = vpack.c.bf16 %v5177, %v5145
      %v5786 = vpack.c.bf16 %v5178, %v5146
      %v5787 = vpack.c.bf16 %v5179, %v5147
      %v5788 = vpack.c.bf16 %v5180, %v5148
      %v5789 = vpack.c.bf16 %v5181, %v5149
      %v5790 = vpack.c.bf16 %v5182, %v5150
      %v5791 = vpack.c.bf16 %v5183, %v5151
      %v5792 = vpack.c.bf16 %v5184, %v5152
      %v5793 = vpack.c.bf16 %v5185, %v5153
      %v5794 = vpack.c.bf16 %v5186, %v5154
      %v5795 = vpack.c.bf16 %v5187, %v5155
      %v5796 = vpack.c.bf16 %v5188, %v5156
      %v5797 = vpack.c.bf16 %v5189, %v5157
      %v5798 = vpack.c.bf16 %v5190, %v5158
      %v5799 = vpack.c.bf16 %v5191, %v5159
      %v5800 = vpack.c.bf16 %v5192, %v5160
      %v5801 = vpack.c.bf16 %v5193, %v5161
      %v5802 = vpack.c.bf16 %v5194, %v5162
      %v5803 = vpack.c.bf16 %v5195, %v5163
      %v5804 = vpack.c.bf16 %v5196, %v5164
      %v5805 = vpack.c.bf16 %v5197, %v5165
      %v5806 = vpack.c.bf16 %v5198, %v5166
      %v5807 = vpack.c.bf16 %v5199, %v5167
      %v5808 = vpack.c.bf16 %v5200, %v5168
      %v5809 = vpack.c.bf16 %v5201, %v5169
      %v5810 = vpack.c.bf16 %v5202, %v5170
      %v5811 = vpack.c.bf16 %v5203, %v5171
      %v5812 = vpack.c.bf16 %v5204, %v5172
      %v5813 = vpack.c.bf16 %v5237, %v5205
      %v5814 = vpack.c.bf16 %v5238, %v5206
      %v5815 = vpack.c.bf16 %v5239, %v5207
      %v5816 = vpack.c.bf16 %v5240, %v5208
      %v5817 = vpack.c.bf16 %v5241, %v5209
      %v5818 = vpack.c.bf16 %v5242, %v5210
      %v5819 = vpack.c.bf16 %v5243, %v5211
      %v5820 = vpack.c.bf16 %v5244, %v5212
      %v5821 = vpack.c.bf16 %v5245, %v5213
      %v5822 = vpack.c.bf16 %v5246, %v5214
      %v5823 = vpack.c.bf16 %v5247, %v5215
      %v5824 = vpack.c.bf16 %v5248, %v5216
      %v5825 = vpack.c.bf16 %v5249, %v5217
      %v5826 = vpack.c.bf16 %v5250, %v5218
      %v5827 = vpack.c.bf16 %v5251, %v5219
      %v5828 = vpack.c.bf16 %v5252, %v5220
      %v5829 = vpack.c.bf16 %v5253, %v5221
      %v5830 = vpack.c.bf16 %v5254, %v5222
      %v5831 = vpack.c.bf16 %v5255, %v5223
      %v5832 = vpack.c.bf16 %v5256, %v5224
      %v5833 = vpack.c.bf16 %v5257, %v5225
      %v5834 = vpack.c.bf16 %v5258, %v5226
      %v5835 = vpack.c.bf16 %v5259, %v5227
      %v5836 = vpack.c.bf16 %v5260, %v5228
      %v5837 = vpack.c.bf16 %v5261, %v5229
      %v5838 = vpack.c.bf16 %v5262, %v5230
      %v5839 = vpack.c.bf16 %v5263, %v5231
      %v5840 = vpack.c.bf16 %v5264, %v5232
      %v5841 = vpack.c.bf16 %v5265, %v5233
      %v5842 = vpack.c.bf16 %v5266, %v5234
      %v5843 = vpack.c.bf16 %v5267, %v5235
      %v5844 = vpack.c.bf16 %v5268, %v5236
      %v5845 = vpack.c.bf16 %v5301, %v5269
      %v5846 = vpack.c.bf16 %v5302, %v5270
      %v5847 = vpack.c.bf16 %v5303, %v5271
      %v5848 = vpack.c.bf16 %v5304, %v5272
      %v5849 = vpack.c.bf16 %v5305, %v5273
      %v5850 = vpack.c.bf16 %v5306, %v5274
      %v5851 = vpack.c.bf16 %v5307, %v5275
      %v5852 = vpack.c.bf16 %v5308, %v5276
      %v5853 = vpack.c.bf16 %v5309, %v5277
      %v5854 = vpack.c.bf16 %v5310, %v5278
      %v5855 = vpack.c.bf16 %v5311, %v5279
      %v5856 = vpack.c.bf16 %v5312, %v5280
      %v5857 = vpack.c.bf16 %v5313, %v5281
      %v5858 = vpack.c.bf16 %v5314, %v5282
      %v5859 = vpack.c.bf16 %v5315, %v5283
      %v5860 = vpack.c.bf16 %v5316, %v5284
      %v5861 = vpack.c.bf16 %v5317, %v5285
      %v5862 = vpack.c.bf16 %v5318, %v5286
      %v5863 = vpack.c.bf16 %v5319, %v5287
      %v5864 = vpack.c.bf16 %v5320, %v5288
      %v5865 = vpack.c.bf16 %v5321, %v5289
      %v5866 = vpack.c.bf16 %v5322, %v5290
      %v5867 = vpack.c.bf16 %v5323, %v5291
      %v5868 = vpack.c.bf16 %v5324, %v5292
      %v5869 = vpack.c.bf16 %v5325, %v5293
      %v5870 = vpack.c.bf16 %v5326, %v5294
      %v5871 = vpack.c.bf16 %v5327, %v5295
      %v5872 = vpack.c.bf16 %v5328, %v5296
      %v5873 = vpack.c.bf16 %v5329, %v5297
      %v5874 = vpack.c.bf16 %v5330, %v5298
      %v5875 = vpack.c.bf16 %v5331, %v5299
      %v5876 = vpack.c.bf16 %v5332, %v5300
      %v5877 = vpack.c.bf16 %v5365, %v5333
      %v5878 = vpack.c.bf16 %v5366, %v5334
      %v5879 = vpack.c.bf16 %v5367, %v5335
      %v5880 = vpack.c.bf16 %v5368, %v5336
      %v5881 = vpack.c.bf16 %v5369, %v5337
      %v5882 = vpack.c.bf16 %v5370, %v5338
      %v5883 = vpack.c.bf16 %v5371, %v5339
      %v5884 = vpack.c.bf16 %v5372, %v5340
      %v5885 = vpack.c.bf16 %v5373, %v5341
      %v5886 = vpack.c.bf16 %v5374, %v5342
      %v5887 = vpack.c.bf16 %v5375, %v5343
      %v5888 = vpack.c.bf16 %v5376, %v5344
      %v5889 = vpack.c.bf16 %v5377, %v5345
      %v5890 = vpack.c.bf16 %v5378, %v5346
      %v5891 = vpack.c.bf16 %v5379, %v5347
      %v5892 = vpack.c.bf16 %v5380, %v5348
      %v5893 = vpack.c.bf16 %v5381, %v5349
      %v5894 = vpack.c.bf16 %v5382, %v5350
      %v5895 = vpack.c.bf16 %v5383, %v5351
      %v5896 = vpack.c.bf16 %v5384, %v5352
      %v5897 = vpack.c.bf16 %v5385, %v5353
      %v5898 = vpack.c.bf16 %v5386, %v5354
      %v5899 = vpack.c.bf16 %v5387, %v5355
      %v5900 = vpack.c.bf16 %v5388, %v5356
      %v5901 = vpack.c.bf16 %v5389, %v5357
      %v5902 = vpack.c.bf16 %v5390, %v5358
      %v5903 = vpack.c.bf16 %v5391, %v5359
      %v5904 = vpack.c.bf16 %v5392, %v5360
      %v5905 = vpack.c.bf16 %v5393, %v5361
      %v5906 = vpack.c.bf16 %v5394, %v5362
      %v5907 = vpack.c.bf16 %v5395, %v5363
      %v5908 = vpack.c.bf16 %v5396, %v5364
      %v5919 = vunpack.c.l.b16 %v224
      %v5920 = vunpack.c.l.b16 %v225
      %v5921 = vunpack.c.l.b16 %v226
      %v5922 = vunpack.c.l.b16 %v227
      %v5923 = vunpack.c.l.b16 %v228
      %v5924 = vunpack.c.l.b16 %v229
      %v5925 = vunpack.c.l.b16 %v230
      %v5926 = vunpack.c.l.b16 %v231
      %v5927 = vunpack.c.l.b16 %v232
      %v5928 = vunpack.c.l.b16 %v233
      %v5929 = vpack.c.b16 %v5920, %v5919
      %v5930 = vpack.c.b16 %v5922, %v5921
      %v5931 = vpack.c.b16 %v5924, %v5923
      %v5932 = vpack.c.b16 %v5926, %v5925
      %v5933 = vpack.c.b16 %v5928, %v5927
      %5939 = vmatprep.subr.bf16.mxu0 %v1942
      %5940 = vmatpush1.bf16.msra.mxu0 %v1941
      %5941 = vmatprep.subr.bf16.mxu0 %v1974
      %5942 = vmatpush1.bf16.msra.mxu0 %v1973
      %5943 = vmatprep.subr.bf16.mxu0 %v2006
      %5944 = vmatpush1.bf16.msra.mxu0 %v2005
      %5945 = vmatprep.subr.bf16.mxu0 %v2038
      %5946 = vmatpush1.bf16.msra.mxu0 %v2037
      %5947 = vmatprep.subr.bf16.mxu0 %v2070
      %5948 = vmatpush1.bf16.msra.mxu0 %v2069
      %5949 = vmatprep.subr.bf16.mxu0 %v2102
      %5950 = vmatpush1.bf16.msra.mxu0 %v2101
      %5951 = vmatprep.subr.bf16.mxu0 %v2134
      %5952 = vmatpush1.bf16.msra.mxu0 %v2133
      %5953 = vmatprep.subr.bf16.mxu0 %v2166
      %5954 = vmatpush1.bf16.msra.mxu0 %v2165
      %5955 = vmatprep.subr.bf16.mxu0 0
      %5956 = vmatpush1.bf16.msra.mxu0 0
      %5957 = vmatprep.subr.bf16.mxu0 0
      %5958 = vmatpush1.bf16.msra.mxu0 0
      %5959 = vmatprep.subr.bf16.mxu0 0
      %5960 = vmatpush1.bf16.msra.mxu0 0
      %5961 = vmatprep.subr.bf16.mxu0 0
      %5962 = vmatpush1.bf16.msra.mxu0 0
      %5963 = vmatprep.subr.bf16.mxu0 0
      %5964 = vmatpush1.bf16.msra.mxu0 0
      %5965 = vmatprep.subr.bf16.mxu0 0
      %5966 = vmatpush1.bf16.msra.mxu0 0
      %5967 = vmatprep.subr.bf16.mxu0 0
      %5968 = vmatpush1.bf16.msra.mxu0 0
      %5969 = vmatprep.subr.bf16.mxu0 0
      %5970 = vmatpush1.bf16.msra.mxu0 0
      %5971 = vmatprep.mubr.bf16.mxu0 0
      %5972 = vmatmul.mubr.bf16.gmra.mrb[0].mxu0 %v5929
      %v5973 = vpop.f32.mrb[0].mxu0
      %v5974 = vadd.f32 0.0, %v5973
      %v5975 = vpop.f32.mrb[0].mxu0
      %v5976 = vadd.f32 0.0, %v5975
      %v5977 = vpop.f32.mrb[0].mxu0
      %v5978 = vadd.f32 0.0, %v5977
      %v5979 = vpop.f32.mrb[0].mxu0
      %v5980 = vadd.f32 0.0, %v5979
      %5981 = vmatprep.mubr.bf16.mxu0 0
      %5982 = vmatmul.mubr.bf16.gmra.mrb[0].mxu0 %v5930
      %v5983 = vpop.f32.mrb[0].mxu0
      %v5984 = vadd.f32 0.0, %v5983
      %v5985 = vpop.f32.mrb[0].mxu0
      %v5986 = vadd.f32 0.0, %v5985
      %v5987 = vpop.f32.mrb[0].mxu0
      %v5988 = vadd.f32 0.0, %v5987
      %v5989 = vpop.f32.mrb[0].mxu0
      %v5990 = vadd.f32 0.0, %v5989
      %5991 = vmatprep.mubr.bf16.mxu0 0
      %5992 = vmatmul.mubr.bf16.gmra.mrb[0].mxu0 %v5931
      %v5993 = vpop.f32.mrb[0].mxu0
      %v5994 = vadd.f32 0.0, %v5993
      %v5995 = vpop.f32.mrb[0].mxu0
      %v5996 = vadd.f32 0.0, %v5995
      %v5997 = vpop.f32.mrb[0].mxu0
      %v5998 = vadd.f32 0.0, %v5997
      %v5999 = vpop.f32.mrb[0].mxu0
      %v6000 = vadd.f32 0.0, %v5999
      %6001 = vmatprep.mubr.bf16.mxu0 0
      %6002 = vmatmul.mubr.bf16.gmra.mrb[0].mxu0 %v5932
      %v6003 = vpop.f32.mrb[0].mxu0
      %v6004 = vadd.f32 0.0, %v6003
      %v6005 = vpop.f32.mrb[0].mxu0
      %v6006 = vadd.f32 0.0, %v6005
      %v6007 = vpop.f32.mrb[0].mxu0
      %v6008 = vadd.f32 0.0, %v6007
      %v6009 = vpop.f32.mrb[0].mxu0
      %v6010 = vadd.f32 0.0, %v6009
      %6011 = vmatprep.mubr.bf16.mxu0 0
      %6012 = vmatmul.mubr.bf16.gmra.mrb[0].mxu0 %v5933
      %v6013 = vpop.f32.mrb[0].mxu0
      %v6014 = vadd.f32 0.0, %v6013
      %v6015 = vpop.f32.mrb[0].mxu0
      %v6016 = vadd.f32 0.0, %v6015
      %v6017 = vpop.f32.mrb[0].mxu0
      %v6018 = vadd.f32 0.0, %v6017
      %v6019 = vpop.f32.mrb[0].mxu0
      %v6020 = vadd.f32 0.0, %v6019
      %6021 = vdwg.mxu0
      %6022 = vmatprep.subr.bf16.mxu0 %v1944
      %6023 = vmatpush1.bf16.msra.mxu0 %v1943
      %6024 = vmatprep.subr.bf16.mxu0 %v1976
      %6025 = vmatpush1.bf16.msra.mxu0 %v1975
      %6026 = vmatprep.subr.bf16.mxu0 %v2008
      %6027 = vmatpush1.bf16.msra.mxu0 %v2007
      %6028 = vmatprep.subr.bf16.mxu0 %v2040
      %6029 = vmatpush1.bf16.msra.mxu0 %v2039
      %6030 = vmatprep.subr.bf16.mxu0 %v2072
      %6031 = vmatpush1.bf16.msra.mxu0 %v2071
      %6032 = vmatprep.subr.bf16.mxu0 %v2104
      %6033 = vmatpush1.bf16.msra.mxu0 %v2103
      %6034 = vmatprep.subr.bf16.mxu0 %v2136
      %6035 = vmatpush1.bf16.msra.mxu0 %v2135
      %6036 = vmatprep.subr.bf16.mxu0 %v2168
      %6037 = vmatpush1.bf16.msra.mxu0 %v2167
      %6038 = vmatprep.subr.bf16.mxu0 0
      %6039 = vmatpush1.bf16.msra.mxu0 0
      %6040 = vmatprep.subr.bf16.mxu0 0
      %6041 = vmatpush1.bf16.msra.mxu0 0
      %6042 = vmatprep.subr.bf16.mxu0 0
      %6043 = vmatpush1.bf16.msra.mxu0 0
      %6044 = vmatprep.subr.bf16.mxu0 0
      %6045 = vmatpush1.bf16.msra.mxu0 0
      %6046 = vmatprep.subr.bf16.mxu0 0
      %6047 = vmatpush1.bf16.msra.mxu0 0
      %6048 = vmatprep.subr.bf16.mxu0 0
      %6049 = vmatpush1.bf16.msra.mxu0 0
      %6050 = vmatprep.subr.bf16.mxu0 0
      %6051 = vmatpush1.bf16.msra.mxu0 0
      %6052 = vmatprep.subr.bf16.mxu0 0
      %6053 = vmatpush1.bf16.msra.mxu0 0
      %6054 = vmatprep.mubr.bf16.mxu0 0
      %6055 = vmatmul.mubr.bf16.gmra.mrb[0].mxu0 %v5929
      %v6056 = vpop.f32.mrb[0].mxu0
      %v6057 = vadd.f32 0.0, %v6056
      %v6058 = vpop.f32.mrb[0].mxu0
      %v6059 = vadd.f32 0.0, %v6058
      %v6060 = vpop.f32.mrb[0].mxu0
      %v6061 = vadd.f32 0.0, %v6060
      %v6062 = vpop.f32.mrb[0].mxu0
      %v6063 = vadd.f32 0.0, %v6062
      %6064 = vmatprep.mubr.bf16.mxu0 0
      %6065 = vmatmul.mubr.bf16.gmra.mrb[0].mxu0 %v5930
      %v6066 = vpop.f32.mrb[0].mxu0
      %v6067 = vadd.f32 0.0, %v6066
      %v6068 = vpop.f32.mrb[0].mxu0
      %v6069 = vadd.f32 0.0, %v6068
      %v6070 = vpop.f32.mrb[0].mxu0
      %v6071 = vadd.f32 0.0, %v6070
      %v6072 = vpop.f32.mrb[0].mxu0
      %v6073 = vadd.f32 0.0, %v6072
      %6074 = vmatprep.mubr.bf16.mxu0 0
      %6075 = vmatmul.mubr.bf16.gmra.mrb[0].mxu0 %v5931
      %v6076 = vpop.f32.mrb[0].mxu0
      %v6077 = vadd.f32 0.0, %v6076
      %v6078 = vpop.f32.mrb[0].mxu0
      %v6079 = vadd.f32 0.0, %v6078
      %v6080 = vpop.f32.mrb[0].mxu0
      %v6081 = vadd.f32 0.0, %v6080
      %v6082 = vpop.f32.mrb[0].mxu0
      %v6083 = vadd.f32 0.0, %v6082
      %6084 = vmatprep.mubr.bf16.mxu0 0
      %6085 = vmatmul.mubr.bf16.gmra.mrb[0].mxu0 %v5932
      %v6086 = vpop.f32.mrb[0].mxu0
      %v6087 = vadd.f32 0.0, %v6086
      %v6088 = vpop.f32.mrb[0].mxu0
      %v6089 = vadd.f32 0.0, %v6088
      %v6090 = vpop.f32.mrb[0].mxu0
      %v6091 = vadd.f32 0.0, %v6090
      %v6092 = vpop.f32.mrb[0].mxu0
      %v6093 = vadd.f32 0.0, %v6092
      %6094 = vmatprep.mubr.bf16.mxu0 0
      %6095 = vmatmul.mubr.bf16.gmra.mrb[0].mxu0 %v5933
      %v6096 = vpop.f32.mrb[0].mxu0
      %v6097 = vadd.f32 0.0, %v6096
      %v6098 = vpop.f32.mrb[0].mxu0
      %v6099 = vadd.f32 0.0, %v6098
      %v6100 = vpop.f32.mrb[0].mxu0
      %v6101 = vadd.f32 0.0, %v6100
      %v6102 = vpop.f32.mrb[0].mxu0
      %v6103 = vadd.f32 0.0, %v6102
      %6104 = vdwg.mxu0
      %6105 = vmatprep.subr.bf16.mxu0 %v1946
      %6106 = vmatpush1.bf16.msra.mxu0 %v1945
      %6107 = vmatprep.subr.bf16.mxu0 %v1978
      %6108 = vmatpush1.bf16.msra.mxu0 %v1977
      %6109 = vmatprep.subr.bf16.mxu0 %v2010
      %6110 = vmatpush1.bf16.msra.mxu0 %v2009
      %6111 = vmatprep.subr.bf16.mxu0 %v2042
      %6112 = vmatpush1.bf16.msra.mxu0 %v2041
      %6113 = vmatprep.subr.bf16.mxu0 %v2074
      %6114 = vmatpush1.bf16.msra.mxu0 %v2073
      %6115 = vmatprep.subr.bf16.mxu0 %v2106
      %6116 = vmatpush1.bf16.msra.mxu0 %v2105
      %6117 = vmatprep.subr.bf16.mxu0 %v2138
      %6118 = vmatpush1.bf16.msra.mxu0 %v2137
      %6119 = vmatprep.subr.bf16.mxu0 %v2170
      %6120 = vmatpush1.bf16.msra.mxu0 %v2169
      %6121 = vmatprep.subr.bf16.mxu0 0
      %6122 = vmatpush1.bf16.msra.mxu0 0
      %6123 = vmatprep.subr.bf16.mxu0 0
      %6124 = vmatpush1.bf16.msra.mxu0 0
      %6125 = vmatprep.subr.bf16.mxu0 0
      %6126 = vmatpush1.bf16.msra.mxu0 0
      %6127 = vmatprep.subr.bf16.mxu0 0
      %6128 = vmatpush1.bf16.msra.mxu0 0
      %6129 = vmatprep.subr.bf16.mxu0 0
      %6130 = vmatpush1.bf16.msra.mxu0 0
      %6131 = vmatprep.subr.bf16.mxu0 0
      %6132 = vmatpush1.bf16.msra.mxu0 0
      %6133 = vmatprep.subr.bf16.mxu0 0
      %6134 = vmatpush1.bf16.msra.mxu0 0
      %6135 = vmatprep.subr.bf16.mxu0 0
      %6136 = vmatpush1.bf16.msra.mxu0 0
      %6137 = vmatprep.mubr.bf16.mxu0 0
      %6138 = vmatmul.mubr.bf16.gmra.mrb[0].mxu0 %v5929
      %v6139 = vpop.f32.mrb[0].mxu0
      %v6140 = vadd.f32 0.0, %v6139
      %v6141 = vpop.f32.mrb[0].mxu0
      %v6142 = vadd.f32 0.0, %v6141
      %v6143 = vpop.f32.mrb[0].mxu0
      %v6144 = vadd.f32 0.0, %v6143
      %v6145 = vpop.f32.mrb[0].mxu0
      %v6146 = vadd.f32 0.0, %v6145
      %6147 = vmatprep.mubr.bf16.mxu0 0
      %6148 = vmatmul.mubr.bf16.gmra.mrb[0].mxu0 %v5930
      %v6149 = vpop.f32.mrb[0].mxu0
      %v6150 = vadd.f32 0.0, %v6149
      %v6151 = vpop.f32.mrb[0].mxu0
      %v6152 = vadd.f32 0.0, %v6151
      %v6153 = vpop.f32.mrb[0].mxu0
      %v6154 = vadd.f32 0.0, %v6153
      %v6155 = vpop.f32.mrb[0].mxu0
      %v6156 = vadd.f32 0.0, %v6155
      %6157 = vmatprep.mubr.bf16.mxu0 0
      %6158 = vmatmul.mubr.bf16.gmra.mrb[0].mxu0 %v5931
      %v6159 = vpop.f32.mrb[0].mxu0
      %v6160 = vadd.f32 0.0, %v6159
      %v6161 = vpop.f32.mrb[0].mxu0
      %v6162 = vadd.f32 0.0, %v6161
      %v6163 = vpop.f32.mrb[0].mxu0
      %v6164 = vadd.f32 0.0, %v6163
      %v6165 = vpop.f32.mrb[0].mxu0
      %v6166 = vadd.f32 0.0, %v6165
      %6167 = vmatprep.mubr.bf16.mxu0 0
      %6168 = vmatmul.mubr.bf16.gmra.mrb[0].mxu0 %v5932
      %v6169 = vpop.f32.mrb[0].mxu0
      %v6170 = vadd.f32 0.0, %v6169
      %v6171 = vpop.f32.mrb[0].mxu0
      %v6172 = vadd.f32 0.0, %v6171
      %v6173 = vpop.f32.mrb[0].mxu0
      %v6174 = vadd.f32 0.0, %v6173
      %v6175 = vpop.f32.mrb[0].mxu0
      %v6176 = vadd.f32 0.0, %v6175
      %6177 = vmatprep.mubr.bf16.mxu0 0
      %6178 = vmatmul.mubr.bf16.gmra.mrb[0].mxu0 %v5933
      %v6179 = vpop.f32.mrb[0].mxu0
      %v6180 = vadd.f32 0.0, %v6179
      %v6181 = vpop.f32.mrb[0].mxu0
      %v6182 = vadd.f32 0.0, %v6181
      %v6183 = vpop.f32.mrb[0].mxu0
      %v6184 = vadd.f32 0.0, %v6183
      %v6185 = vpop.f32.mrb[0].mxu0
      %v6186 = vadd.f32 0.0, %v6185
      %6187 = vdwg.mxu0
      %6188 = vmatprep.subr.bf16.mxu0 %v1948
      %6189 = vmatpush1.bf16.msra.mxu0 %v1947
      %6190 = vmatprep.subr.bf16.mxu0 %v1980
      %6191 = vmatpush1.bf16.msra.mxu0 %v1979
      %6192 = vmatprep.subr.bf16.mxu0 %v2012
      %6193 = vmatpush1.bf16.msra.mxu0 %v2011
      %6194 = vmatprep.subr.bf16.mxu0 %v2044
      %6195 = vmatpush1.bf16.msra.mxu0 %v2043
      %6196 = vmatprep.subr.bf16.mxu0 %v2076
      %6197 = vmatpush1.bf16.msra.mxu0 %v2075
      %6198 = vmatprep.subr.bf16.mxu0 %v2108
      %6199 = vmatpush1.bf16.msra.mxu0 %v2107
      %6200 = vmatprep.subr.bf16.mxu0 %v2140
      %6201 = vmatpush1.bf16.msra.mxu0 %v2139
      %6202 = vmatprep.subr.bf16.mxu0 %v2172
      %6203 = vmatpush1.bf16.msra.mxu0 %v2171
      %6204 = vmatprep.subr.bf16.mxu0 0
      %6205 = vmatpush1.bf16.msra.mxu0 0
      %6206 = vmatprep.subr.bf16.mxu0 0
      %6207 = vmatpush1.bf16.msra.mxu0 0
      %6208 = vmatprep.subr.bf16.mxu0 0
      %6209 = vmatpush1.bf16.msra.mxu0 0
      %6210 = vmatprep.subr.bf16.mxu0 0
      %6211 = vmatpush1.bf16.msra.mxu0 0
      %6212 = vmatprep.subr.bf16.mxu0 0
      %6213 = vmatpush1.bf16.msra.mxu0 0
      %6214 = vmatprep.subr.bf16.mxu0 0
      %6215 = vmatpush1.bf16.msra.mxu0 0
      %6216 = vmatprep.subr.bf16.mxu0 0
      %6217 = vmatpush1.bf16.msra.mxu0 0
      %6218 = vmatprep.subr.bf16.mxu0 0
      %6219 = vmatpush1.bf16.msra.mxu0 0
      %6220 = vmatprep.mubr.bf16.mxu0 0
      %6221 = vmatmul.mubr.bf16.gmra.mrb[0].mxu0 %v5929
      %v6222 = vpop.f32.mrb[0].mxu0
      %v6223 = vadd.f32 0.0, %v6222
      %v6224 = vpop.f32.mrb[0].mxu0
      %v6225 = vadd.f32 0.0, %v6224
      %v6226 = vpop.f32.mrb[0].mxu0
      %v6227 = vadd.f32 0.0, %v6226
      %v6228 = vpop.f32.mrb[0].mxu0
      %v6229 = vadd.f32 0.0, %v6228
      %6230 = vmatprep.mubr.bf16.mxu0 0
      %6231 = vmatmul.mubr.bf16.gmra.mrb[0].mxu0 %v5930
      %v6232 = vpop.f32.mrb[0].mxu0
      %v6233 = vadd.f32 0.0, %v6232
      %v6234 = vpop.f32.mrb[0].mxu0
      %v6235 = vadd.f32 0.0, %v6234
      %v6236 = vpop.f32.mrb[0].mxu0
      %v6237 = vadd.f32 0.0, %v6236
      %v6238 = vpop.f32.mrb[0].mxu0
      %v6239 = vadd.f32 0.0, %v6238
      %6240 = vmatprep.mubr.bf16.mxu0 0
      %6241 = vmatmul.mubr.bf16.gmra.mrb[0].mxu0 %v5931
      %v6242 = vpop.f32.mrb[0].mxu0
      %v6243 = vadd.f32 0.0, %v6242
      %v6244 = vpop.f32.mrb[0].mxu0
      %v6245 = vadd.f32 0.0, %v6244
      %v6246 = vpop.f32.mrb[0].mxu0
      %v6247 = vadd.f32 0.0, %v6246
      %v6248 = vpop.f32.mrb[0].mxu0
      %v6249 = vadd.f32 0.0, %v6248
      %6250 = vmatprep.mubr.bf16.mxu0 0
      %6251 = vmatmul.mubr.bf16.gmra.mrb[0].mxu0 %v5932
      %v6252 = vpop.f32.mrb[0].mxu0
      %v6253 = vadd.f32 0.0, %v6252
      %v6254 = vpop.f32.mrb[0].mxu0
      %v6255 = vadd.f32 0.0, %v6254
      %v6256 = vpop.f32.mrb[0].mxu0
      %v6257 = vadd.f32 0.0, %v6256
      %v6258 = vpop.f32.mrb[0].mxu0
      %v6259 = vadd.f32 0.0, %v6258
      %6260 = vmatprep.mubr.bf16.mxu0 0
      %6261 = vmatmul.mubr.bf16.gmra.mrb[0].mxu0 %v5933
      %v6262 = vpop.f32.mrb[0].mxu0
      %v6263 = vadd.f32 0.0, %v6262
      %v6264 = vpop.f32.mrb[0].mxu0
      %v6265 = vadd.f32 0.0, %v6264
      %v6266 = vpop.f32.mrb[0].mxu0
      %v6267 = vadd.f32 0.0, %v6266
      %v6268 = vpop.f32.mrb[0].mxu0
      %v6269 = vadd.f32 0.0, %v6268
      %6270 = vdwg.mxu0
      %6271 = vmatprep.subr.bf16.mxu0 %v1950
      %6272 = vmatpush1.bf16.msra.mxu0 %v1949
      %6273 = vmatprep.subr.bf16.mxu0 %v1982
      %6274 = vmatpush1.bf16.msra.mxu0 %v1981
      %6275 = vmatprep.subr.bf16.mxu0 %v2014
      %6276 = vmatpush1.bf16.msra.mxu0 %v2013
      %6277 = vmatprep.subr.bf16.mxu0 %v2046
      %6278 = vmatpush1.bf16.msra.mxu0 %v2045
      %6279 = vmatprep.subr.bf16.mxu0 %v2078
      %6280 = vmatpush1.bf16.msra.mxu0 %v2077
      %6281 = vmatprep.subr.bf16.mxu0 %v2110
      %6282 = vmatpush1.bf16.msra.mxu0 %v2109
      %6283 = vmatprep.subr.bf16.mxu0 %v2142
      %6284 = vmatpush1.bf16.msra.mxu0 %v2141
      %6285 = vmatprep.subr.bf16.mxu0 %v2174
      %6286 = vmatpush1.bf16.msra.mxu0 %v2173
      %6287 = vmatprep.subr.bf16.mxu0 0
      %6288 = vmatpush1.bf16.msra.mxu0 0
      %6289 = vmatprep.subr.bf16.mxu0 0
      %6290 = vmatpush1.bf16.msra.mxu0 0
      %6291 = vmatprep.subr.bf16.mxu0 0
      %6292 = vmatpush1.bf16.msra.mxu0 0
      %6293 = vmatprep.subr.bf16.mxu0 0
      %6294 = vmatpush1.bf16.msra.mxu0 0
      %6295 = vmatprep.subr.bf16.mxu0 0
      %6296 = vmatpush1.bf16.msra.mxu0 0
      %6297 = vmatprep.subr.bf16.mxu0 0
      %6298 = vmatpush1.bf16.msra.mxu0 0
      %6299 = vmatprep.subr.bf16.mxu0 0
      %6300 = vmatpush1.bf16.msra.mxu0 0
      %6301 = vmatprep.subr.bf16.mxu0 0
      %6302 = vmatpush1.bf16.msra.mxu0 0
      %6303 = vmatprep.mubr.bf16.mxu0 0
      %6304 = vmatmul.mubr.bf16.gmra.mrb[0].mxu0 %v5929
      %v6305 = vpop.f32.mrb[0].mxu0
      %v6306 = vadd.f32 0.0, %v6305
      %v6307 = vpop.f32.mrb[0].mxu0
      %v6308 = vadd.f32 0.0, %v6307
      %v6309 = vpop.f32.mrb[0].mxu0
      %v6310 = vadd.f32 0.0, %v6309
      %v6311 = vpop.f32.mrb[0].mxu0
      %v6312 = vadd.f32 0.0, %v6311
      %6313 = vmatprep.mubr.bf16.mxu0 0
      %6314 = vmatmul.mubr.bf16.gmra.mrb[0].mxu0 %v5930
      %v6315 = vpop.f32.mrb[0].mxu0
      %v6316 = vadd.f32 0.0, %v6315
      %v6317 = vpop.f32.mrb[0].mxu0
      %v6318 = vadd.f32 0.0, %v6317
      %v6319 = vpop.f32.mrb[0].mxu0
      %v6320 = vadd.f32 0.0, %v6319
      %v6321 = vpop.f32.mrb[0].mxu0
      %v6322 = vadd.f32 0.0, %v6321
      %6323 = vmatprep.mubr.bf16.mxu0 0
      %6324 = vmatmul.mubr.bf16.gmra.mrb[0].mxu0 %v5931
      %v6325 = vpop.f32.mrb[0].mxu0
      %v6326 = vadd.f32 0.0, %v6325
      %v6327 = vpop.f32.mrb[0].mxu0
      %v6328 = vadd.f32 0.0, %v6327
      %v6329 = vpop.f32.mrb[0].mxu0
      %v6330 = vadd.f32 0.0, %v6329
      %v6331 = vpop.f32.mrb[0].mxu0
      %v6332 = vadd.f32 0.0, %v6331
      %6333 = vmatprep.mubr.bf16.mxu0 0
      %6334 = vmatmul.mubr.bf16.gmra.mrb[0].mxu0 %v5932
      %v6335 = vpop.f32.mrb[0].mxu0
      %v6336 = vadd.f32 0.0, %v6335
      %v6337 = vpop.f32.mrb[0].mxu0
      %v6338 = vadd.f32 0.0, %v6337
      %v6339 = vpop.f32.mrb[0].mxu0
      %v6340 = vadd.f32 0.0, %v6339
      %v6341 = vpop.f32.mrb[0].mxu0
      %v6342 = vadd.f32 0.0, %v6341
      %6343 = vmatprep.mubr.bf16.mxu0 0
      %6344 = vmatmul.mubr.bf16.gmra.mrb[0].mxu0 %v5933
      %v6345 = vpop.f32.mrb[0].mxu0
      %v6346 = vadd.f32 0.0, %v6345
      %v6347 = vpop.f32.mrb[0].mxu0
      %v6348 = vadd.f32 0.0, %v6347
      %v6349 = vpop.f32.mrb[0].mxu0
      %v6350 = vadd.f32 0.0, %v6349
      %v6351 = vpop.f32.mrb[0].mxu0
      %v6352 = vadd.f32 0.0, %v6351
      %6353 = vdwg.mxu0
      %6354 = vmatprep.subr.bf16.mxu0 %v1952
      %6355 = vmatpush1.bf16.msra.mxu0 %v1951
      %6356 = vmatprep.subr.bf16.mxu0 %v1984
      %6357 = vmatpush1.bf16.msra.mxu0 %v1983
      %6358 = vmatprep.subr.bf16.mxu0 %v2016
      %6359 = vmatpush1.bf16.msra.mxu0 %v2015
      %6360 = vmatprep.subr.bf16.mxu0 %v2048
      %6361 = vmatpush1.bf16.msra.mxu0 %v2047
      %6362 = vmatprep.subr.bf16.mxu0 %v2080
      %6363 = vmatpush1.bf16.msra.mxu0 %v2079
      %6364 = vmatprep.subr.bf16.mxu0 %v2112
      %6365 = vmatpush1.bf16.msra.mxu0 %v2111
      %6366 = vmatprep.subr.bf16.mxu0 %v2144
      %6367 = vmatpush1.bf16.msra.mxu0 %v2143
      %6368 = vmatprep.subr.bf16.mxu0 %v2176
      %6369 = vmatpush1.bf16.msra.mxu0 %v2175
      %6370 = vmatprep.subr.bf16.mxu0 0
      %6371 = vmatpush1.bf16.msra.mxu0 0
      %6372 = vmatprep.subr.bf16.mxu0 0
      %6373 = vmatpush1.bf16.msra.mxu0 0
      %6374 = vmatprep.subr.bf16.mxu0 0
      %6375 = vmatpush1.bf16.msra.mxu0 0
      %6376 = vmatprep.subr.bf16.mxu0 0
      %6377 = vmatpush1.bf16.msra.mxu0 0
      %6378 = vmatprep.subr.bf16.mxu0 0
      %6379 = vmatpush1.bf16.msra.mxu0 0
      %6380 = vmatprep.subr.bf16.mxu0 0
      %6381 = vmatpush1.bf16.msra.mxu0 0
      %6382 = vmatprep.subr.bf16.mxu0 0
      %6383 = vmatpush1.bf16.msra.mxu0 0
      %6384 = vmatprep.subr.bf16.mxu0 0
      %6385 = vmatpush1.bf16.msra.mxu0 0
      %6386 = vmatprep.mubr.bf16.mxu0 0
      %6387 = vmatmul.mubr.bf16.gmra.mrb[0].mxu0 %v5929
      %v6388 = vpop.f32.mrb[0].mxu0
      %v6389 = vadd.f32 0.0, %v6388
      %v6390 = vpop.f32.mrb[0].mxu0
      %v6391 = vadd.f32 0.0, %v6390
      %v6392 = vpop.f32.mrb[0].mxu0
      %v6393 = vadd.f32 0.0, %v6392
      %v6394 = vpop.f32.mrb[0].mxu0
      %v6395 = vadd.f32 0.0, %v6394
      %6396 = vmatprep.mubr.bf16.mxu0 0
      %6397 = vmatmul.mubr.bf16.gmra.mrb[0].mxu0 %v5930
      %v6398 = vpop.f32.mrb[0].mxu0
      %v6399 = vadd.f32 0.0, %v6398
      %v6400 = vpop.f32.mrb[0].mxu0
      %v6401 = vadd.f32 0.0, %v6400
      %v6402 = vpop.f32.mrb[0].mxu0
      %v6403 = vadd.f32 0.0, %v6402
      %v6404 = vpop.f32.mrb[0].mxu0
      %v6405 = vadd.f32 0.0, %v6404
      %6406 = vmatprep.mubr.bf16.mxu0 0
      %6407 = vmatmul.mubr.bf16.gmra.mrb[0].mxu0 %v5931
      %v6408 = vpop.f32.mrb[0].mxu0
      %v6409 = vadd.f32 0.0, %v6408
      %v6410 = vpop.f32.mrb[0].mxu0
      %v6411 = vadd.f32 0.0, %v6410
      %v6412 = vpop.f32.mrb[0].mxu0
      %v6413 = vadd.f32 0.0, %v6412
      %v6414 = vpop.f32.mrb[0].mxu0
      %v6415 = vadd.f32 0.0, %v6414
      %6416 = vmatprep.mubr.bf16.mxu0 0
      %6417 = vmatmul.mubr.bf16.gmra.mrb[0].mxu0 %v5932
      %v6418 = vpop.f32.mrb[0].mxu0
      %v6419 = vadd.f32 0.0, %v6418
      %v6420 = vpop.f32.mrb[0].mxu0
      %v6421 = vadd.f32 0.0, %v6420
      %v6422 = vpop.f32.mrb[0].mxu0
      %v6423 = vadd.f32 0.0, %v6422
      %v6424 = vpop.f32.mrb[0].mxu0
      %v6425 = vadd.f32 0.0, %v6424
      %6426 = vmatprep.mubr.bf16.mxu0 0
      %6427 = vmatmul.mubr.bf16.gmra.mrb[0].mxu0 %v5933
      %v6428 = vpop.f32.mrb[0].mxu0
      %v6429 = vadd.f32 0.0, %v6428
      %v6430 = vpop.f32.mrb[0].mxu0
      %v6431 = vadd.f32 0.0, %v6430
      %v6432 = vpop.f32.mrb[0].mxu0
      %v6433 = vadd.f32 0.0, %v6432
      %v6434 = vpop.f32.mrb[0].mxu0
      %v6435 = vadd.f32 0.0, %v6434
      %6436 = vdwg.mxu0
      %6437 = vmatprep.subr.bf16.mxu0 %v1954
      %6438 = vmatpush1.bf16.msra.mxu0 %v1953
      %6439 = vmatprep.subr.bf16.mxu0 %v1986
      %6440 = vmatpush1.bf16.msra.mxu0 %v1985
      %6441 = vmatprep.subr.bf16.mxu0 %v2018
      %6442 = vmatpush1.bf16.msra.mxu0 %v2017
      %6443 = vmatprep.subr.bf16.mxu0 %v2050
      %6444 = vmatpush1.bf16.msra.mxu0 %v2049
      %6445 = vmatprep.subr.bf16.mxu0 %v2082
      %6446 = vmatpush1.bf16.msra.mxu0 %v2081
      %6447 = vmatprep.subr.bf16.mxu0 %v2114
      %6448 = vmatpush1.bf16.msra.mxu0 %v2113
      %6449 = vmatprep.subr.bf16.mxu0 %v2146
      %6450 = vmatpush1.bf16.msra.mxu0 %v2145
      %6451 = vmatprep.subr.bf16.mxu0 %v2178
      %6452 = vmatpush1.bf16.msra.mxu0 %v2177
      %6453 = vmatprep.subr.bf16.mxu0 0
      %6454 = vmatpush1.bf16.msra.mxu0 0
      %6455 = vmatprep.subr.bf16.mxu0 0
      %6456 = vmatpush1.bf16.msra.mxu0 0
      %6457 = vmatprep.subr.bf16.mxu0 0
      %6458 = vmatpush1.bf16.msra.mxu0 0
      %6459 = vmatprep.subr.bf16.mxu0 0
      %6460 = vmatpush1.bf16.msra.mxu0 0
      %6461 = vmatprep.subr.bf16.mxu0 0
      %6462 = vmatpush1.bf16.msra.mxu0 0
      %6463 = vmatprep.subr.bf16.mxu0 0
      %6464 = vmatpush1.bf16.msra.mxu0 0
      %6465 = vmatprep.subr.bf16.mxu0 0
      %6466 = vmatpush1.bf16.msra.mxu0 0
      %6467 = vmatprep.subr.bf16.mxu0 0
      %6468 = vmatpush1.bf16.msra.mxu0 0
      %6469 = vmatprep.mubr.bf16.mxu0 0
      %6470 = vmatmul.mubr.bf16.gmra.mrb[0].mxu0 %v5929
      %v6471 = vpop.f32.mrb[0].mxu0
      %v6472 = vadd.f32 0.0, %v6471
      %v6473 = vpop.f32.mrb[0].mxu0
      %v6474 = vadd.f32 0.0, %v6473
      %v6475 = vpop.f32.mrb[0].mxu0
      %v6476 = vadd.f32 0.0, %v6475
      %v6477 = vpop.f32.mrb[0].mxu0
      %v6478 = vadd.f32 0.0, %v6477
      %6479 = vmatprep.mubr.bf16.mxu0 0
      %6480 = vmatmul.mubr.bf16.gmra.mrb[0].mxu0 %v5930
      %v6481 = vpop.f32.mrb[0].mxu0
      %v6482 = vadd.f32 0.0, %v6481
      %v6483 = vpop.f32.mrb[0].mxu0
      %v6484 = vadd.f32 0.0, %v6483
      %v6485 = vpop.f32.mrb[0].mxu0
      %v6486 = vadd.f32 0.0, %v6485
      %v6487 = vpop.f32.mrb[0].mxu0
      %v6488 = vadd.f32 0.0, %v6487
      %6489 = vmatprep.mubr.bf16.mxu0 0
      %6490 = vmatmul.mubr.bf16.gmra.mrb[0].mxu0 %v5931
      %v6491 = vpop.f32.mrb[0].mxu0
      %v6492 = vadd.f32 0.0, %v6491
      %v6493 = vpop.f32.mrb[0].mxu0
      %v6494 = vadd.f32 0.0, %v6493
      %v6495 = vpop.f32.mrb[0].mxu0
      %v6496 = vadd.f32 0.0, %v6495
      %v6497 = vpop.f32.mrb[0].mxu0
      %v6498 = vadd.f32 0.0, %v6497
      %6499 = vmatprep.mubr.bf16.mxu0 0
      %6500 = vmatmul.mubr.bf16.gmra.mrb[0].mxu0 %v5932
      %v6501 = vpop.f32.mrb[0].mxu0
      %v6502 = vadd.f32 0.0, %v6501
      %v6503 = vpop.f32.mrb[0].mxu0
      %v6504 = vadd.f32 0.0, %v6503
      %v6505 = vpop.f32.mrb[0].mxu0
      %v6506 = vadd.f32 0.0, %v6505
      %v6507 = vpop.f32.mrb[0].mxu0
      %v6508 = vadd.f32 0.0, %v6507
      %6509 = vmatprep.mubr.bf16.mxu0 0
      %6510 = vmatmul.mubr.bf16.gmra.mrb[0].mxu0 %v5933
      %v6511 = vpop.f32.mrb[0].mxu0
      %v6512 = vadd.f32 0.0, %v6511
      %v6513 = vpop.f32.mrb[0].mxu0
      %v6514 = vadd.f32 0.0, %v6513
      %v6515 = vpop.f32.mrb[0].mxu0
      %v6516 = vadd.f32 0.0, %v6515
      %v6517 = vpop.f32.mrb[0].mxu0
      %v6518 = vadd.f32 0.0, %v6517
      %6519 = vdwg.mxu0
      %6520 = vmatprep.subr.bf16.mxu0 %v1956
      %6521 = vmatpush1.bf16.msra.mxu0 %v1955
      %6522 = vmatprep.subr.bf16.mxu0 %v1988
      %6523 = vmatpush1.bf16.msra.mxu0 %v1987
      %6524 = vmatprep.subr.bf16.mxu0 %v2020
      %6525 = vmatpush1.bf16.msra.mxu0 %v2019
      %6526 = vmatprep.subr.bf16.mxu0 %v2052
      %6527 = vmatpush1.bf16.msra.mxu0 %v2051
      %6528 = vmatprep.subr.bf16.mxu0 %v2084
      %6529 = vmatpush1.bf16.msra.mxu0 %v2083
      %6530 = vmatprep.subr.bf16.mxu0 %v2116
      %6531 = vmatpush1.bf16.msra.mxu0 %v2115
      %6532 = vmatprep.subr.bf16.mxu0 %v2148
      %6533 = vmatpush1.bf16.msra.mxu0 %v2147
      %6534 = vmatprep.subr.bf16.mxu0 %v2180
      %6535 = vmatpush1.bf16.msra.mxu0 %v2179
      %6536 = vmatprep.subr.bf16.mxu0 0
      %6537 = vmatpush1.bf16.msra.mxu0 0
      %6538 = vmatprep.subr.bf16.mxu0 0
      %6539 = vmatpush1.bf16.msra.mxu0 0
      %6540 = vmatprep.subr.bf16.mxu0 0
      %6541 = vmatpush1.bf16.msra.mxu0 0
      %6542 = vmatprep.subr.bf16.mxu0 0
      %6543 = vmatpush1.bf16.msra.mxu0 0
      %6544 = vmatprep.subr.bf16.mxu0 0
      %6545 = vmatpush1.bf16.msra.mxu0 0
      %6546 = vmatprep.subr.bf16.mxu0 0
      %6547 = vmatpush1.bf16.msra.mxu0 0
      %6548 = vmatprep.subr.bf16.mxu0 0
      %6549 = vmatpush1.bf16.msra.mxu0 0
      %6550 = vmatprep.subr.bf16.mxu0 0
      %6551 = vmatpush1.bf16.msra.mxu0 0
      %6552 = vmatprep.mubr.bf16.mxu0 0
      %6553 = vmatmul.mubr.bf16.gmra.mrb[0].mxu0 %v5929
      %v6554 = vpop.f32.mrb[0].mxu0
      %v6555 = vadd.f32 0.0, %v6554
      %v6556 = vpop.f32.mrb[0].mxu0
      %v6557 = vadd.f32 0.0, %v6556
      %v6558 = vpop.f32.mrb[0].mxu0
      %v6559 = vadd.f32 0.0, %v6558
      %v6560 = vpop.f32.mrb[0].mxu0
      %v6561 = vadd.f32 0.0, %v6560
      %6562 = vmatprep.mubr.bf16.mxu0 0
      %6563 = vmatmul.mubr.bf16.gmra.mrb[0].mxu0 %v5930
      %v6564 = vpop.f32.mrb[0].mxu0
      %v6565 = vadd.f32 0.0, %v6564
      %v6566 = vpop.f32.mrb[0].mxu0
      %v6567 = vadd.f32 0.0, %v6566
      %v6568 = vpop.f32.mrb[0].mxu0
      %v6569 = vadd.f32 0.0, %v6568
      %v6570 = vpop.f32.mrb[0].mxu0
      %v6571 = vadd.f32 0.0, %v6570
      %6572 = vmatprep.mubr.bf16.mxu0 0
      %6573 = vmatmul.mubr.bf16.gmra.mrb[0].mxu0 %v5931
      %v6574 = vpop.f32.mrb[0].mxu0
      %v6575 = vadd.f32 0.0, %v6574
      %v6576 = vpop.f32.mrb[0].mxu0
      %v6577 = vadd.f32 0.0, %v6576
      %v6578 = vpop.f32.mrb[0].mxu0
      %v6579 = vadd.f32 0.0, %v6578
      %v6580 = vpop.f32.mrb[0].mxu0
      %v6581 = vadd.f32 0.0, %v6580
      %6582 = vmatprep.mubr.bf16.mxu0 0
      %6583 = vmatmul.mubr.bf16.gmra.mrb[0].mxu0 %v5932
      %v6584 = vpop.f32.mrb[0].mxu0
      %v6585 = vadd.f32 0.0, %v6584
      %v6586 = vpop.f32.mrb[0].mxu0
      %v6587 = vadd.f32 0.0, %v6586
      %v6588 = vpop.f32.mrb[0].mxu0
      %v6589 = vadd.f32 0.0, %v6588
      %v6590 = vpop.f32.mrb[0].mxu0
      %v6591 = vadd.f32 0.0, %v6590
      %6592 = vmatprep.mubr.bf16.mxu0 0
      %6593 = vmatmul.mubr.bf16.gmra.mrb[0].mxu0 %v5933
      %v6594 = vpop.f32.mrb[0].mxu0
      %v6595 = vadd.f32 0.0, %v6594
      %v6596 = vpop.f32.mrb[0].mxu0
      %v6597 = vadd.f32 0.0, %v6596
      %v6598 = vpop.f32.mrb[0].mxu0
      %v6599 = vadd.f32 0.0, %v6598
      %v6600 = vpop.f32.mrb[0].mxu0
      %v6601 = vadd.f32 0.0, %v6600
      %6602 = vdwg.mxu0
      %6603 = vmatprep.subr.bf16.mxu0 %v1958
      %6604 = vmatpush1.bf16.msra.mxu0 %v1957
      %6605 = vmatprep.subr.bf16.mxu0 %v1990
      %6606 = vmatpush1.bf16.msra.mxu0 %v1989
      %6607 = vmatprep.subr.bf16.mxu0 %v2022
      %6608 = vmatpush1.bf16.msra.mxu0 %v2021
      %6609 = vmatprep.subr.bf16.mxu0 %v2054
      %6610 = vmatpush1.bf16.msra.mxu0 %v2053
      %6611 = vmatprep.subr.bf16.mxu0 %v2086
      %6612 = vmatpush1.bf16.msra.mxu0 %v2085
      %6613 = vmatprep.subr.bf16.mxu0 %v2118
      %6614 = vmatpush1.bf16.msra.mxu0 %v2117
      %6615 = vmatprep.subr.bf16.mxu0 %v2150
      %6616 = vmatpush1.bf16.msra.mxu0 %v2149
      %6617 = vmatprep.subr.bf16.mxu0 %v2182
      %6618 = vmatpush1.bf16.msra.mxu0 %v2181
      %6619 = vmatprep.subr.bf16.mxu0 0
      %6620 = vmatpush1.bf16.msra.mxu0 0
      %6621 = vmatprep.subr.bf16.mxu0 0
      %6622 = vmatpush1.bf16.msra.mxu0 0
      %6623 = vmatprep.subr.bf16.mxu0 0
      %6624 = vmatpush1.bf16.msra.mxu0 0
      %6625 = vmatprep.subr.bf16.mxu0 0
      %6626 = vmatpush1.bf16.msra.mxu0 0
      %6627 = vmatprep.subr.bf16.mxu0 0
      %6628 = vmatpush1.bf16.msra.mxu0 0
      %6629 = vmatprep.subr.bf16.mxu0 0
      %6630 = vmatpush1.bf16.msra.mxu0 0
      %6631 = vmatprep.subr.bf16.mxu0 0
      %6632 = vmatpush1.bf16.msra.mxu0 0
      %6633 = vmatprep.subr.bf16.mxu0 0
      %6634 = vmatpush1.bf16.msra.mxu0 0
      %6635 = vmatprep.mubr.bf16.mxu0 0
      %6636 = vmatmul.mubr.bf16.gmra.mrb[0].mxu0 %v5929
      %v6637 = vpop.f32.mrb[0].mxu0
      %v6638 = vadd.f32 0.0, %v6637
      %v6639 = vpop.f32.mrb[0].mxu0
      %v6640 = vadd.f32 0.0, %v6639
      %v6641 = vpop.f32.mrb[0].mxu0
      %v6642 = vadd.f32 0.0, %v6641
      %v6643 = vpop.f32.mrb[0].mxu0
      %v6644 = vadd.f32 0.0, %v6643
      %6645 = vmatprep.mubr.bf16.mxu0 0
      %6646 = vmatmul.mubr.bf16.gmra.mrb[0].mxu0 %v5930
      %v6647 = vpop.f32.mrb[0].mxu0
      %v6648 = vadd.f32 0.0, %v6647
      %v6649 = vpop.f32.mrb[0].mxu0
      %v6650 = vadd.f32 0.0, %v6649
      %v6651 = vpop.f32.mrb[0].mxu0
      %v6652 = vadd.f32 0.0, %v6651
      %v6653 = vpop.f32.mrb[0].mxu0
      %v6654 = vadd.f32 0.0, %v6653
      %6655 = vmatprep.mubr.bf16.mxu0 0
      %6656 = vmatmul.mubr.bf16.gmra.mrb[0].mxu0 %v5931
      %v6657 = vpop.f32.mrb[0].mxu0
      %v6658 = vadd.f32 0.0, %v6657
      %v6659 = vpop.f32.mrb[0].mxu0
      %v6660 = vadd.f32 0.0, %v6659
      %v6661 = vpop.f32.mrb[0].mxu0
      %v6662 = vadd.f32 0.0, %v6661
      %v6663 = vpop.f32.mrb[0].mxu0
      %v6664 = vadd.f32 0.0, %v6663
      %6665 = vmatprep.mubr.bf16.mxu0 0
      %6666 = vmatmul.mubr.bf16.gmra.mrb[0].mxu0 %v5932
      %v6667 = vpop.f32.mrb[0].mxu0
      %v6668 = vadd.f32 0.0, %v6667
      %v6669 = vpop.f32.mrb[0].mxu0
      %v6670 = vadd.f32 0.0, %v6669
      %v6671 = vpop.f32.mrb[0].mxu0
      %v6672 = vadd.f32 0.0, %v6671
      %v6673 = vpop.f32.mrb[0].mxu0
      %v6674 = vadd.f32 0.0, %v6673
      %6675 = vmatprep.mubr.bf16.mxu0 0
      %6676 = vmatmul.mubr.bf16.gmra.mrb[0].mxu0 %v5933
      %v6677 = vpop.f32.mrb[0].mxu0
      %v6678 = vadd.f32 0.0, %v6677
      %v6679 = vpop.f32.mrb[0].mxu0
      %v6680 = vadd.f32 0.0, %v6679
      %v6681 = vpop.f32.mrb[0].mxu0
      %v6682 = vadd.f32 0.0, %v6681
      %v6683 = vpop.f32.mrb[0].mxu0
      %v6684 = vadd.f32 0.0, %v6683
      %6685 = vdwg.mxu0
      %6686 = vmatprep.subr.bf16.mxu0 %v1960
      %6687 = vmatpush1.bf16.msra.mxu0 %v1959
      %6688 = vmatprep.subr.bf16.mxu0 %v1992
      %6689 = vmatpush1.bf16.msra.mxu0 %v1991
      %6690 = vmatprep.subr.bf16.mxu0 %v2024
      %6691 = vmatpush1.bf16.msra.mxu0 %v2023
      %6692 = vmatprep.subr.bf16.mxu0 %v2056
      %6693 = vmatpush1.bf16.msra.mxu0 %v2055
      %6694 = vmatprep.subr.bf16.mxu0 %v2088
      %6695 = vmatpush1.bf16.msra.mxu0 %v2087
      %6696 = vmatprep.subr.bf16.mxu0 %v2120
      %6697 = vmatpush1.bf16.msra.mxu0 %v2119
      %6698 = vmatprep.subr.bf16.mxu0 %v2152
      %6699 = vmatpush1.bf16.msra.mxu0 %v2151
      %6700 = vmatprep.subr.bf16.mxu0 %v2184
      %6701 = vmatpush1.bf16.msra.mxu0 %v2183
      %6702 = vmatprep.subr.bf16.mxu0 0
      %6703 = vmatpush1.bf16.msra.mxu0 0
      %6704 = vmatprep.subr.bf16.mxu0 0
      %6705 = vmatpush1.bf16.msra.mxu0 0
      %6706 = vmatprep.subr.bf16.mxu0 0
      %6707 = vmatpush1.bf16.msra.mxu0 0
      %6708 = vmatprep.subr.bf16.mxu0 0
      %6709 = vmatpush1.bf16.msra.mxu0 0
      %6710 = vmatprep.subr.bf16.mxu0 0
      %6711 = vmatpush1.bf16.msra.mxu0 0
      %6712 = vmatprep.subr.bf16.mxu0 0
      %6713 = vmatpush1.bf16.msra.mxu0 0
      %6714 = vmatprep.subr.bf16.mxu0 0
      %6715 = vmatpush1.bf16.msra.mxu0 0
      %6716 = vmatprep.subr.bf16.mxu0 0
      %6717 = vmatpush1.bf16.msra.mxu0 0
      %6718 = vmatprep.mubr.bf16.mxu0 0
      %6719 = vmatmul.mubr.bf16.gmra.mrb[0].mxu0 %v5929
      %v6720 = vpop.f32.mrb[0].mxu0
      %v6721 = vadd.f32 0.0, %v6720
      %v6722 = vpop.f32.mrb[0].mxu0
      %v6723 = vadd.f32 0.0, %v6722
      %v6724 = vpop.f32.mrb[0].mxu0
      %v6725 = vadd.f32 0.0, %v6724
      %v6726 = vpop.f32.mrb[0].mxu0
      %v6727 = vadd.f32 0.0, %v6726
      %6728 = vmatprep.mubr.bf16.mxu0 0
      %6729 = vmatmul.mubr.bf16.gmra.mrb[0].mxu0 %v5930
      %v6730 = vpop.f32.mrb[0].mxu0
      %v6731 = vadd.f32 0.0, %v6730
      %v6732 = vpop.f32.mrb[0].mxu0
      %v6733 = vadd.f32 0.0, %v6732
      %v6734 = vpop.f32.mrb[0].mxu0
      %v6735 = vadd.f32 0.0, %v6734
      %v6736 = vpop.f32.mrb[0].mxu0
      %v6737 = vadd.f32 0.0, %v6736
      %6738 = vmatprep.mubr.bf16.mxu0 0
      %6739 = vmatmul.mubr.bf16.gmra.mrb[0].mxu0 %v5931
      %v6740 = vpop.f32.mrb[0].mxu0
      %v6741 = vadd.f32 0.0, %v6740
      %v6742 = vpop.f32.mrb[0].mxu0
      %v6743 = vadd.f32 0.0, %v6742
      %v6744 = vpop.f32.mrb[0].mxu0
      %v6745 = vadd.f32 0.0, %v6744
      %v6746 = vpop.f32.mrb[0].mxu0
      %v6747 = vadd.f32 0.0, %v6746
      %6748 = vmatprep.mubr.bf16.mxu0 0
      %6749 = vmatmul.mubr.bf16.gmra.mrb[0].mxu0 %v5932
      %v6750 = vpop.f32.mrb[0].mxu0
      %v6751 = vadd.f32 0.0, %v6750
      %v6752 = vpop.f32.mrb[0].mxu0
      %v6753 = vadd.f32 0.0, %v6752
      %v6754 = vpop.f32.mrb[0].mxu0
      %v6755 = vadd.f32 0.0, %v6754
      %v6756 = vpop.f32.mrb[0].mxu0
      %v6757 = vadd.f32 0.0, %v6756
      %6758 = vmatprep.mubr.bf16.mxu0 0
      %6759 = vmatmul.mubr.bf16.gmra.mrb[0].mxu0 %v5933
      %v6760 = vpop.f32.mrb[0].mxu0
      %v6761 = vadd.f32 0.0, %v6760
      %v6762 = vpop.f32.mrb[0].mxu0
      %v6763 = vadd.f32 0.0, %v6762
      %v6764 = vpop.f32.mrb[0].mxu0
      %v6765 = vadd.f32 0.0, %v6764
      %v6766 = vpop.f32.mrb[0].mxu0
      %v6767 = vadd.f32 0.0, %v6766
      %6768 = vdwg.mxu0
      %6769 = vmatprep.subr.bf16.mxu0 %v1962
      %6770 = vmatpush1.bf16.msra.mxu0 %v1961
      %6771 = vmatprep.subr.bf16.mxu0 %v1994
      %6772 = vmatpush1.bf16.msra.mxu0 %v1993
      %6773 = vmatprep.subr.bf16.mxu0 %v2026
      %6774 = vmatpush1.bf16.msra.mxu0 %v2025
      %6775 = vmatprep.subr.bf16.mxu0 %v2058
      %6776 = vmatpush1.bf16.msra.mxu0 %v2057
      %6777 = vmatprep.subr.bf16.mxu0 %v2090
      %6778 = vmatpush1.bf16.msra.mxu0 %v2089
      %6779 = vmatprep.subr.bf16.mxu0 %v2122
      %6780 = vmatpush1.bf16.msra.mxu0 %v2121
      %6781 = vmatprep.subr.bf16.mxu0 %v2154
      %6782 = vmatpush1.bf16.msra.mxu0 %v2153
      %6783 = vmatprep.subr.bf16.mxu0 %v2186
      %6784 = vmatpush1.bf16.msra.mxu0 %v2185
      %6785 = vmatprep.subr.bf16.mxu0 0
      %6786 = vmatpush1.bf16.msra.mxu0 0
      %6787 = vmatprep.subr.bf16.mxu0 0
      %6788 = vmatpush1.bf16.msra.mxu0 0
      %6789 = vmatprep.subr.bf16.mxu0 0
      %6790 = vmatpush1.bf16.msra.mxu0 0
      %6791 = vmatprep.subr.bf16.mxu0 0
      %6792 = vmatpush1.bf16.msra.mxu0 0
      %6793 = vmatprep.subr.bf16.mxu0 0
      %6794 = vmatpush1.bf16.msra.mxu0 0
      %6795 = vmatprep.subr.bf16.mxu0 0
      %6796 = vmatpush1.bf16.msra.mxu0 0
      %6797 = vmatprep.subr.bf16.mxu0 0
      %6798 = vmatpush1.bf16.msra.mxu0 0
      %6799 = vmatprep.subr.bf16.mxu0 0
      %6800 = vmatpush1.bf16.msra.mxu0 0
      %6801 = vmatprep.mubr.bf16.mxu0 0
      %6802 = vmatmul.mubr.bf16.gmra.mrb[0].mxu0 %v5929
      %v6803 = vpop.f32.mrb[0].mxu0
      %v6804 = vadd.f32 0.0, %v6803
      %v6805 = vpop.f32.mrb[0].mxu0
      %v6806 = vadd.f32 0.0, %v6805
      %v6807 = vpop.f32.mrb[0].mxu0
      %v6808 = vadd.f32 0.0, %v6807
      %v6809 = vpop.f32.mrb[0].mxu0
      %v6810 = vadd.f32 0.0, %v6809
      %6811 = vmatprep.mubr.bf16.mxu0 0
      %6812 = vmatmul.mubr.bf16.gmra.mrb[0].mxu0 %v5930
      %v6813 = vpop.f32.mrb[0].mxu0
      %v6814 = vadd.f32 0.0, %v6813
      %v6815 = vpop.f32.mrb[0].mxu0
      %v6816 = vadd.f32 0.0, %v6815
      %v6817 = vpop.f32.mrb[0].mxu0
      %v6818 = vadd.f32 0.0, %v6817
      %v6819 = vpop.f32.mrb[0].mxu0
      %v6820 = vadd.f32 0.0, %v6819
      %6821 = vmatprep.mubr.bf16.mxu0 0
      %6822 = vmatmul.mubr.bf16.gmra.mrb[0].mxu0 %v5931
      %v6823 = vpop.f32.mrb[0].mxu0
      %v6824 = vadd.f32 0.0, %v6823
      %v6825 = vpop.f32.mrb[0].mxu0
      %v6826 = vadd.f32 0.0, %v6825
      %v6827 = vpop.f32.mrb[0].mxu0
      %v6828 = vadd.f32 0.0, %v6827
      %v6829 = vpop.f32.mrb[0].mxu0
      %v6830 = vadd.f32 0.0, %v6829
      %6831 = vmatprep.mubr.bf16.mxu0 0
      %6832 = vmatmul.mubr.bf16.gmra.mrb[0].mxu0 %v5932
      %v6833 = vpop.f32.mrb[0].mxu0
      %v6834 = vadd.f32 0.0, %v6833
      %v6835 = vpop.f32.mrb[0].mxu0
      %v6836 = vadd.f32 0.0, %v6835
      %v6837 = vpop.f32.mrb[0].mxu0
      %v6838 = vadd.f32 0.0, %v6837
      %v6839 = vpop.f32.mrb[0].mxu0
      %v6840 = vadd.f32 0.0, %v6839
      %6841 = vmatprep.mubr.bf16.mxu0 0
      %6842 = vmatmul.mubr.bf16.gmra.mrb[0].mxu0 %v5933
      %v6843 = vpop.f32.mrb[0].mxu0
      %v6844 = vadd.f32 0.0, %v6843
      %v6845 = vpop.f32.mrb[0].mxu0
      %v6846 = vadd.f32 0.0, %v6845
      %v6847 = vpop.f32.mrb[0].mxu0
      %v6848 = vadd.f32 0.0, %v6847
      %v6849 = vpop.f32.mrb[0].mxu0
      %v6850 = vadd.f32 0.0, %v6849
      %6851 = vdwg.mxu0
      %6852 = vmatprep.subr.bf16.mxu0 %v1964
      %6853 = vmatpush1.bf16.msra.mxu0 %v1963
      %6854 = vmatprep.subr.bf16.mxu0 %v1996
      %6855 = vmatpush1.bf16.msra.mxu0 %v1995
      %6856 = vmatprep.subr.bf16.mxu0 %v2028
      %6857 = vmatpush1.bf16.msra.mxu0 %v2027
      %6858 = vmatprep.subr.bf16.mxu0 %v2060
      %6859 = vmatpush1.bf16.msra.mxu0 %v2059
      %6860 = vmatprep.subr.bf16.mxu0 %v2092
      %6861 = vmatpush1.bf16.msra.mxu0 %v2091
      %6862 = vmatprep.subr.bf16.mxu0 %v2124
      %6863 = vmatpush1.bf16.msra.mxu0 %v2123
      %6864 = vmatprep.subr.bf16.mxu0 %v2156
      %6865 = vmatpush1.bf16.msra.mxu0 %v2155
      %6866 = vmatprep.subr.bf16.mxu0 %v2188
      %6867 = vmatpush1.bf16.msra.mxu0 %v2187
      %6868 = vmatprep.subr.bf16.mxu0 0
      %6869 = vmatpush1.bf16.msra.mxu0 0
      %6870 = vmatprep.subr.bf16.mxu0 0
      %6871 = vmatpush1.bf16.msra.mxu0 0
      %6872 = vmatprep.subr.bf16.mxu0 0
      %6873 = vmatpush1.bf16.msra.mxu0 0
      %6874 = vmatprep.subr.bf16.mxu0 0
      %6875 = vmatpush1.bf16.msra.mxu0 0
      %6876 = vmatprep.subr.bf16.mxu0 0
      %6877 = vmatpush1.bf16.msra.mxu0 0
      %6878 = vmatprep.subr.bf16.mxu0 0
      %6879 = vmatpush1.bf16.msra.mxu0 0
      %6880 = vmatprep.subr.bf16.mxu0 0
      %6881 = vmatpush1.bf16.msra.mxu0 0
      %6882 = vmatprep.subr.bf16.mxu0 0
      %6883 = vmatpush1.bf16.msra.mxu0 0
      %6884 = vmatprep.mubr.bf16.mxu0 0
      %6885 = vmatmul.mubr.bf16.gmra.mrb[0].mxu0 %v5929
      %v6886 = vpop.f32.mrb[0].mxu0
      %v6887 = vadd.f32 0.0, %v6886
      %v6888 = vpop.f32.mrb[0].mxu0
      %v6889 = vadd.f32 0.0, %v6888
      %v6890 = vpop.f32.mrb[0].mxu0
      %v6891 = vadd.f32 0.0, %v6890
      %v6892 = vpop.f32.mrb[0].mxu0
      %v6893 = vadd.f32 0.0, %v6892
      %6894 = vmatprep.mubr.bf16.mxu0 0
      %6895 = vmatmul.mubr.bf16.gmra.mrb[0].mxu0 %v5930
      %v6896 = vpop.f32.mrb[0].mxu0
      %v6897 = vadd.f32 0.0, %v6896
      %v6898 = vpop.f32.mrb[0].mxu0
      %v6899 = vadd.f32 0.0, %v6898
      %v6900 = vpop.f32.mrb[0].mxu0
      %v6901 = vadd.f32 0.0, %v6900
      %v6902 = vpop.f32.mrb[0].mxu0
      %v6903 = vadd.f32 0.0, %v6902
      %6904 = vmatprep.mubr.bf16.mxu0 0
      %6905 = vmatmul.mubr.bf16.gmra.mrb[0].mxu0 %v5931
      %v6906 = vpop.f32.mrb[0].mxu0
      %v6907 = vadd.f32 0.0, %v6906
      %v6908 = vpop.f32.mrb[0].mxu0
      %v6909 = vadd.f32 0.0, %v6908
      %v6910 = vpop.f32.mrb[0].mxu0
      %v6911 = vadd.f32 0.0, %v6910
      %v6912 = vpop.f32.mrb[0].mxu0
      %v6913 = vadd.f32 0.0, %v6912
      %6914 = vmatprep.mubr.bf16.mxu0 0
      %6915 = vmatmul.mubr.bf16.gmra.mrb[0].mxu0 %v5932
      %v6916 = vpop.f32.mrb[0].mxu0
      %v6917 = vadd.f32 0.0, %v6916
      %v6918 = vpop.f32.mrb[0].mxu0
      %v6919 = vadd.f32 0.0, %v6918
      %v6920 = vpop.f32.mrb[0].mxu0
      %v6921 = vadd.f32 0.0, %v6920
      %v6922 = vpop.f32.mrb[0].mxu0
      %v6923 = vadd.f32 0.0, %v6922
      %6924 = vmatprep.mubr.bf16.mxu0 0
      %6925 = vmatmul.mubr.bf16.gmra.mrb[0].mxu0 %v5933
      %v6926 = vpop.f32.mrb[0].mxu0
      %v6927 = vadd.f32 0.0, %v6926
      %v6928 = vpop.f32.mrb[0].mxu0
      %v6929 = vadd.f32 0.0, %v6928
      %v6930 = vpop.f32.mrb[0].mxu0
      %v6931 = vadd.f32 0.0, %v6930
      %v6932 = vpop.f32.mrb[0].mxu0
      %v6933 = vadd.f32 0.0, %v6932
      %6934 = vdwg.mxu0
      %6935 = vmatprep.subr.bf16.mxu0 %v1966
      %6936 = vmatpush1.bf16.msra.mxu0 %v1965
      %6937 = vmatprep.subr.bf16.mxu0 %v1998
      %6938 = vmatpush1.bf16.msra.mxu0 %v1997
      %6939 = vmatprep.subr.bf16.mxu0 %v2030
      %6940 = vmatpush1.bf16.msra.mxu0 %v2029
      %6941 = vmatprep.subr.bf16.mxu0 %v2062
      %6942 = vmatpush1.bf16.msra.mxu0 %v2061
      %6943 = vmatprep.subr.bf16.mxu0 %v2094
      %6944 = vmatpush1.bf16.msra.mxu0 %v2093
      %6945 = vmatprep.subr.bf16.mxu0 %v2126
      %6946 = vmatpush1.bf16.msra.mxu0 %v2125
      %6947 = vmatprep.subr.bf16.mxu0 %v2158
      %6948 = vmatpush1.bf16.msra.mxu0 %v2157
      %6949 = vmatprep.subr.bf16.mxu0 %v2190
      %6950 = vmatpush1.bf16.msra.mxu0 %v2189
      %6951 = vmatprep.subr.bf16.mxu0 0
      %6952 = vmatpush1.bf16.msra.mxu0 0
      %6953 = vmatprep.subr.bf16.mxu0 0
      %6954 = vmatpush1.bf16.msra.mxu0 0
      %6955 = vmatprep.subr.bf16.mxu0 0
      %6956 = vmatpush1.bf16.msra.mxu0 0
      %6957 = vmatprep.subr.bf16.mxu0 0
      %6958 = vmatpush1.bf16.msra.mxu0 0
      %6959 = vmatprep.subr.bf16.mxu0 0
      %6960 = vmatpush1.bf16.msra.mxu0 0
      %6961 = vmatprep.subr.bf16.mxu0 0
      %6962 = vmatpush1.bf16.msra.mxu0 0
      %6963 = vmatprep.subr.bf16.mxu0 0
      %6964 = vmatpush1.bf16.msra.mxu0 0
      %6965 = vmatprep.subr.bf16.mxu0 0
      %6966 = vmatpush1.bf16.msra.mxu0 0
      %6967 = vmatprep.mubr.bf16.mxu0 0
      %6968 = vmatmul.mubr.bf16.gmra.mrb[0].mxu0 %v5929
      %v6969 = vpop.f32.mrb[0].mxu0
      %v6970 = vadd.f32 0.0, %v6969
      %v6971 = vpop.f32.mrb[0].mxu0
      %v6972 = vadd.f32 0.0, %v6971
      %v6973 = vpop.f32.mrb[0].mxu0
      %v6974 = vadd.f32 0.0, %v6973
      %v6975 = vpop.f32.mrb[0].mxu0
      %v6976 = vadd.f32 0.0, %v6975
      %6977 = vmatprep.mubr.bf16.mxu0 0
      %6978 = vmatmul.mubr.bf16.gmra.mrb[0].mxu0 %v5930
      %v6979 = vpop.f32.mrb[0].mxu0
      %v6980 = vadd.f32 0.0, %v6979
      %v6981 = vpop.f32.mrb[0].mxu0
      %v6982 = vadd.f32 0.0, %v6981
      %v6983 = vpop.f32.mrb[0].mxu0
      %v6984 = vadd.f32 0.0, %v6983
      %v6985 = vpop.f32.mrb[0].mxu0
      %v6986 = vadd.f32 0.0, %v6985
      %6987 = vmatprep.mubr.bf16.mxu0 0
      %6988 = vmatmul.mubr.bf16.gmra.mrb[0].mxu0 %v5931
      %v6989 = vpop.f32.mrb[0].mxu0
      %v6990 = vadd.f32 0.0, %v6989
      %v6991 = vpop.f32.mrb[0].mxu0
      %v6992 = vadd.f32 0.0, %v6991
      %v6993 = vpop.f32.mrb[0].mxu0
      %v6994 = vadd.f32 0.0, %v6993
      %v6995 = vpop.f32.mrb[0].mxu0
      %v6996 = vadd.f32 0.0, %v6995
      %6997 = vmatprep.mubr.bf16.mxu0 0
      %6998 = vmatmul.mubr.bf16.gmra.mrb[0].mxu0 %v5932
      %v6999 = vpop.f32.mrb[0].mxu0
      %v7000 = vadd.f32 0.0, %v6999
      %v7001 = vpop.f32.mrb[0].mxu0
      %v7002 = vadd.f32 0.0, %v7001
      %v7003 = vpop.f32.mrb[0].mxu0
      %v7004 = vadd.f32 0.0, %v7003
      %v7005 = vpop.f32.mrb[0].mxu0
      %v7006 = vadd.f32 0.0, %v7005
      %7007 = vmatprep.mubr.bf16.mxu0 0
      %7008 = vmatmul.mubr.bf16.gmra.mrb[0].mxu0 %v5933
      %v7009 = vpop.f32.mrb[0].mxu0
      %v7010 = vadd.f32 0.0, %v7009
      %v7011 = vpop.f32.mrb[0].mxu0
      %v7012 = vadd.f32 0.0, %v7011
      %v7013 = vpop.f32.mrb[0].mxu0
      %v7014 = vadd.f32 0.0, %v7013
      %v7015 = vpop.f32.mrb[0].mxu0
      %v7016 = vadd.f32 0.0, %v7015
      %7017 = vdwg.mxu0
      %7018 = vmatprep.subr.bf16.mxu0 %v1968
      %7019 = vmatpush1.bf16.msra.mxu0 %v1967
      %7020 = vmatprep.subr.bf16.mxu0 %v2000
      %7021 = vmatpush1.bf16.msra.mxu0 %v1999
      %7022 = vmatprep.subr.bf16.mxu0 %v2032
      %7023 = vmatpush1.bf16.msra.mxu0 %v2031
      %7024 = vmatprep.subr.bf16.mxu0 %v2064
      %7025 = vmatpush1.bf16.msra.mxu0 %v2063
      %7026 = vmatprep.subr.bf16.mxu0 %v2096
      %7027 = vmatpush1.bf16.msra.mxu0 %v2095
      %7028 = vmatprep.subr.bf16.mxu0 %v2128
      %7029 = vmatpush1.bf16.msra.mxu0 %v2127
      %7030 = vmatprep.subr.bf16.mxu0 %v2160
      %7031 = vmatpush1.bf16.msra.mxu0 %v2159
      %7032 = vmatprep.subr.bf16.mxu0 %v2192
      %7033 = vmatpush1.bf16.msra.mxu0 %v2191
      %7034 = vmatprep.subr.bf16.mxu0 0
      %7035 = vmatpush1.bf16.msra.mxu0 0
      %7036 = vmatprep.subr.bf16.mxu0 0
      %7037 = vmatpush1.bf16.msra.mxu0 0
      %7038 = vmatprep.subr.bf16.mxu0 0
      %7039 = vmatpush1.bf16.msra.mxu0 0
      %7040 = vmatprep.subr.bf16.mxu0 0
      %7041 = vmatpush1.bf16.msra.mxu0 0
      %7042 = vmatprep.subr.bf16.mxu0 0
      %7043 = vmatpush1.bf16.msra.mxu0 0
      %7044 = vmatprep.subr.bf16.mxu0 0
      %7045 = vmatpush1.bf16.msra.mxu0 0
      %7046 = vmatprep.subr.bf16.mxu0 0
      %7047 = vmatpush1.bf16.msra.mxu0 0
      %7048 = vmatprep.subr.bf16.mxu0 0
      %7049 = vmatpush1.bf16.msra.mxu0 0
      %7050 = vmatprep.mubr.bf16.mxu0 0
      %7051 = vmatmul.mubr.bf16.gmra.mrb[0].mxu0 %v5929
      %v7052 = vpop.f32.mrb[0].mxu0
      %v7053 = vadd.f32 0.0, %v7052
      %v7054 = vpop.f32.mrb[0].mxu0
      %v7055 = vadd.f32 0.0, %v7054
      %v7056 = vpop.f32.mrb[0].mxu0
      %v7057 = vadd.f32 0.0, %v7056
      %v7058 = vpop.f32.mrb[0].mxu0
      %v7059 = vadd.f32 0.0, %v7058
      %7060 = vmatprep.mubr.bf16.mxu0 0
      %7061 = vmatmul.mubr.bf16.gmra.mrb[0].mxu0 %v5930
      %v7062 = vpop.f32.mrb[0].mxu0
      %v7063 = vadd.f32 0.0, %v7062
      %v7064 = vpop.f32.mrb[0].mxu0
      %v7065 = vadd.f32 0.0, %v7064
      %v7066 = vpop.f32.mrb[0].mxu0
      %v7067 = vadd.f32 0.0, %v7066
      %v7068 = vpop.f32.mrb[0].mxu0
      %v7069 = vadd.f32 0.0, %v7068
      %7070 = vmatprep.mubr.bf16.mxu0 0
      %7071 = vmatmul.mubr.bf16.gmra.mrb[0].mxu0 %v5931
      %v7072 = vpop.f32.mrb[0].mxu0
      %v7073 = vadd.f32 0.0, %v7072
      %v7074 = vpop.f32.mrb[0].mxu0
      %v7075 = vadd.f32 0.0, %v7074
      %v7076 = vpop.f32.mrb[0].mxu0
      %v7077 = vadd.f32 0.0, %v7076
      %v7078 = vpop.f32.mrb[0].mxu0
      %v7079 = vadd.f32 0.0, %v7078
      %7080 = vmatprep.mubr.bf16.mxu0 0
      %7081 = vmatmul.mubr.bf16.gmra.mrb[0].mxu0 %v5932
      %v7082 = vpop.f32.mrb[0].mxu0
      %v7083 = vadd.f32 0.0, %v7082
      %v7084 = vpop.f32.mrb[0].mxu0
      %v7085 = vadd.f32 0.0, %v7084
      %v7086 = vpop.f32.mrb[0].mxu0
      %v7087 = vadd.f32 0.0, %v7086
      %v7088 = vpop.f32.mrb[0].mxu0
      %v7089 = vadd.f32 0.0, %v7088
      %7090 = vmatprep.mubr.bf16.mxu0 0
      %7091 = vmatmul.mubr.bf16.gmra.mrb[0].mxu0 %v5933
      %v7092 = vpop.f32.mrb[0].mxu0
      %v7093 = vadd.f32 0.0, %v7092
      %v7094 = vpop.f32.mrb[0].mxu0
      %v7095 = vadd.f32 0.0, %v7094
      %v7096 = vpop.f32.mrb[0].mxu0
      %v7097 = vadd.f32 0.0, %v7096
      %v7098 = vpop.f32.mrb[0].mxu0
      %v7099 = vadd.f32 0.0, %v7098
      %7100 = vdwg.mxu0
      %7101 = vmatprep.subr.bf16.mxu0 %v1970
      %7102 = vmatpush1.bf16.msra.mxu0 %v1969
      %7103 = vmatprep.subr.bf16.mxu0 %v2002
      %7104 = vmatpush1.bf16.msra.mxu0 %v2001
      %7105 = vmatprep.subr.bf16.mxu0 %v2034
      %7106 = vmatpush1.bf16.msra.mxu0 %v2033
      %7107 = vmatprep.subr.bf16.mxu0 %v2066
      %7108 = vmatpush1.bf16.msra.mxu0 %v2065
      %7109 = vmatprep.subr.bf16.mxu0 %v2098
      %7110 = vmatpush1.bf16.msra.mxu0 %v2097
      %7111 = vmatprep.subr.bf16.mxu0 %v2130
      %7112 = vmatpush1.bf16.msra.mxu0 %v2129
      %7113 = vmatprep.subr.bf16.mxu0 %v2162
      %7114 = vmatpush1.bf16.msra.mxu0 %v2161
      %7115 = vmatprep.subr.bf16.mxu0 %v2194
      %7116 = vmatpush1.bf16.msra.mxu0 %v2193
      %7117 = vmatprep.subr.bf16.mxu0 0
      %7118 = vmatpush1.bf16.msra.mxu0 0
      %7119 = vmatprep.subr.bf16.mxu0 0
      %7120 = vmatpush1.bf16.msra.mxu0 0
      %7121 = vmatprep.subr.bf16.mxu0 0
      %7122 = vmatpush1.bf16.msra.mxu0 0
      %7123 = vmatprep.subr.bf16.mxu0 0
      %7124 = vmatpush1.bf16.msra.mxu0 0
      %7125 = vmatprep.subr.bf16.mxu0 0
      %7126 = vmatpush1.bf16.msra.mxu0 0
      %7127 = vmatprep.subr.bf16.mxu0 0
      %7128 = vmatpush1.bf16.msra.mxu0 0
      %7129 = vmatprep.subr.bf16.mxu0 0
      %7130 = vmatpush1.bf16.msra.mxu0 0
      %7131 = vmatprep.subr.bf16.mxu0 0
      %7132 = vmatpush1.bf16.msra.mxu0 0
      %7133 = vmatprep.mubr.bf16.mxu0 0
      %7134 = vmatmul.mubr.bf16.gmra.mrb[0].mxu0 %v5929
      %v7135 = vpop.f32.mrb[0].mxu0
      %v7136 = vadd.f32 0.0, %v7135
      %v7137 = vpop.f32.mrb[0].mxu0
      %v7138 = vadd.f32 0.0, %v7137
      %v7139 = vpop.f32.mrb[0].mxu0
      %v7140 = vadd.f32 0.0, %v7139
      %v7141 = vpop.f32.mrb[0].mxu0
      %v7142 = vadd.f32 0.0, %v7141
      %7143 = vmatprep.mubr.bf16.mxu0 0
      %7144 = vmatmul.mubr.bf16.gmra.mrb[0].mxu0 %v5930
      %v7145 = vpop.f32.mrb[0].mxu0
      %v7146 = vadd.f32 0.0, %v7145
      %v7147 = vpop.f32.mrb[0].mxu0
      %v7148 = vadd.f32 0.0, %v7147
      %v7149 = vpop.f32.mrb[0].mxu0
      %v7150 = vadd.f32 0.0, %v7149
      %v7151 = vpop.f32.mrb[0].mxu0
      %v7152 = vadd.f32 0.0, %v7151
      %7153 = vmatprep.mubr.bf16.mxu0 0
      %7154 = vmatmul.mubr.bf16.gmra.mrb[0].mxu0 %v5931
      %v7155 = vpop.f32.mrb[0].mxu0
      %v7156 = vadd.f32 0.0, %v7155
      %v7157 = vpop.f32.mrb[0].mxu0
      %v7158 = vadd.f32 0.0, %v7157
      %v7159 = vpop.f32.mrb[0].mxu0
      %v7160 = vadd.f32 0.0, %v7159
      %v7161 = vpop.f32.mrb[0].mxu0
      %v7162 = vadd.f32 0.0, %v7161
      %7163 = vmatprep.mubr.bf16.mxu0 0
      %7164 = vmatmul.mubr.bf16.gmra.mrb[0].mxu0 %v5932
      %v7165 = vpop.f32.mrb[0].mxu0
      %v7166 = vadd.f32 0.0, %v7165
      %v7167 = vpop.f32.mrb[0].mxu0
      %v7168 = vadd.f32 0.0, %v7167
      %v7169 = vpop.f32.mrb[0].mxu0
      %v7170 = vadd.f32 0.0, %v7169
      %v7171 = vpop.f32.mrb[0].mxu0
      %v7172 = vadd.f32 0.0, %v7171
      %7173 = vmatprep.mubr.bf16.mxu0 0
      %7174 = vmatmul.mubr.bf16.gmra.mrb[0].mxu0 %v5933
      %v7175 = vpop.f32.mrb[0].mxu0
      %v7176 = vadd.f32 0.0, %v7175
      %v7177 = vpop.f32.mrb[0].mxu0
      %v7178 = vadd.f32 0.0, %v7177
      %v7179 = vpop.f32.mrb[0].mxu0
      %v7180 = vadd.f32 0.0, %v7179
      %v7181 = vpop.f32.mrb[0].mxu0
      %v7182 = vadd.f32 0.0, %v7181
      %7183 = vdwg.mxu0
      %7184 = vmatprep.subr.bf16.mxu0 %v1972
      %7185 = vmatpush1.bf16.msra.mxu0 %v1971
      %7186 = vmatprep.subr.bf16.mxu0 %v2004
      %7187 = vmatpush1.bf16.msra.mxu0 %v2003
      %7188 = vmatprep.subr.bf16.mxu0 %v2036
      %7189 = vmatpush1.bf16.msra.mxu0 %v2035
      %7190 = vmatprep.subr.bf16.mxu0 %v2068
      %7191 = vmatpush1.bf16.msra.mxu0 %v2067
      %7192 = vmatprep.subr.bf16.mxu0 %v2100
      %7193 = vmatpush1.bf16.msra.mxu0 %v2099
      %7194 = vmatprep.subr.bf16.mxu0 %v2132
      %7195 = vmatpush1.bf16.msra.mxu0 %v2131
      %7196 = vmatprep.subr.bf16.mxu0 %v2164
      %7197 = vmatpush1.bf16.msra.mxu0 %v2163
      %7198 = vmatprep.subr.bf16.mxu0 %v2196
      %7199 = vmatpush1.bf16.msra.mxu0 %v2195
      %7200 = vmatprep.subr.bf16.mxu0 0
      %7201 = vmatpush1.bf16.msra.mxu0 0
      %7202 = vmatprep.subr.bf16.mxu0 0
      %7203 = vmatpush1.bf16.msra.mxu0 0
      %7204 = vmatprep.subr.bf16.mxu0 0
      %7205 = vmatpush1.bf16.msra.mxu0 0
      %7206 = vmatprep.subr.bf16.mxu0 0
      %7207 = vmatpush1.bf16.msra.mxu0 0
      %7208 = vmatprep.subr.bf16.mxu0 0
      %7209 = vmatpush1.bf16.msra.mxu0 0
      %7210 = vmatprep.subr.bf16.mxu0 0
      %7211 = vmatpush1.bf16.msra.mxu0 0
      %7212 = vmatprep.subr.bf16.mxu0 0
      %7213 = vmatpush1.bf16.msra.mxu0 0
      %7214 = vmatprep.subr.bf16.mxu0 0
      %7215 = vmatpush1.bf16.msra.mxu0 0
      %7216 = vmatprep.mubr.bf16.mxu0 0
      %7217 = vmatmul.mubr.bf16.gmra.mrb[0].mxu0 %v5929
      %v7218 = vpop.f32.mrb[0].mxu0
      %v7219 = vadd.f32 0.0, %v7218
      %v7220 = vpop.f32.mrb[0].mxu0
      %v7221 = vadd.f32 0.0, %v7220
      %v7222 = vpop.f32.mrb[0].mxu0
      %v7223 = vadd.f32 0.0, %v7222
      %v7224 = vpop.f32.mrb[0].mxu0
      %v7225 = vadd.f32 0.0, %v7224
      %7226 = vmatprep.mubr.bf16.mxu0 0
      %7227 = vmatmul.mubr.bf16.gmra.mrb[0].mxu0 %v5930
      %v7228 = vpop.f32.mrb[0].mxu0
      %v7229 = vadd.f32 0.0, %v7228
      %v7230 = vpop.f32.mrb[0].mxu0
      %v7231 = vadd.f32 0.0, %v7230
      %v7232 = vpop.f32.mrb[0].mxu0
      %v7233 = vadd.f32 0.0, %v7232
      %v7234 = vpop.f32.mrb[0].mxu0
      %v7235 = vadd.f32 0.0, %v7234
      %7236 = vmatprep.mubr.bf16.mxu0 0
      %7237 = vmatmul.mubr.bf16.gmra.mrb[0].mxu0 %v5931
      %v7238 = vpop.f32.mrb[0].mxu0
      %v7239 = vadd.f32 0.0, %v7238
      %v7240 = vpop.f32.mrb[0].mxu0
      %v7241 = vadd.f32 0.0, %v7240
      %v7242 = vpop.f32.mrb[0].mxu0
      %v7243 = vadd.f32 0.0, %v7242
      %v7244 = vpop.f32.mrb[0].mxu0
      %v7245 = vadd.f32 0.0, %v7244
      %7246 = vmatprep.mubr.bf16.mxu0 0
      %7247 = vmatmul.mubr.bf16.gmra.mrb[0].mxu0 %v5932
      %v7248 = vpop.f32.mrb[0].mxu0
      %v7249 = vadd.f32 0.0, %v7248
      %v7250 = vpop.f32.mrb[0].mxu0
      %v7251 = vadd.f32 0.0, %v7250
      %v7252 = vpop.f32.mrb[0].mxu0
      %v7253 = vadd.f32 0.0, %v7252
      %v7254 = vpop.f32.mrb[0].mxu0
      %v7255 = vadd.f32 0.0, %v7254
      %7256 = vmatprep.mubr.bf16.mxu0 0
      %7257 = vmatmul.mubr.bf16.gmra.mrb[0].mxu0 %v5933
      %v7258 = vpop.f32.mrb[0].mxu0
      %v7259 = vadd.f32 0.0, %v7258
      %v7260 = vpop.f32.mrb[0].mxu0
      %v7261 = vadd.f32 0.0, %v7260
      %v7262 = vpop.f32.mrb[0].mxu0
      %v7263 = vadd.f32 0.0, %v7262
      %v7264 = vpop.f32.mrb[0].mxu0
      %v7265 = vadd.f32 0.0, %v7264
      %7266 = vdwg.mxu0
      %v7277 = vunpack.c.l.b16 %v234
      %v7278 = vunpack.c.h.b16 %v234
      %v7279 = vunpack.c.l.b16 %v235
      %v7280 = vunpack.c.h.b16 %v235
      %v7281 = vunpack.c.l.b16 %v236
      %v7282 = vunpack.c.h.b16 %v236
      %v7283 = vunpack.c.l.b16 %v237
      %v7284 = vunpack.c.h.b16 %v237
      %v7285 = vunpack.c.l.b16 %v238
      %v7286 = vunpack.c.h.b16 %v238
      %v7287 = vunpack.c.l.b16 %v239
      %v7288 = vunpack.c.h.b16 %v239
      %v7289 = vunpack.c.l.b16 %v240
      %v7290 = vunpack.c.h.b16 %v240
      %v7291 = vunpack.c.l.b16 %v241
      %v7292 = vunpack.c.h.b16 %v241
      %v7293 = vunpack.c.l.b16 %v242
      %v7294 = vunpack.c.h.b16 %v242
      %v7295 = vunpack.c.l.b16 %v243
      %v7296 = vunpack.c.h.b16 %v243
      %v7297 = vpack.c.b16 %v7279, %v7277
      %v7298 = vpack.c.b16 %v7280, %v7278
      %v7299 = vpack.c.b16 %v7283, %v7281
      %v7300 = vpack.c.b16 %v7284, %v7282
      %v7301 = vpack.c.b16 %v7287, %v7285
      %v7302 = vpack.c.b16 %v7288, %v7286
      %v7303 = vpack.c.b16 %v7291, %v7289
      %v7304 = vpack.c.b16 %v7292, %v7290
      %v7305 = vpack.c.b16 %v7295, %v7293
      %v7306 = vpack.c.b16 %v7296, %v7294
      %7317 = vmatprep.subr.bf16.mxu0 %v5398
      %7318 = vmatpush1.bf16.msra.mxu0 %v5397
      %7319 = vmatprep.subr.bf16.mxu0 %v5430
      %7320 = vmatpush1.bf16.msra.mxu0 %v5429
      %7321 = vmatprep.subr.bf16.mxu0 %v5462
      %7322 = vmatpush1.bf16.msra.mxu0 %v5461
      %7323 = vmatprep.subr.bf16.mxu0 %v5494
      %7324 = vmatpush1.bf16.msra.mxu0 %v5493
      %7325 = vmatprep.subr.bf16.mxu0 %v5526
      %7326 = vmatpush1.bf16.msra.mxu0 %v5525
      %7327 = vmatprep.subr.bf16.mxu0 %v5558
      %7328 = vmatpush1.bf16.msra.mxu0 %v5557
      %7329 = vmatprep.subr.bf16.mxu0 %v5590
      %7330 = vmatpush1.bf16.msra.mxu0 %v5589
      %7331 = vmatprep.subr.bf16.mxu0 %v5622
      %7332 = vmatpush1.bf16.msra.mxu0 %v5621
      %7333 = vmatprep.subr.bf16.mxu0 %v5654
      %7334 = vmatpush1.bf16.msra.mxu0 %v5653
      %7335 = vmatprep.subr.bf16.mxu0 %v5686
      %7336 = vmatpush1.bf16.msra.mxu0 %v5685
      %7337 = vmatprep.subr.bf16.mxu0 %v5718
      %7338 = vmatpush1.bf16.msra.mxu0 %v5717
      %7339 = vmatprep.subr.bf16.mxu0 %v5750
      %7340 = vmatpush1.bf16.msra.mxu0 %v5749
      %7341 = vmatprep.subr.bf16.mxu0 %v5782
      %7342 = vmatpush1.bf16.msra.mxu0 %v5781
      %7343 = vmatprep.subr.bf16.mxu0 %v5814
      %7344 = vmatpush1.bf16.msra.mxu0 %v5813
      %7345 = vmatprep.subr.bf16.mxu0 %v5846
      %7346 = vmatpush1.bf16.msra.mxu0 %v5845
      %7347 = vmatprep.subr.bf16.mxu0 %v5878
      %7348 = vmatpush1.bf16.msra.mxu0 %v5877
      %7349 = vmatprep.mubr.bf16.mxu0 %v7298
      %7350 = vmatmul.mubr.bf16.gmra.mrb[0].mxu0 %v7297
      %v7351 = vpop.f32.mrb[0].mxu0
      %v7352 = vadd.f32 0.0, %v7351
      %v7353 = vpop.f32.mrb[0].mxu0
      %v7354 = vadd.f32 0.0, %v7353
      %v7355 = vpop.f32.mrb[0].mxu0
      %v7356 = vadd.f32 0.0, %v7355
      %v7357 = vpop.f32.mrb[0].mxu0
      %v7358 = vadd.f32 0.0, %v7357
      %7359 = vmatprep.mubr.bf16.mxu0 %v7300
      %7360 = vmatmul.mubr.bf16.gmra.mrb[0].mxu0 %v7299
      %v7361 = vpop.f32.mrb[0].mxu0
      %v7362 = vadd.f32 0.0, %v7361
      %v7363 = vpop.f32.mrb[0].mxu0
      %v7364 = vadd.f32 0.0, %v7363
      %v7365 = vpop.f32.mrb[0].mxu0
      %v7366 = vadd.f32 0.0, %v7365
      %v7367 = vpop.f32.mrb[0].mxu0
      %v7368 = vadd.f32 0.0, %v7367
      %7369 = vmatprep.mubr.bf16.mxu0 %v7302
      %7370 = vmatmul.mubr.bf16.gmra.mrb[0].mxu0 %v7301
      %v7371 = vpop.f32.mrb[0].mxu0
      %v7372 = vadd.f32 0.0, %v7371
      %v7373 = vpop.f32.mrb[0].mxu0
      %v7374 = vadd.f32 0.0, %v7373
      %v7375 = vpop.f32.mrb[0].mxu0
      %v7376 = vadd.f32 0.0, %v7375
      %v7377 = vpop.f32.mrb[0].mxu0
      %v7378 = vadd.f32 0.0, %v7377
      %7379 = vmatprep.mubr.bf16.mxu0 %v7304
      %7380 = vmatmul.mubr.bf16.gmra.mrb[0].mxu0 %v7303
      %v7381 = vpop.f32.mrb[0].mxu0
      %v7382 = vadd.f32 0.0, %v7381
      %v7383 = vpop.f32.mrb[0].mxu0
      %v7384 = vadd.f32 0.0, %v7383
      %v7385 = vpop.f32.mrb[0].mxu0
      %v7386 = vadd.f32 0.0, %v7385
      %v7387 = vpop.f32.mrb[0].mxu0
      %v7388 = vadd.f32 0.0, %v7387
      %7389 = vmatprep.mubr.bf16.mxu0 %v7306
      %7390 = vmatmul.mubr.bf16.gmra.mrb[0].mxu0 %v7305
      %v7391 = vpop.f32.mrb[0].mxu0
      %v7392 = vadd.f32 0.0, %v7391
      %v7393 = vpop.f32.mrb[0].mxu0
      %v7394 = vadd.f32 0.0, %v7393
      %v7395 = vpop.f32.mrb[0].mxu0
      %v7396 = vadd.f32 0.0, %v7395
      %v7397 = vpop.f32.mrb[0].mxu0
      %v7398 = vadd.f32 0.0, %v7397
      %7399 = vdwg.mxu0
      %7400 = vmatprep.subr.bf16.mxu0 %v5400
      %7401 = vmatpush1.bf16.msra.mxu0 %v5399
      %7402 = vmatprep.subr.bf16.mxu0 %v5432
      %7403 = vmatpush1.bf16.msra.mxu0 %v5431
      %7404 = vmatprep.subr.bf16.mxu0 %v5464
      %7405 = vmatpush1.bf16.msra.mxu0 %v5463
      %7406 = vmatprep.subr.bf16.mxu0 %v5496
      %7407 = vmatpush1.bf16.msra.mxu0 %v5495
      %7408 = vmatprep.subr.bf16.mxu0 %v5528
      %7409 = vmatpush1.bf16.msra.mxu0 %v5527
      %7410 = vmatprep.subr.bf16.mxu0 %v5560
      %7411 = vmatpush1.bf16.msra.mxu0 %v5559
      %7412 = vmatprep.subr.bf16.mxu0 %v5592
      %7413 = vmatpush1.bf16.msra.mxu0 %v5591
      %7414 = vmatprep.subr.bf16.mxu0 %v5624
      %7415 = vmatpush1.bf16.msra.mxu0 %v5623
      %7416 = vmatprep.subr.bf16.mxu0 %v5656
      %7417 = vmatpush1.bf16.msra.mxu0 %v5655
      %7418 = vmatprep.subr.bf16.mxu0 %v5688
      %7419 = vmatpush1.bf16.msra.mxu0 %v5687
      %7420 = vmatprep.subr.bf16.mxu0 %v5720
      %7421 = vmatpush1.bf16.msra.mxu0 %v5719
      %7422 = vmatprep.subr.bf16.mxu0 %v5752
      %7423 = vmatpush1.bf16.msra.mxu0 %v5751
      %7424 = vmatprep.subr.bf16.mxu0 %v5784
      %7425 = vmatpush1.bf16.msra.mxu0 %v5783
      %7426 = vmatprep.subr.bf16.mxu0 %v5816
      %7427 = vmatpush1.bf16.msra.mxu0 %v5815
      %7428 = vmatprep.subr.bf16.mxu0 %v5848
      %7429 = vmatpush1.bf16.msra.mxu0 %v5847
      %7430 = vmatprep.subr.bf16.mxu0 %v5880
      %7431 = vmatpush1.bf16.msra.mxu0 %v5879
      %7432 = vmatprep.mubr.bf16.mxu0 %v7298
      %7433 = vmatmul.mubr.bf16.gmra.mrb[0].mxu0 %v7297
      %v7434 = vpop.f32.mrb[0].mxu0
      %v7435 = vadd.f32 0.0, %v7434
      %v7436 = vpop.f32.mrb[0].mxu0
      %v7437 = vadd.f32 0.0, %v7436
      %v7438 = vpop.f32.mrb[0].mxu0
      %v7439 = vadd.f32 0.0, %v7438
      %v7440 = vpop.f32.mrb[0].mxu0
      %v7441 = vadd.f32 0.0, %v7440
      %7442 = vmatprep.mubr.bf16.mxu0 %v7300
      %7443 = vmatmul.mubr.bf16.gmra.mrb[0].mxu0 %v7299
      %v7444 = vpop.f32.mrb[0].mxu0
      %v7445 = vadd.f32 0.0, %v7444
      %v7446 = vpop.f32.mrb[0].mxu0
      %v7447 = vadd.f32 0.0, %v7446
      %v7448 = vpop.f32.mrb[0].mxu0
      %v7449 = vadd.f32 0.0, %v7448
      %v7450 = vpop.f32.mrb[0].mxu0
      %v7451 = vadd.f32 0.0, %v7450
      %7452 = vmatprep.mubr.bf16.mxu0 %v7302
      %7453 = vmatmul.mubr.bf16.gmra.mrb[0].mxu0 %v7301
      %v7454 = vpop.f32.mrb[0].mxu0
      %v7455 = vadd.f32 0.0, %v7454
      %v7456 = vpop.f32.mrb[0].mxu0
      %v7457 = vadd.f32 0.0, %v7456
      %v7458 = vpop.f32.mrb[0].mxu0
      %v7459 = vadd.f32 0.0, %v7458
      %v7460 = vpop.f32.mrb[0].mxu0
      %v7461 = vadd.f32 0.0, %v7460
      %7462 = vmatprep.mubr.bf16.mxu0 %v7304
      %7463 = vmatmul.mubr.bf16.gmra.mrb[0].mxu0 %v7303
      %v7464 = vpop.f32.mrb[0].mxu0
      %v7465 = vadd.f32 0.0, %v7464
      %v7466 = vpop.f32.mrb[0].mxu0
      %v7467 = vadd.f32 0.0, %v7466
      %v7468 = vpop.f32.mrb[0].mxu0
      %v7469 = vadd.f32 0.0, %v7468
      %v7470 = vpop.f32.mrb[0].mxu0
      %v7471 = vadd.f32 0.0, %v7470
      %7472 = vmatprep.mubr.bf16.mxu0 %v7306
      %7473 = vmatmul.mubr.bf16.gmra.mrb[0].mxu0 %v7305
      %v7474 = vpop.f32.mrb[0].mxu0
      %v7475 = vadd.f32 0.0, %v7474
      %v7476 = vpop.f32.mrb[0].mxu0
      %v7477 = vadd.f32 0.0, %v7476
      %v7478 = vpop.f32.mrb[0].mxu0
      %v7479 = vadd.f32 0.0, %v7478
      %v7480 = vpop.f32.mrb[0].mxu0
      %v7481 = vadd.f32 0.0, %v7480
      %7482 = vdwg.mxu0
      %7483 = vmatprep.subr.bf16.mxu0 %v5402
      %7484 = vmatpush1.bf16.msra.mxu0 %v5401
      %7485 = vmatprep.subr.bf16.mxu0 %v5434
      %7486 = vmatpush1.bf16.msra.mxu0 %v5433
      %7487 = vmatprep.subr.bf16.mxu0 %v5466
      %7488 = vmatpush1.bf16.msra.mxu0 %v5465
      %7489 = vmatprep.subr.bf16.mxu0 %v5498
      %7490 = vmatpush1.bf16.msra.mxu0 %v5497
      %7491 = vmatprep.subr.bf16.mxu0 %v5530
      %7492 = vmatpush1.bf16.msra.mxu0 %v5529
      %7493 = vmatprep.subr.bf16.mxu0 %v5562
      %7494 = vmatpush1.bf16.msra.mxu0 %v5561
      %7495 = vmatprep.subr.bf16.mxu0 %v5594
      %7496 = vmatpush1.bf16.msra.mxu0 %v5593
      %7497 = vmatprep.subr.bf16.mxu0 %v5626
      %7498 = vmatpush1.bf16.msra.mxu0 %v5625
      %7499 = vmatprep.subr.bf16.mxu0 %v5658
      %7500 = vmatpush1.bf16.msra.mxu0 %v5657
      %7501 = vmatprep.subr.bf16.mxu0 %v5690
      %7502 = vmatpush1.bf16.msra.mxu0 %v5689
      %7503 = vmatprep.subr.bf16.mxu0 %v5722
      %7504 = vmatpush1.bf16.msra.mxu0 %v5721
      %7505 = vmatprep.subr.bf16.mxu0 %v5754
      %7506 = vmatpush1.bf16.msra.mxu0 %v5753
      %7507 = vmatprep.subr.bf16.mxu0 %v5786
      %7508 = vmatpush1.bf16.msra.mxu0 %v5785
      %7509 = vmatprep.subr.bf16.mxu0 %v5818
      %7510 = vmatpush1.bf16.msra.mxu0 %v5817
      %7511 = vmatprep.subr.bf16.mxu0 %v5850
      %7512 = vmatpush1.bf16.msra.mxu0 %v5849
      %7513 = vmatprep.subr.bf16.mxu0 %v5882
      %7514 = vmatpush1.bf16.msra.mxu0 %v5881
      %7515 = vmatprep.mubr.bf16.mxu0 %v7298
      %7516 = vmatmul.mubr.bf16.gmra.mrb[0].mxu0 %v7297
      %v7517 = vpop.f32.mrb[0].mxu0
      %v7518 = vadd.f32 0.0, %v7517
      %v7519 = vpop.f32.mrb[0].mxu0
      %v7520 = vadd.f32 0.0, %v7519
      %v7521 = vpop.f32.mrb[0].mxu0
      %v7522 = vadd.f32 0.0, %v7521
      %v7523 = vpop.f32.mrb[0].mxu0
      %v7524 = vadd.f32 0.0, %v7523
      %7525 = vmatprep.mubr.bf16.mxu0 %v7300
      %7526 = vmatmul.mubr.bf16.gmra.mrb[0].mxu0 %v7299
      %v7527 = vpop.f32.mrb[0].mxu0
      %v7528 = vadd.f32 0.0, %v7527
      %v7529 = vpop.f32.mrb[0].mxu0
      %v7530 = vadd.f32 0.0, %v7529
      %v7531 = vpop.f32.mrb[0].mxu0
      %v7532 = vadd.f32 0.0, %v7531
      %v7533 = vpop.f32.mrb[0].mxu0
      %v7534 = vadd.f32 0.0, %v7533
      %7535 = vmatprep.mubr.bf16.mxu0 %v7302
      %7536 = vmatmul.mubr.bf16.gmra.mrb[0].mxu0 %v7301
      %v7537 = vpop.f32.mrb[0].mxu0
      %v7538 = vadd.f32 0.0, %v7537
      %v7539 = vpop.f32.mrb[0].mxu0
      %v7540 = vadd.f32 0.0, %v7539
      %v7541 = vpop.f32.mrb[0].mxu0
      %v7542 = vadd.f32 0.0, %v7541
      %v7543 = vpop.f32.mrb[0].mxu0
      %v7544 = vadd.f32 0.0, %v7543
      %7545 = vmatprep.mubr.bf16.mxu0 %v7304
      %7546 = vmatmul.mubr.bf16.gmra.mrb[0].mxu0 %v7303
      %v7547 = vpop.f32.mrb[0].mxu0
      %v7548 = vadd.f32 0.0, %v7547
      %v7549 = vpop.f32.mrb[0].mxu0
      %v7550 = vadd.f32 0.0, %v7549
      %v7551 = vpop.f32.mrb[0].mxu0
      %v7552 = vadd.f32 0.0, %v7551
      %v7553 = vpop.f32.mrb[0].mxu0
      %v7554 = vadd.f32 0.0, %v7553
      %7555 = vmatprep.mubr.bf16.mxu0 %v7306
      %7556 = vmatmul.mubr.bf16.gmra.mrb[0].mxu0 %v7305
      %v7557 = vpop.f32.mrb[0].mxu0
      %v7558 = vadd.f32 0.0, %v7557
      %v7559 = vpop.f32.mrb[0].mxu0
      %v7560 = vadd.f32 0.0, %v7559
      %v7561 = vpop.f32.mrb[0].mxu0
      %v7562 = vadd.f32 0.0, %v7561
      %v7563 = vpop.f32.mrb[0].mxu0
      %v7564 = vadd.f32 0.0, %v7563
      %7565 = vdwg.mxu0
      %7566 = vmatprep.subr.bf16.mxu0 %v5404
      %7567 = vmatpush1.bf16.msra.mxu0 %v5403
      %7568 = vmatprep.subr.bf16.mxu0 %v5436
      %7569 = vmatpush1.bf16.msra.mxu0 %v5435
      %7570 = vmatprep.subr.bf16.mxu0 %v5468
      %7571 = vmatpush1.bf16.msra.mxu0 %v5467
      %7572 = vmatprep.subr.bf16.mxu0 %v5500
      %7573 = vmatpush1.bf16.msra.mxu0 %v5499
      %7574 = vmatprep.subr.bf16.mxu0 %v5532
      %7575 = vmatpush1.bf16.msra.mxu0 %v5531
      %7576 = vmatprep.subr.bf16.mxu0 %v5564
      %7577 = vmatpush1.bf16.msra.mxu0 %v5563
      %7578 = vmatprep.subr.bf16.mxu0 %v5596
      %7579 = vmatpush1.bf16.msra.mxu0 %v5595
      %7580 = vmatprep.subr.bf16.mxu0 %v5628
      %7581 = vmatpush1.bf16.msra.mxu0 %v5627
      %7582 = vmatprep.subr.bf16.mxu0 %v5660
      %7583 = vmatpush1.bf16.msra.mxu0 %v5659
      %7584 = vmatprep.subr.bf16.mxu0 %v5692
      %7585 = vmatpush1.bf16.msra.mxu0 %v5691
      %7586 = vmatprep.subr.bf16.mxu0 %v5724
      %7587 = vmatpush1.bf16.msra.mxu0 %v5723
      %7588 = vmatprep.subr.bf16.mxu0 %v5756
      %7589 = vmatpush1.bf16.msra.mxu0 %v5755
      %7590 = vmatprep.subr.bf16.mxu0 %v5788
      %7591 = vmatpush1.bf16.msra.mxu0 %v5787
      %7592 = vmatprep.subr.bf16.mxu0 %v5820
      %7593 = vmatpush1.bf16.msra.mxu0 %v5819
      %7594 = vmatprep.subr.bf16.mxu0 %v5852
      %7595 = vmatpush1.bf16.msra.mxu0 %v5851
      %7596 = vmatprep.subr.bf16.mxu0 %v5884
      %7597 = vmatpush1.bf16.msra.mxu0 %v5883
      %7598 = vmatprep.mubr.bf16.mxu0 %v7298
      %7599 = vmatmul.mubr.bf16.gmra.mrb[0].mxu0 %v7297
      %v7600 = vpop.f32.mrb[0].mxu0
      %v7601 = vadd.f32 0.0, %v7600
      %v7602 = vpop.f32.mrb[0].mxu0
      %v7603 = vadd.f32 0.0, %v7602
      %v7604 = vpop.f32.mrb[0].mxu0
      %v7605 = vadd.f32 0.0, %v7604
      %v7606 = vpop.f32.mrb[0].mxu0
      %v7607 = vadd.f32 0.0, %v7606
      %7608 = vmatprep.mubr.bf16.mxu0 %v7300
      %7609 = vmatmul.mubr.bf16.gmra.mrb[0].mxu0 %v7299
      %v7610 = vpop.f32.mrb[0].mxu0
      %v7611 = vadd.f32 0.0, %v7610
      %v7612 = vpop.f32.mrb[0].mxu0
      %v7613 = vadd.f32 0.0, %v7612
      %v7614 = vpop.f32.mrb[0].mxu0
      %v7615 = vadd.f32 0.0, %v7614
      %v7616 = vpop.f32.mrb[0].mxu0
      %v7617 = vadd.f32 0.0, %v7616
      %7618 = vmatprep.mubr.bf16.mxu0 %v7302
      %7619 = vmatmul.mubr.bf16.gmra.mrb[0].mxu0 %v7301
      %v7620 = vpop.f32.mrb[0].mxu0
      %v7621 = vadd.f32 0.0, %v7620
      %v7622 = vpop.f32.mrb[0].mxu0
      %v7623 = vadd.f32 0.0, %v7622
      %v7624 = vpop.f32.mrb[0].mxu0
      %v7625 = vadd.f32 0.0, %v7624
      %v7626 = vpop.f32.mrb[0].mxu0
      %v7627 = vadd.f32 0.0, %v7626
      %7628 = vmatprep.mubr.bf16.mxu0 %v7304
      %7629 = vmatmul.mubr.bf16.gmra.mrb[0].mxu0 %v7303
      %v7630 = vpop.f32.mrb[0].mxu0
      %v7631 = vadd.f32 0.0, %v7630
      %v7632 = vpop.f32.mrb[0].mxu0
      %v7633 = vadd.f32 0.0, %v7632
      %v7634 = vpop.f32.mrb[0].mxu0
      %v7635 = vadd.f32 0.0, %v7634
      %v7636 = vpop.f32.mrb[0].mxu0
      %v7637 = vadd.f32 0.0, %v7636
      %7638 = vmatprep.mubr.bf16.mxu0 %v7306
      %7639 = vmatmul.mubr.bf16.gmra.mrb[0].mxu0 %v7305
      %v7640 = vpop.f32.mrb[0].mxu0
      %v7641 = vadd.f32 0.0, %v7640
      %v7642 = vpop.f32.mrb[0].mxu0
      %v7643 = vadd.f32 0.0, %v7642
      %v7644 = vpop.f32.mrb[0].mxu0
      %v7645 = vadd.f32 0.0, %v7644
      %v7646 = vpop.f32.mrb[0].mxu0
      %v7647 = vadd.f32 0.0, %v7646
      %7648 = vdwg.mxu0
      %7649 = vmatprep.subr.bf16.mxu0 %v5406
      %7650 = vmatpush1.bf16.msra.mxu0 %v5405
      %7651 = vmatprep.subr.bf16.mxu0 %v5438
      %7652 = vmatpush1.bf16.msra.mxu0 %v5437
      %7653 = vmatprep.subr.bf16.mxu0 %v5470
      %7654 = vmatpush1.bf16.msra.mxu0 %v5469
      %7655 = vmatprep.subr.bf16.mxu0 %v5502
      %7656 = vmatpush1.bf16.msra.mxu0 %v5501
      %7657 = vmatprep.subr.bf16.mxu0 %v5534
      %7658 = vmatpush1.bf16.msra.mxu0 %v5533
      %7659 = vmatprep.subr.bf16.mxu0 %v5566
      %7660 = vmatpush1.bf16.msra.mxu0 %v5565
      %7661 = vmatprep.subr.bf16.mxu0 %v5598
      %7662 = vmatpush1.bf16.msra.mxu0 %v5597
      %7663 = vmatprep.subr.bf16.mxu0 %v5630
      %7664 = vmatpush1.bf16.msra.mxu0 %v5629
      %7665 = vmatprep.subr.bf16.mxu0 %v5662
      %7666 = vmatpush1.bf16.msra.mxu0 %v5661
      %7667 = vmatprep.subr.bf16.mxu0 %v5694
      %7668 = vmatpush1.bf16.msra.mxu0 %v5693
      %7669 = vmatprep.subr.bf16.mxu0 %v5726
      %7670 = vmatpush1.bf16.msra.mxu0 %v5725
      %7671 = vmatprep.subr.bf16.mxu0 %v5758
      %7672 = vmatpush1.bf16.msra.mxu0 %v5757
      %7673 = vmatprep.subr.bf16.mxu0 %v5790
      %7674 = vmatpush1.bf16.msra.mxu0 %v5789
      %7675 = vmatprep.subr.bf16.mxu0 %v5822
      %7676 = vmatpush1.bf16.msra.mxu0 %v5821
      %7677 = vmatprep.subr.bf16.mxu0 %v5854
      %7678 = vmatpush1.bf16.msra.mxu0 %v5853
      %7679 = vmatprep.subr.bf16.mxu0 %v5886
      %7680 = vmatpush1.bf16.msra.mxu0 %v5885
      %7681 = vmatprep.mubr.bf16.mxu0 %v7298
      %7682 = vmatmul.mubr.bf16.gmra.mrb[0].mxu0 %v7297
      %v7683 = vpop.f32.mrb[0].mxu0
      %v7684 = vadd.f32 0.0, %v7683
      %v7685 = vpop.f32.mrb[0].mxu0
      %v7686 = vadd.f32 0.0, %v7685
      %v7687 = vpop.f32.mrb[0].mxu0
      %v7688 = vadd.f32 0.0, %v7687
      %v7689 = vpop.f32.mrb[0].mxu0
      %v7690 = vadd.f32 0.0, %v7689
      %7691 = vmatprep.mubr.bf16.mxu0 %v7300
      %7692 = vmatmul.mubr.bf16.gmra.mrb[0].mxu0 %v7299
      %v7693 = vpop.f32.mrb[0].mxu0
      %v7694 = vadd.f32 0.0, %v7693
      %v7695 = vpop.f32.mrb[0].mxu0
      %v7696 = vadd.f32 0.0, %v7695
      %v7697 = vpop.f32.mrb[0].mxu0
      %v7698 = vadd.f32 0.0, %v7697
      %v7699 = vpop.f32.mrb[0].mxu0
      %v7700 = vadd.f32 0.0, %v7699
      %7701 = vmatprep.mubr.bf16.mxu0 %v7302
      %7702 = vmatmul.mubr.bf16.gmra.mrb[0].mxu0 %v7301
      %v7703 = vpop.f32.mrb[0].mxu0
      %v7704 = vadd.f32 0.0, %v7703
      %v7705 = vpop.f32.mrb[0].mxu0
      %v7706 = vadd.f32 0.0, %v7705
      %v7707 = vpop.f32.mrb[0].mxu0
      %v7708 = vadd.f32 0.0, %v7707
      %v7709 = vpop.f32.mrb[0].mxu0
      %v7710 = vadd.f32 0.0, %v7709
      %7711 = vmatprep.mubr.bf16.mxu0 %v7304
      %7712 = vmatmul.mubr.bf16.gmra.mrb[0].mxu0 %v7303
      %v7713 = vpop.f32.mrb[0].mxu0
      %v7714 = vadd.f32 0.0, %v7713
      %v7715 = vpop.f32.mrb[0].mxu0
      %v7716 = vadd.f32 0.0, %v7715
      %v7717 = vpop.f32.mrb[0].mxu0
      %v7718 = vadd.f32 0.0, %v7717
      %v7719 = vpop.f32.mrb[0].mxu0
      %v7720 = vadd.f32 0.0, %v7719
      %7721 = vmatprep.mubr.bf16.mxu0 %v7306
      %7722 = vmatmul.mubr.bf16.gmra.mrb[0].mxu0 %v7305
      %v7723 = vpop.f32.mrb[0].mxu0
      %v7724 = vadd.f32 0.0, %v7723
      %v7725 = vpop.f32.mrb[0].mxu0
      %v7726 = vadd.f32 0.0, %v7725
      %v7727 = vpop.f32.mrb[0].mxu0
      %v7728 = vadd.f32 0.0, %v7727
      %v7729 = vpop.f32.mrb[0].mxu0
      %v7730 = vadd.f32 0.0, %v7729
      %7731 = vdwg.mxu0
      %7732 = vmatprep.subr.bf16.mxu0 %v5408
      %7733 = vmatpush1.bf16.msra.mxu0 %v5407
      %7734 = vmatprep.subr.bf16.mxu0 %v5440
      %7735 = vmatpush1.bf16.msra.mxu0 %v5439
      %7736 = vmatprep.subr.bf16.mxu0 %v5472
      %7737 = vmatpush1.bf16.msra.mxu0 %v5471
      %7738 = vmatprep.subr.bf16.mxu0 %v5504
      %7739 = vmatpush1.bf16.msra.mxu0 %v5503
      %7740 = vmatprep.subr.bf16.mxu0 %v5536
      %7741 = vmatpush1.bf16.msra.mxu0 %v5535
      %7742 = vmatprep.subr.bf16.mxu0 %v5568
      %7743 = vmatpush1.bf16.msra.mxu0 %v5567
      %7744 = vmatprep.subr.bf16.mxu0 %v5600
      %7745 = vmatpush1.bf16.msra.mxu0 %v5599
      %7746 = vmatprep.subr.bf16.mxu0 %v5632
      %7747 = vmatpush1.bf16.msra.mxu0 %v5631
      %7748 = vmatprep.subr.bf16.mxu0 %v5664
      %7749 = vmatpush1.bf16.msra.mxu0 %v5663
      %7750 = vmatprep.subr.bf16.mxu0 %v5696
      %7751 = vmatpush1.bf16.msra.mxu0 %v5695
      %7752 = vmatprep.subr.bf16.mxu0 %v5728
      %7753 = vmatpush1.bf16.msra.mxu0 %v5727
      %7754 = vmatprep.subr.bf16.mxu0 %v5760
      %7755 = vmatpush1.bf16.msra.mxu0 %v5759
      %7756 = vmatprep.subr.bf16.mxu0 %v5792
      %7757 = vmatpush1.bf16.msra.mxu0 %v5791
      %7758 = vmatprep.subr.bf16.mxu0 %v5824
      %7759 = vmatpush1.bf16.msra.mxu0 %v5823
      %7760 = vmatprep.subr.bf16.mxu0 %v5856
      %7761 = vmatpush1.bf16.msra.mxu0 %v5855
      %7762 = vmatprep.subr.bf16.mxu0 %v5888
      %7763 = vmatpush1.bf16.msra.mxu0 %v5887
      %7764 = vmatprep.mubr.bf16.mxu0 %v7298
      %7765 = vmatmul.mubr.bf16.gmra.mrb[0].mxu0 %v7297
      %v7766 = vpop.f32.mrb[0].mxu0
      %v7767 = vadd.f32 0.0, %v7766
      %v7768 = vpop.f32.mrb[0].mxu0
      %v7769 = vadd.f32 0.0, %v7768
      %v7770 = vpop.f32.mrb[0].mxu0
      %v7771 = vadd.f32 0.0, %v7770
      %v7772 = vpop.f32.mrb[0].mxu0
      %v7773 = vadd.f32 0.0, %v7772
      %7774 = vmatprep.mubr.bf16.mxu0 %v7300
      %7775 = vmatmul.mubr.bf16.gmra.mrb[0].mxu0 %v7299
      %v7776 = vpop.f32.mrb[0].mxu0
      %v7777 = vadd.f32 0.0, %v7776
      %v7778 = vpop.f32.mrb[0].mxu0
      %v7779 = vadd.f32 0.0, %v7778
      %v7780 = vpop.f32.mrb[0].mxu0
      %v7781 = vadd.f32 0.0, %v7780
      %v7782 = vpop.f32.mrb[0].mxu0
      %v7783 = vadd.f32 0.0, %v7782
      %7784 = vmatprep.mubr.bf16.mxu0 %v7302
      %7785 = vmatmul.mubr.bf16.gmra.mrb[0].mxu0 %v7301
      %v7786 = vpop.f32.mrb[0].mxu0
      %v7787 = vadd.f32 0.0, %v7786
      %v7788 = vpop.f32.mrb[0].mxu0
      %v7789 = vadd.f32 0.0, %v7788
      %v7790 = vpop.f32.mrb[0].mxu0
      %v7791 = vadd.f32 0.0, %v7790
      %v7792 = vpop.f32.mrb[0].mxu0
      %v7793 = vadd.f32 0.0, %v7792
      %7794 = vmatprep.mubr.bf16.mxu0 %v7304
      %7795 = vmatmul.mubr.bf16.gmra.mrb[0].mxu0 %v7303
      %v7796 = vpop.f32.mrb[0].mxu0
      %v7797 = vadd.f32 0.0, %v7796
      %v7798 = vpop.f32.mrb[0].mxu0
      %v7799 = vadd.f32 0.0, %v7798
      %v7800 = vpop.f32.mrb[0].mxu0
      %v7801 = vadd.f32 0.0, %v7800
      %v7802 = vpop.f32.mrb[0].mxu0
      %v7803 = vadd.f32 0.0, %v7802
      %7804 = vmatprep.mubr.bf16.mxu0 %v7306
      %7805 = vmatmul.mubr.bf16.gmra.mrb[0].mxu0 %v7305
      %v7806 = vpop.f32.mrb[0].mxu0
      %v7807 = vadd.f32 0.0, %v7806
      %v7808 = vpop.f32.mrb[0].mxu0
      %v7809 = vadd.f32 0.0, %v7808
      %v7810 = vpop.f32.mrb[0].mxu0
      %v7811 = vadd.f32 0.0, %v7810
      %v7812 = vpop.f32.mrb[0].mxu0
      %v7813 = vadd.f32 0.0, %v7812
      %7814 = vdwg.mxu0
      %7815 = vmatprep.subr.bf16.mxu0 %v5410
      %7816 = vmatpush1.bf16.msra.mxu0 %v5409
      %7817 = vmatprep.subr.bf16.mxu0 %v5442
      %7818 = vmatpush1.bf16.msra.mxu0 %v5441
      %7819 = vmatprep.subr.bf16.mxu0 %v5474
      %7820 = vmatpush1.bf16.msra.mxu0 %v5473
      %7821 = vmatprep.subr.bf16.mxu0 %v5506
      %7822 = vmatpush1.bf16.msra.mxu0 %v5505
      %7823 = vmatprep.subr.bf16.mxu0 %v5538
      %7824 = vmatpush1.bf16.msra.mxu0 %v5537
      %7825 = vmatprep.subr.bf16.mxu0 %v5570
      %7826 = vmatpush1.bf16.msra.mxu0 %v5569
      %7827 = vmatprep.subr.bf16.mxu0 %v5602
      %7828 = vmatpush1.bf16.msra.mxu0 %v5601
      %7829 = vmatprep.subr.bf16.mxu0 %v5634
      %7830 = vmatpush1.bf16.msra.mxu0 %v5633
      %7831 = vmatprep.subr.bf16.mxu0 %v5666
      %7832 = vmatpush1.bf16.msra.mxu0 %v5665
      %7833 = vmatprep.subr.bf16.mxu0 %v5698
      %7834 = vmatpush1.bf16.msra.mxu0 %v5697
      %7835 = vmatprep.subr.bf16.mxu0 %v5730
      %7836 = vmatpush1.bf16.msra.mxu0 %v5729
      %7837 = vmatprep.subr.bf16.mxu0 %v5762
      %7838 = vmatpush1.bf16.msra.mxu0 %v5761
      %7839 = vmatprep.subr.bf16.mxu0 %v5794
      %7840 = vmatpush1.bf16.msra.mxu0 %v5793
      %7841 = vmatprep.subr.bf16.mxu0 %v5826
      %7842 = vmatpush1.bf16.msra.mxu0 %v5825
      %7843 = vmatprep.subr.bf16.mxu0 %v5858
      %7844 = vmatpush1.bf16.msra.mxu0 %v5857
      %7845 = vmatprep.subr.bf16.mxu0 %v5890
      %7846 = vmatpush1.bf16.msra.mxu0 %v5889
      %7847 = vmatprep.mubr.bf16.mxu0 %v7298
      %7848 = vmatmul.mubr.bf16.gmra.mrb[0].mxu0 %v7297
      %v7849 = vpop.f32.mrb[0].mxu0
      %v7850 = vadd.f32 0.0, %v7849
      %v7851 = vpop.f32.mrb[0].mxu0
      %v7852 = vadd.f32 0.0, %v7851
      %v7853 = vpop.f32.mrb[0].mxu0
      %v7854 = vadd.f32 0.0, %v7853
      %v7855 = vpop.f32.mrb[0].mxu0
      %v7856 = vadd.f32 0.0, %v7855
      %7857 = vmatprep.mubr.bf16.mxu0 %v7300
      %7858 = vmatmul.mubr.bf16.gmra.mrb[0].mxu0 %v7299
      %v7859 = vpop.f32.mrb[0].mxu0
      %v7860 = vadd.f32 0.0, %v7859
      %v7861 = vpop.f32.mrb[0].mxu0
      %v7862 = vadd.f32 0.0, %v7861
      %v7863 = vpop.f32.mrb[0].mxu0
      %v7864 = vadd.f32 0.0, %v7863
      %v7865 = vpop.f32.mrb[0].mxu0
      %v7866 = vadd.f32 0.0, %v7865
      %7867 = vmatprep.mubr.bf16.mxu0 %v7302
      %7868 = vmatmul.mubr.bf16.gmra.mrb[0].mxu0 %v7301
      %v7869 = vpop.f32.mrb[0].mxu0
      %v7870 = vadd.f32 0.0, %v7869
      %v7871 = vpop.f32.mrb[0].mxu0
      %v7872 = vadd.f32 0.0, %v7871
      %v7873 = vpop.f32.mrb[0].mxu0
      %v7874 = vadd.f32 0.0, %v7873
      %v7875 = vpop.f32.mrb[0].mxu0
      %v7876 = vadd.f32 0.0, %v7875
      %7877 = vmatprep.mubr.bf16.mxu0 %v7304
      %7878 = vmatmul.mubr.bf16.gmra.mrb[0].mxu0 %v7303
      %v7879 = vpop.f32.mrb[0].mxu0
      %v7880 = vadd.f32 0.0, %v7879
      %v7881 = vpop.f32.mrb[0].mxu0
      %v7882 = vadd.f32 0.0, %v7881
      %v7883 = vpop.f32.mrb[0].mxu0
      %v7884 = vadd.f32 0.0, %v7883
      %v7885 = vpop.f32.mrb[0].mxu0
      %v7886 = vadd.f32 0.0, %v7885
      %7887 = vmatprep.mubr.bf16.mxu0 %v7306
      %7888 = vmatmul.mubr.bf16.gmra.mrb[0].mxu0 %v7305
      %v7889 = vpop.f32.mrb[0].mxu0
      %v7890 = vadd.f32 0.0, %v7889
      %v7891 = vpop.f32.mrb[0].mxu0
      %v7892 = vadd.f32 0.0, %v7891
      %v7893 = vpop.f32.mrb[0].mxu0
      %v7894 = vadd.f32 0.0, %v7893
      %v7895 = vpop.f32.mrb[0].mxu0
      %v7896 = vadd.f32 0.0, %v7895
      %7897 = vdwg.mxu0
      %7898 = vmatprep.subr.bf16.mxu0 %v5412
      %7899 = vmatpush1.bf16.msra.mxu0 %v5411
      %7900 = vmatprep.subr.bf16.mxu0 %v5444
      %7901 = vmatpush1.bf16.msra.mxu0 %v5443
      %7902 = vmatprep.subr.bf16.mxu0 %v5476
      %7903 = vmatpush1.bf16.msra.mxu0 %v5475
      %7904 = vmatprep.subr.bf16.mxu0 %v5508
      %7905 = vmatpush1.bf16.msra.mxu0 %v5507
      %7906 = vmatprep.subr.bf16.mxu0 %v5540
      %7907 = vmatpush1.bf16.msra.mxu0 %v5539
      %7908 = vmatprep.subr.bf16.mxu0 %v5572
      %7909 = vmatpush1.bf16.msra.mxu0 %v5571
      %7910 = vmatprep.subr.bf16.mxu0 %v5604
      %7911 = vmatpush1.bf16.msra.mxu0 %v5603
      %7912 = vmatprep.subr.bf16.mxu0 %v5636
      %7913 = vmatpush1.bf16.msra.mxu0 %v5635
      %7914 = vmatprep.subr.bf16.mxu0 %v5668
      %7915 = vmatpush1.bf16.msra.mxu0 %v5667
      %7916 = vmatprep.subr.bf16.mxu0 %v5700
      %7917 = vmatpush1.bf16.msra.mxu0 %v5699
      %7918 = vmatprep.subr.bf16.mxu0 %v5732
      %7919 = vmatpush1.bf16.msra.mxu0 %v5731
      %7920 = vmatprep.subr.bf16.mxu0 %v5764
      %7921 = vmatpush1.bf16.msra.mxu0 %v5763
      %7922 = vmatprep.subr.bf16.mxu0 %v5796
      %7923 = vmatpush1.bf16.msra.mxu0 %v5795
      %7924 = vmatprep.subr.bf16.mxu0 %v5828
      %7925 = vmatpush1.bf16.msra.mxu0 %v5827
      %7926 = vmatprep.subr.bf16.mxu0 %v5860
      %7927 = vmatpush1.bf16.msra.mxu0 %v5859
      %7928 = vmatprep.subr.bf16.mxu0 %v5892
      %7929 = vmatpush1.bf16.msra.mxu0 %v5891
      %7930 = vmatprep.mubr.bf16.mxu0 %v7298
      %7931 = vmatmul.mubr.bf16.gmra.mrb[0].mxu0 %v7297
      %v7932 = vpop.f32.mrb[0].mxu0
      %v7933 = vadd.f32 0.0, %v7932
      %v7934 = vpop.f32.mrb[0].mxu0
      %v7935 = vadd.f32 0.0, %v7934
      %v7936 = vpop.f32.mrb[0].mxu0
      %v7937 = vadd.f32 0.0, %v7936
      %v7938 = vpop.f32.mrb[0].mxu0
      %v7939 = vadd.f32 0.0, %v7938
      %7940 = vmatprep.mubr.bf16.mxu0 %v7300
      %7941 = vmatmul.mubr.bf16.gmra.mrb[0].mxu0 %v7299
      %v7942 = vpop.f32.mrb[0].mxu0
      %v7943 = vadd.f32 0.0, %v7942
      %v7944 = vpop.f32.mrb[0].mxu0
      %v7945 = vadd.f32 0.0, %v7944
      %v7946 = vpop.f32.mrb[0].mxu0
      %v7947 = vadd.f32 0.0, %v7946
      %v7948 = vpop.f32.mrb[0].mxu0
      %v7949 = vadd.f32 0.0, %v7948
      %7950 = vmatprep.mubr.bf16.mxu0 %v7302
      %7951 = vmatmul.mubr.bf16.gmra.mrb[0].mxu0 %v7301
      %v7952 = vpop.f32.mrb[0].mxu0
      %v7953 = vadd.f32 0.0, %v7952
      %v7954 = vpop.f32.mrb[0].mxu0
      %v7955 = vadd.f32 0.0, %v7954
      %v7956 = vpop.f32.mrb[0].mxu0
      %v7957 = vadd.f32 0.0, %v7956
      %v7958 = vpop.f32.mrb[0].mxu0
      %v7959 = vadd.f32 0.0, %v7958
      %7960 = vmatprep.mubr.bf16.mxu0 %v7304
      %7961 = vmatmul.mubr.bf16.gmra.mrb[0].mxu0 %v7303
      %v7962 = vpop.f32.mrb[0].mxu0
      %v7963 = vadd.f32 0.0, %v7962
      %v7964 = vpop.f32.mrb[0].mxu0
      %v7965 = vadd.f32 0.0, %v7964
      %v7966 = vpop.f32.mrb[0].mxu0
      %v7967 = vadd.f32 0.0, %v7966
      %v7968 = vpop.f32.mrb[0].mxu0
      %v7969 = vadd.f32 0.0, %v7968
      %7970 = vmatprep.mubr.bf16.mxu0 %v7306
      %7971 = vmatmul.mubr.bf16.gmra.mrb[0].mxu0 %v7305
      %v7972 = vpop.f32.mrb[0].mxu0
      %v7973 = vadd.f32 0.0, %v7972
      %v7974 = vpop.f32.mrb[0].mxu0
      %v7975 = vadd.f32 0.0, %v7974
      %v7976 = vpop.f32.mrb[0].mxu0
      %v7977 = vadd.f32 0.0, %v7976
      %v7978 = vpop.f32.mrb[0].mxu0
      %v7979 = vadd.f32 0.0, %v7978
      %7980 = vdwg.mxu0
      %7981 = vmatprep.subr.bf16.mxu0 %v5414
      %7982 = vmatpush1.bf16.msra.mxu0 %v5413
      %7983 = vmatprep.subr.bf16.mxu0 %v5446
      %7984 = vmatpush1.bf16.msra.mxu0 %v5445
      %7985 = vmatprep.subr.bf16.mxu0 %v5478
      %7986 = vmatpush1.bf16.msra.mxu0 %v5477
      %7987 = vmatprep.subr.bf16.mxu0 %v5510
      %7988 = vmatpush1.bf16.msra.mxu0 %v5509
      %7989 = vmatprep.subr.bf16.mxu0 %v5542
      %7990 = vmatpush1.bf16.msra.mxu0 %v5541
      %7991 = vmatprep.subr.bf16.mxu0 %v5574
      %7992 = vmatpush1.bf16.msra.mxu0 %v5573
      %7993 = vmatprep.subr.bf16.mxu0 %v5606
      %7994 = vmatpush1.bf16.msra.mxu0 %v5605
      %7995 = vmatprep.subr.bf16.mxu0 %v5638
      %7996 = vmatpush1.bf16.msra.mxu0 %v5637
      %7997 = vmatprep.subr.bf16.mxu0 %v5670
      %7998 = vmatpush1.bf16.msra.mxu0 %v5669
      %7999 = vmatprep.subr.bf16.mxu0 %v5702
      %8000 = vmatpush1.bf16.msra.mxu0 %v5701
      %8001 = vmatprep.subr.bf16.mxu0 %v5734
      %8002 = vmatpush1.bf16.msra.mxu0 %v5733
      %8003 = vmatprep.subr.bf16.mxu0 %v5766
      %8004 = vmatpush1.bf16.msra.mxu0 %v5765
      %8005 = vmatprep.subr.bf16.mxu0 %v5798
      %8006 = vmatpush1.bf16.msra.mxu0 %v5797
      %8007 = vmatprep.subr.bf16.mxu0 %v5830
      %8008 = vmatpush1.bf16.msra.mxu0 %v5829
      %8009 = vmatprep.subr.bf16.mxu0 %v5862
      %8010 = vmatpush1.bf16.msra.mxu0 %v5861
      %8011 = vmatprep.subr.bf16.mxu0 %v5894
      %8012 = vmatpush1.bf16.msra.mxu0 %v5893
      %8013 = vmatprep.mubr.bf16.mxu0 %v7298
      %8014 = vmatmul.mubr.bf16.gmra.mrb[0].mxu0 %v7297
      %v8015 = vpop.f32.mrb[0].mxu0
      %v8016 = vadd.f32 0.0, %v8015
      %v8017 = vpop.f32.mrb[0].mxu0
      %v8018 = vadd.f32 0.0, %v8017
      %v8019 = vpop.f32.mrb[0].mxu0
      %v8020 = vadd.f32 0.0, %v8019
      %v8021 = vpop.f32.mrb[0].mxu0
      %v8022 = vadd.f32 0.0, %v8021
      %8023 = vmatprep.mubr.bf16.mxu0 %v7300
      %8024 = vmatmul.mubr.bf16.gmra.mrb[0].mxu0 %v7299
      %v8025 = vpop.f32.mrb[0].mxu0
      %v8026 = vadd.f32 0.0, %v8025
      %v8027 = vpop.f32.mrb[0].mxu0
      %v8028 = vadd.f32 0.0, %v8027
      %v8029 = vpop.f32.mrb[0].mxu0
      %v8030 = vadd.f32 0.0, %v8029
      %v8031 = vpop.f32.mrb[0].mxu0
      %v8032 = vadd.f32 0.0, %v8031
      %8033 = vmatprep.mubr.bf16.mxu0 %v7302
      %8034 = vmatmul.mubr.bf16.gmra.mrb[0].mxu0 %v7301
      %v8035 = vpop.f32.mrb[0].mxu0
      %v8036 = vadd.f32 0.0, %v8035
      %v8037 = vpop.f32.mrb[0].mxu0
      %v8038 = vadd.f32 0.0, %v8037
      %v8039 = vpop.f32.mrb[0].mxu0
      %v8040 = vadd.f32 0.0, %v8039
      %v8041 = vpop.f32.mrb[0].mxu0
      %v8042 = vadd.f32 0.0, %v8041
      %8043 = vmatprep.mubr.bf16.mxu0 %v7304
      %8044 = vmatmul.mubr.bf16.gmra.mrb[0].mxu0 %v7303
      %v8045 = vpop.f32.mrb[0].mxu0
      %v8046 = vadd.f32 0.0, %v8045
      %v8047 = vpop.f32.mrb[0].mxu0
      %v8048 = vadd.f32 0.0, %v8047
      %v8049 = vpop.f32.mrb[0].mxu0
      %v8050 = vadd.f32 0.0, %v8049
      %v8051 = vpop.f32.mrb[0].mxu0
      %v8052 = vadd.f32 0.0, %v8051
      %8053 = vmatprep.mubr.bf16.mxu0 %v7306
      %8054 = vmatmul.mubr.bf16.gmra.mrb[0].mxu0 %v7305
      %v8055 = vpop.f32.mrb[0].mxu0
      %v8056 = vadd.f32 0.0, %v8055
      %v8057 = vpop.f32.mrb[0].mxu0
      %v8058 = vadd.f32 0.0, %v8057
      %v8059 = vpop.f32.mrb[0].mxu0
      %v8060 = vadd.f32 0.0, %v8059
      %v8061 = vpop.f32.mrb[0].mxu0
      %v8062 = vadd.f32 0.0, %v8061
      %8063 = vdwg.mxu0
      %8064 = vmatprep.subr.bf16.mxu0 %v5416
      %8065 = vmatpush1.bf16.msra.mxu0 %v5415
      %8066 = vmatprep.subr.bf16.mxu0 %v5448
      %8067 = vmatpush1.bf16.msra.mxu0 %v5447
      %8068 = vmatprep.subr.bf16.mxu0 %v5480
      %8069 = vmatpush1.bf16.msra.mxu0 %v5479
      %8070 = vmatprep.subr.bf16.mxu0 %v5512
      %8071 = vmatpush1.bf16.msra.mxu0 %v5511
      %8072 = vmatprep.subr.bf16.mxu0 %v5544
      %8073 = vmatpush1.bf16.msra.mxu0 %v5543
      %8074 = vmatprep.subr.bf16.mxu0 %v5576
      %8075 = vmatpush1.bf16.msra.mxu0 %v5575
      %8076 = vmatprep.subr.bf16.mxu0 %v5608
      %8077 = vmatpush1.bf16.msra.mxu0 %v5607
      %8078 = vmatprep.subr.bf16.mxu0 %v5640
      %8079 = vmatpush1.bf16.msra.mxu0 %v5639
      %8080 = vmatprep.subr.bf16.mxu0 %v5672
      %8081 = vmatpush1.bf16.msra.mxu0 %v5671
      %8082 = vmatprep.subr.bf16.mxu0 %v5704
      %8083 = vmatpush1.bf16.msra.mxu0 %v5703
      %8084 = vmatprep.subr.bf16.mxu0 %v5736
      %8085 = vmatpush1.bf16.msra.mxu0 %v5735
      %8086 = vmatprep.subr.bf16.mxu0 %v5768
      %8087 = vmatpush1.bf16.msra.mxu0 %v5767
      %8088 = vmatprep.subr.bf16.mxu0 %v5800
      %8089 = vmatpush1.bf16.msra.mxu0 %v5799
      %8090 = vmatprep.subr.bf16.mxu0 %v5832
      %8091 = vmatpush1.bf16.msra.mxu0 %v5831
      %8092 = vmatprep.subr.bf16.mxu0 %v5864
      %8093 = vmatpush1.bf16.msra.mxu0 %v5863
      %8094 = vmatprep.subr.bf16.mxu0 %v5896
      %8095 = vmatpush1.bf16.msra.mxu0 %v5895
      %8096 = vmatprep.mubr.bf16.mxu0 %v7298
      %8097 = vmatmul.mubr.bf16.gmra.mrb[0].mxu0 %v7297
      %v8098 = vpop.f32.mrb[0].mxu0
      %v8099 = vadd.f32 0.0, %v8098
      %v8100 = vpop.f32.mrb[0].mxu0
      %v8101 = vadd.f32 0.0, %v8100
      %v8102 = vpop.f32.mrb[0].mxu0
      %v8103 = vadd.f32 0.0, %v8102
      %v8104 = vpop.f32.mrb[0].mxu0
      %v8105 = vadd.f32 0.0, %v8104
      %8106 = vmatprep.mubr.bf16.mxu0 %v7300
      %8107 = vmatmul.mubr.bf16.gmra.mrb[0].mxu0 %v7299
      %v8108 = vpop.f32.mrb[0].mxu0
      %v8109 = vadd.f32 0.0, %v8108
      %v8110 = vpop.f32.mrb[0].mxu0
      %v8111 = vadd.f32 0.0, %v8110
      %v8112 = vpop.f32.mrb[0].mxu0
      %v8113 = vadd.f32 0.0, %v8112
      %v8114 = vpop.f32.mrb[0].mxu0
      %v8115 = vadd.f32 0.0, %v8114
      %8116 = vmatprep.mubr.bf16.mxu0 %v7302
      %8117 = vmatmul.mubr.bf16.gmra.mrb[0].mxu0 %v7301
      %v8118 = vpop.f32.mrb[0].mxu0
      %v8119 = vadd.f32 0.0, %v8118
      %v8120 = vpop.f32.mrb[0].mxu0
      %v8121 = vadd.f32 0.0, %v8120
      %v8122 = vpop.f32.mrb[0].mxu0
      %v8123 = vadd.f32 0.0, %v8122
      %v8124 = vpop.f32.mrb[0].mxu0
      %v8125 = vadd.f32 0.0, %v8124
      %8126 = vmatprep.mubr.bf16.mxu0 %v7304
      %8127 = vmatmul.mubr.bf16.gmra.mrb[0].mxu0 %v7303
      %v8128 = vpop.f32.mrb[0].mxu0
      %v8129 = vadd.f32 0.0, %v8128
      %v8130 = vpop.f32.mrb[0].mxu0
      %v8131 = vadd.f32 0.0, %v8130
      %v8132 = vpop.f32.mrb[0].mxu0
      %v8133 = vadd.f32 0.0, %v8132
      %v8134 = vpop.f32.mrb[0].mxu0
      %v8135 = vadd.f32 0.0, %v8134
      %8136 = vmatprep.mubr.bf16.mxu0 %v7306
      %8137 = vmatmul.mubr.bf16.gmra.mrb[0].mxu0 %v7305
      %v8138 = vpop.f32.mrb[0].mxu0
      %v8139 = vadd.f32 0.0, %v8138
      %v8140 = vpop.f32.mrb[0].mxu0
      %v8141 = vadd.f32 0.0, %v8140
      %v8142 = vpop.f32.mrb[0].mxu0
      %v8143 = vadd.f32 0.0, %v8142
      %v8144 = vpop.f32.mrb[0].mxu0
      %v8145 = vadd.f32 0.0, %v8144
      %8146 = vdwg.mxu0
      %8147 = vmatprep.subr.bf16.mxu0 %v5418
      %8148 = vmatpush1.bf16.msra.mxu0 %v5417
      %8149 = vmatprep.subr.bf16.mxu0 %v5450
      %8150 = vmatpush1.bf16.msra.mxu0 %v5449
      %8151 = vmatprep.subr.bf16.mxu0 %v5482
      %8152 = vmatpush1.bf16.msra.mxu0 %v5481
      %8153 = vmatprep.subr.bf16.mxu0 %v5514
      %8154 = vmatpush1.bf16.msra.mxu0 %v5513
      %8155 = vmatprep.subr.bf16.mxu0 %v5546
      %8156 = vmatpush1.bf16.msra.mxu0 %v5545
      %8157 = vmatprep.subr.bf16.mxu0 %v5578
      %8158 = vmatpush1.bf16.msra.mxu0 %v5577
      %8159 = vmatprep.subr.bf16.mxu0 %v5610
      %8160 = vmatpush1.bf16.msra.mxu0 %v5609
      %8161 = vmatprep.subr.bf16.mxu0 %v5642
      %8162 = vmatpush1.bf16.msra.mxu0 %v5641
      %8163 = vmatprep.subr.bf16.mxu0 %v5674
      %8164 = vmatpush1.bf16.msra.mxu0 %v5673
      %8165 = vmatprep.subr.bf16.mxu0 %v5706
      %8166 = vmatpush1.bf16.msra.mxu0 %v5705
      %8167 = vmatprep.subr.bf16.mxu0 %v5738
      %8168 = vmatpush1.bf16.msra.mxu0 %v5737
      %8169 = vmatprep.subr.bf16.mxu0 %v5770
      %8170 = vmatpush1.bf16.msra.mxu0 %v5769
      %8171 = vmatprep.subr.bf16.mxu0 %v5802
      %8172 = vmatpush1.bf16.msra.mxu0 %v5801
      %8173 = vmatprep.subr.bf16.mxu0 %v5834
      %8174 = vmatpush1.bf16.msra.mxu0 %v5833
      %8175 = vmatprep.subr.bf16.mxu0 %v5866
      %8176 = vmatpush1.bf16.msra.mxu0 %v5865
      %8177 = vmatprep.subr.bf16.mxu0 %v5898
      %8178 = vmatpush1.bf16.msra.mxu0 %v5897
      %8179 = vmatprep.mubr.bf16.mxu0 %v7298
      %8180 = vmatmul.mubr.bf16.gmra.mrb[0].mxu0 %v7297
      %v8181 = vpop.f32.mrb[0].mxu0
      %v8182 = vadd.f32 0.0, %v8181
      %v8183 = vpop.f32.mrb[0].mxu0
      %v8184 = vadd.f32 0.0, %v8183
      %v8185 = vpop.f32.mrb[0].mxu0
      %v8186 = vadd.f32 0.0, %v8185
      %v8187 = vpop.f32.mrb[0].mxu0
      %v8188 = vadd.f32 0.0, %v8187
      %8189 = vmatprep.mubr.bf16.mxu0 %v7300
      %8190 = vmatmul.mubr.bf16.gmra.mrb[0].mxu0 %v7299
      %v8191 = vpop.f32.mrb[0].mxu0
      %v8192 = vadd.f32 0.0, %v8191
      %v8193 = vpop.f32.mrb[0].mxu0
      %v8194 = vadd.f32 0.0, %v8193
      %v8195 = vpop.f32.mrb[0].mxu0
      %v8196 = vadd.f32 0.0, %v8195
      %v8197 = vpop.f32.mrb[0].mxu0
      %v8198 = vadd.f32 0.0, %v8197
      %8199 = vmatprep.mubr.bf16.mxu0 %v7302
      %8200 = vmatmul.mubr.bf16.gmra.mrb[0].mxu0 %v7301
      %v8201 = vpop.f32.mrb[0].mxu0
      %v8202 = vadd.f32 0.0, %v8201
      %v8203 = vpop.f32.mrb[0].mxu0
      %v8204 = vadd.f32 0.0, %v8203
      %v8205 = vpop.f32.mrb[0].mxu0
      %v8206 = vadd.f32 0.0, %v8205
      %v8207 = vpop.f32.mrb[0].mxu0
      %v8208 = vadd.f32 0.0, %v8207
      %8209 = vmatprep.mubr.bf16.mxu0 %v7304
      %8210 = vmatmul.mubr.bf16.gmra.mrb[0].mxu0 %v7303
      %v8211 = vpop.f32.mrb[0].mxu0
      %v8212 = vadd.f32 0.0, %v8211
      %v8213 = vpop.f32.mrb[0].mxu0
      %v8214 = vadd.f32 0.0, %v8213
      %v8215 = vpop.f32.mrb[0].mxu0
      %v8216 = vadd.f32 0.0, %v8215
      %v8217 = vpop.f32.mrb[0].mxu0
      %v8218 = vadd.f32 0.0, %v8217
      %8219 = vmatprep.mubr.bf16.mxu0 %v7306
      %8220 = vmatmul.mubr.bf16.gmra.mrb[0].mxu0 %v7305
      %v8221 = vpop.f32.mrb[0].mxu0
      %v8222 = vadd.f32 0.0, %v8221
      %v8223 = vpop.f32.mrb[0].mxu0
      %v8224 = vadd.f32 0.0, %v8223
      %v8225 = vpop.f32.mrb[0].mxu0
      %v8226 = vadd.f32 0.0, %v8225
      %v8227 = vpop.f32.mrb[0].mxu0
      %v8228 = vadd.f32 0.0, %v8227
      %8229 = vdwg.mxu0
      %8230 = vmatprep.subr.bf16.mxu0 %v5420
      %8231 = vmatpush1.bf16.msra.mxu0 %v5419
      %8232 = vmatprep.subr.bf16.mxu0 %v5452
      %8233 = vmatpush1.bf16.msra.mxu0 %v5451
      %8234 = vmatprep.subr.bf16.mxu0 %v5484
      %8235 = vmatpush1.bf16.msra.mxu0 %v5483
      %8236 = vmatprep.subr.bf16.mxu0 %v5516
      %8237 = vmatpush1.bf16.msra.mxu0 %v5515
      %8238 = vmatprep.subr.bf16.mxu0 %v5548
      %8239 = vmatpush1.bf16.msra.mxu0 %v5547
      %8240 = vmatprep.subr.bf16.mxu0 %v5580
      %8241 = vmatpush1.bf16.msra.mxu0 %v5579
      %8242 = vmatprep.subr.bf16.mxu0 %v5612
      %8243 = vmatpush1.bf16.msra.mxu0 %v5611
      %8244 = vmatprep.subr.bf16.mxu0 %v5644
      %8245 = vmatpush1.bf16.msra.mxu0 %v5643
      %8246 = vmatprep.subr.bf16.mxu0 %v5676
      %8247 = vmatpush1.bf16.msra.mxu0 %v5675
      %8248 = vmatprep.subr.bf16.mxu0 %v5708
      %8249 = vmatpush1.bf16.msra.mxu0 %v5707
      %8250 = vmatprep.subr.bf16.mxu0 %v5740
      %8251 = vmatpush1.bf16.msra.mxu0 %v5739
      %8252 = vmatprep.subr.bf16.mxu0 %v5772
      %8253 = vmatpush1.bf16.msra.mxu0 %v5771
      %8254 = vmatprep.subr.bf16.mxu0 %v5804
      %8255 = vmatpush1.bf16.msra.mxu0 %v5803
      %8256 = vmatprep.subr.bf16.mxu0 %v5836
      %8257 = vmatpush1.bf16.msra.mxu0 %v5835
      %8258 = vmatprep.subr.bf16.mxu0 %v5868
      %8259 = vmatpush1.bf16.msra.mxu0 %v5867
      %8260 = vmatprep.subr.bf16.mxu0 %v5900
      %8261 = vmatpush1.bf16.msra.mxu0 %v5899
      %8262 = vmatprep.mubr.bf16.mxu0 %v7298
      %8263 = vmatmul.mubr.bf16.gmra.mrb[0].mxu0 %v7297
      %v8264 = vpop.f32.mrb[0].mxu0
      %v8265 = vadd.f32 0.0, %v8264
      %v8266 = vpop.f32.mrb[0].mxu0
      %v8267 = vadd.f32 0.0, %v8266
      %v8268 = vpop.f32.mrb[0].mxu0
      %v8269 = vadd.f32 0.0, %v8268
      %v8270 = vpop.f32.mrb[0].mxu0
      %v8271 = vadd.f32 0.0, %v8270
      %8272 = vmatprep.mubr.bf16.mxu0 %v7300
      %8273 = vmatmul.mubr.bf16.gmra.mrb[0].mxu0 %v7299
      %v8274 = vpop.f32.mrb[0].mxu0
      %v8275 = vadd.f32 0.0, %v8274
      %v8276 = vpop.f32.mrb[0].mxu0
      %v8277 = vadd.f32 0.0, %v8276
      %v8278 = vpop.f32.mrb[0].mxu0
      %v8279 = vadd.f32 0.0, %v8278
      %v8280 = vpop.f32.mrb[0].mxu0
      %v8281 = vadd.f32 0.0, %v8280
      %8282 = vmatprep.mubr.bf16.mxu0 %v7302
      %8283 = vmatmul.mubr.bf16.gmra.mrb[0].mxu0 %v7301
      %v8284 = vpop.f32.mrb[0].mxu0
      %v8285 = vadd.f32 0.0, %v8284
      %v8286 = vpop.f32.mrb[0].mxu0
      %v8287 = vadd.f32 0.0, %v8286
      %v8288 = vpop.f32.mrb[0].mxu0
      %v8289 = vadd.f32 0.0, %v8288
      %v8290 = vpop.f32.mrb[0].mxu0
      %v8291 = vadd.f32 0.0, %v8290
      %8292 = vmatprep.mubr.bf16.mxu0 %v7304
      %8293 = vmatmul.mubr.bf16.gmra.mrb[0].mxu0 %v7303
      %v8294 = vpop.f32.mrb[0].mxu0
      %v8295 = vadd.f32 0.0, %v8294
      %v8296 = vpop.f32.mrb[0].mxu0
      %v8297 = vadd.f32 0.0, %v8296
      %v8298 = vpop.f32.mrb[0].mxu0
      %v8299 = vadd.f32 0.0, %v8298
      %v8300 = vpop.f32.mrb[0].mxu0
      %v8301 = vadd.f32 0.0, %v8300
      %8302 = vmatprep.mubr.bf16.mxu0 %v7306
      %8303 = vmatmul.mubr.bf16.gmra.mrb[0].mxu0 %v7305
      %v8304 = vpop.f32.mrb[0].mxu0
      %v8305 = vadd.f32 0.0, %v8304
      %v8306 = vpop.f32.mrb[0].mxu0
      %v8307 = vadd.f32 0.0, %v8306
      %v8308 = vpop.f32.mrb[0].mxu0
      %v8309 = vadd.f32 0.0, %v8308
      %v8310 = vpop.f32.mrb[0].mxu0
      %v8311 = vadd.f32 0.0, %v8310
      %8312 = vdwg.mxu0
      %8313 = vmatprep.subr.bf16.mxu0 %v5422
      %8314 = vmatpush1.bf16.msra.mxu0 %v5421
      %8315 = vmatprep.subr.bf16.mxu0 %v5454
      %8316 = vmatpush1.bf16.msra.mxu0 %v5453
      %8317 = vmatprep.subr.bf16.mxu0 %v5486
      %8318 = vmatpush1.bf16.msra.mxu0 %v5485
      %8319 = vmatprep.subr.bf16.mxu0 %v5518
      %8320 = vmatpush1.bf16.msra.mxu0 %v5517
      %8321 = vmatprep.subr.bf16.mxu0 %v5550
      %8322 = vmatpush1.bf16.msra.mxu0 %v5549
      %8323 = vmatprep.subr.bf16.mxu0 %v5582
      %8324 = vmatpush1.bf16.msra.mxu0 %v5581
      %8325 = vmatprep.subr.bf16.mxu0 %v5614
      %8326 = vmatpush1.bf16.msra.mxu0 %v5613
      %8327 = vmatprep.subr.bf16.mxu0 %v5646
      %8328 = vmatpush1.bf16.msra.mxu0 %v5645
      %8329 = vmatprep.subr.bf16.mxu0 %v5678
      %8330 = vmatpush1.bf16.msra.mxu0 %v5677
      %8331 = vmatprep.subr.bf16.mxu0 %v5710
      %8332 = vmatpush1.bf16.msra.mxu0 %v5709
      %8333 = vmatprep.subr.bf16.mxu0 %v5742
      %8334 = vmatpush1.bf16.msra.mxu0 %v5741
      %8335 = vmatprep.subr.bf16.mxu0 %v5774
      %8336 = vmatpush1.bf16.msra.mxu0 %v5773
      %8337 = vmatprep.subr.bf16.mxu0 %v5806
      %8338 = vmatpush1.bf16.msra.mxu0 %v5805
      %8339 = vmatprep.subr.bf16.mxu0 %v5838
      %8340 = vmatpush1.bf16.msra.mxu0 %v5837
      %8341 = vmatprep.subr.bf16.mxu0 %v5870
      %8342 = vmatpush1.bf16.msra.mxu0 %v5869
      %8343 = vmatprep.subr.bf16.mxu0 %v5902
      %8344 = vmatpush1.bf16.msra.mxu0 %v5901
      %8345 = vmatprep.mubr.bf16.mxu0 %v7298
      %8346 = vmatmul.mubr.bf16.gmra.mrb[0].mxu0 %v7297
      %v8347 = vpop.f32.mrb[0].mxu0
      %v8348 = vadd.f32 0.0, %v8347
      %v8349 = vpop.f32.mrb[0].mxu0
      %v8350 = vadd.f32 0.0, %v8349
      %v8351 = vpop.f32.mrb[0].mxu0
      %v8352 = vadd.f32 0.0, %v8351
      %v8353 = vpop.f32.mrb[0].mxu0
      %v8354 = vadd.f32 0.0, %v8353
      %8355 = vmatprep.mubr.bf16.mxu0 %v7300
      %8356 = vmatmul.mubr.bf16.gmra.mrb[0].mxu0 %v7299
      %v8357 = vpop.f32.mrb[0].mxu0
      %v8358 = vadd.f32 0.0, %v8357
      %v8359 = vpop.f32.mrb[0].mxu0
      %v8360 = vadd.f32 0.0, %v8359
      %v8361 = vpop.f32.mrb[0].mxu0
      %v8362 = vadd.f32 0.0, %v8361
      %v8363 = vpop.f32.mrb[0].mxu0
      %v8364 = vadd.f32 0.0, %v8363
      %8365 = vmatprep.mubr.bf16.mxu0 %v7302
      %8366 = vmatmul.mubr.bf16.gmra.mrb[0].mxu0 %v7301
      %v8367 = vpop.f32.mrb[0].mxu0
      %v8368 = vadd.f32 0.0, %v8367
      %v8369 = vpop.f32.mrb[0].mxu0
      %v8370 = vadd.f32 0.0, %v8369
      %v8371 = vpop.f32.mrb[0].mxu0
      %v8372 = vadd.f32 0.0, %v8371
      %v8373 = vpop.f32.mrb[0].mxu0
      %v8374 = vadd.f32 0.0, %v8373
      %8375 = vmatprep.mubr.bf16.mxu0 %v7304
      %8376 = vmatmul.mubr.bf16.gmra.mrb[0].mxu0 %v7303
      %v8377 = vpop.f32.mrb[0].mxu0
      %v8378 = vadd.f32 0.0, %v8377
      %v8379 = vpop.f32.mrb[0].mxu0
      %v8380 = vadd.f32 0.0, %v8379
      %v8381 = vpop.f32.mrb[0].mxu0
      %v8382 = vadd.f32 0.0, %v8381
      %v8383 = vpop.f32.mrb[0].mxu0
      %v8384 = vadd.f32 0.0, %v8383
      %8385 = vmatprep.mubr.bf16.mxu0 %v7306
      %8386 = vmatmul.mubr.bf16.gmra.mrb[0].mxu0 %v7305
      %v8387 = vpop.f32.mrb[0].mxu0
      %v8388 = vadd.f32 0.0, %v8387
      %v8389 = vpop.f32.mrb[0].mxu0
      %v8390 = vadd.f32 0.0, %v8389
      %v8391 = vpop.f32.mrb[0].mxu0
      %v8392 = vadd.f32 0.0, %v8391
      %v8393 = vpop.f32.mrb[0].mxu0
      %v8394 = vadd.f32 0.0, %v8393
      %8395 = vdwg.mxu0
      %8396 = vmatprep.subr.bf16.mxu0 %v5424
      %8397 = vmatpush1.bf16.msra.mxu0 %v5423
      %8398 = vmatprep.subr.bf16.mxu0 %v5456
      %8399 = vmatpush1.bf16.msra.mxu0 %v5455
      %8400 = vmatprep.subr.bf16.mxu0 %v5488
      %8401 = vmatpush1.bf16.msra.mxu0 %v5487
      %8402 = vmatprep.subr.bf16.mxu0 %v5520
      %8403 = vmatpush1.bf16.msra.mxu0 %v5519
      %8404 = vmatprep.subr.bf16.mxu0 %v5552
      %8405 = vmatpush1.bf16.msra.mxu0 %v5551
      %8406 = vmatprep.subr.bf16.mxu0 %v5584
      %8407 = vmatpush1.bf16.msra.mxu0 %v5583
      %8408 = vmatprep.subr.bf16.mxu0 %v5616
      %8409 = vmatpush1.bf16.msra.mxu0 %v5615
      %8410 = vmatprep.subr.bf16.mxu0 %v5648
      %8411 = vmatpush1.bf16.msra.mxu0 %v5647
      %8412 = vmatprep.subr.bf16.mxu0 %v5680
      %8413 = vmatpush1.bf16.msra.mxu0 %v5679
      %8414 = vmatprep.subr.bf16.mxu0 %v5712
      %8415 = vmatpush1.bf16.msra.mxu0 %v5711
      %8416 = vmatprep.subr.bf16.mxu0 %v5744
      %8417 = vmatpush1.bf16.msra.mxu0 %v5743
      %8418 = vmatprep.subr.bf16.mxu0 %v5776
      %8419 = vmatpush1.bf16.msra.mxu0 %v5775
      %8420 = vmatprep.subr.bf16.mxu0 %v5808
      %8421 = vmatpush1.bf16.msra.mxu0 %v5807
      %8422 = vmatprep.subr.bf16.mxu0 %v5840
      %8423 = vmatpush1.bf16.msra.mxu0 %v5839
      %8424 = vmatprep.subr.bf16.mxu0 %v5872
      %8425 = vmatpush1.bf16.msra.mxu0 %v5871
      %8426 = vmatprep.subr.bf16.mxu0 %v5904
      %8427 = vmatpush1.bf16.msra.mxu0 %v5903
      %8428 = vmatprep.mubr.bf16.mxu0 %v7298
      %8429 = vmatmul.mubr.bf16.gmra.mrb[0].mxu0 %v7297
      %v8430 = vpop.f32.mrb[0].mxu0
      %v8431 = vadd.f32 0.0, %v8430
      %v8432 = vpop.f32.mrb[0].mxu0
      %v8433 = vadd.f32 0.0, %v8432
      %v8434 = vpop.f32.mrb[0].mxu0
      %v8435 = vadd.f32 0.0, %v8434
      %v8436 = vpop.f32.mrb[0].mxu0
      %v8437 = vadd.f32 0.0, %v8436
      %8438 = vmatprep.mubr.bf16.mxu0 %v7300
      %8439 = vmatmul.mubr.bf16.gmra.mrb[0].mxu0 %v7299
      %v8440 = vpop.f32.mrb[0].mxu0
      %v8441 = vadd.f32 0.0, %v8440
      %v8442 = vpop.f32.mrb[0].mxu0
      %v8443 = vadd.f32 0.0, %v8442
      %v8444 = vpop.f32.mrb[0].mxu0
      %v8445 = vadd.f32 0.0, %v8444
      %v8446 = vpop.f32.mrb[0].mxu0
      %v8447 = vadd.f32 0.0, %v8446
      %8448 = vmatprep.mubr.bf16.mxu0 %v7302
      %8449 = vmatmul.mubr.bf16.gmra.mrb[0].mxu0 %v7301
      %v8450 = vpop.f32.mrb[0].mxu0
      %v8451 = vadd.f32 0.0, %v8450
      %v8452 = vpop.f32.mrb[0].mxu0
      %v8453 = vadd.f32 0.0, %v8452
      %v8454 = vpop.f32.mrb[0].mxu0
      %v8455 = vadd.f32 0.0, %v8454
      %v8456 = vpop.f32.mrb[0].mxu0
      %v8457 = vadd.f32 0.0, %v8456
      %8458 = vmatprep.mubr.bf16.mxu0 %v7304
      %8459 = vmatmul.mubr.bf16.gmra.mrb[0].mxu0 %v7303
      %v8460 = vpop.f32.mrb[0].mxu0
      %v8461 = vadd.f32 0.0, %v8460
      %v8462 = vpop.f32.mrb[0].mxu0
      %v8463 = vadd.f32 0.0, %v8462
      %v8464 = vpop.f32.mrb[0].mxu0
      %v8465 = vadd.f32 0.0, %v8464
      %v8466 = vpop.f32.mrb[0].mxu0
      %v8467 = vadd.f32 0.0, %v8466
      %8468 = vmatprep.mubr.bf16.mxu0 %v7306
      %8469 = vmatmul.mubr.bf16.gmra.mrb[0].mxu0 %v7305
      %v8470 = vpop.f32.mrb[0].mxu0
      %v8471 = vadd.f32 0.0, %v8470
      %v8472 = vpop.f32.mrb[0].mxu0
      %v8473 = vadd.f32 0.0, %v8472
      %v8474 = vpop.f32.mrb[0].mxu0
      %v8475 = vadd.f32 0.0, %v8474
      %v8476 = vpop.f32.mrb[0].mxu0
      %v8477 = vadd.f32 0.0, %v8476
      %8478 = vdwg.mxu0
      %8479 = vmatprep.subr.bf16.mxu0 %v5426
      %8480 = vmatpush1.bf16.msra.mxu0 %v5425
      %8481 = vmatprep.subr.bf16.mxu0 %v5458
      %8482 = vmatpush1.bf16.msra.mxu0 %v5457
      %8483 = vmatprep.subr.bf16.mxu0 %v5490
      %8484 = vmatpush1.bf16.msra.mxu0 %v5489
      %8485 = vmatprep.subr.bf16.mxu0 %v5522
      %8486 = vmatpush1.bf16.msra.mxu0 %v5521
      %8487 = vmatprep.subr.bf16.mxu0 %v5554
      %8488 = vmatpush1.bf16.msra.mxu0 %v5553
      %8489 = vmatprep.subr.bf16.mxu0 %v5586
      %8490 = vmatpush1.bf16.msra.mxu0 %v5585
      %8491 = vmatprep.subr.bf16.mxu0 %v5618
      %8492 = vmatpush1.bf16.msra.mxu0 %v5617
      %8493 = vmatprep.subr.bf16.mxu0 %v5650
      %8494 = vmatpush1.bf16.msra.mxu0 %v5649
      %8495 = vmatprep.subr.bf16.mxu0 %v5682
      %8496 = vmatpush1.bf16.msra.mxu0 %v5681
      %8497 = vmatprep.subr.bf16.mxu0 %v5714
      %8498 = vmatpush1.bf16.msra.mxu0 %v5713
      %8499 = vmatprep.subr.bf16.mxu0 %v5746
      %8500 = vmatpush1.bf16.msra.mxu0 %v5745
      %8501 = vmatprep.subr.bf16.mxu0 %v5778
      %8502 = vmatpush1.bf16.msra.mxu0 %v5777
      %8503 = vmatprep.subr.bf16.mxu0 %v5810
      %8504 = vmatpush1.bf16.msra.mxu0 %v5809
      %8505 = vmatprep.subr.bf16.mxu0 %v5842
      %8506 = vmatpush1.bf16.msra.mxu0 %v5841
      %8507 = vmatprep.subr.bf16.mxu0 %v5874
      %8508 = vmatpush1.bf16.msra.mxu0 %v5873
      %8509 = vmatprep.subr.bf16.mxu0 %v5906
      %8510 = vmatpush1.bf16.msra.mxu0 %v5905
      %8511 = vmatprep.mubr.bf16.mxu0 %v7298
      %8512 = vmatmul.mubr.bf16.gmra.mrb[0].mxu0 %v7297
      %v8513 = vpop.f32.mrb[0].mxu0
      %v8514 = vadd.f32 0.0, %v8513
      %v8515 = vpop.f32.mrb[0].mxu0
      %v8516 = vadd.f32 0.0, %v8515
      %v8517 = vpop.f32.mrb[0].mxu0
      %v8518 = vadd.f32 0.0, %v8517
      %v8519 = vpop.f32.mrb[0].mxu0
      %v8520 = vadd.f32 0.0, %v8519
      %8521 = vmatprep.mubr.bf16.mxu0 %v7300
      %8522 = vmatmul.mubr.bf16.gmra.mrb[0].mxu0 %v7299
      %v8523 = vpop.f32.mrb[0].mxu0
      %v8524 = vadd.f32 0.0, %v8523
      %v8525 = vpop.f32.mrb[0].mxu0
      %v8526 = vadd.f32 0.0, %v8525
      %v8527 = vpop.f32.mrb[0].mxu0
      %v8528 = vadd.f32 0.0, %v8527
      %v8529 = vpop.f32.mrb[0].mxu0
      %v8530 = vadd.f32 0.0, %v8529
      %8531 = vmatprep.mubr.bf16.mxu0 %v7302
      %8532 = vmatmul.mubr.bf16.gmra.mrb[0].mxu0 %v7301
      %v8533 = vpop.f32.mrb[0].mxu0
      %v8534 = vadd.f32 0.0, %v8533
      %v8535 = vpop.f32.mrb[0].mxu0
      %v8536 = vadd.f32 0.0, %v8535
      %v8537 = vpop.f32.mrb[0].mxu0
      %v8538 = vadd.f32 0.0, %v8537
      %v8539 = vpop.f32.mrb[0].mxu0
      %v8540 = vadd.f32 0.0, %v8539
      %8541 = vmatprep.mubr.bf16.mxu0 %v7304
      %8542 = vmatmul.mubr.bf16.gmra.mrb[0].mxu0 %v7303
      %v8543 = vpop.f32.mrb[0].mxu0
      %v8544 = vadd.f32 0.0, %v8543
      %v8545 = vpop.f32.mrb[0].mxu0
      %v8546 = vadd.f32 0.0, %v8545
      %v8547 = vpop.f32.mrb[0].mxu0
      %v8548 = vadd.f32 0.0, %v8547
      %v8549 = vpop.f32.mrb[0].mxu0
      %v8550 = vadd.f32 0.0, %v8549
      %8551 = vmatprep.mubr.bf16.mxu0 %v7306
      %8552 = vmatmul.mubr.bf16.gmra.mrb[0].mxu0 %v7305
      %v8553 = vpop.f32.mrb[0].mxu0
      %v8554 = vadd.f32 0.0, %v8553
      %v8555 = vpop.f32.mrb[0].mxu0
      %v8556 = vadd.f32 0.0, %v8555
      %v8557 = vpop.f32.mrb[0].mxu0
      %v8558 = vadd.f32 0.0, %v8557
      %v8559 = vpop.f32.mrb[0].mxu0
      %v8560 = vadd.f32 0.0, %v8559
      %8561 = vdwg.mxu0
      %8562 = vmatprep.subr.bf16.mxu0 %v5428
      %8563 = vmatpush1.bf16.msra.mxu0 %v5427
      %8564 = vmatprep.subr.bf16.mxu0 %v5460
      %8565 = vmatpush1.bf16.msra.mxu0 %v5459
      %8566 = vmatprep.subr.bf16.mxu0 %v5492
      %8567 = vmatpush1.bf16.msra.mxu0 %v5491
      %8568 = vmatprep.subr.bf16.mxu0 %v5524
      %8569 = vmatpush1.bf16.msra.mxu0 %v5523
      %8570 = vmatprep.subr.bf16.mxu0 %v5556
      %8571 = vmatpush1.bf16.msra.mxu0 %v5555
      %8572 = vmatprep.subr.bf16.mxu0 %v5588
      %8573 = vmatpush1.bf16.msra.mxu0 %v5587
      %8574 = vmatprep.subr.bf16.mxu0 %v5620
      %8575 = vmatpush1.bf16.msra.mxu0 %v5619
      %8576 = vmatprep.subr.bf16.mxu0 %v5652
      %8577 = vmatpush1.bf16.msra.mxu0 %v5651
      %8578 = vmatprep.subr.bf16.mxu0 %v5684
      %8579 = vmatpush1.bf16.msra.mxu0 %v5683
      %8580 = vmatprep.subr.bf16.mxu0 %v5716
      %8581 = vmatpush1.bf16.msra.mxu0 %v5715
      %8582 = vmatprep.subr.bf16.mxu0 %v5748
      %8583 = vmatpush1.bf16.msra.mxu0 %v5747
      %8584 = vmatprep.subr.bf16.mxu0 %v5780
      %8585 = vmatpush1.bf16.msra.mxu0 %v5779
      %8586 = vmatprep.subr.bf16.mxu0 %v5812
      %8587 = vmatpush1.bf16.msra.mxu0 %v5811
      %8588 = vmatprep.subr.bf16.mxu0 %v5844
      %8589 = vmatpush1.bf16.msra.mxu0 %v5843
      %8590 = vmatprep.subr.bf16.mxu0 %v5876
      %8591 = vmatpush1.bf16.msra.mxu0 %v5875
      %8592 = vmatprep.subr.bf16.mxu0 %v5908
      %8593 = vmatpush1.bf16.msra.mxu0 %v5907
      %8594 = vmatprep.mubr.bf16.mxu0 %v7298
      %8595 = vmatmul.mubr.bf16.gmra.mrb[0].mxu0 %v7297
      %v8596 = vpop.f32.mrb[0].mxu0
      %v8597 = vadd.f32 0.0, %v8596
      %v8598 = vpop.f32.mrb[0].mxu0
      %v8599 = vadd.f32 0.0, %v8598
      %v8600 = vpop.f32.mrb[0].mxu0
      %v8601 = vadd.f32 0.0, %v8600
      %v8602 = vpop.f32.mrb[0].mxu0
      %v8603 = vadd.f32 0.0, %v8602
      %8604 = vmatprep.mubr.bf16.mxu0 %v7300
      %8605 = vmatmul.mubr.bf16.gmra.mrb[0].mxu0 %v7299
      %v8606 = vpop.f32.mrb[0].mxu0
      %v8607 = vadd.f32 0.0, %v8606
      %v8608 = vpop.f32.mrb[0].mxu0
      %v8609 = vadd.f32 0.0, %v8608
      %v8610 = vpop.f32.mrb[0].mxu0
      %v8611 = vadd.f32 0.0, %v8610
      %v8612 = vpop.f32.mrb[0].mxu0
      %v8613 = vadd.f32 0.0, %v8612
      %8614 = vmatprep.mubr.bf16.mxu0 %v7302
      %8615 = vmatmul.mubr.bf16.gmra.mrb[0].mxu0 %v7301
      %v8616 = vpop.f32.mrb[0].mxu0
      %v8617 = vadd.f32 0.0, %v8616
      %v8618 = vpop.f32.mrb[0].mxu0
      %v8619 = vadd.f32 0.0, %v8618
      %v8620 = vpop.f32.mrb[0].mxu0
      %v8621 = vadd.f32 0.0, %v8620
      %v8622 = vpop.f32.mrb[0].mxu0
      %v8623 = vadd.f32 0.0, %v8622
      %8624 = vmatprep.mubr.bf16.mxu0 %v7304
      %8625 = vmatmul.mubr.bf16.gmra.mrb[0].mxu0 %v7303
      %v8626 = vpop.f32.mrb[0].mxu0
      %v8627 = vadd.f32 0.0, %v8626
      %v8628 = vpop.f32.mrb[0].mxu0
      %v8629 = vadd.f32 0.0, %v8628
      %v8630 = vpop.f32.mrb[0].mxu0
      %v8631 = vadd.f32 0.0, %v8630
      %v8632 = vpop.f32.mrb[0].mxu0
      %v8633 = vadd.f32 0.0, %v8632
      %8634 = vmatprep.mubr.bf16.mxu0 %v7306
      %8635 = vmatmul.mubr.bf16.gmra.mrb[0].mxu0 %v7305
      %v8636 = vpop.f32.mrb[0].mxu0
      %v8637 = vadd.f32 0.0, %v8636
      %v8638 = vpop.f32.mrb[0].mxu0
      %v8639 = vadd.f32 0.0, %v8638
      %v8640 = vpop.f32.mrb[0].mxu0
      %v8641 = vadd.f32 0.0, %v8640
      %v8642 = vpop.f32.mrb[0].mxu0
      %v8643 = vadd.f32 0.0, %v8642
      %8644 = vdwg.mxu0
      %v8645 = vadd.f32 %v5974, %v5998
      %v8646 = vadd.f32 %v5976, %v6000
      %v8647 = vadd.f32 %v6057, %v6081
      %v8648 = vadd.f32 %v6059, %v6083
      %v8649 = vadd.f32 %v6140, %v6164
      %v8650 = vadd.f32 %v6142, %v6166
      %v8651 = vadd.f32 %v6223, %v6247
      %v8652 = vadd.f32 %v6225, %v6249
      %v8653 = vadd.f32 %v6306, %v6330
      %v8654 = vadd.f32 %v6308, %v6332
      %v8655 = vadd.f32 %v6389, %v6413
      %v8656 = vadd.f32 %v6391, %v6415
      %v8657 = vadd.f32 %v6472, %v6496
      %v8658 = vadd.f32 %v6474, %v6498
      %v8659 = vadd.f32 %v6555, %v6579
      %v8660 = vadd.f32 %v6557, %v6581
      %v8661 = vadd.f32 %v6638, %v6662
      %v8662 = vadd.f32 %v6640, %v6664
      %v8663 = vadd.f32 %v6721, %v6745
      %v8664 = vadd.f32 %v6723, %v6747
      %v8665 = vadd.f32 %v6804, %v6828
      %v8666 = vadd.f32 %v6806, %v6830
      %v8667 = vadd.f32 %v6887, %v6911
      %v8668 = vadd.f32 %v6889, %v6913
      %v8669 = vadd.f32 %v6970, %v6994
      %v8670 = vadd.f32 %v6972, %v6996
      %v8671 = vadd.f32 %v7053, %v7077
      %v8672 = vadd.f32 %v7055, %v7079
      %v8673 = vadd.f32 %v7136, %v7160
      %v8674 = vadd.f32 %v7138, %v7162
      %v8675 = vadd.f32 %v7219, %v7243
      %v8676 = vadd.f32 %v7221, %v7245
      %v8677 = vadd.f32 %v5978, %v6004
      %v8678 = vadd.f32 %v5980, %v6006
      %v8679 = vadd.f32 %v6061, %v6087
      %v8680 = vadd.f32 %v6063, %v6089
      %v8681 = vadd.f32 %v6144, %v6170
      %v8682 = vadd.f32 %v6146, %v6172
      %v8683 = vadd.f32 %v6227, %v6253
      %v8684 = vadd.f32 %v6229, %v6255
      %v8685 = vadd.f32 %v6310, %v6336
      %v8686 = vadd.f32 %v6312, %v6338
      %v8687 = vadd.f32 %v6393, %v6419
      %v8688 = vadd.f32 %v6395, %v6421
      %v8689 = vadd.f32 %v6476, %v6502
      %v8690 = vadd.f32 %v6478, %v6504
      %v8691 = vadd.f32 %v6559, %v6585
      %v8692 = vadd.f32 %v6561, %v6587
      %v8693 = vadd.f32 %v6642, %v6668
      %v8694 = vadd.f32 %v6644, %v6670
      %v8695 = vadd.f32 %v6725, %v6751
      %v8696 = vadd.f32 %v6727, %v6753
      %v8697 = vadd.f32 %v6808, %v6834
      %v8698 = vadd.f32 %v6810, %v6836
      %v8699 = vadd.f32 %v6891, %v6917
      %v8700 = vadd.f32 %v6893, %v6919
      %v8701 = vadd.f32 %v6974, %v7000
      %v8702 = vadd.f32 %v6976, %v7002
      %v8703 = vadd.f32 %v7057, %v7083
      %v8704 = vadd.f32 %v7059, %v7085
      %v8705 = vadd.f32 %v7140, %v7166
      %v8706 = vadd.f32 %v7142, %v7168
      %v8707 = vadd.f32 %v7223, %v7249
      %v8708 = vadd.f32 %v7225, %v7251
      %v8709 = vadd.f32 %v5984, %v6008
      %v8710 = vadd.f32 %v5986, %v6010
      %v8711 = vadd.f32 %v6067, %v6091
      %v8712 = vadd.f32 %v6069, %v6093
      %v8713 = vadd.f32 %v6150, %v6174
      %v8714 = vadd.f32 %v6152, %v6176
      %v8715 = vadd.f32 %v6233, %v6257
      %v8716 = vadd.f32 %v6235, %v6259
      %v8717 = vadd.f32 %v6316, %v6340
      %v8718 = vadd.f32 %v6318, %v6342
      %v8719 = vadd.f32 %v6399, %v6423
      %v8720 = vadd.f32 %v6401, %v6425
      %v8721 = vadd.f32 %v6482, %v6506
      %v8722 = vadd.f32 %v6484, %v6508
      %v8723 = vadd.f32 %v6565, %v6589
      %v8724 = vadd.f32 %v6567, %v6591
      %v8725 = vadd.f32 %v6648, %v6672
      %v8726 = vadd.f32 %v6650, %v6674
      %v8727 = vadd.f32 %v6731, %v6755
      %v8728 = vadd.f32 %v6733, %v6757
      %v8729 = vadd.f32 %v6814, %v6838
      %v8730 = vadd.f32 %v6816, %v6840
      %v8731 = vadd.f32 %v6897, %v6921
      %v8732 = vadd.f32 %v6899, %v6923
      %v8733 = vadd.f32 %v6980, %v7004
      %v8734 = vadd.f32 %v6982, %v7006
      %v8735 = vadd.f32 %v7063, %v7087
      %v8736 = vadd.f32 %v7065, %v7089
      %v8737 = vadd.f32 %v7146, %v7170
      %v8738 = vadd.f32 %v7148, %v7172
      %v8739 = vadd.f32 %v7229, %v7253
      %v8740 = vadd.f32 %v7231, %v7255
      %v8741 = vadd.f32 %v5988, %v6014
      %v8742 = vadd.f32 %v5990, %v6016
      %v8743 = vadd.f32 %v6071, %v6097
      %v8744 = vadd.f32 %v6073, %v6099
      %v8745 = vadd.f32 %v6154, %v6180
      %v8746 = vadd.f32 %v6156, %v6182
      %v8747 = vadd.f32 %v6237, %v6263
      %v8748 = vadd.f32 %v6239, %v6265
      %v8749 = vadd.f32 %v6320, %v6346
      %v8750 = vadd.f32 %v6322, %v6348
      %v8751 = vadd.f32 %v6403, %v6429
      %v8752 = vadd.f32 %v6405, %v6431
      %v8753 = vadd.f32 %v6486, %v6512
      %v8754 = vadd.f32 %v6488, %v6514
      %v8755 = vadd.f32 %v6569, %v6595
      %v8756 = vadd.f32 %v6571, %v6597
      %v8757 = vadd.f32 %v6652, %v6678
      %v8758 = vadd.f32 %v6654, %v6680
      %v8759 = vadd.f32 %v6735, %v6761
      %v8760 = vadd.f32 %v6737, %v6763
      %v8761 = vadd.f32 %v6818, %v6844
      %v8762 = vadd.f32 %v6820, %v6846
      %v8763 = vadd.f32 %v6901, %v6927
      %v8764 = vadd.f32 %v6903, %v6929
      %v8765 = vadd.f32 %v6984, %v7010
      %v8766 = vadd.f32 %v6986, %v7012
      %v8767 = vadd.f32 %v7067, %v7093
      %v8768 = vadd.f32 %v7069, %v7095
      %v8769 = vadd.f32 %v7150, %v7176
      %v8770 = vadd.f32 %v7152, %v7178
      %v8771 = vadd.f32 %v7233, %v7259
      %v8772 = vadd.f32 %v7235, %v7261
      %v8773 = vadd.f32 %v5994, %v6018
      %v8774 = vadd.f32 %v5996, %v6020
      %v8775 = vadd.f32 %v6077, %v6101
      %v8776 = vadd.f32 %v6079, %v6103
      %v8777 = vadd.f32 %v6160, %v6184
      %v8778 = vadd.f32 %v6162, %v6186
      %v8779 = vadd.f32 %v6243, %v6267
      %v8780 = vadd.f32 %v6245, %v6269
      %v8781 = vadd.f32 %v6326, %v6350
      %v8782 = vadd.f32 %v6328, %v6352
      %v8783 = vadd.f32 %v6409, %v6433
      %v8784 = vadd.f32 %v6411, %v6435
      %v8785 = vadd.f32 %v6492, %v6516
      %v8786 = vadd.f32 %v6494, %v6518
      %v8787 = vadd.f32 %v6575, %v6599
      %v8788 = vadd.f32 %v6577, %v6601
      %v8789 = vadd.f32 %v6658, %v6682
      %v8790 = vadd.f32 %v6660, %v6684
      %v8791 = vadd.f32 %v6741, %v6765
      %v8792 = vadd.f32 %v6743, %v6767
      %v8793 = vadd.f32 %v6824, %v6848
      %v8794 = vadd.f32 %v6826, %v6850
      %v8795 = vadd.f32 %v6907, %v6931
      %v8796 = vadd.f32 %v6909, %v6933
      %v8797 = vadd.f32 %v6990, %v7014
      %v8798 = vadd.f32 %v6992, %v7016
      %v8799 = vadd.f32 %v7073, %v7097
      %v8800 = vadd.f32 %v7075, %v7099
      %v8801 = vadd.f32 %v7156, %v7180
      %v8802 = vadd.f32 %v7158, %v7182
      %v8803 = vadd.f32 %v7239, %v7263
      %v8804 = vadd.f32 %v7241, %v7265
      %v8805 = vadd.f32 %v7352, %v7376
      %v8806 = vadd.f32 %v7354, %v7378
      %v8807 = vadd.f32 %v7435, %v7459
      %v8808 = vadd.f32 %v7437, %v7461
      %v8809 = vadd.f32 %v7518, %v7542
      %v8810 = vadd.f32 %v7520, %v7544
      %v8811 = vadd.f32 %v7601, %v7625
      %v8812 = vadd.f32 %v7603, %v7627
      %v8813 = vadd.f32 %v7684, %v7708
      %v8814 = vadd.f32 %v7686, %v7710
      %v8815 = vadd.f32 %v7767, %v7791
      %v8816 = vadd.f32 %v7769, %v7793
      %v8817 = vadd.f32 %v7850, %v7874
      %v8818 = vadd.f32 %v7852, %v7876
      %v8819 = vadd.f32 %v7933, %v7957
      %v8820 = vadd.f32 %v7935, %v7959
      %v8821 = vadd.f32 %v8016, %v8040
      %v8822 = vadd.f32 %v8018, %v8042
      %v8823 = vadd.f32 %v8099, %v8123
      %v8824 = vadd.f32 %v8101, %v8125
      %v8825 = vadd.f32 %v8182, %v8206
      %v8826 = vadd.f32 %v8184, %v8208
      %v8827 = vadd.f32 %v8265, %v8289
      %v8828 = vadd.f32 %v8267, %v8291
      %v8829 = vadd.f32 %v8348, %v8372
      %v8830 = vadd.f32 %v8350, %v8374
      %v8831 = vadd.f32 %v8431, %v8455
      %v8832 = vadd.f32 %v8433, %v8457
      %v8833 = vadd.f32 %v8514, %v8538
      %v8834 = vadd.f32 %v8516, %v8540
      %v8835 = vadd.f32 %v8597, %v8621
      %v8836 = vadd.f32 %v8599, %v8623
      %v8837 = vadd.f32 %v7356, %v7382
      %v8838 = vadd.f32 %v7358, %v7384
      %v8839 = vadd.f32 %v7439, %v7465
      %v8840 = vadd.f32 %v7441, %v7467
      %v8841 = vadd.f32 %v7522, %v7548
      %v8842 = vadd.f32 %v7524, %v7550
      %v8843 = vadd.f32 %v7605, %v7631
      %v8844 = vadd.f32 %v7607, %v7633
      %v8845 = vadd.f32 %v7688, %v7714
      %v8846 = vadd.f32 %v7690, %v7716
      %v8847 = vadd.f32 %v7771, %v7797
      %v8848 = vadd.f32 %v7773, %v7799
      %v8849 = vadd.f32 %v7854, %v7880
      %v8850 = vadd.f32 %v7856, %v7882
      %v8851 = vadd.f32 %v7937, %v7963
      %v8852 = vadd.f32 %v7939, %v7965
      %v8853 = vadd.f32 %v8020, %v8046
      %v8854 = vadd.f32 %v8022, %v8048
      %v8855 = vadd.f32 %v8103, %v8129
      %v8856 = vadd.f32 %v8105, %v8131
      %v8857 = vadd.f32 %v8186, %v8212
      %v8858 = vadd.f32 %v8188, %v8214
      %v8859 = vadd.f32 %v8269, %v8295
      %v8860 = vadd.f32 %v8271, %v8297
      %v8861 = vadd.f32 %v8352, %v8378
      %v8862 = vadd.f32 %v8354, %v8380
      %v8863 = vadd.f32 %v8435, %v8461
      %v8864 = vadd.f32 %v8437, %v8463
      %v8865 = vadd.f32 %v8518, %v8544
      %v8866 = vadd.f32 %v8520, %v8546
      %v8867 = vadd.f32 %v8601, %v8627
      %v8868 = vadd.f32 %v8603, %v8629
      %v8869 = vadd.f32 %v7362, %v7386
      %v8870 = vadd.f32 %v7364, %v7388
      %v8871 = vadd.f32 %v7445, %v7469
      %v8872 = vadd.f32 %v7447, %v7471
      %v8873 = vadd.f32 %v7528, %v7552
      %v8874 = vadd.f32 %v7530, %v7554
      %v8875 = vadd.f32 %v7611, %v7635
      %v8876 = vadd.f32 %v7613, %v7637
      %v8877 = vadd.f32 %v7694, %v7718
      %v8878 = vadd.f32 %v7696, %v7720
      %v8879 = vadd.f32 %v7777, %v7801
      %v8880 = vadd.f32 %v7779, %v7803
      %v8881 = vadd.f32 %v7860, %v7884
      %v8882 = vadd.f32 %v7862, %v7886
      %v8883 = vadd.f32 %v7943, %v7967
      %v8884 = vadd.f32 %v7945, %v7969
      %v8885 = vadd.f32 %v8026, %v8050
      %v8886 = vadd.f32 %v8028, %v8052
      %v8887 = vadd.f32 %v8109, %v8133
      %v8888 = vadd.f32 %v8111, %v8135
      %v8889 = vadd.f32 %v8192, %v8216
      %v8890 = vadd.f32 %v8194, %v8218
      %v8891 = vadd.f32 %v8275, %v8299
      %v8892 = vadd.f32 %v8277, %v8301
      %v8893 = vadd.f32 %v8358, %v8382
      %v8894 = vadd.f32 %v8360, %v8384
      %v8895 = vadd.f32 %v8441, %v8465
      %v8896 = vadd.f32 %v8443, %v8467
      %v8897 = vadd.f32 %v8524, %v8548
      %v8898 = vadd.f32 %v8526, %v8550
      %v8899 = vadd.f32 %v8607, %v8631
      %v8900 = vadd.f32 %v8609, %v8633
      %v8901 = vadd.f32 %v7366, %v7392
      %v8902 = vadd.f32 %v7368, %v7394
      %v8903 = vadd.f32 %v7449, %v7475
      %v8904 = vadd.f32 %v7451, %v7477
      %v8905 = vadd.f32 %v7532, %v7558
      %v8906 = vadd.f32 %v7534, %v7560
      %v8907 = vadd.f32 %v7615, %v7641
      %v8908 = vadd.f32 %v7617, %v7643
      %v8909 = vadd.f32 %v7698, %v7724
      %v8910 = vadd.f32 %v7700, %v7726
      %v8911 = vadd.f32 %v7781, %v7807
      %v8912 = vadd.f32 %v7783, %v7809
      %v8913 = vadd.f32 %v7864, %v7890
      %v8914 = vadd.f32 %v7866, %v7892
      %v8915 = vadd.f32 %v7947, %v7973
      %v8916 = vadd.f32 %v7949, %v7975
      %v8917 = vadd.f32 %v8030, %v8056
      %v8918 = vadd.f32 %v8032, %v8058
      %v8919 = vadd.f32 %v8113, %v8139
      %v8920 = vadd.f32 %v8115, %v8141
      %v8921 = vadd.f32 %v8196, %v8222
      %v8922 = vadd.f32 %v8198, %v8224
      %v8923 = vadd.f32 %v8279, %v8305
      %v8924 = vadd.f32 %v8281, %v8307
      %v8925 = vadd.f32 %v8362, %v8388
      %v8926 = vadd.f32 %v8364, %v8390
      %v8927 = vadd.f32 %v8445, %v8471
      %v8928 = vadd.f32 %v8447, %v8473
      %v8929 = vadd.f32 %v8528, %v8554
      %v8930 = vadd.f32 %v8530, %v8556
      %v8931 = vadd.f32 %v8611, %v8637
      %v8932 = vadd.f32 %v8613, %v8639
      %v8933 = vadd.f32 %v7372, %v7396
      %v8934 = vadd.f32 %v7374, %v7398
      %v8935 = vadd.f32 %v7455, %v7479
      %v8936 = vadd.f32 %v7457, %v7481
      %v8937 = vadd.f32 %v7538, %v7562
      %v8938 = vadd.f32 %v7540, %v7564
      %v8939 = vadd.f32 %v7621, %v7645
      %v8940 = vadd.f32 %v7623, %v7647
      %v8941 = vadd.f32 %v7704, %v7728
      %v8942 = vadd.f32 %v7706, %v7730
      %v8943 = vadd.f32 %v7787, %v7811
      %v8944 = vadd.f32 %v7789, %v7813
      %v8945 = vadd.f32 %v7870, %v7894
      %v8946 = vadd.f32 %v7872, %v7896
      %v8947 = vadd.f32 %v7953, %v7977
      %v8948 = vadd.f32 %v7955, %v7979
      %v8949 = vadd.f32 %v8036, %v8060
      %v8950 = vadd.f32 %v8038, %v8062
      %v8951 = vadd.f32 %v8119, %v8143
      %v8952 = vadd.f32 %v8121, %v8145
      %v8953 = vadd.f32 %v8202, %v8226
      %v8954 = vadd.f32 %v8204, %v8228
      %v8955 = vadd.f32 %v8285, %v8309
      %v8956 = vadd.f32 %v8287, %v8311
      %v8957 = vadd.f32 %v8368, %v8392
      %v8958 = vadd.f32 %v8370, %v8394
      %v8959 = vadd.f32 %v8451, %v8475
      %v8960 = vadd.f32 %v8453, %v8477
      %v8961 = vadd.f32 %v8534, %v8558
      %v8962 = vadd.f32 %v8536, %v8560
      %v8963 = vadd.f32 %v8617, %v8641
      %v8964 = vadd.f32 %v8619, %v8643
      %v8965 = vmul.f32 %v8645, %v8805
      %v8966 = vmul.f32 %v8646, %v8806
      %v8967 = vmul.f32 %v8647, %v8807
      %v8968 = vmul.f32 %v8648, %v8808
      %v8969 = vmul.f32 %v8649, %v8809
      %v8970 = vmul.f32 %v8650, %v8810
      %v8971 = vmul.f32 %v8651, %v8811
      %v8972 = vmul.f32 %v8652, %v8812
      %v8973 = vmul.f32 %v8653, %v8813
      %v8974 = vmul.f32 %v8654, %v8814
      %v8975 = vmul.f32 %v8655, %v8815
      %v8976 = vmul.f32 %v8656, %v8816
      %v8977 = vmul.f32 %v8657, %v8817
      %v8978 = vmul.f32 %v8658, %v8818
      %v8979 = vmul.f32 %v8659, %v8819
      %v8980 = vmul.f32 %v8660, %v8820
      %v8981 = vmul.f32 %v8661, %v8821
      %v8982 = vmul.f32 %v8662, %v8822
      %v8983 = vmul.f32 %v8663, %v8823
      %v8984 = vmul.f32 %v8664, %v8824
      %v8985 = vmul.f32 %v8665, %v8825
      %v8986 = vmul.f32 %v8666, %v8826
      %v8987 = vmul.f32 %v8667, %v8827
      %v8988 = vmul.f32 %v8668, %v8828
      %v8989 = vmul.f32 %v8669, %v8829
      %v8990 = vmul.f32 %v8670, %v8830
      %v8991 = vmul.f32 %v8671, %v8831
      %v8992 = vmul.f32 %v8672, %v8832
      %v8993 = vmul.f32 %v8673, %v8833
      %v8994 = vmul.f32 %v8674, %v8834
      %v8995 = vmul.f32 %v8675, %v8835
      %v8996 = vmul.f32 %v8676, %v8836
      %v8997 = vmul.f32 %v8677, %v8837
      %v8998 = vmul.f32 %v8678, %v8838
      %v8999 = vmul.f32 %v8679, %v8839
      %v9000 = vmul.f32 %v8680, %v8840
      %v9001 = vmul.f32 %v8681, %v8841
      %v9002 = vmul.f32 %v8682, %v8842
      %v9003 = vmul.f32 %v8683, %v8843
      %v9004 = vmul.f32 %v8684, %v8844
      %v9005 = vmul.f32 %v8685, %v8845
      %v9006 = vmul.f32 %v8686, %v8846
      %v9007 = vmul.f32 %v8687, %v8847
      %v9008 = vmul.f32 %v8688, %v8848
      %v9009 = vmul.f32 %v8689, %v8849
      %v9010 = vmul.f32 %v8690, %v8850
      %v9011 = vmul.f32 %v8691, %v8851
      %v9012 = vmul.f32 %v8692, %v8852
      %v9013 = vmul.f32 %v8693, %v8853
      %v9014 = vmul.f32 %v8694, %v8854
      %v9015 = vmul.f32 %v8695, %v8855
      %v9016 = vmul.f32 %v8696, %v8856
      %v9017 = vmul.f32 %v8697, %v8857
      %v9018 = vmul.f32 %v8698, %v8858
      %v9019 = vmul.f32 %v8699, %v8859
      %v9020 = vmul.f32 %v8700, %v8860
      %v9021 = vmul.f32 %v8701, %v8861
      %v9022 = vmul.f32 %v8702, %v8862
      %v9023 = vmul.f32 %v8703, %v8863
      %v9024 = vmul.f32 %v8704, %v8864
      %v9025 = vmul.f32 %v8705, %v8865
      %v9026 = vmul.f32 %v8706, %v8866
      %v9027 = vmul.f32 %v8707, %v8867
      %v9028 = vmul.f32 %v8708, %v8868
      %v9029 = vmul.f32 %v8709, %v8869
      %v9030 = vmul.f32 %v8710, %v8870
      %v9031 = vmul.f32 %v8711, %v8871
      %v9032 = vmul.f32 %v8712, %v8872
      %v9033 = vmul.f32 %v8713, %v8873
      %v9034 = vmul.f32 %v8714, %v8874
      %v9035 = vmul.f32 %v8715, %v8875
      %v9036 = vmul.f32 %v8716, %v8876
      %v9037 = vmul.f32 %v8717, %v8877
      %v9038 = vmul.f32 %v8718, %v8878
      %v9039 = vmul.f32 %v8719, %v8879
      %v9040 = vmul.f32 %v8720, %v8880
      %v9041 = vmul.f32 %v8721, %v8881
      %v9042 = vmul.f32 %v8722, %v8882
      %v9043 = vmul.f32 %v8723, %v8883
      %v9044 = vmul.f32 %v8724, %v8884
      %v9045 = vmul.f32 %v8725, %v8885
      %v9046 = vmul.f32 %v8726, %v8886
      %v9047 = vmul.f32 %v8727, %v8887
      %v9048 = vmul.f32 %v8728, %v8888
      %v9049 = vmul.f32 %v8729, %v8889
      %v9050 = vmul.f32 %v8730, %v8890
      %v9051 = vmul.f32 %v8731, %v8891
      %v9052 = vmul.f32 %v8732, %v8892
      %v9053 = vmul.f32 %v8733, %v8893
      %v9054 = vmul.f32 %v8734, %v8894
      %v9055 = vmul.f32 %v8735, %v8895
      %v9056 = vmul.f32 %v8736, %v8896
      %v9057 = vmul.f32 %v8737, %v8897
      %v9058 = vmul.f32 %v8738, %v8898
      %v9059 = vmul.f32 %v8739, %v8899
      %v9060 = vmul.f32 %v8740, %v8900
      %v9061 = vmul.f32 %v8741, %v8901
      %v9062 = vmul.f32 %v8742, %v8902
      %v9063 = vmul.f32 %v8743, %v8903
      %v9064 = vmul.f32 %v8744, %v8904
      %v9065 = vmul.f32 %v8745, %v8905
      %v9066 = vmul.f32 %v8746, %v8906
      %v9067 = vmul.f32 %v8747, %v8907
      %v9068 = vmul.f32 %v8748, %v8908
      %v9069 = vmul.f32 %v8749, %v8909
      %v9070 = vmul.f32 %v8750, %v8910
      %v9071 = vmul.f32 %v8751, %v8911
      %v9072 = vmul.f32 %v8752, %v8912
      %v9073 = vmul.f32 %v8753, %v8913
      %v9074 = vmul.f32 %v8754, %v8914
      %v9075 = vmul.f32 %v8755, %v8915
      %v9076 = vmul.f32 %v8756, %v8916
      %v9077 = vmul.f32 %v8757, %v8917
      %v9078 = vmul.f32 %v8758, %v8918
      %v9079 = vmul.f32 %v8759, %v8919
      %v9080 = vmul.f32 %v8760, %v8920
      %v9081 = vmul.f32 %v8761, %v8921
      %v9082 = vmul.f32 %v8762, %v8922
      %v9083 = vmul.f32 %v8763, %v8923
      %v9084 = vmul.f32 %v8764, %v8924
      %v9085 = vmul.f32 %v8765, %v8925
      %v9086 = vmul.f32 %v8766, %v8926
      %v9087 = vmul.f32 %v8767, %v8927
      %v9088 = vmul.f32 %v8768, %v8928
      %v9089 = vmul.f32 %v8769, %v8929
      %v9090 = vmul.f32 %v8770, %v8930
      %v9091 = vmul.f32 %v8771, %v8931
      %v9092 = vmul.f32 %v8772, %v8932
      %v9093 = vmul.f32 %v8773, %v8933
      %v9094 = vmul.f32 %v8774, %v8934
      %v9095 = vmul.f32 %v8775, %v8935
      %v9096 = vmul.f32 %v8776, %v8936
      %v9097 = vmul.f32 %v8777, %v8937
      %v9098 = vmul.f32 %v8778, %v8938
      %v9099 = vmul.f32 %v8779, %v8939
      %v9100 = vmul.f32 %v8780, %v8940
      %v9101 = vmul.f32 %v8781, %v8941
      %v9102 = vmul.f32 %v8782, %v8942
      %v9103 = vmul.f32 %v8783, %v8943
      %v9104 = vmul.f32 %v8784, %v8944
      %v9105 = vmul.f32 %v8785, %v8945
      %v9106 = vmul.f32 %v8786, %v8946
      %v9107 = vmul.f32 %v8787, %v8947
      %v9108 = vmul.f32 %v8788, %v8948
      %v9109 = vmul.f32 %v8789, %v8949
      %v9110 = vmul.f32 %v8790, %v8950
      %v9111 = vmul.f32 %v8791, %v8951
      %v9112 = vmul.f32 %v8792, %v8952
      %v9113 = vmul.f32 %v8793, %v8953
      %v9114 = vmul.f32 %v8794, %v8954
      %v9115 = vmul.f32 %v8795, %v8955
      %v9116 = vmul.f32 %v8796, %v8956
      %v9117 = vmul.f32 %v8797, %v8957
      %v9118 = vmul.f32 %v8798, %v8958
      %v9119 = vmul.f32 %v8799, %v8959
      %v9120 = vmul.f32 %v8800, %v8960
      %v9121 = vmul.f32 %v8801, %v8961
      %v9122 = vmul.f32 %v8802, %v8962
      %v9123 = vmul.f32 %v8803, %v8963
      %v9124 = vmul.f32 %v8804, %v8964
      %v9125 = vadd.f32 %v8965, %v8997
      %v9126 = vadd.f32 %v9125, %v9029
      %v9127 = vadd.f32 %v9126, %v9061
      %v9128 = vadd.f32 %v9127, %v9093
      %v9129 = vrot.slane %v9128, 4
      %v9130 = vadd.f32 %v9128, %v9129
      %v9131 = vrot.slane %v9130, 2
      %v9132 = vadd.f32 %v9130, %v9131
      %v9133 = vrot.slane %v9132, 1
      %v9134 = vadd.f32 %v9132, %v9133
      %v9135 = vadd.f32 %v8966, %v8998
      %v9136 = vadd.f32 %v9135, %v9030
      %v9137 = vadd.f32 %v9136, %v9062
      %v9138 = vadd.f32 %v9137, %v9094
      %v9139 = vrot.slane %v9138, 4
      %v9140 = vadd.f32 %v9138, %v9139
      %v9141 = vrot.slane %v9140, 2
      %v9142 = vadd.f32 %v9140, %v9141
      %v9143 = vrot.slane %v9142, 1
      %v9144 = vadd.f32 %v9142, %v9143
      %v9145 = vadd.f32 %v8967, %v8999
      %v9146 = vadd.f32 %v9145, %v9031
      %v9147 = vadd.f32 %v9146, %v9063
      %v9148 = vadd.f32 %v9147, %v9095
      %v9149 = vrot.slane %v9148, 4
      %v9150 = vadd.f32 %v9148, %v9149
      %v9151 = vrot.slane %v9150, 2
      %v9152 = vadd.f32 %v9150, %v9151
      %v9153 = vrot.slane %v9152, 1
      %v9154 = vadd.f32 %v9152, %v9153
      %v9155 = vadd.f32 %v8968, %v9000
      %v9156 = vadd.f32 %v9155, %v9032
      %v9157 = vadd.f32 %v9156, %v9064
      %v9158 = vadd.f32 %v9157, %v9096
      %v9159 = vrot.slane %v9158, 4
      %v9160 = vadd.f32 %v9158, %v9159
      %v9161 = vrot.slane %v9160, 2
      %v9162 = vadd.f32 %v9160, %v9161
      %v9163 = vrot.slane %v9162, 1
      %v9164 = vadd.f32 %v9162, %v9163
      %v9165 = vadd.f32 %v8969, %v9001
      %v9166 = vadd.f32 %v9165, %v9033
      %v9167 = vadd.f32 %v9166, %v9065
      %v9168 = vadd.f32 %v9167, %v9097
      %v9169 = vrot.slane %v9168, 4
      %v9170 = vadd.f32 %v9168, %v9169
      %v9171 = vrot.slane %v9170, 2
      %v9172 = vadd.f32 %v9170, %v9171
      %v9173 = vrot.slane %v9172, 1
      %v9174 = vadd.f32 %v9172, %v9173
      %v9175 = vadd.f32 %v8970, %v9002
      %v9176 = vadd.f32 %v9175, %v9034
      %v9177 = vadd.f32 %v9176, %v9066
      %v9178 = vadd.f32 %v9177, %v9098
      %v9179 = vrot.slane %v9178, 4
      %v9180 = vadd.f32 %v9178, %v9179
      %v9181 = vrot.slane %v9180, 2
      %v9182 = vadd.f32 %v9180, %v9181
      %v9183 = vrot.slane %v9182, 1
      %v9184 = vadd.f32 %v9182, %v9183
      %v9185 = vadd.f32 %v8971, %v9003
      %v9186 = vadd.f32 %v9185, %v9035
      %v9187 = vadd.f32 %v9186, %v9067
      %v9188 = vadd.f32 %v9187, %v9099
      %v9189 = vrot.slane %v9188, 4
      %v9190 = vadd.f32 %v9188, %v9189
      %v9191 = vrot.slane %v9190, 2
      %v9192 = vadd.f32 %v9190, %v9191
      %v9193 = vrot.slane %v9192, 1
      %v9194 = vadd.f32 %v9192, %v9193
      %v9195 = vadd.f32 %v8972, %v9004
      %v9196 = vadd.f32 %v9195, %v9036
      %v9197 = vadd.f32 %v9196, %v9068
      %v9198 = vadd.f32 %v9197, %v9100
      %v9199 = vrot.slane %v9198, 4
      %v9200 = vadd.f32 %v9198, %v9199
      %v9201 = vrot.slane %v9200, 2
      %v9202 = vadd.f32 %v9200, %v9201
      %v9203 = vrot.slane %v9202, 1
      %v9204 = vadd.f32 %v9202, %v9203
      %v9205 = vadd.f32 %v8973, %v9005
      %v9206 = vadd.f32 %v9205, %v9037
      %v9207 = vadd.f32 %v9206, %v9069
      %v9208 = vadd.f32 %v9207, %v9101
      %v9209 = vrot.slane %v9208, 4
      %v9210 = vadd.f32 %v9208, %v9209
      %v9211 = vrot.slane %v9210, 2
      %v9212 = vadd.f32 %v9210, %v9211
      %v9213 = vrot.slane %v9212, 1
      %v9214 = vadd.f32 %v9212, %v9213
      %v9215 = vadd.f32 %v8974, %v9006
      %v9216 = vadd.f32 %v9215, %v9038
      %v9217 = vadd.f32 %v9216, %v9070
      %v9218 = vadd.f32 %v9217, %v9102
      %v9219 = vrot.slane %v9218, 4
      %v9220 = vadd.f32 %v9218, %v9219
      %v9221 = vrot.slane %v9220, 2
      %v9222 = vadd.f32 %v9220, %v9221
      %v9223 = vrot.slane %v9222, 1
      %v9224 = vadd.f32 %v9222, %v9223
      %v9225 = vadd.f32 %v8975, %v9007
      %v9226 = vadd.f32 %v9225, %v9039
      %v9227 = vadd.f32 %v9226, %v9071
      %v9228 = vadd.f32 %v9227, %v9103
      %v9229 = vrot.slane %v9228, 4
      %v9230 = vadd.f32 %v9228, %v9229
      %v9231 = vrot.slane %v9230, 2
      %v9232 = vadd.f32 %v9230, %v9231
      %v9233 = vrot.slane %v9232, 1
      %v9234 = vadd.f32 %v9232, %v9233
      %v9235 = vadd.f32 %v8976, %v9008
      %v9236 = vadd.f32 %v9235, %v9040
      %v9237 = vadd.f32 %v9236, %v9072
      %v9238 = vadd.f32 %v9237, %v9104
      %v9239 = vrot.slane %v9238, 4
      %v9240 = vadd.f32 %v9238, %v9239
      %v9241 = vrot.slane %v9240, 2
      %v9242 = vadd.f32 %v9240, %v9241
      %v9243 = vrot.slane %v9242, 1
      %v9244 = vadd.f32 %v9242, %v9243
      %v9245 = vadd.f32 %v8977, %v9009
      %v9246 = vadd.f32 %v9245, %v9041
      %v9247 = vadd.f32 %v9246, %v9073
      %v9248 = vadd.f32 %v9247, %v9105
      %v9249 = vrot.slane %v9248, 4
      %v9250 = vadd.f32 %v9248, %v9249
      %v9251 = vrot.slane %v9250, 2
      %v9252 = vadd.f32 %v9250, %v9251
      %v9253 = vrot.slane %v9252, 1
      %v9254 = vadd.f32 %v9252, %v9253
      %v9255 = vadd.f32 %v8978, %v9010
      %v9256 = vadd.f32 %v9255, %v9042
      %v9257 = vadd.f32 %v9256, %v9074
      %v9258 = vadd.f32 %v9257, %v9106
      %v9259 = vrot.slane %v9258, 4
      %v9260 = vadd.f32 %v9258, %v9259
      %v9261 = vrot.slane %v9260, 2
      %v9262 = vadd.f32 %v9260, %v9261
      %v9263 = vrot.slane %v9262, 1
      %v9264 = vadd.f32 %v9262, %v9263
      %v9265 = vadd.f32 %v8979, %v9011
      %v9266 = vadd.f32 %v9265, %v9043
      %v9267 = vadd.f32 %v9266, %v9075
      %v9268 = vadd.f32 %v9267, %v9107
      %v9269 = vrot.slane %v9268, 4
      %v9270 = vadd.f32 %v9268, %v9269
      %v9271 = vrot.slane %v9270, 2
      %v9272 = vadd.f32 %v9270, %v9271
      %v9273 = vrot.slane %v9272, 1
      %v9274 = vadd.f32 %v9272, %v9273
      %v9275 = vadd.f32 %v8980, %v9012
      %v9276 = vadd.f32 %v9275, %v9044
      %v9277 = vadd.f32 %v9276, %v9076
      %v9278 = vadd.f32 %v9277, %v9108
      %v9279 = vrot.slane %v9278, 4
      %v9280 = vadd.f32 %v9278, %v9279
      %v9281 = vrot.slane %v9280, 2
      %v9282 = vadd.f32 %v9280, %v9281
      %v9283 = vrot.slane %v9282, 1
      %v9284 = vadd.f32 %v9282, %v9283
      %v9285 = vadd.f32 %v8981, %v9013
      %v9286 = vadd.f32 %v9285, %v9045
      %v9287 = vadd.f32 %v9286, %v9077
      %v9288 = vadd.f32 %v9287, %v9109
      %v9289 = vrot.slane %v9288, 4
      %v9290 = vadd.f32 %v9288, %v9289
      %v9291 = vrot.slane %v9290, 2
      %v9292 = vadd.f32 %v9290, %v9291
      %v9293 = vrot.slane %v9292, 1
      %v9294 = vadd.f32 %v9292, %v9293
      %v9295 = vadd.f32 %v8982, %v9014
      %v9296 = vadd.f32 %v9295, %v9046
      %v9297 = vadd.f32 %v9296, %v9078
      %v9298 = vadd.f32 %v9297, %v9110
      %v9299 = vrot.slane %v9298, 4
      %v9300 = vadd.f32 %v9298, %v9299
      %v9301 = vrot.slane %v9300, 2
      %v9302 = vadd.f32 %v9300, %v9301
      %v9303 = vrot.slane %v9302, 1
      %v9304 = vadd.f32 %v9302, %v9303
      %v9305 = vadd.f32 %v8983, %v9015
      %v9306 = vadd.f32 %v9305, %v9047
      %v9307 = vadd.f32 %v9306, %v9079
      %v9308 = vadd.f32 %v9307, %v9111
      %v9309 = vrot.slane %v9308, 4
      %v9310 = vadd.f32 %v9308, %v9309
      %v9311 = vrot.slane %v9310, 2
      %v9312 = vadd.f32 %v9310, %v9311
      %v9313 = vrot.slane %v9312, 1
      %v9314 = vadd.f32 %v9312, %v9313
      %v9315 = vadd.f32 %v8984, %v9016
      %v9316 = vadd.f32 %v9315, %v9048
      %v9317 = vadd.f32 %v9316, %v9080
      %v9318 = vadd.f32 %v9317, %v9112
      %v9319 = vrot.slane %v9318, 4
      %v9320 = vadd.f32 %v9318, %v9319
      %v9321 = vrot.slane %v9320, 2
      %v9322 = vadd.f32 %v9320, %v9321
      %v9323 = vrot.slane %v9322, 1
      %v9324 = vadd.f32 %v9322, %v9323
      %v9325 = vadd.f32 %v8985, %v9017
      %v9326 = vadd.f32 %v9325, %v9049
      %v9327 = vadd.f32 %v9326, %v9081
      %v9328 = vadd.f32 %v9327, %v9113
      %v9329 = vrot.slane %v9328, 4
      %v9330 = vadd.f32 %v9328, %v9329
      %v9331 = vrot.slane %v9330, 2
      %v9332 = vadd.f32 %v9330, %v9331
      %v9333 = vrot.slane %v9332, 1
      %v9334 = vadd.f32 %v9332, %v9333
      %v9335 = vadd.f32 %v8986, %v9018
      %v9336 = vadd.f32 %v9335, %v9050
      %v9337 = vadd.f32 %v9336, %v9082
      %v9338 = vadd.f32 %v9337, %v9114
      %v9339 = vrot.slane %v9338, 4
      %v9340 = vadd.f32 %v9338, %v9339
      %v9341 = vrot.slane %v9340, 2
      %v9342 = vadd.f32 %v9340, %v9341
      %v9343 = vrot.slane %v9342, 1
      %v9344 = vadd.f32 %v9342, %v9343
      %v9345 = vadd.f32 %v8987, %v9019
      %v9346 = vadd.f32 %v9345, %v9051
      %v9347 = vadd.f32 %v9346, %v9083
      %v9348 = vadd.f32 %v9347, %v9115
      %v9349 = vrot.slane %v9348, 4
      %v9350 = vadd.f32 %v9348, %v9349
      %v9351 = vrot.slane %v9350, 2
      %v9352 = vadd.f32 %v9350, %v9351
      %v9353 = vrot.slane %v9352, 1
      %v9354 = vadd.f32 %v9352, %v9353
      %v9355 = vadd.f32 %v8988, %v9020
      %v9356 = vadd.f32 %v9355, %v9052
      %v9357 = vadd.f32 %v9356, %v9084
      %v9358 = vadd.f32 %v9357, %v9116
      %v9359 = vrot.slane %v9358, 4
      %v9360 = vadd.f32 %v9358, %v9359
      %v9361 = vrot.slane %v9360, 2
      %v9362 = vadd.f32 %v9360, %v9361
      %v9363 = vrot.slane %v9362, 1
      %v9364 = vadd.f32 %v9362, %v9363
      %v9365 = vadd.f32 %v8989, %v9021
      %v9366 = vadd.f32 %v9365, %v9053
      %v9367 = vadd.f32 %v9366, %v9085
      %v9368 = vadd.f32 %v9367, %v9117
      %v9369 = vrot.slane %v9368, 4
      %v9370 = vadd.f32 %v9368, %v9369
      %v9371 = vrot.slane %v9370, 2
      %v9372 = vadd.f32 %v9370, %v9371
      %v9373 = vrot.slane %v9372, 1
      %v9374 = vadd.f32 %v9372, %v9373
      %v9375 = vadd.f32 %v8990, %v9022
      %v9376 = vadd.f32 %v9375, %v9054
      %v9377 = vadd.f32 %v9376, %v9086
      %v9378 = vadd.f32 %v9377, %v9118
      %v9379 = vrot.slane %v9378, 4
      %v9380 = vadd.f32 %v9378, %v9379
      %v9381 = vrot.slane %v9380, 2
      %v9382 = vadd.f32 %v9380, %v9381
      %v9383 = vrot.slane %v9382, 1
      %v9384 = vadd.f32 %v9382, %v9383
      %v9385 = vadd.f32 %v8991, %v9023
      %v9386 = vadd.f32 %v9385, %v9055
      %v9387 = vadd.f32 %v9386, %v9087
      %v9388 = vadd.f32 %v9387, %v9119
      %v9389 = vrot.slane %v9388, 4
      %v9390 = vadd.f32 %v9388, %v9389
      %v9391 = vrot.slane %v9390, 2
      %v9392 = vadd.f32 %v9390, %v9391
      %v9393 = vrot.slane %v9392, 1
      %v9394 = vadd.f32 %v9392, %v9393
      %v9395 = vadd.f32 %v8992, %v9024
      %v9396 = vadd.f32 %v9395, %v9056
      %v9397 = vadd.f32 %v9396, %v9088
      %v9398 = vadd.f32 %v9397, %v9120
      %v9399 = vrot.slane %v9398, 4
      %v9400 = vadd.f32 %v9398, %v9399
      %v9401 = vrot.slane %v9400, 2
      %v9402 = vadd.f32 %v9400, %v9401
      %v9403 = vrot.slane %v9402, 1
      %v9404 = vadd.f32 %v9402, %v9403
      %v9405 = vadd.f32 %v8993, %v9025
      %v9406 = vadd.f32 %v9405, %v9057
      %v9407 = vadd.f32 %v9406, %v9089
      %v9408 = vadd.f32 %v9407, %v9121
      %v9409 = vrot.slane %v9408, 4
      %v9410 = vadd.f32 %v9408, %v9409
      %v9411 = vrot.slane %v9410, 2
      %v9412 = vadd.f32 %v9410, %v9411
      %v9413 = vrot.slane %v9412, 1
      %v9414 = vadd.f32 %v9412, %v9413
      %v9415 = vadd.f32 %v8994, %v9026
      %v9416 = vadd.f32 %v9415, %v9058
      %v9417 = vadd.f32 %v9416, %v9090
      %v9418 = vadd.f32 %v9417, %v9122
      %v9419 = vrot.slane %v9418, 4
      %v9420 = vadd.f32 %v9418, %v9419
      %v9421 = vrot.slane %v9420, 2
      %v9422 = vadd.f32 %v9420, %v9421
      %v9423 = vrot.slane %v9422, 1
      %v9424 = vadd.f32 %v9422, %v9423
      %v9425 = vadd.f32 %v8995, %v9027
      %v9426 = vadd.f32 %v9425, %v9059
      %v9427 = vadd.f32 %v9426, %v9091
      %v9428 = vadd.f32 %v9427, %v9123
      %v9429 = vrot.slane %v9428, 4
      %v9430 = vadd.f32 %v9428, %v9429
      %v9431 = vrot.slane %v9430, 2
      %v9432 = vadd.f32 %v9430, %v9431
      %v9433 = vrot.slane %v9432, 1
      %v9434 = vadd.f32 %v9432, %v9433
      %v9435 = vadd.f32 %v8996, %v9028
      %v9436 = vadd.f32 %v9435, %v9060
      %v9437 = vadd.f32 %v9436, %v9092
      %v9438 = vadd.f32 %v9437, %v9124
      %v9439 = vrot.slane %v9438, 4
      %v9440 = vadd.f32 %v9438, %v9439
      %v9441 = vrot.slane %v9440, 2
      %v9442 = vadd.f32 %v9440, %v9441
      %v9443 = vrot.slane %v9442, 1
      %v9444 = vadd.f32 %v9442, %v9443
      %v9477 = vcombine.low %v9134, %v9144
      %v9478 = vcombine.low %v9154, %v9164
      %v9479 = vcombine.low %v9174, %v9184
      %v9480 = vcombine.low %v9194, %v9204
      %v9482 = vunpack.c.l.s4 1966171168
      %v9483 = vunpack.c.0.s8 %v9482
      %v9484 = vlaneseq
      %v9485 = vshrl.u32 %v9484, 7
      %v9486 = vsub.s32 %v9483, %v9485
      %v9487 = vrot.slane %v9477, %v9486
      %v9489 = vunpack.c.l.s4 1966171168
      %v9490 = vunpack.c.0.s8 %v9489
      %v9491 = vlaneseq
      %v9492 = vshrl.u32 %v9491, 7
      %v9493 = vsub.s32 %v9490, %v9492
      %v9494 = vrot.slane %v9478, %v9493
      %v9496 = vunpack.c.l.s4 1966171168
      %v9497 = vunpack.c.0.s8 %v9496
      %v9498 = vlaneseq
      %v9499 = vshrl.u32 %v9498, 7
      %v9500 = vsub.s32 %v9497, %v9499
      %v9501 = vrot.slane %v9479, %v9500
      %v9503 = vunpack.c.l.s4 1966171168
      %v9504 = vunpack.c.0.s8 %v9503
      %v9505 = vlaneseq
      %v9506 = vshrl.u32 %v9505, 7
      %v9507 = vsub.s32 %v9504, %v9506
      %v9508 = vrot.slane %v9480, %v9507
      %v9509 = vcombine.low %v9487, %v9494
      %v9510 = vcombine.low %v9501, %v9508
      %v9512 = vunpack.c.l.s4 1966171168
      %v9513 = vunpack.c.0.s8 %v9512
      %v9514 = vlaneseq
      %v9515 = vshrl.u32 %v9514, 7
      %v9516 = vsub.s32 %v9513, %v9515
      %v9517 = vrot.slane %v9509, %v9516
      %v9519 = vunpack.c.l.s4 1966171168
      %v9520 = vunpack.c.0.s8 %v9519
      %v9521 = vlaneseq
      %v9522 = vshrl.u32 %v9521, 7
      %v9523 = vsub.s32 %v9520, %v9522
      %v9524 = vrot.slane %v9510, %v9523
      %v9525 = vcombine.low %v9517, %v9524
      %v9526 = vcombine.low %v9214, %v9224
      %v9527 = vcombine.low %v9234, %v9244
      %v9528 = vcombine.low %v9254, %v9264
      %v9529 = vcombine.low %v9274, %v9284
      %v9531 = vunpack.c.l.s4 1966171168
      %v9532 = vunpack.c.0.s8 %v9531
      %v9533 = vlaneseq
      %v9534 = vshrl.u32 %v9533, 7
      %v9535 = vsub.s32 %v9532, %v9534
      %v9536 = vrot.slane %v9526, %v9535
      %v9538 = vunpack.c.l.s4 1966171168
      %v9539 = vunpack.c.0.s8 %v9538
      %v9540 = vlaneseq
      %v9541 = vshrl.u32 %v9540, 7
      %v9542 = vsub.s32 %v9539, %v9541
      %v9543 = vrot.slane %v9527, %v9542
      %v9545 = vunpack.c.l.s4 1966171168
      %v9546 = vunpack.c.0.s8 %v9545
      %v9547 = vlaneseq
      %v9548 = vshrl.u32 %v9547, 7
      %v9549 = vsub.s32 %v9546, %v9548
      %v9550 = vrot.slane %v9528, %v9549
      %v9552 = vunpack.c.l.s4 1966171168
      %v9553 = vunpack.c.0.s8 %v9552
      %v9554 = vlaneseq
      %v9555 = vshrl.u32 %v9554, 7
      %v9556 = vsub.s32 %v9553, %v9555
      %v9557 = vrot.slane %v9529, %v9556
      %v9558 = vcombine.low %v9536, %v9543
      %v9559 = vcombine.low %v9550, %v9557
      %v9561 = vunpack.c.l.s4 1966171168
      %v9562 = vunpack.c.0.s8 %v9561
      %v9563 = vlaneseq
      %v9564 = vshrl.u32 %v9563, 7
      %v9565 = vsub.s32 %v9562, %v9564
      %v9566 = vrot.slane %v9558, %v9565
      %v9568 = vunpack.c.l.s4 1966171168
      %v9569 = vunpack.c.0.s8 %v9568
      %v9570 = vlaneseq
      %v9571 = vshrl.u32 %v9570, 7
      %v9572 = vsub.s32 %v9569, %v9571
      %v9573 = vrot.slane %v9559, %v9572
      %v9574 = vcombine.low %v9566, %v9573
      %v9575 = vcombine.low %v9294, %v9304
      %v9576 = vcombine.low %v9314, %v9324
      %v9577 = vcombine.low %v9334, %v9344
      %v9578 = vcombine.low %v9354, %v9364
      %v9580 = vunpack.c.l.s4 1966171168
      %v9581 = vunpack.c.0.s8 %v9580
      %v9582 = vlaneseq
      %v9583 = vshrl.u32 %v9582, 7
      %v9584 = vsub.s32 %v9581, %v9583
      %v9585 = vrot.slane %v9575, %v9584
      %v9587 = vunpack.c.l.s4 1966171168
      %v9588 = vunpack.c.0.s8 %v9587
      %v9589 = vlaneseq
      %v9590 = vshrl.u32 %v9589, 7
      %v9591 = vsub.s32 %v9588, %v9590
      %v9592 = vrot.slane %v9576, %v9591
      %v9594 = vunpack.c.l.s4 1966171168
      %v9595 = vunpack.c.0.s8 %v9594
      %v9596 = vlaneseq
      %v9597 = vshrl.u32 %v9596, 7
      %v9598 = vsub.s32 %v9595, %v9597
      %v9599 = vrot.slane %v9577, %v9598
      %v9601 = vunpack.c.l.s4 1966171168
      %v9602 = vunpack.c.0.s8 %v9601
      %v9603 = vlaneseq
      %v9604 = vshrl.u32 %v9603, 7
      %v9605 = vsub.s32 %v9602, %v9604
      %v9606 = vrot.slane %v9578, %v9605
      %v9607 = vcombine.low %v9585, %v9592
      %v9608 = vcombine.low %v9599, %v9606
      %v9610 = vunpack.c.l.s4 1966171168
      %v9611 = vunpack.c.0.s8 %v9610
      %v9612 = vlaneseq
      %v9613 = vshrl.u32 %v9612, 7
      %v9614 = vsub.s32 %v9611, %v9613
      %v9615 = vrot.slane %v9607, %v9614
      %v9617 = vunpack.c.l.s4 1966171168
      %v9618 = vunpack.c.0.s8 %v9617
      %v9619 = vlaneseq
      %v9620 = vshrl.u32 %v9619, 7
      %v9621 = vsub.s32 %v9618, %v9620
      %v9622 = vrot.slane %v9608, %v9621
      %v9623 = vcombine.low %v9615, %v9622
      %v9624 = vcombine.low %v9374, %v9384
      %v9625 = vcombine.low %v9394, %v9404
      %v9626 = vcombine.low %v9414, %v9424
      %v9627 = vcombine.low %v9434, %v9444
      %v9629 = vunpack.c.l.s4 1966171168
      %v9630 = vunpack.c.0.s8 %v9629
      %v9631 = vlaneseq
      %v9632 = vshrl.u32 %v9631, 7
      %v9633 = vsub.s32 %v9630, %v9632
      %v9634 = vrot.slane %v9624, %v9633
      %v9636 = vunpack.c.l.s4 1966171168
      %v9637 = vunpack.c.0.s8 %v9636
      %v9638 = vlaneseq
      %v9639 = vshrl.u32 %v9638, 7
      %v9640 = vsub.s32 %v9637, %v9639
      %v9641 = vrot.slane %v9625, %v9640
      %v9643 = vunpack.c.l.s4 1966171168
      %v9644 = vunpack.c.0.s8 %v9643
      %v9645 = vlaneseq
      %v9646 = vshrl.u32 %v9645, 7
      %v9647 = vsub.s32 %v9644, %v9646
      %v9648 = vrot.slane %v9626, %v9647
      %v9650 = vunpack.c.l.s4 1966171168
      %v9651 = vunpack.c.0.s8 %v9650
      %v9652 = vlaneseq
      %v9653 = vshrl.u32 %v9652, 7
      %v9654 = vsub.s32 %v9651, %v9653
      %v9655 = vrot.slane %v9627, %v9654
      %v9656 = vcombine.low %v9634, %v9641
      %v9657 = vcombine.low %v9648, %v9655
      %v9659 = vunpack.c.l.s4 1966171168
      %v9660 = vunpack.c.0.s8 %v9659
      %v9661 = vlaneseq
      %v9662 = vshrl.u32 %v9661, 7
      %v9663 = vsub.s32 %v9660, %v9662
      %v9664 = vrot.slane %v9656, %v9663
      %v9666 = vunpack.c.l.s4 1966171168
      %v9667 = vunpack.c.0.s8 %v9666
      %v9668 = vlaneseq
      %v9669 = vshrl.u32 %v9668, 7
      %v9670 = vsub.s32 %v9667, %v9669
      %v9671 = vrot.slane %v9657, %v9670
      %v9672 = vcombine.low %v9664, %v9671
      %9677 = vst [vmem:[%s213] sm:$0xff] %v9525
      %9678 = vst [vmem:[%s213 + $0x8] sm:$0xff] %v9574
      %9679 = vst [vmem:[%s213 + $0x10] sm:$0xff] %v9623
      %9680 = vst [vmem:[%s213 + $0x18] sm:$0xff] %v9672
      %s9681 = smul.u32 32, %s15
      %p9682 = scmp.lt.s32.totalorder %s9681, 63
      %s9683 = scalar_select %p9682, %s9681, 63
      %s9684 = scalar_lea.vmem %s4, %s9683
      // Predicated region
      $region37: #{biasmf_forward.1} parent=35 // pred_check
        %p9685 = pneg %p127
      $region38: #{biasmf_forward.1} parent=35 // pred_check_branch
        %9687 = sbr.rel (%p9685) target = $region40
      $region39: #{biasmf_forward.1} parent=35 // pred_region
        %s9688 = smul.u32 32, %s15
      $region40: #{biasmf_forward.1} parent=35 // pred_fallthru
        _
    $region36: #{biasmf_forward.1} parent=5 // pred_fallthru
      _
    %p9689 = scmp.le.s32.totalorder 2, %s10
    // Predicated region
    $region41: #{biasmf_forward.1} parent=5 // pred_check
      %p9690 = pneg %p9689
    $region42: #{biasmf_forward.1} parent=5 // pred_check_branch
      %9692 = sbr.rel (%p9690) target = $region44
    $region43: #{biasmf_forward.1} parent=5 // pred_region
      %s9693 = ssub.s32 %s10, 2
      // Predicated region
      $region45: #{biasmf_forward.1} parent=43 // pred_check
        %p9694 = pneg %p133
      $region46: #{biasmf_forward.1} parent=43 // pred_check_branch
        %9696 = sbr.rel (%p9694) target = $region48
      $region47: #{biasmf_forward.1} parent=43 // pred_region
        %s9697 = smul.u32 32, %s16
        %p9698 = scmp.lt.s32.totalorder %s9697, 63
        %s9699 = scalar_select %p9698, %s9697, 63
        %s9700 = scalar_lea.vmem %s4, %s9699
      $region48: #{biasmf_forward.1} parent=43 // pred_fallthru
        _
    $region44: #{biasmf_forward.1} parent=5 // pred_fallthru
      _
  $region6: #{biasmf_forward.1} parent=0 // loop_footer
    %s14 = sadd.s32 1, %s10
  $region7: #{biasmf_forward.1} parent=0 // loop_footer_branch
    %9 = sbr.rel target = $region3
  $region8: #{biasmf_forward.1} parent=0 // loop_exit
    _

</llo_original>
